<compile_context>
chip_gen: v7x
topology: tpu7x:2x2x1
jax: 0.10.0
libtpu: 0.0.40
codegen_flags: <defaults>
</compile_context>

<pallas_src>
import math

import jax
import jax.numpy as jnp
from jax.experimental import pallas as pl
from jax.experimental.pallas import tpu as pltpu

# ----- model hyperparameters (from the PyTorch script) -----
IMAGE_SIZE = 28
PATCH_SIZE = 7
HIDDEN_DIM = 64
NUM_HEADS = 4
NUM_LAYERS = 4
NUM_CLASSES = 10
DIM_FF = 2048          # nn.TransformerEncoderLayer default dim_feedforward
LN_EPS = 1e-5

NUM_PATCHES = (IMAGE_SIZE // PATCH_SIZE) ** 2      # 16
PATCH_DIM = PATCH_SIZE * PATCH_SIZE                # 49 (in_channels = 1)
PAD_PATCH_DIM = 64                                 # zero-padded patch dim
HEAD_DIM = HIDDEN_DIM // NUM_HEADS                 # 16
PAD_CLASSES = 128                                  # lane-dense logits store
MAX_TB = 32                                        # batch-tile rows (TBN=512)


# --------------------------------------------------------------------------
# helpers
# --------------------------------------------------------------------------
def _layer_norm(x, gamma, beta):
    mu = jnp.mean(x, axis=-1, keepdims=True)
    var = jnp.mean((x - mu) ** 2, axis=-1, keepdims=True)
    return (x - mu) * jax.lax.rsqrt(var + LN_EPS) * gamma + beta


# --------------------------------------------------------------------------
# fused ViT forward kernel
#   grid = (num_batch_tiles, NUM_LAYERS)
#   * all layer weights are resident [L, ...] VMEM blocks (constant index_map)
#   * activations live in x_scr across layer steps of one batch tile
# --------------------------------------------------------------------------
def fused_vit_kernel(patches_ref, pw_ref, pb_ref,
                     wqkv_ref, bqkv_ref, wo_ref, bo_ref,
                     g1_ref, beta1_ref, w1_ref, bf1_ref, w2_ref, bf2_ref,
                     g2_ref, beta2_ref, clsw_ref, clsb_ref,
                     out_ref, x_scr):
    layer = pl.program_id(1)
    D = HIDDEN_DIM
    dh = HEAD_DIM
    N = NUM_PATCHES
    TBN = x_scr.shape[0]                 # TB * NUM_PATCHES
    TB = TBN // N

    # ---- layer 0: patch embedding (Conv2d(1,D,7,7) as a matmul) ----
    @pl.when(layer == 0)
    def _():
        pt = patches_ref[...].reshape(TBN, PAD_PATCH_DIM)        # bf16
        x_scr[...] = (jnp.dot(pt, pw_ref[...],
                              preferred_element_type=jnp.float32)
                      + pb_ref[...])

    x = x_scr[...]                                               # [TBN, D] f32

    # ---- select this layer's weights (all layers resident in VMEM) ----
    wqkv = wqkv_ref[layer]               # [D, 3D] bf16 (Q cols pre-scaled)
    bqkv = bqkv_ref[layer]               # [1, 3D] f32
    wo = wo_ref[layer]                   # [D, D]  bf16
    bo = bo_ref[layer]                   # [1, D]  f32
    g1 = g1_ref[layer]
    beta1 = beta1_ref[layer]
    w1 = w1_ref[layer]                   # [D, F]  bf16
    bf1 = bf1_ref[layer]                 # [1, F]  f32
    w2 = w2_ref[layer]                   # [F, D]  bf16
    bf2 = bf2_ref[layer]                 # [1, D]  f32
    g2 = g2_ref[layer]
    beta2 = beta2_ref[layer]

    # ---- multi-head self-attention (post-norm, PyTorch norm_first=False) ----
    qkv = (jnp.dot(x.astype(jnp.bfloat16), wqkv,
                   preferred_element_type=jnp.float32)
           + bqkv)                                               # [TBN, 3D] f32
    # cast once so every MXU operand below is bf16 (single-pass MXU)
    qkv3 = qkv.reshape(TB, N, 3 * D).astype(jnp.bfloat16)

    attn = jnp.zeros((TBN, D), jnp.float32)
    for h in range(NUM_HEADS):                                   # static unroll
        lo = h * dh
        qh = qkv3[:, :, lo:lo + dh]                              # [TB, N, dh]
        kh = qkv3[:, :, D + lo:D + lo + dh]
        vh = qkv3[:, :, 2 * D + lo:2 * D + lo + dh]

        s = jnp.einsum("bqd,bkd->bqk", qh, kh,
                       preferred_element_type=jnp.float32)       # [TB, N, N]
        s = s - jnp.max(s, axis=-1, keepdims=True)
        p = jnp.exp(s)
        p = p * pl.reciprocal(jnp.sum(p, axis=-1, keepdims=True), approx=True)
        oh = jnp.einsum("bqk,bkd->bqd", p.astype(jnp.bfloat16), vh,
                        preferred_element_type=jnp.float32)      # [TB, N, dh]
        # fold the output projection per head (no lane concat needed)
        attn = attn + jnp.dot(oh.reshape(TBN, dh).astype(jnp.bfloat16),
                              wo[lo:lo + dh, :],
                              preferred_element_type=jnp.float32)
    attn = attn + bo

    # residual + LayerNorm
    x = _layer_norm(x + attn, g1, beta1)

    # ---- feed-forward: single un-chunked Linear -> ReLU -> Linear ----
    h1 = (jnp.dot(x.astype(jnp.bfloat16), w1,
                  preferred_element_type=jnp.float32)
          + bf1)                                                 # [TBN, 2048]
    h1 = jnp.maximum(h1, 0.0)
    ff = (jnp.dot(h1.astype(jnp.bfloat16), w2,
                  preferred_element_type=jnp.float32)
          + bf2)                                                 # [TBN, D]

    x = _layer_norm(x + ff, g2, beta2)
    x_scr[...] = x

    # ---- last layer: mean over sequence + classifier head ----
    @pl.when(layer == pl.num_programs(1) - 1)
    def _():
        pooled = jnp.mean(x.reshape(TB, N, D), axis=1)           # [TB, D]
        out_ref[...] = (jnp.dot(pooled.astype(jnp.bfloat16), clsw_ref[...],
                                preferred_element_type=jnp.float32)
                        + clsb_ref[...])


# --------------------------------------------------------------------------
# Parameter construction (deterministic, in-script)
# --------------------------------------------------------------------------
def init_params(key):
    def normal(k, shape, scale=0.02):
        return scale * jax.random.normal(k, shape, dtype=jnp.float32)

    ks = jax.random.split(key, 6)
    L, D, F = NUM_LAYERS, HIDDEN_DIM, DIM_FF

    # Conv2d(1, D, k=7, s=7) == Linear(49 -> D); rows padded 49->64 with zeros.
    patch_w = jnp.pad(normal(ks[0], (PATCH_DIM, D)),
                      ((0, PAD_PATCH_DIM - PATCH_DIM), (0, 0)))
    # classifier columns padded 10 -> 128 for a lane-dense output store
    cls_w = jnp.pad(normal(ks[1], (D, NUM_CLASSES)),
                    ((0, 0), (0, PAD_CLASSES - NUM_CLASSES)))

    # fold 1/sqrt(head_dim) into the Q third of the in-projection (constant
    # fold; the Q bias would need the same scale if it were nonzero)
    wqkv = normal(ks[2], (L, D, 3 * D))
    q_scale = jnp.concatenate([
        jnp.full((D,), 1.0 / math.sqrt(HEAD_DIM), jnp.float32),
        jnp.ones((2 * D,), jnp.float32)])
    wqkv = wqkv * q_scale

    return {
        "patch_w": patch_w.astype(jnp.bfloat16),
        "patch_b": jnp.zeros((1, D), jnp.float32),
        "cls_w":   cls_w.astype(jnp.bfloat16),
        "cls_b":   jnp.zeros((1, PAD_CLASSES), jnp.float32),
        # per-layer weights stacked on a leading [NUM_LAYERS, ...] axis,
        # pre-transposed so the kernel computes x @ W + b; MXU operands bf16.
        "wqkv":  wqkv.astype(jnp.bfloat16),
        "bqkv":  jnp.zeros((L, 1, 3 * D), jnp.float32),
        "wo":    normal(ks[3], (L, D, D)).astype(jnp.bfloat16),
        "bo":    jnp.zeros((L, 1, D), jnp.float32),
        "g1":    jnp.ones((L, 1, D), jnp.float32),
        "beta1": jnp.zeros((L, 1, D), jnp.float32),
        "w1":    normal(ks[4], (L, D, F)).astype(jnp.bfloat16),
        "bf1":   jnp.zeros((L, 1, F), jnp.float32),
        "w2":    normal(ks[5], (L, F, D)).astype(jnp.bfloat16),
        "bf2":   jnp.zeros((L, 1, D), jnp.float32),
        "g2":    jnp.ones((L, 1, D), jnp.float32),
        "beta2": jnp.zeros((L, 1, D), jnp.float32),
    }


# --------------------------------------------------------------------------
# Forward pass wrapper (single fused pallas_call)
# --------------------------------------------------------------------------
def vit_forward(x_nchw, params):
    B = x_nchw.shape[0]
    g = IMAGE_SIZE // PATCH_SIZE

    # Patch extraction (glue): NCHW -> [B, N, P] with (c, ph, pw) flattening,
    # patches ordered row-major (matches Conv2d + 'b c h w -> b (h w) c').
    # NOTE: the reference ViT has no positional embedding / CLS token.
    patches = x_nchw.reshape(B, 1, g, PATCH_SIZE, g, PATCH_SIZE)
    patches = patches.transpose(0, 2, 4, 1, 3, 5).reshape(B, NUM_PATCHES, PATCH_DIM)
    patches = jnp.pad(patches.astype(jnp.float32),
                      ((0, 0), (0, 0), (0, PAD_PATCH_DIM - PATCH_DIM)))
    patches = patches.astype(jnp.bfloat16)        # halves the input DMA

    # batch tiling: TB multiple of 8 (TBN multiple of 128), up to MAX_TB;
    # pad B to a whole number of tiles (padded rows are sliced off below).
    TB = min(MAX_TB, ((max(B, 8) + 7) // 8) * 8)
    B_pad = ((B + TB - 1) // TB) * TB
    if B_pad != B:
        patches = jnp.pad(patches, ((0, B_pad - B), (0, 0), (0, 0)))
    GB = B_pad // TB

    D, F, L = HIDDEN_DIM, DIM_FF, NUM_LAYERS
    const2 = lambda b, l: (0, 0)
    const3 = lambda b, l: (0, 0, 0)

    in_specs = [
        pl.BlockSpec((TB, NUM_PATCHES, PAD_PATCH_DIM), lambda b, l: (b, 0, 0)),
        pl.BlockSpec((PAD_PATCH_DIM, D), const2),    # patch_w
        pl.BlockSpec((1, D), const2),                # patch_b
        # all-layer resident weight blocks (fetched once, constant index_map)
        pl.BlockSpec((L, D, 3 * D), const3),         # wqkv
        pl.BlockSpec((L, 1, 3 * D), const3),         # bqkv
        pl.BlockSpec((L, D, D), const3),             # wo
        pl.BlockSpec((L, 1, D), const3),             # bo
        pl.BlockSpec((L, 1, D), const3),             # g1
        pl.BlockSpec((L, 1, D), const3),             # beta1
        pl.BlockSpec((L, D, F), const3),             # w1
        pl.BlockSpec((L, 1, F), const3),             # bf1
        pl.BlockSpec((L, F, D), const3),             # w2
        pl.BlockSpec((L, 1, D), const3),             # bf2
        pl.BlockSpec((L, 1, D), const3),             # g2
        pl.BlockSpec((L, 1, D), const3),             # beta2
        pl.BlockSpec((D, PAD_CLASSES), const2),      # cls_w
        pl.BlockSpec((1, PAD_CLASSES), const2),      # cls_b
    ]
    out_spec = pl.BlockSpec((TB, PAD_CLASSES), lambda b, l: (b, 0))

    logits = pl.pallas_call(
        fused_vit_kernel,
        out_shape=jax.ShapeDtypeStruct((B_pad, PAD_CLASSES), jnp.float32),
        grid=(GB, NUM_LAYERS),
        in_specs=in_specs,
        out_specs=out_spec,
        scratch_shapes=[pltpu.VMEM((TB * NUM_PATCHES, HIDDEN_DIM), jnp.float32)],
        compiler_params=pltpu.CompilerParams(
            dimension_semantics=("parallel", "arbitrary"),
            vmem_limit_bytes=32 * 1024 * 1024,
        ),
    )(patches,
      params["patch_w"], params["patch_b"],
      params["wqkv"], params["bqkv"], params["wo"], params["bo"],
      params["g1"], params["beta1"],
      params["w1"], params["bf1"], params["w2"], params["bf2"],
      params["g2"], params["beta2"],
      params["cls_w"], params["cls_b"])

    return logits[:B, :NUM_CLASSES]


# --------------------------------------------------------------------------
if __name__ == "__main__":
    key = jax.random.PRNGKey(0)
    k_params, k_input = jax.random.split(key)

    params = init_params(k_params)
    x = jax.random.normal(k_input, (2, 1, IMAGE_SIZE, IMAGE_SIZE), dtype=jnp.float32)

    logits = jax.jit(vit_forward)(x, params)
    logits = jax.block_until_ready(logits)

    assert logits.shape == (2, NUM_CLASSES)
    assert bool(jnp.all(jnp.isfinite(logits)))
    print("KERNEL_OK")
</pallas_src>

<mosaic_0001>
module attributes {stable_mosaic.version = 11 : i64} {
  func.func @fused_vit_kernel(%arg0: i32, %arg1: i32, %arg2: memref<8x16x64xbf16, #tpu.memory_space<vmem>>, %arg3: memref<64x64xbf16, #tpu.memory_space<vmem>>, %arg4: memref<1x64xf32, #tpu.memory_space<vmem>>, %arg5: memref<4x64x192xbf16, #tpu.memory_space<vmem>>, %arg6: memref<4x1x192xf32, #tpu.memory_space<vmem>>, %arg7: memref<4x64x64xbf16, #tpu.memory_space<vmem>>, %arg8: memref<4x1x64xf32, #tpu.memory_space<vmem>>, %arg9: memref<4x1x64xf32, #tpu.memory_space<vmem>>, %arg10: memref<4x1x64xf32, #tpu.memory_space<vmem>>, %arg11: memref<4x64x2048xbf16, #tpu.memory_space<vmem>>, %arg12: memref<4x1x2048xf32, #tpu.memory_space<vmem>>, %arg13: memref<4x2048x64xbf16, #tpu.memory_space<vmem>>, %arg14: memref<4x1x64xf32, #tpu.memory_space<vmem>>, %arg15: memref<4x1x64xf32, #tpu.memory_space<vmem>>, %arg16: memref<4x1x64xf32, #tpu.memory_space<vmem>>, %arg17: memref<64x128xbf16, #tpu.memory_space<vmem>>, %arg18: memref<1x128xf32, #tpu.memory_space<vmem>>, %arg19: memref<8x128xf32, #tpu.memory_space<vmem>>, %arg20: memref<128x64xf32, #tpu.memory_space<vmem>>) attributes {dimension_semantics = [#tpu.dimension_semantics<parallel>, #tpu.dimension_semantics<arbitrary>], iteration_bounds = array<i64: 1, 4>, scalar_prefetch = 0 : i64, scratch_operands = 1 : i64, tpu.core_type = #tpu.core_type<tc>, window_params = [{transform_indices = @transform_0, window_bounds = array<i64: 8, 16, 64>}, {pipeline_mode = #tpu.pipeline_mode<synchronous>, transform_indices = @transform_1, window_bounds = array<i64: 64, 64>}, {pipeline_mode = #tpu.pipeline_mode<synchronous>, transform_indices = @transform_2, window_bounds = array<i64: 1, 64>}, {pipeline_mode = #tpu.pipeline_mode<synchronous>, transform_indices = @transform_3, window_bounds = array<i64: 4, 64, 192>}, {pipeline_mode = #tpu.pipeline_mode<synchronous>, transform_indices = @transform_4, window_bounds = array<i64: 4, 1, 192>}, {pipeline_mode = #tpu.pipeline_mode<synchronous>, transform_indices = @transform_5, window_bounds = array<i64: 4, 64, 64>}, {pipeline_mode = #tpu.pipeline_mode<synchronous>, transform_indices = @transform_6, window_bounds = array<i64: 4, 1, 64>}, {pipeline_mode = #tpu.pipeline_mode<synchronous>, transform_indices = @transform_7, window_bounds = array<i64: 4, 1, 64>}, {pipeline_mode = #tpu.pipeline_mode<synchronous>, transform_indices = @transform_8, window_bounds = array<i64: 4, 1, 64>}, {pipeline_mode = #tpu.pipeline_mode<synchronous>, transform_indices = @transform_9, window_bounds = array<i64: 4, 64, 2048>}, {pipeline_mode = #tpu.pipeline_mode<synchronous>, transform_indices = @transform_10, window_bounds = array<i64: 4, 1, 2048>}, {pipeline_mode = #tpu.pipeline_mode<synchronous>, transform_indices = @transform_11, window_bounds = array<i64: 4, 2048, 64>}, {pipeline_mode = #tpu.pipeline_mode<synchronous>, transform_indices = @transform_12, window_bounds = array<i64: 4, 1, 64>}, {pipeline_mode = #tpu.pipeline_mode<synchronous>, transform_indices = @transform_13, window_bounds = array<i64: 4, 1, 64>}, {pipeline_mode = #tpu.pipeline_mode<synchronous>, transform_indices = @transform_14, window_bounds = array<i64: 4, 1, 64>}, {pipeline_mode = #tpu.pipeline_mode<synchronous>, transform_indices = @transform_15, window_bounds = array<i64: 64, 128>}, {pipeline_mode = #tpu.pipeline_mode<synchronous>, transform_indices = @transform_16, window_bounds = array<i64: 1, 128>}, {transform_indices = @transform_17, window_bounds = array<i64: 8, 128>}]} {
    %c0_i32 = arith.constant 0 : i32
    %0 = arith.cmpi eq, %arg1, %c0_i32 : i32
    %1 = arith.extui %0 : i1 to i32
    %c0_i32_0 = arith.constant 0 : i32
    %2 = arith.cmpi ne, %1, %c0_i32_0 : i32
    scf.if %2 {
      %c0_63 = arith.constant 0 : index
      %c0_64 = arith.constant 0 : index
      %c0_65 = arith.constant 0 : index
      %193 = vector.load %arg2[%c0_63, %c0_64, %c0_65] : memref<8x16x64xbf16, #tpu.memory_space<vmem>>, vector<8x16x64xbf16>
      %194 = vector.shape_cast %193 : vector<8x16x64xbf16> to vector<128x64xbf16>
      %c0_66 = arith.constant 0 : index
      %c0_67 = arith.constant 0 : index
      %195 = vector.load %arg3[%c0_66, %c0_67] : memref<64x64xbf16, #tpu.memory_space<vmem>>, vector<64x64xbf16>
      %cst_68 = arith.constant dense<0.000000e+00> : vector<128x64xf32>
      %196 = tpu.matmul %194, %195, %cst_68 {dimension_numbers = #tpu.dot_dimension_numbers<[1], [0], [0], [1], [0, 0, 1, 1], [], []>} : vector<128x64xbf16>, vector<64x64xbf16>, vector<128x64xf32> -> vector<128x64xf32>
      %c0_69 = arith.constant 0 : index
      %c0_70 = arith.constant 0 : index
      %197 = vector.load %arg4[%c0_69, %c0_70] : memref<1x64xf32, #tpu.memory_space<vmem>>, vector<1x64xf32>
      %198 = vector.broadcast %197 : vector<1x64xf32> to vector<128x64xf32>
      %199 = arith.addf %196, %198 : vector<128x64xf32>
      %c0_71 = arith.constant 0 : index
      %c0_72 = arith.constant 0 : index
      %200 = vector.load %arg20[%c0_71, %c0_72] : memref<128x64xf32, #tpu.memory_space<vmem>>, vector<128x64xf32>
      tpu.vector_store %arg20[%c0_71, %c0_72], %199 {strides = array<i32>} : memref<128x64xf32, #tpu.memory_space<vmem>>, vector<128x64xf32>,
    } else {
    }
    %c0 = arith.constant 0 : index
    %c0_1 = arith.constant 0 : index
    %3 = vector.load %arg20[%c0, %c0_1] : memref<128x64xf32, #tpu.memory_space<vmem>>, vector<128x64xf32>
    %4 = arith.index_cast %arg1 : i32 to index
    %c0_2 = arith.constant 0 : index
    %c0_3 = arith.constant 0 : index
    %5 = vector.load %arg5[%4, %c0_2, %c0_3] : memref<4x64x192xbf16, #tpu.memory_space<vmem>>, vector<1x64x192xbf16>
    %6 = vector.shape_cast %5 : vector<1x64x192xbf16> to vector<64x192xbf16>
    %7 = arith.index_cast %arg1 : i32 to index
    %c0_4 = arith.constant 0 : index
    %c0_5 = arith.constant 0 : index
    %8 = vector.load %arg6[%7, %c0_4, %c0_5] : memref<4x1x192xf32, #tpu.memory_space<vmem>>, vector<1x1x192xf32>
    %9 = vector.shape_cast %8 : vector<1x1x192xf32> to vector<1x192xf32>
    %10 = arith.index_cast %arg1 : i32 to index
    %c0_6 = arith.constant 0 : index
    %c0_7 = arith.constant 0 : index
    %11 = vector.load %arg7[%10, %c0_6, %c0_7] : memref<4x64x64xbf16, #tpu.memory_space<vmem>>, vector<1x64x64xbf16>
    %12 = vector.shape_cast %11 : vector<1x64x64xbf16> to vector<64x64xbf16>
    %13 = arith.index_cast %arg1 : i32 to index
    %c0_8 = arith.constant 0 : index
    %c0_9 = arith.constant 0 : index
    %14 = vector.load %arg8[%13, %c0_8, %c0_9] : memref<4x1x64xf32, #tpu.memory_space<vmem>>, vector<1x1x64xf32>
    %15 = vector.shape_cast %14 : vector<1x1x64xf32> to vector<1x64xf32>
    %16 = arith.index_cast %arg1 : i32 to index
    %c0_10 = arith.constant 0 : index
    %c0_11 = arith.constant 0 : index
    %17 = vector.load %arg9[%16, %c0_10, %c0_11] : memref<4x1x64xf32, #tpu.memory_space<vmem>>, vector<1x1x64xf32>
    %18 = vector.shape_cast %17 : vector<1x1x64xf32> to vector<1x64xf32>
    %19 = arith.index_cast %arg1 : i32 to index
    %c0_12 = arith.constant 0 : index
    %c0_13 = arith.constant 0 : index
    %20 = vector.load %arg10[%19, %c0_12, %c0_13] : memref<4x1x64xf32, #tpu.memory_space<vmem>>, vector<1x1x64xf32>
    %21 = vector.shape_cast %20 : vector<1x1x64xf32> to vector<1x64xf32>
    %22 = arith.index_cast %arg1 : i32 to index
    %c0_14 = arith.constant 0 : index
    %c0_15 = arith.constant 0 : index
    %23 = vector.load %arg11[%22, %c0_14, %c0_15] : memref<4x64x2048xbf16, #tpu.memory_space<vmem>>, vector<1x64x2048xbf16>
    %24 = vector.shape_cast %23 : vector<1x64x2048xbf16> to vector<64x2048xbf16>
    %25 = arith.index_cast %arg1 : i32 to index
    %c0_16 = arith.constant 0 : index
    %c0_17 = arith.constant 0 : index
    %26 = vector.load %arg12[%25, %c0_16, %c0_17] : memref<4x1x2048xf32, #tpu.memory_space<vmem>>, vector<1x1x2048xf32>
    %27 = vector.shape_cast %26 : vector<1x1x2048xf32> to vector<1x2048xf32>
    %28 = arith.index_cast %arg1 : i32 to index
    %c0_18 = arith.constant 0 : index
    %c0_19 = arith.constant 0 : index
    %29 = vector.load %arg13[%28, %c0_18, %c0_19] : memref<4x2048x64xbf16, #tpu.memory_space<vmem>>, vector<1x2048x64xbf16>
    %30 = vector.shape_cast %29 : vector<1x2048x64xbf16> to vector<2048x64xbf16>
    %31 = arith.index_cast %arg1 : i32 to index
    %c0_20 = arith.constant 0 : index
    %c0_21 = arith.constant 0 : index
    %32 = vector.load %arg14[%31, %c0_20, %c0_21] : memref<4x1x64xf32, #tpu.memory_space<vmem>>, vector<1x1x64xf32>
    %33 = vector.shape_cast %32 : vector<1x1x64xf32> to vector<1x64xf32>
    %34 = arith.index_cast %arg1 : i32 to index
    %c0_22 = arith.constant 0 : index
    %c0_23 = arith.constant 0 : index
    %35 = vector.load %arg15[%34, %c0_22, %c0_23] : memref<4x1x64xf32, #tpu.memory_space<vmem>>, vector<1x1x64xf32>
    %36 = vector.shape_cast %35 : vector<1x1x64xf32> to vector<1x64xf32>
    %37 = arith.index_cast %arg1 : i32 to index
    %c0_24 = arith.constant 0 : index
    %c0_25 = arith.constant 0 : index
    %38 = vector.load %arg16[%37, %c0_24, %c0_25] : memref<4x1x64xf32, #tpu.memory_space<vmem>>, vector<1x1x64xf32>
    %39 = vector.shape_cast %38 : vector<1x1x64xf32> to vector<1x64xf32>
    %40 = arith.truncf %3 : vector<128x64xf32> to vector<128x64xbf16>
    %cst = arith.constant dense<0.000000e+00> : vector<128x192xf32>
    %41 = tpu.matmul %40, %6, %cst {dimension_numbers = #tpu.dot_dimension_numbers<[1], [0], [0], [1], [0, 0, 1, 1], [], []>} : vector<128x64xbf16>, vector<64x192xbf16>, vector<128x192xf32> -> vector<128x192xf32>
    %42 = vector.broadcast %9 : vector<1x192xf32> to vector<128x192xf32>
    %43 = arith.addf %41, %42 : vector<128x192xf32>
    %44 = vector.shape_cast %43 : vector<128x192xf32> to vector<8x16x192xf32>
    %45 = arith.truncf %44 : vector<8x16x192xf32> to vector<8x16x192xbf16>
    %cst_26 = arith.constant 0.000000e+00 : f32
    %46 = vector.broadcast %cst_26 : f32 to vector<128x64xf32>
    %47 = vector.extract_strided_slice %45 {offsets = [0, 0, 0], sizes = [8, 16, 16], strides = [1, 1, 1]} : vector<8x16x192xbf16> to vector<8x16x16xbf16>
    %48 = vector.extract_strided_slice %45 {offsets = [0, 0, 64], sizes = [8, 16, 16], strides = [1, 1, 1]} : vector<8x16x192xbf16> to vector<8x16x16xbf16>
    %49 = vector.extract_strided_slice %45 {offsets = [0, 0, 128], sizes = [8, 16, 16], strides = [1, 1, 1]} : vector<8x16x192xbf16> to vector<8x16x16xbf16>
    "tpu.trace_start"() <{level = 10 : i32, message = "bqd,bkd->bqk"}> : () -> ()
    %cst_27 = arith.constant dense<0.000000e+00> : vector<8x16x16xf32>
    %50 = tpu.matmul %47, %48, %cst_27 {dimension_numbers = #tpu.dot_dimension_numbers<[2], [2], [1], [1], [0, 0, 0, 1, 1, 1], [0], [0]>} : vector<8x16x16xbf16>, vector<8x16x16xbf16>, vector<8x16x16xf32> -> vector<8x16x16xf32>
    "tpu.trace_stop"() : () -> ()
    %cst_28 = arith.constant dense<0xFF800000> : vector<8x16xf32>
    %51 = vector.multi_reduction <maximumf>, %50, %cst_28 [2] : vector<8x16x16xf32> to vector<8x16xf32>
    %52 = vector.shape_cast %51 : vector<8x16xf32> to vector<8x16x1xf32>
    %53 = vector.broadcast %52 : vector<8x16x1xf32> to vector<8x16x16xf32>
    %54 = arith.subf %50, %53 : vector<8x16x16xf32>
    %55 = math.exp %54 : vector<8x16x16xf32>
    %cst_29 = arith.constant dense<0.000000e+00> : vector<8x16xf32>
    %56 = vector.multi_reduction <add>, %55, %cst_29 [2] : vector<8x16x16xf32> to vector<8x16xf32>
    %57 = vector.shape_cast %56 : vector<8x16xf32> to vector<8x16x1xf32>
    %58 = tpu.reciprocal %57 {approx = true} : vector<8x16x1xf32> -> vector<8x16x1xf32>
    %59 = vector.broadcast %58 : vector<8x16x1xf32> to vector<8x16x16xf32>
    %60 = arith.mulf %55, %59 : vector<8x16x16xf32>
    %61 = arith.truncf %60 : vector<8x16x16xf32> to vector<8x16x16xbf16>
    "tpu.trace_start"() <{level = 10 : i32, message = "bqk,bkd->bqd"}> : () -> ()
    %cst_30 = arith.constant dense<0.000000e+00> : vector<8x16x16xf32>
    %62 = tpu.matmul %61, %49, %cst_30 {dimension_numbers = #tpu.dot_dimension_numbers<[2], [1], [1], [2], [0, 0, 0, 1, 1, 2], [0], [0]>} : vector<8x16x16xbf16>, vector<8x16x16xbf16>, vector<8x16x16xf32> -> vector<8x16x16xf32>
    "tpu.trace_stop"() : () -> ()
    %63 = vector.shape_cast %62 : vector<8x16x16xf32> to vector<128x16xf32>
    %64 = arith.truncf %63 : vector<128x16xf32> to vector<128x16xbf16>
    %65 = vector.extract_strided_slice %12 {offsets = [0, 0], sizes = [16, 64], strides = [1, 1]} : vector<64x64xbf16> to vector<16x64xbf16>
    %cst_31 = arith.constant dense<0.000000e+00> : vector<128x64xf32>
    %66 = tpu.matmul %64, %65, %cst_31 {dimension_numbers = #tpu.dot_dimension_numbers<[1], [0], [0], [1], [0, 0, 1, 1], [], []>} : vector<128x16xbf16>, vector<16x64xbf16>, vector<128x64xf32> -> vector<128x64xf32>
    %67 = arith.addf %46, %66 : vector<128x64xf32>
    %68 = vector.extract_strided_slice %45 {offsets = [0, 0, 16], sizes = [8, 16, 16], strides = [1, 1, 1]} : vector<8x16x192xbf16> to vector<8x16x16xbf16>
    %69 = vector.extract_strided_slice %45 {offsets = [0, 0, 80], sizes = [8, 16, 16], strides = [1, 1, 1]} : vector<8x16x192xbf16> to vector<8x16x16xbf16>
    %70 = vector.extract_strided_slice %45 {offsets = [0, 0, 144], sizes = [8, 16, 16], strides = [1, 1, 1]} : vector<8x16x192xbf16> to vector<8x16x16xbf16>
    "tpu.trace_start"() <{level = 10 : i32, message = "bqd,bkd->bqk"}> : () -> ()
    %cst_32 = arith.constant dense<0.000000e+00> : vector<8x16x16xf32>
    %71 = tpu.matmul %68, %69, %cst_32 {dimension_numbers = #tpu.dot_dimension_numbers<[2], [2], [1], [1], [0, 0, 0, 1, 1, 1], [0], [0]>} : vector<8x16x16xbf16>, vector<8x16x16xbf16>, vector<8x16x16xf32> -> vector<8x16x16xf32>
    "tpu.trace_stop"() : () -> ()
    %cst_33 = arith.constant dense<0xFF800000> : vector<8x16xf32>
    %72 = vector.multi_reduction <maximumf>, %71, %cst_33 [2] : vector<8x16x16xf32> to vector<8x16xf32>
    %73 = vector.shape_cast %72 : vector<8x16xf32> to vector<8x16x1xf32>
    %74 = vector.broadcast %73 : vector<8x16x1xf32> to vector<8x16x16xf32>
    %75 = arith.subf %71, %74 : vector<8x16x16xf32>
    %76 = math.exp %75 : vector<8x16x16xf32>
    %cst_34 = arith.constant dense<0.000000e+00> : vector<8x16xf32>
    %77 = vector.multi_reduction <add>, %76, %cst_34 [2] : vector<8x16x16xf32> to vector<8x16xf32>
    %78 = vector.shape_cast %77 : vector<8x16xf32> to vector<8x16x1xf32>
    %79 = tpu.reciprocal %78 {approx = true} : vector<8x16x1xf32> -> vector<8x16x1xf32>
    %80 = vector.broadcast %79 : vector<8x16x1xf32> to vector<8x16x16xf32>
    %81 = arith.mulf %76, %80 : vector<8x16x16xf32>
    %82 = arith.truncf %81 : vector<8x16x16xf32> to vector<8x16x16xbf16>
    "tpu.trace_start"() <{level = 10 : i32, message = "bqk,bkd->bqd"}> : () -> ()
    %cst_35 = arith.constant dense<0.000000e+00> : vector<8x16x16xf32>
    %83 = tpu.matmul %82, %70, %cst_35 {dimension_numbers = #tpu.dot_dimension_numbers<[2], [1], [1], [2], [0, 0, 0, 1, 1, 2], [0], [0]>} : vector<8x16x16xbf16>, vector<8x16x16xbf16>, vector<8x16x16xf32> -> vector<8x16x16xf32>
    "tpu.trace_stop"() : () -> ()
    %84 = vector.shape_cast %83 : vector<8x16x16xf32> to vector<128x16xf32>
    %85 = arith.truncf %84 : vector<128x16xf32> to vector<128x16xbf16>
    %86 = vector.extract_strided_slice %12 {offsets = [16, 0], sizes = [16, 64], strides = [1, 1]} : vector<64x64xbf16> to vector<16x64xbf16>
    %cst_36 = arith.constant dense<0.000000e+00> : vector<128x64xf32>
    %87 = tpu.matmul %85, %86, %cst_36 {dimension_numbers = #tpu.dot_dimension_numbers<[1], [0], [0], [1], [0, 0, 1, 1], [], []>} : vector<128x16xbf16>, vector<16x64xbf16>, vector<128x64xf32> -> vector<128x64xf32>
    %88 = arith.addf %67, %87 : vector<128x64xf32>
    %89 = vector.extract_strided_slice %45 {offsets = [0, 0, 32], sizes = [8, 16, 16], strides = [1, 1, 1]} : vector<8x16x192xbf16> to vector<8x16x16xbf16>
    %90 = vector.extract_strided_slice %45 {offsets = [0, 0, 96], sizes = [8, 16, 16], strides = [1, 1, 1]} : vector<8x16x192xbf16> to vector<8x16x16xbf16>
    %91 = vector.extract_strided_slice %45 {offsets = [0, 0, 160], sizes = [8, 16, 16], strides = [1, 1, 1]} : vector<8x16x192xbf16> to vector<8x16x16xbf16>
    "tpu.trace_start"() <{level = 10 : i32, message = "bqd,bkd->bqk"}> : () -> ()
    %cst_37 = arith.constant dense<0.000000e+00> : vector<8x16x16xf32>
    %92 = tpu.matmul %89, %90, %cst_37 {dimension_numbers = #tpu.dot_dimension_numbers<[2], [2], [1], [1], [0, 0, 0, 1, 1, 1], [0], [0]>} : vector<8x16x16xbf16>, vector<8x16x16xbf16>, vector<8x16x16xf32> -> vector<8x16x16xf32>
    "tpu.trace_stop"() : () -> ()
    %cst_38 = arith.constant dense<0xFF800000> : vector<8x16xf32>
    %93 = vector.multi_reduction <maximumf>, %92, %cst_38 [2] : vector<8x16x16xf32> to vector<8x16xf32>
    %94 = vector.shape_cast %93 : vector<8x16xf32> to vector<8x16x1xf32>
    %95 = vector.broadcast %94 : vector<8x16x1xf32> to vector<8x16x16xf32>
    %96 = arith.subf %92, %95 : vector<8x16x16xf32>
    %97 = math.exp %96 : vector<8x16x16xf32>
    %cst_39 = arith.constant dense<0.000000e+00> : vector<8x16xf32>
    %98 = vector.multi_reduction <add>, %97, %cst_39 [2] : vector<8x16x16xf32> to vector<8x16xf32>
    %99 = vector.shape_cast %98 : vector<8x16xf32> to vector<8x16x1xf32>
    %100 = tpu.reciprocal %99 {approx = true} : vector<8x16x1xf32> -> vector<8x16x1xf32>
    %101 = vector.broadcast %100 : vector<8x16x1xf32> to vector<8x16x16xf32>
    %102 = arith.mulf %97, %101 : vector<8x16x16xf32>
    %103 = arith.truncf %102 : vector<8x16x16xf32> to vector<8x16x16xbf16>
    "tpu.trace_start"() <{level = 10 : i32, message = "bqk,bkd->bqd"}> : () -> ()
    %cst_40 = arith.constant dense<0.000000e+00> : vector<8x16x16xf32>
    %104 = tpu.matmul %103, %91, %cst_40 {dimension_numbers = #tpu.dot_dimension_numbers<[2], [1], [1], [2], [0, 0, 0, 1, 1, 2], [0], [0]>} : vector<8x16x16xbf16>, vector<8x16x16xbf16>, vector<8x16x16xf32> -> vector<8x16x16xf32>
    "tpu.trace_stop"() : () -> ()
    %105 = vector.shape_cast %104 : vector<8x16x16xf32> to vector<128x16xf32>
    %106 = arith.truncf %105 : vector<128x16xf32> to vector<128x16xbf16>
    %107 = vector.extract_strided_slice %12 {offsets = [32, 0], sizes = [16, 64], strides = [1, 1]} : vector<64x64xbf16> to vector<16x64xbf16>
    %cst_41 = arith.constant dense<0.000000e+00> : vector<128x64xf32>
    %108 = tpu.matmul %106, %107, %cst_41 {dimension_numbers = #tpu.dot_dimension_numbers<[1], [0], [0], [1], [0, 0, 1, 1], [], []>} : vector<128x16xbf16>, vector<16x64xbf16>, vector<128x64xf32> -> vector<128x64xf32>
    %109 = arith.addf %88, %108 : vector<128x64xf32>
    %110 = vector.extract_strided_slice %45 {offsets = [0, 0, 48], sizes = [8, 16, 16], strides = [1, 1, 1]} : vector<8x16x192xbf16> to vector<8x16x16xbf16>
    %111 = vector.extract_strided_slice %45 {offsets = [0, 0, 112], sizes = [8, 16, 16], strides = [1, 1, 1]} : vector<8x16x192xbf16> to vector<8x16x16xbf16>
    %112 = vector.extract_strided_slice %45 {offsets = [0, 0, 176], sizes = [8, 16, 16], strides = [1, 1, 1]} : vector<8x16x192xbf16> to vector<8x16x16xbf16>
    "tpu.trace_start"() <{level = 10 : i32, message = "bqd,bkd->bqk"}> : () -> ()
    %cst_42 = arith.constant dense<0.000000e+00> : vector<8x16x16xf32>
    %113 = tpu.matmul %110, %111, %cst_42 {dimension_numbers = #tpu.dot_dimension_numbers<[2], [2], [1], [1], [0, 0, 0, 1, 1, 1], [0], [0]>} : vector<8x16x16xbf16>, vector<8x16x16xbf16>, vector<8x16x16xf32> -> vector<8x16x16xf32>
    "tpu.trace_stop"() : () -> ()
    %cst_43 = arith.constant dense<0xFF800000> : vector<8x16xf32>
    %114 = vector.multi_reduction <maximumf>, %113, %cst_43 [2] : vector<8x16x16xf32> to vector<8x16xf32>
    %115 = vector.shape_cast %114 : vector<8x16xf32> to vector<8x16x1xf32>
    %116 = vector.broadcast %115 : vector<8x16x1xf32> to vector<8x16x16xf32>
    %117 = arith.subf %113, %116 : vector<8x16x16xf32>
    %118 = math.exp %117 : vector<8x16x16xf32>
    %cst_44 = arith.constant dense<0.000000e+00> : vector<8x16xf32>
    %119 = vector.multi_reduction <add>, %118, %cst_44 [2] : vector<8x16x16xf32> to vector<8x16xf32>
    %120 = vector.shape_cast %119 : vector<8x16xf32> to vector<8x16x1xf32>
    %121 = tpu.reciprocal %120 {approx = true} : vector<8x16x1xf32> -> vector<8x16x1xf32>
    %122 = vector.broadcast %121 : vector<8x16x1xf32> to vector<8x16x16xf32>
    %123 = arith.mulf %118, %122 : vector<8x16x16xf32>
    %124 = arith.truncf %123 : vector<8x16x16xf32> to vector<8x16x16xbf16>
    "tpu.trace_start"() <{level = 10 : i32, message = "bqk,bkd->bqd"}> : () -> ()
    %cst_45 = arith.constant dense<0.000000e+00> : vector<8x16x16xf32>
    %125 = tpu.matmul %124, %112, %cst_45 {dimension_numbers = #tpu.dot_dimension_numbers<[2], [1], [1], [2], [0, 0, 0, 1, 1, 2], [0], [0]>} : vector<8x16x16xbf16>, vector<8x16x16xbf16>, vector<8x16x16xf32> -> vector<8x16x16xf32>
    "tpu.trace_stop"() : () -> ()
    %126 = vector.shape_cast %125 : vector<8x16x16xf32> to vector<128x16xf32>
    %127 = arith.truncf %126 : vector<128x16xf32> to vector<128x16xbf16>
    %128 = vector.extract_strided_slice %12 {offsets = [48, 0], sizes = [16, 64], strides = [1, 1]} : vector<64x64xbf16> to vector<16x64xbf16>
    %cst_46 = arith.constant dense<0.000000e+00> : vector<128x64xf32>
    %129 = tpu.matmul %127, %128, %cst_46 {dimension_numbers = #tpu.dot_dimension_numbers<[1], [0], [0], [1], [0, 0, 1, 1], [], []>} : vector<128x16xbf16>, vector<16x64xbf16>, vector<128x64xf32> -> vector<128x64xf32>
    %130 = arith.addf %109, %129 : vector<128x64xf32>
    %131 = vector.broadcast %15 : vector<1x64xf32> to vector<128x64xf32>
    %132 = arith.addf %130, %131 : vector<128x64xf32>
    %133 = arith.addf %3, %132 : vector<128x64xf32>
    %cst_47 = arith.constant dense<0.000000e+00> : vector<128xf32>
    %134 = vector.multi_reduction <add>, %133, %cst_47 [1] : vector<128x64xf32> to vector<128xf32>
    %135 = vector.shape_cast %134 : vector<128xf32> to vector<128x1xf32>
    %cst_48 = arith.constant 6.400000e+01 : f32
    %136 = vector.broadcast %cst_48 : f32 to vector<128x1xf32>
    %137 = arith.divf %135, %136 : vector<128x1xf32>
    %138 = vector.broadcast %137 : vector<128x1xf32> to vector<128x64xf32>
    %139 = arith.subf %133, %138 : vector<128x64xf32>
    %140 = arith.mulf %139, %139 : vector<128x64xf32>
    %cst_49 = arith.constant dense<0.000000e+00> : vector<128xf32>
    %141 = vector.multi_reduction <add>, %140, %cst_49 [1] : vector<128x64xf32> to vector<128xf32>
    %142 = vector.shape_cast %141 : vector<128xf32> to vector<128x1xf32>
    %cst_50 = arith.constant 6.400000e+01 : f32
    %143 = vector.broadcast %cst_50 : f32 to vector<128x1xf32>
    %144 = arith.divf %142, %143 : vector<128x1xf32>
    %145 = vector.broadcast %137 : vector<128x1xf32> to vector<128x64xf32>
    %146 = arith.subf %133, %145 : vector<128x64xf32>
    %cst_51 = arith.constant 9.99999974E-6 : f32
    %147 = vector.broadcast %cst_51 : f32 to vector<128x1xf32>
    %148 = arith.addf %144, %147 : vector<128x1xf32>
    %149 = math.rsqrt %148 : vector<128x1xf32>
    %150 = vector.broadcast %149 : vector<128x1xf32> to vector<128x64xf32>
    %151 = arith.mulf %146, %150 : vector<128x64xf32>
    %152 = vector.broadcast %18 : vector<1x64xf32> to vector<128x64xf32>
    %153 = arith.mulf %151, %152 : vector<128x64xf32>
    %154 = vector.broadcast %21 : vector<1x64xf32> to vector<128x64xf32>
    %155 = arith.addf %153, %154 : vector<128x64xf32>
    %156 = arith.truncf %155 : vector<128x64xf32> to vector<128x64xbf16>
    %cst_52 = arith.constant dense<0.000000e+00> : vector<128x2048xf32>
    %157 = tpu.matmul %156, %24, %cst_52 {dimension_numbers = #tpu.dot_dimension_numbers<[1], [0], [0], [1], [0, 0, 1, 1], [], []>} : vector<128x64xbf16>, vector<64x2048xbf16>, vector<128x2048xf32> -> vector<128x2048xf32>
    %158 = vector.broadcast %27 : vector<1x2048xf32> to vector<128x2048xf32>
    %159 = arith.addf %157, %158 : vector<128x2048xf32>
    %cst_53 = arith.constant 0.000000e+00 : f32
    %160 = vector.broadcast %cst_53 : f32 to vector<128x2048xf32>
    %161 = arith.maximumf %159, %160 : vector<128x2048xf32>
    %162 = arith.truncf %161 : vector<128x2048xf32> to vector<128x2048xbf16>
    %cst_54 = arith.constant dense<0.000000e+00> : vector<128x64xf32>
    %163 = tpu.matmul %162, %30, %cst_54 {dimension_numbers = #tpu.dot_dimension_numbers<[1], [0], [0], [1], [0, 0, 1, 1], [], []>} : vector<128x2048xbf16>, vector<2048x64xbf16>, vector<128x64xf32> -> vector<128x64xf32>
    %164 = vector.broadcast %33 : vector<1x64xf32> to vector<128x64xf32>
    %165 = arith.addf %163, %164 : vector<128x64xf32>
    %166 = arith.addf %155, %165 : vector<128x64xf32>
    %cst_55 = arith.constant dense<0.000000e+00> : vector<128xf32>
    %167 = vector.multi_reduction <add>, %166, %cst_55 [1] : vector<128x64xf32> to vector<128xf32>
    %168 = vector.shape_cast %167 : vector<128xf32> to vector<128x1xf32>
    %cst_56 = arith.constant 6.400000e+01 : f32
    %169 = vector.broadcast %cst_56 : f32 to vector<128x1xf32>
    %170 = arith.divf %168, %169 : vector<128x1xf32>
    %171 = vector.broadcast %170 : vector<128x1xf32> to vector<128x64xf32>
    %172 = arith.subf %166, %171 : vector<128x64xf32>
    %173 = arith.mulf %172, %172 : vector<128x64xf32>
    %cst_57 = arith.constant dense<0.000000e+00> : vector<128xf32>
    %174 = vector.multi_reduction <add>, %173, %cst_57 [1] : vector<128x64xf32> to vector<128xf32>
    %175 = vector.shape_cast %174 : vector<128xf32> to vector<128x1xf32>
    %cst_58 = arith.constant 6.400000e+01 : f32
    %176 = vector.broadcast %cst_58 : f32 to vector<128x1xf32>
    %177 = arith.divf %175, %176 : vector<128x1xf32>
    %178 = vector.broadcast %170 : vector<128x1xf32> to vector<128x64xf32>
    %179 = arith.subf %166, %178 : vector<128x64xf32>
    %cst_59 = arith.constant 9.99999974E-6 : f32
    %180 = vector.broadcast %cst_59 : f32 to vector<128x1xf32>
    %181 = arith.addf %177, %180 : vector<128x1xf32>
    %182 = math.rsqrt %181 : vector<128x1xf32>
    %183 = vector.broadcast %182 : vector<128x1xf32> to vector<128x64xf32>
    %184 = arith.mulf %179, %183 : vector<128x64xf32>
    %185 = vector.broadcast %36 : vector<1x64xf32> to vector<128x64xf32>
    %186 = arith.mulf %184, %185 : vector<128x64xf32>
    %187 = vector.broadcast %39 : vector<1x64xf32> to vector<128x64xf32>
    %188 = arith.addf %186, %187 : vector<128x64xf32>
    %c0_60 = arith.constant 0 : index
    %c0_61 = arith.constant 0 : index
    %189 = vector.load %arg20[%c0_60, %c0_61] : memref<128x64xf32, #tpu.memory_space<vmem>>, vector<128x64xf32>
    tpu.vector_store %arg20[%c0_60, %c0_61], %188 {strides = array<i32>} : memref<128x64xf32, #tpu.memory_space<vmem>>, vector<128x64xf32>,
    %c3_i32 = arith.constant 3 : i32
    %190 = arith.cmpi eq, %arg1, %c3_i32 : i32
    %191 = arith.extui %190 : i1 to i32
    %c0_i32_62 = arith.constant 0 : i32
    %192 = arith.cmpi ne, %191, %c0_i32_62 : i32
    scf.if %192 {
      %193 = vector.shape_cast %188 : vector<128x64xf32> to vector<8x16x64xf32>
      %cst_63 = arith.constant dense<0.000000e+00> : vector<8x64xf32>
      %194 = vector.multi_reduction <add>, %193, %cst_63 [1] : vector<8x16x64xf32> to vector<8x64xf32>
      %cst_64 = arith.constant 1.600000e+01 : f32
      %195 = vector.broadcast %cst_64 : f32 to vector<8x64xf32>
      %196 = arith.divf %194, %195 : vector<8x64xf32>
      %197 = arith.truncf %196 : vector<8x64xf32> to vector<8x64xbf16>
      %c0_65 = arith.constant 0 : index
      %c0_66 = arith.constant 0 : index
      %198 = vector.load %arg17[%c0_65, %c0_66] : memref<64x128xbf16, #tpu.memory_space<vmem>>, vector<64x128xbf16>
      %cst_67 = arith.constant dense<0.000000e+00> : vector<8x128xf32>
      %199 = tpu.matmul %197, %198, %cst_67 {dimension_numbers = #tpu.dot_dimension_numbers<[1], [0], [0], [1], [0, 0, 1, 1], [], []>} : vector<8x64xbf16>, vector<64x128xbf16>, vector<8x128xf32> -> vector<8x128xf32>
      %c0_68 = arith.constant 0 : index
      %c0_69 = arith.constant 0 : index
      %200 = vector.load %arg18[%c0_68, %c0_69] : memref<1x128xf32, #tpu.memory_space<vmem>>, vector<1x128xf32>
      %201 = vector.broadcast %200 : vector<1x128xf32> to vector<8x128xf32>
      %202 = arith.addf %199, %201 : vector<8x128xf32>
      %c0_70 = arith.constant 0 : index
      %c0_71 = arith.constant 0 : index
      %203 = vector.load %arg19[%c0_70, %c0_71] : memref<8x128xf32, #tpu.memory_space<vmem>>, vector<8x128xf32>
      tpu.vector_store %arg19[%c0_70, %c0_71], %202 {strides = array<i32>} : memref<8x128xf32, #tpu.memory_space<vmem>>, vector<8x128xf32>,
    } else {
    }
    return
  }
  func.func @transform_0(%arg0: i32, %arg1: i32) -> (i32, i32, i32) {
    %c0_i32 = arith.constant 0 : i32
    %c0_i32_0 = arith.constant 0 : i32
    %c0_i32_1 = arith.constant 0 : i32
    return %arg0, %c0_i32, %c0_i32_0 : i32, i32, i32
  }
  func.func @transform_1(%arg0: i32, %arg1: i32) -> (i32, i32) {
    %c0_i32 = arith.constant 0 : i32
    %c0_i32_0 = arith.constant 0 : i32
    %c0_i32_1 = arith.constant 0 : i32
    return %c0_i32, %c0_i32_0 : i32, i32
  }
  func.func @transform_2(%arg0: i32, %arg1: i32) -> (i32, i32) {
    %c0_i32 = arith.constant 0 : i32
    %c0_i32_0 = arith.constant 0 : i32
    %c0_i32_1 = arith.constant 0 : i32
    return %c0_i32, %c0_i32_0 : i32, i32
  }
  func.func @transform_3(%arg0: i32, %arg1: i32) -> (i32, i32, i32) {
    %c0_i32 = arith.constant 0 : i32
    %c0_i32_0 = arith.constant 0 : i32
    %c0_i32_1 = arith.constant 0 : i32
    %c0_i32_2 = arith.constant 0 : i32
    return %c0_i32, %c0_i32_0, %c0_i32_1 : i32, i32, i32
  }
  func.func @transform_4(%arg0: i32, %arg1: i32) -> (i32, i32, i32) {
    %c0_i32 = arith.constant 0 : i32
    %c0_i32_0 = arith.constant 0 : i32
    %c0_i32_1 = arith.constant 0 : i32
    %c0_i32_2 = arith.constant 0 : i32
    return %c0_i32, %c0_i32_0, %c0_i32_1 : i32, i32, i32
  }
  func.func @transform_5(%arg0: i32, %arg1: i32) -> (i32, i32, i32) {
    %c0_i32 = arith.constant 0 : i32
    %c0_i32_0 = arith.constant 0 : i32
    %c0_i32_1 = arith.constant 0 : i32
    %c0_i32_2 = arith.constant 0 : i32
    return %c0_i32, %c0_i32_0, %c0_i32_1 : i32, i32, i32
  }
  func.func @transform_6(%arg0: i32, %arg1: i32) -> (i32, i32, i32) {
    %c0_i32 = arith.constant 0 : i32
    %c0_i32_0 = arith.constant 0 : i32
    %c0_i32_1 = arith.constant 0 : i32
    %c0_i32_2 = arith.constant 0 : i32
    return %c0_i32, %c0_i32_0, %c0_i32_1 : i32, i32, i32
  }
  func.func @transform_7(%arg0: i32, %arg1: i32) -> (i32, i32, i32) {
    %c0_i32 = arith.constant 0 : i32
    %c0_i32_0 = arith.constant 0 : i32
    %c0_i32_1 = arith.constant 0 : i32
    %c0_i32_2 = arith.constant 0 : i32
    return %c0_i32, %c0_i32_0, %c0_i32_1 : i32, i32, i32
  }
  func.func @transform_8(%arg0: i32, %arg1: i32) -> (i32, i32, i32) {
    %c0_i32 = arith.constant 0 : i32
    %c0_i32_0 = arith.constant 0 : i32
    %c0_i32_1 = arith.constant 0 : i32
    %c0_i32_2 = arith.constant 0 : i32
    return %c0_i32, %c0_i32_0, %c0_i32_1 : i32, i32, i32
  }
  func.func @transform_9(%arg0: i32, %arg1: i32) -> (i32, i32, i32) {
    %c0_i32 = arith.constant 0 : i32
    %c0_i32_0 = arith.constant 0 : i32
    %c0_i32_1 = arith.constant 0 : i32
    %c0_i32_2 = arith.constant 0 : i32
    return %c0_i32, %c0_i32_0, %c0_i32_1 : i32, i32, i32
  }
  func.func @transform_10(%arg0: i32, %arg1: i32) -> (i32, i32, i32) {
    %c0_i32 = arith.constant 0 : i32
    %c0_i32_0 = arith.constant 0 : i32
    %c0_i32_1 = arith.constant 0 : i32
    %c0_i32_2 = arith.constant 0 : i32
    return %c0_i32, %c0_i32_0, %c0_i32_1 : i32, i32, i32
  }
  func.func @transform_11(%arg0: i32, %arg1: i32) -> (i32, i32, i32) {
    %c0_i32 = arith.constant 0 : i32
    %c0_i32_0 = arith.constant 0 : i32
    %c0_i32_1 = arith.constant 0 : i32
    %c0_i32_2 = arith.constant 0 : i32
    return %c0_i32, %c0_i32_0, %c0_i32_1 : i32, i32, i32
  }
  func.func @transform_12(%arg0: i32, %arg1: i32) -> (i32, i32, i32) {
    %c0_i32 = arith.constant 0 : i32
    %c0_i32_0 = arith.constant 0 : i32
    %c0_i32_1 = arith.constant 0 : i32
    %c0_i32_2 = arith.constant 0 : i32
    return %c0_i32, %c0_i32_0, %c0_i32_1 : i32, i32, i32
  }
  func.func @transform_13(%arg0: i32, %arg1: i32) -> (i32, i32, i32) {
    %c0_i32 = arith.constant 0 : i32
    %c0_i32_0 = arith.constant 0 : i32
    %c0_i32_1 = arith.constant 0 : i32
    %c0_i32_2 = arith.constant 0 : i32
    return %c0_i32, %c0_i32_0, %c0_i32_1 : i32, i32, i32
  }
  func.func @transform_14(%arg0: i32, %arg1: i32) -> (i32, i32, i32) {
    %c0_i32 = arith.constant 0 : i32
    %c0_i32_0 = arith.constant 0 : i32
    %c0_i32_1 = arith.constant 0 : i32
    %c0_i32_2 = arith.constant 0 : i32
    return %c0_i32, %c0_i32_0, %c0_i32_1 : i32, i32, i32
  }
  func.func @transform_15(%arg0: i32, %arg1: i32) -> (i32, i32) {
    %c0_i32 = arith.constant 0 : i32
    %c0_i32_0 = arith.constant 0 : i32
    %c0_i32_1 = arith.constant 0 : i32
    return %c0_i32, %c0_i32_0 : i32, i32
  }
  func.func @transform_16(%arg0: i32, %arg1: i32) -> (i32, i32) {
    %c0_i32 = arith.constant 0 : i32
    %c0_i32_0 = arith.constant 0 : i32
    %c0_i32_1 = arith.constant 0 : i32
    return %c0_i32, %c0_i32_0 : i32, i32
  }
  func.func @transform_17(%arg0: i32, %arg1: i32) -> (i32, i32) {
    %c0_i32 = arith.constant 0 : i32
    %c0_i32_0 = arith.constant 0 : i32
    return %arg0, %c0_i32 : i32, i32
  }
}

</mosaic_0001>

<llo_original>
// kernel: vit_forward.1
$region0: #{vit_forward.1}
  #allocation0 [shape = 'u32[]', space=smem, size = 0x4, offset = 0x4, fixed_abs, tag = 'smem constant byte address 0x4 - core index']
  #allocation1 [shape = 'u32[144,128]{1,0:T(1,128)}', space=vmem, size = 0x12000, scoped, tag = 'internal scratch']
  #allocation2 [shape = 'f32[128,64]{1,0:T(8,128)}', space=vmem, size = 0x10000, scoped, tag = 'scratch operand']
  %s0 = inlined_call_operand.vmem [shape: bf16[8,16,64], index: 0, kind: input, shape index: {}]
  %s1 = inlined_call_operand.vmem [shape: bf16[64,64], index: 1, kind: input, shape index: {}]
  %s2 = inlined_call_operand.vmem [shape: f32[1,64], index: 2, kind: input, shape index: {}]
  %s3 = inlined_call_operand.vmem [shape: bf16[4,64,192], index: 3, kind: input, shape index: {}]
  %s4 = inlined_call_operand.vmem [shape: f32[4,1,192], index: 4, kind: input, shape index: {}]
  %s5 = inlined_call_operand.vmem [shape: bf16[4,64,64], index: 5, kind: input, shape index: {}]
  %s6 = inlined_call_operand.vmem [shape: f32[4,1,64], index: 6, kind: input, shape index: {}]
  %s7 = inlined_call_operand.vmem [shape: f32[4,1,64], index: 7, kind: input, shape index: {}]
  %s8 = inlined_call_operand.vmem [shape: f32[4,1,64], index: 8, kind: input, shape index: {}]
  %s9 = inlined_call_operand.vmem [shape: bf16[4,64,2048], index: 9, kind: input, shape index: {}]
  %s10 = inlined_call_operand.vmem [shape: f32[4,1,2048], index: 10, kind: input, shape index: {}]
  %s11 = inlined_call_operand.vmem [shape: bf16[4,2048,64], index: 11, kind: input, shape index: {}]
  %s12 = inlined_call_operand.vmem [shape: f32[4,1,64], index: 12, kind: input, shape index: {}]
  %s13 = inlined_call_operand.vmem [shape: f32[4,1,64], index: 13, kind: input, shape index: {}]
  %s14 = inlined_call_operand.vmem [shape: f32[4,1,64], index: 14, kind: input, shape index: {}]
  %s15 = inlined_call_operand.vmem [shape: bf16[64,128], index: 15, kind: input, shape index: {}]
  %s16 = inlined_call_operand.vmem [shape: f32[1,128], index: 16, kind: input, shape index: {}]
  %s17 = inlined_call_operand.vmem [shape: f32[8,128], index: 17, kind: output, shape index: {}]
  %s18 = sld [smem:[#allocation0]]
  $region109: #{vit_forward.1} parent=0
    _
  %s20 = ssub.s32 1, %s18
  %s21 = scalar_select 0, %s20, %s18
  loop: start=0, step=1, limit=6
  $region2: #{vit_forward.1} parent=0 // loop_pre_header
    _
  $region3: #{vit_forward.1} parent=0 // loop_header
    %s23 = sphi 0, %s27
    %p24 = scmp.ge.s32.totalorder %s23, 6
    %s30 = sphi 0, %s42
    %s31 = sphi 0, %s38
    %s32 = sphi 0, %s30
    %s33 = sphi 0, %s31
    %s34 = sphi 0, %s32
    %s35 = sphi 0, %s33
    %s45 = sphi 0, %s47
    %s48 = sphi 0, %s45
    %s49 = sphi 0, %s48
    %s65 = sphi 0, %s49
    %s69 = sphi 0, %s69
    %s71 = sphi 0, %s69
    %s72 = sphi 0, %s71
    %s86 = sphi 0, %s72
    %s90 = sphi 0, %s90
    %s92 = sphi 0, %s90
    %s93 = sphi 0, %s92
    %s107 = sphi 0, %s93
    %s111 = sphi 0, %s111
    %s113 = sphi 0, %s111
    %s114 = sphi 0, %s113
    %s128 = sphi 0, %s114
    %s132 = sphi 0, %s132
    %s134 = sphi 0, %s132
    %s135 = sphi 0, %s134
    %s149 = sphi 0, %s135
    %s153 = sphi 0, %s153
    %s155 = sphi 0, %s153
    %s156 = sphi 0, %s155
    %s170 = sphi 0, %s156
    %s174 = sphi 0, %s174
    %s176 = sphi 0, %s174
    %s177 = sphi 0, %s176
    %s191 = sphi 0, %s177
    %s195 = sphi 0, %s195
    %s197 = sphi 0, %s195
    %s198 = sphi 0, %s197
    %s212 = sphi 0, %s198
    %s216 = sphi 0, %s216
    %s218 = sphi 0, %s216
    %s219 = sphi 0, %s218
    %s233 = sphi 0, %s219
    %s237 = sphi 0, %s237
    %s239 = sphi 0, %s237
    %s240 = sphi 0, %s239
    %s254 = sphi 0, %s240
    %s258 = sphi 0, %s258
    %s260 = sphi 0, %s258
    %s261 = sphi 0, %s260
    %s275 = sphi 0, %s261
    %s279 = sphi 0, %s279
    %s281 = sphi 0, %s279
    %s282 = sphi 0, %s281
    %s296 = sphi 0, %s282
    %s300 = sphi 0, %s300
    %s302 = sphi 0, %s300
    %s303 = sphi 0, %s302
    %s317 = sphi 0, %s303
    %s321 = sphi 0, %s321
    %s323 = sphi 0, %s321
    %s324 = sphi 0, %s323
    %s338 = sphi 0, %s324
    %s342 = sphi 0, %s342
    %s344 = sphi 0, %s342
    %s345 = sphi 0, %s344
    %s359 = sphi 0, %s345
    %s363 = sphi 0, %s363
    %s365 = sphi 0, %s363
    %s366 = sphi 0, %s365
    %s380 = sphi 0, %s366
    %s384 = sphi 0, %s384
    %s386 = sphi 0, %s384
    %s387 = sphi 0, %s386
    %s401 = sphi 0, %s387
    %s407 = sphi 0, %s409
    %s410 = sphi 0, %s407
    %s411 = sphi 0, %s410
    %s427 = sphi 0, %s411
  $region4: #{vit_forward.1} parent=0 // loop_header_branch
    %26 = sbr.rel (%p24) target = $region8
  $region5: #{vit_forward.1} parent=0 // loop_body
    %s28 = ssub.s32 %s23, 1
    %s29 = ssub.s32 %s23, 2
    %s36 = sadd.s32 1, %s31
    %p37 = scmp.ge.s32.totalorder %s36, 4
    %s38 = scalar_select %p37, 0, %s36
    %s39 = sadd.s32 1, %s30
    %s40 = scalar_select %p37, %s39, %s30
    %p41 = scmp.ge.s32.totalorder %s40, 1
    %s42 = scalar_select %p41, 0, %s40
    %s43 = ssub.s32 %s30, %s42
    %p44 = scmp.eq.s32.totalorder %s43, 0
    %s46 = sadd.s32 %s45, 1
    %s47 = scalar_select %p44, %s45, %s46
    %p50 = pneg %p44
    %p51 = scmp.eq.s32.totalorder %s23, 3
    %p52 = por %p50, %p51
    %p53 = scmp.ne.s32.totalorder %s45, %s48
    %p54 = scmp.eq.s32.totalorder %s23, 0
    %p55 = por %p53, %p54
    %p56 = scmp.ne.s32.totalorder %s45, %s48
    %p57 = scmp.eq.s32.totalorder %s28, 3
    %p58 = por %p56, %p57
    %p59 = scmp.ne.s32.totalorder %s48, %s49
    %p60 = scmp.eq.s32.totalorder %s28, 0
    %p61 = por %p59, %p60
    %p62 = scmp.ne.s32.totalorder %s48, %s49
    %p63 = scmp.eq.s32.totalorder %s29, 3
    %p64 = por %p62, %p63
    %p66 = scmp.ne.s32.totalorder %s49, %s65
    %p67 = scmp.eq.s32.totalorder %s29, 0
    %p68 = por %p66, %p67
    %s70 = sadd.s32 %s69, 1
    %p73 = scmp.eq.s32.totalorder %s23, 3
    %p74 = scmp.ne.s32.totalorder %s69, %s71
    %p75 = scmp.eq.s32.totalorder %s23, 0
    %p76 = por %p74, %p75
    %p77 = scmp.ne.s32.totalorder %s69, %s71
    %p78 = scmp.eq.s32.totalorder %s28, 3
    %p79 = por %p77, %p78
    %p80 = scmp.ne.s32.totalorder %s71, %s72
    %p81 = scmp.eq.s32.totalorder %s28, 0
    %p82 = por %p80, %p81
    %p83 = scmp.ne.s32.totalorder %s71, %s72
    %p84 = scmp.eq.s32.totalorder %s29, 3
    %p85 = por %p83, %p84
    %p87 = scmp.ne.s32.totalorder %s72, %s86
    %p88 = scmp.eq.s32.totalorder %s29, 0
    %p89 = por %p87, %p88
    %s91 = sadd.s32 %s90, 1
    %p94 = scmp.eq.s32.totalorder %s23, 3
    %p95 = scmp.ne.s32.totalorder %s90, %s92
    %p96 = scmp.eq.s32.totalorder %s23, 0
    %p97 = por %p95, %p96
    %p98 = scmp.ne.s32.totalorder %s90, %s92
    %p99 = scmp.eq.s32.totalorder %s28, 3
    %p100 = por %p98, %p99
    %p101 = scmp.ne.s32.totalorder %s92, %s93
    %p102 = scmp.eq.s32.totalorder %s28, 0
    %p103 = por %p101, %p102
    %p104 = scmp.ne.s32.totalorder %s92, %s93
    %p105 = scmp.eq.s32.totalorder %s29, 3
    %p106 = por %p104, %p105
    %p108 = scmp.ne.s32.totalorder %s93, %s107
    %p109 = scmp.eq.s32.totalorder %s29, 0
    %p110 = por %p108, %p109
    %s112 = sadd.s32 %s111, 1
    %p115 = scmp.eq.s32.totalorder %s23, 3
    %p116 = scmp.ne.s32.totalorder %s111, %s113
    %p117 = scmp.eq.s32.totalorder %s23, 0
    %p118 = por %p116, %p117
    %p119 = scmp.ne.s32.totalorder %s111, %s113
    %p120 = scmp.eq.s32.totalorder %s28, 3
    %p121 = por %p119, %p120
    %p122 = scmp.ne.s32.totalorder %s113, %s114
    %p123 = scmp.eq.s32.totalorder %s28, 0
    %p124 = por %p122, %p123
    %p125 = scmp.ne.s32.totalorder %s113, %s114
    %p126 = scmp.eq.s32.totalorder %s29, 3
    %p127 = por %p125, %p126
    %p129 = scmp.ne.s32.totalorder %s114, %s128
    %p130 = scmp.eq.s32.totalorder %s29, 0
    %p131 = por %p129, %p130
    %s133 = sadd.s32 %s132, 1
    %p136 = scmp.eq.s32.totalorder %s23, 3
    %p137 = scmp.ne.s32.totalorder %s132, %s134
    %p138 = scmp.eq.s32.totalorder %s23, 0
    %p139 = por %p137, %p138
    %p140 = scmp.ne.s32.totalorder %s132, %s134
    %p141 = scmp.eq.s32.totalorder %s28, 3
    %p142 = por %p140, %p141
    %p143 = scmp.ne.s32.totalorder %s134, %s135
    %p144 = scmp.eq.s32.totalorder %s28, 0
    %p145 = por %p143, %p144
    %p146 = scmp.ne.s32.totalorder %s134, %s135
    %p147 = scmp.eq.s32.totalorder %s29, 3
    %p148 = por %p146, %p147
    %p150 = scmp.ne.s32.totalorder %s135, %s149
    %p151 = scmp.eq.s32.totalorder %s29, 0
    %p152 = por %p150, %p151
    %s154 = sadd.s32 %s153, 1
    %p157 = scmp.eq.s32.totalorder %s23, 3
    %p158 = scmp.ne.s32.totalorder %s153, %s155
    %p159 = scmp.eq.s32.totalorder %s23, 0
    %p160 = por %p158, %p159
    %p161 = scmp.ne.s32.totalorder %s153, %s155
    %p162 = scmp.eq.s32.totalorder %s28, 3
    %p163 = por %p161, %p162
    %p164 = scmp.ne.s32.totalorder %s155, %s156
    %p165 = scmp.eq.s32.totalorder %s28, 0
    %p166 = por %p164, %p165
    %p167 = scmp.ne.s32.totalorder %s155, %s156
    %p168 = scmp.eq.s32.totalorder %s29, 3
    %p169 = por %p167, %p168
    %p171 = scmp.ne.s32.totalorder %s156, %s170
    %p172 = scmp.eq.s32.totalorder %s29, 0
    %p173 = por %p171, %p172
    %s175 = sadd.s32 %s174, 1
    %p178 = scmp.eq.s32.totalorder %s23, 3
    %p179 = scmp.ne.s32.totalorder %s174, %s176
    %p180 = scmp.eq.s32.totalorder %s23, 0
    %p181 = por %p179, %p180
    %p182 = scmp.ne.s32.totalorder %s174, %s176
    %p183 = scmp.eq.s32.totalorder %s28, 3
    %p184 = por %p182, %p183
    %p185 = scmp.ne.s32.totalorder %s176, %s177
    %p186 = scmp.eq.s32.totalorder %s28, 0
    %p187 = por %p185, %p186
    %p188 = scmp.ne.s32.totalorder %s176, %s177
    %p189 = scmp.eq.s32.totalorder %s29, 3
    %p190 = por %p188, %p189
    %p192 = scmp.ne.s32.totalorder %s177, %s191
    %p193 = scmp.eq.s32.totalorder %s29, 0
    %p194 = por %p192, %p193
    %s196 = sadd.s32 %s195, 1
    %p199 = scmp.eq.s32.totalorder %s23, 3
    %p200 = scmp.ne.s32.totalorder %s195, %s197
    %p201 = scmp.eq.s32.totalorder %s23, 0
    %p202 = por %p200, %p201
    %p203 = scmp.ne.s32.totalorder %s195, %s197
    %p204 = scmp.eq.s32.totalorder %s28, 3
    %p205 = por %p203, %p204
    %p206 = scmp.ne.s32.totalorder %s197, %s198
    %p207 = scmp.eq.s32.totalorder %s28, 0
    %p208 = por %p206, %p207
    %p209 = scmp.ne.s32.totalorder %s197, %s198
    %p210 = scmp.eq.s32.totalorder %s29, 3
    %p211 = por %p209, %p210
    %p213 = scmp.ne.s32.totalorder %s198, %s212
    %p214 = scmp.eq.s32.totalorder %s29, 0
    %p215 = por %p213, %p214
    %s217 = sadd.s32 %s216, 1
    %p220 = scmp.eq.s32.totalorder %s23, 3
    %p221 = scmp.ne.s32.totalorder %s216, %s218
    %p222 = scmp.eq.s32.totalorder %s23, 0
    %p223 = por %p221, %p222
    %p224 = scmp.ne.s32.totalorder %s216, %s218
    %p225 = scmp.eq.s32.totalorder %s28, 3
    %p226 = por %p224, %p225
    %p227 = scmp.ne.s32.totalorder %s218, %s219
    %p228 = scmp.eq.s32.totalorder %s28, 0
    %p229 = por %p227, %p228
    %p230 = scmp.ne.s32.totalorder %s218, %s219
    %p231 = scmp.eq.s32.totalorder %s29, 3
    %p232 = por %p230, %p231
    %p234 = scmp.ne.s32.totalorder %s219, %s233
    %p235 = scmp.eq.s32.totalorder %s29, 0
    %p236 = por %p234, %p235
    %s238 = sadd.s32 %s237, 1
    %p241 = scmp.eq.s32.totalorder %s23, 3
    %p242 = scmp.ne.s32.totalorder %s237, %s239
    %p243 = scmp.eq.s32.totalorder %s23, 0
    %p244 = por %p242, %p243
    %p245 = scmp.ne.s32.totalorder %s237, %s239
    %p246 = scmp.eq.s32.totalorder %s28, 3
    %p247 = por %p245, %p246
    %p248 = scmp.ne.s32.totalorder %s239, %s240
    %p249 = scmp.eq.s32.totalorder %s28, 0
    %p250 = por %p248, %p249
    %p251 = scmp.ne.s32.totalorder %s239, %s240
    %p252 = scmp.eq.s32.totalorder %s29, 3
    %p253 = por %p251, %p252
    %p255 = scmp.ne.s32.totalorder %s240, %s254
    %p256 = scmp.eq.s32.totalorder %s29, 0
    %p257 = por %p255, %p256
    %s259 = sadd.s32 %s258, 1
    %p262 = scmp.eq.s32.totalorder %s23, 3
    %p263 = scmp.ne.s32.totalorder %s258, %s260
    %p264 = scmp.eq.s32.totalorder %s23, 0
    %p265 = por %p263, %p264
    %p266 = scmp.ne.s32.totalorder %s258, %s260
    %p267 = scmp.eq.s32.totalorder %s28, 3
    %p268 = por %p266, %p267
    %p269 = scmp.ne.s32.totalorder %s260, %s261
    %p270 = scmp.eq.s32.totalorder %s28, 0
    %p271 = por %p269, %p270
    %p272 = scmp.ne.s32.totalorder %s260, %s261
    %p273 = scmp.eq.s32.totalorder %s29, 3
    %p274 = por %p272, %p273
    %p276 = scmp.ne.s32.totalorder %s261, %s275
    %p277 = scmp.eq.s32.totalorder %s29, 0
    %p278 = por %p276, %p277
    %s280 = sadd.s32 %s279, 1
    %p283 = scmp.eq.s32.totalorder %s23, 3
    %p284 = scmp.ne.s32.totalorder %s279, %s281
    %p285 = scmp.eq.s32.totalorder %s23, 0
    %p286 = por %p284, %p285
    %p287 = scmp.ne.s32.totalorder %s279, %s281
    %p288 = scmp.eq.s32.totalorder %s28, 3
    %p289 = por %p287, %p288
    %p290 = scmp.ne.s32.totalorder %s281, %s282
    %p291 = scmp.eq.s32.totalorder %s28, 0
    %p292 = por %p290, %p291
    %p293 = scmp.ne.s32.totalorder %s281, %s282
    %p294 = scmp.eq.s32.totalorder %s29, 3
    %p295 = por %p293, %p294
    %p297 = scmp.ne.s32.totalorder %s282, %s296
    %p298 = scmp.eq.s32.totalorder %s29, 0
    %p299 = por %p297, %p298
    %s301 = sadd.s32 %s300, 1
    %p304 = scmp.eq.s32.totalorder %s23, 3
    %p305 = scmp.ne.s32.totalorder %s300, %s302
    %p306 = scmp.eq.s32.totalorder %s23, 0
    %p307 = por %p305, %p306
    %p308 = scmp.ne.s32.totalorder %s300, %s302
    %p309 = scmp.eq.s32.totalorder %s28, 3
    %p310 = por %p308, %p309
    %p311 = scmp.ne.s32.totalorder %s302, %s303
    %p312 = scmp.eq.s32.totalorder %s28, 0
    %p313 = por %p311, %p312
    %p314 = scmp.ne.s32.totalorder %s302, %s303
    %p315 = scmp.eq.s32.totalorder %s29, 3
    %p316 = por %p314, %p315
    %p318 = scmp.ne.s32.totalorder %s303, %s317
    %p319 = scmp.eq.s32.totalorder %s29, 0
    %p320 = por %p318, %p319
    %s322 = sadd.s32 %s321, 1
    %p325 = scmp.eq.s32.totalorder %s23, 3
    %p326 = scmp.ne.s32.totalorder %s321, %s323
    %p327 = scmp.eq.s32.totalorder %s23, 0
    %p328 = por %p326, %p327
    %p329 = scmp.ne.s32.totalorder %s321, %s323
    %p330 = scmp.eq.s32.totalorder %s28, 3
    %p331 = por %p329, %p330
    %p332 = scmp.ne.s32.totalorder %s323, %s324
    %p333 = scmp.eq.s32.totalorder %s28, 0
    %p334 = por %p332, %p333
    %p335 = scmp.ne.s32.totalorder %s323, %s324
    %p336 = scmp.eq.s32.totalorder %s29, 3
    %p337 = por %p335, %p336
    %p339 = scmp.ne.s32.totalorder %s324, %s338
    %p340 = scmp.eq.s32.totalorder %s29, 0
    %p341 = por %p339, %p340
    %s343 = sadd.s32 %s342, 1
    %p346 = scmp.eq.s32.totalorder %s23, 3
    %p347 = scmp.ne.s32.totalorder %s342, %s344
    %p348 = scmp.eq.s32.totalorder %s23, 0
    %p349 = por %p347, %p348
    %p350 = scmp.ne.s32.totalorder %s342, %s344
    %p351 = scmp.eq.s32.totalorder %s28, 3
    %p352 = por %p350, %p351
    %p353 = scmp.ne.s32.totalorder %s344, %s345
    %p354 = scmp.eq.s32.totalorder %s28, 0
    %p355 = por %p353, %p354
    %p356 = scmp.ne.s32.totalorder %s344, %s345
    %p357 = scmp.eq.s32.totalorder %s29, 3
    %p358 = por %p356, %p357
    %p360 = scmp.ne.s32.totalorder %s345, %s359
    %p361 = scmp.eq.s32.totalorder %s29, 0
    %p362 = por %p360, %p361
    %s364 = sadd.s32 %s363, 1
    %p367 = scmp.eq.s32.totalorder %s23, 3
    %p368 = scmp.ne.s32.totalorder %s363, %s365
    %p369 = scmp.eq.s32.totalorder %s23, 0
    %p370 = por %p368, %p369
    %p371 = scmp.ne.s32.totalorder %s363, %s365
    %p372 = scmp.eq.s32.totalorder %s28, 3
    %p373 = por %p371, %p372
    %p374 = scmp.ne.s32.totalorder %s365, %s366
    %p375 = scmp.eq.s32.totalorder %s28, 0
    %p376 = por %p374, %p375
    %p377 = scmp.ne.s32.totalorder %s365, %s366
    %p378 = scmp.eq.s32.totalorder %s29, 3
    %p379 = por %p377, %p378
    %p381 = scmp.ne.s32.totalorder %s366, %s380
    %p382 = scmp.eq.s32.totalorder %s29, 0
    %p383 = por %p381, %p382
    %s385 = sadd.s32 %s384, 1
    %p388 = scmp.eq.s32.totalorder %s23, 3
    %p389 = scmp.ne.s32.totalorder %s384, %s386
    %p390 = scmp.eq.s32.totalorder %s23, 0
    %p391 = por %p389, %p390
    %p392 = scmp.ne.s32.totalorder %s384, %s386
    %p393 = scmp.eq.s32.totalorder %s28, 3
    %p394 = por %p392, %p393
    %p395 = scmp.ne.s32.totalorder %s386, %s387
    %p396 = scmp.eq.s32.totalorder %s28, 0
    %p397 = por %p395, %p396
    %p398 = scmp.ne.s32.totalorder %s386, %s387
    %p399 = scmp.eq.s32.totalorder %s29, 3
    %p400 = por %p398, %p399
    %p402 = scmp.ne.s32.totalorder %s387, %s401
    %p403 = scmp.eq.s32.totalorder %s29, 0
    %p404 = por %p402, %p403
    %s405 = ssub.s32 %s30, %s42
    %p406 = scmp.eq.s32.totalorder %s405, 0
    %s408 = sadd.s32 %s407, 1
    %s409 = scalar_select %p406, %s407, %s408
    %p412 = pneg %p406
    %p413 = scmp.eq.s32.totalorder %s23, 3
    %p414 = por %p412, %p413
    %p415 = scmp.ne.s32.totalorder %s407, %s410
    %p416 = scmp.eq.s32.totalorder %s23, 0
    %p417 = por %p415, %p416
    %p418 = scmp.ne.s32.totalorder %s407, %s410
    %p419 = scmp.eq.s32.totalorder %s28, 3
    %p420 = por %p418, %p419
    %p421 = scmp.ne.s32.totalorder %s410, %s411
    %p422 = scmp.eq.s32.totalorder %s28, 0
    %p423 = por %p421, %p422
    %p424 = scmp.ne.s32.totalorder %s410, %s411
    %p425 = scmp.eq.s32.totalorder %s29, 3
    %p426 = por %p424, %p425
    %p428 = scmp.ne.s32.totalorder %s411, %s427
    %p429 = scmp.eq.s32.totalorder %s29, 0
    %p430 = por %p428, %p429
    %p431 = scmp.le.s32.totalorder 1, %s23
    %p432 = scmp.lt.s32.totalorder %s23, 5
    %p433 = pnand %p431, %p432
    %p434 = pneg %p433
    // Predicated region
    $region9: #{vit_forward.1} parent=5 // pred_check
      _
    $region10: #{vit_forward.1} parent=5 // pred_check_branch
      %436 = sbr.rel (%p433) target = $region12
    $region11: #{vit_forward.1} parent=5 // pred_region
      %s437 = ssub.s32 %s23, 1
      // Predicated region
      $region13: #{vit_forward.1} parent=11 // pred_check
        %p438 = pneg %p61
      $region14: #{vit_forward.1} parent=11 // pred_check_branch
        %440 = sbr.rel (%p438) target = $region16
      $region15: #{vit_forward.1} parent=11 // pred_region
        %s441 = smul.u32 8, %s32
        %p442 = scmp.lt.s32.totalorder %s441, 7
        %s443 = scalar_select %p442, %s441, 7
        %s444 = smul.addr %s443, 2
        %s445 = smul.addr %s444, 4
        %s446 = scalar_lea.vmem %s0, %s445
        %s447 = smul.u32 8, %s32
      $region16: #{vit_forward.1} parent=11 // pred_fallthru
        _
      // Predicated region
      $region17: #{vit_forward.1} parent=11 // pred_check
        %p448 = pneg %p82
      $region18: #{vit_forward.1} parent=11 // pred_check_branch
        %450 = sbr.rel (%p448) target = $region20
      $region19: #{vit_forward.1} parent=11 // pred_region
        _
      $region20: #{vit_forward.1} parent=11 // pred_fallthru
        _
      // Predicated region
      $region21: #{vit_forward.1} parent=11 // pred_check
        %p451 = pneg %p103
      $region22: #{vit_forward.1} parent=11 // pred_check_branch
        %453 = sbr.rel (%p451) target = $region24
      $region23: #{vit_forward.1} parent=11 // pred_region
        _
      $region24: #{vit_forward.1} parent=11 // pred_fallthru
        _
      // Predicated region
      $region25: #{vit_forward.1} parent=11 // pred_check
        %p454 = pneg %p124
      $region26: #{vit_forward.1} parent=11 // pred_check_branch
        %456 = sbr.rel (%p454) target = $region28
      $region27: #{vit_forward.1} parent=11 // pred_region
        _
      $region28: #{vit_forward.1} parent=11 // pred_fallthru
        _
      // Predicated region
      $region29: #{vit_forward.1} parent=11 // pred_check
        %p457 = pneg %p145
      $region30: #{vit_forward.1} parent=11 // pred_check_branch
        %459 = sbr.rel (%p457) target = $region32
      $region31: #{vit_forward.1} parent=11 // pred_region
        _
      $region32: #{vit_forward.1} parent=11 // pred_fallthru
        _
      // Predicated region
      $region33: #{vit_forward.1} parent=11 // pred_check
        %p460 = pneg %p166
      $region34: #{vit_forward.1} parent=11 // pred_check_branch
        %462 = sbr.rel (%p460) target = $region36
      $region35: #{vit_forward.1} parent=11 // pred_region
        _
      $region36: #{vit_forward.1} parent=11 // pred_fallthru
        _
      // Predicated region
      $region37: #{vit_forward.1} parent=11 // pred_check
        %p463 = pneg %p187
      $region38: #{vit_forward.1} parent=11 // pred_check_branch
        %465 = sbr.rel (%p463) target = $region40
      $region39: #{vit_forward.1} parent=11 // pred_region
        _
      $region40: #{vit_forward.1} parent=11 // pred_fallthru
        _
      // Predicated region
      $region41: #{vit_forward.1} parent=11 // pred_check
        %p466 = pneg %p208
      $region42: #{vit_forward.1} parent=11 // pred_check_branch
        %468 = sbr.rel (%p466) target = $region44
      $region43: #{vit_forward.1} parent=11 // pred_region
        _
      $region44: #{vit_forward.1} parent=11 // pred_fallthru
        _
      // Predicated region
      $region45: #{vit_forward.1} parent=11 // pred_check
        %p469 = pneg %p229
      $region46: #{vit_forward.1} parent=11 // pred_check_branch
        %471 = sbr.rel (%p469) target = $region48
      $region47: #{vit_forward.1} parent=11 // pred_region
        _
      $region48: #{vit_forward.1} parent=11 // pred_fallthru
        _
      // Predicated region
      $region49: #{vit_forward.1} parent=11 // pred_check
        %p472 = pneg %p250
      $region50: #{vit_forward.1} parent=11 // pred_check_branch
        %474 = sbr.rel (%p472) target = $region52
      $region51: #{vit_forward.1} parent=11 // pred_region
        _
      $region52: #{vit_forward.1} parent=11 // pred_fallthru
        _
      // Predicated region
      $region53: #{vit_forward.1} parent=11 // pred_check
        %p475 = pneg %p271
      $region54: #{vit_forward.1} parent=11 // pred_check_branch
        %477 = sbr.rel (%p475) target = $region56
      $region55: #{vit_forward.1} parent=11 // pred_region
        _
      $region56: #{vit_forward.1} parent=11 // pred_fallthru
        _
      // Predicated region
      $region57: #{vit_forward.1} parent=11 // pred_check
        %p478 = pneg %p292
      $region58: #{vit_forward.1} parent=11 // pred_check_branch
        %480 = sbr.rel (%p478) target = $region60
      $region59: #{vit_forward.1} parent=11 // pred_region
        _
      $region60: #{vit_forward.1} parent=11 // pred_fallthru
        _
      // Predicated region
      $region61: #{vit_forward.1} parent=11 // pred_check
        %p481 = pneg %p313
      $region62: #{vit_forward.1} parent=11 // pred_check_branch
        %483 = sbr.rel (%p481) target = $region64
      $region63: #{vit_forward.1} parent=11 // pred_region
        _
      $region64: #{vit_forward.1} parent=11 // pred_fallthru
        _
      // Predicated region
      $region65: #{vit_forward.1} parent=11 // pred_check
        %p484 = pneg %p334
      $region66: #{vit_forward.1} parent=11 // pred_check_branch
        %486 = sbr.rel (%p484) target = $region68
      $region67: #{vit_forward.1} parent=11 // pred_region
        _
      $region68: #{vit_forward.1} parent=11 // pred_fallthru
        _
      // Predicated region
      $region69: #{vit_forward.1} parent=11 // pred_check
        %p487 = pneg %p355
      $region70: #{vit_forward.1} parent=11 // pred_check_branch
        %489 = sbr.rel (%p487) target = $region72
      $region71: #{vit_forward.1} parent=11 // pred_region
        _
      $region72: #{vit_forward.1} parent=11 // pred_fallthru
        _
      // Predicated region
      $region73: #{vit_forward.1} parent=11 // pred_check
        %p490 = pneg %p376
      $region74: #{vit_forward.1} parent=11 // pred_check_branch
        %492 = sbr.rel (%p490) target = $region76
      $region75: #{vit_forward.1} parent=11 // pred_region
        _
      $region76: #{vit_forward.1} parent=11 // pred_fallthru
        _
      // Predicated region
      $region77: #{vit_forward.1} parent=11 // pred_check
        %p493 = pneg %p397
      $region78: #{vit_forward.1} parent=11 // pred_check_branch
        %495 = sbr.rel (%p493) target = $region80
      $region79: #{vit_forward.1} parent=11 // pred_region
        _
      $region80: #{vit_forward.1} parent=11 // pred_fallthru
        _
    $region12: #{vit_forward.1} parent=5 // pred_fallthru
      _
    %p496 = scmp.lt.s32.totalorder %s23, 4
    // Predicated region
    $region81: #{vit_forward.1} parent=5 // pred_check
      %p497 = pneg %p496
    $region82: #{vit_forward.1} parent=5 // pred_check_branch
      %499 = sbr.rel (%p497) target = $region84
    $region83: #{vit_forward.1} parent=5 // pred_region
      _
    $region84: #{vit_forward.1} parent=5 // pred_fallthru
      _
    %p500 = scmp.le.s32.totalorder 1, %s23
    %p501 = scmp.lt.s32.totalorder %s23, 5
    %p502 = pnand %p500, %p501
    %p503 = pneg %p502
    // Predicated region
    $region85: #{vit_forward.1} parent=5 // pred_check
      _
    $region86: #{vit_forward.1} parent=5 // pred_check_branch
      %505 = sbr.rel (%p502) target = $region88
    $region87: #{vit_forward.1} parent=5 // pred_region
      %s506 = ssub.s32 %s23, 1
      %s507 = smul.u32 8, %s32
      %p508 = scmp.lt.s32.totalorder %s507, 7
      %s509 = scalar_select %p508, %s507, 7
      %s510 = smul.addr %s509, 2
      %s511 = smul.addr %s510, 4
      %s512 = scalar_lea.vmem %s0, %s511
      %p513 = pneg %p61
      %p514 = pneg %p58
      %p515 = pneg %p82
      %p516 = pneg %p79
      %p517 = pneg %p103
      %p518 = pneg %p100
      %p519 = pneg %p124
      %p520 = pneg %p121
      %p521 = pneg %p145
      %p522 = pneg %p142
      %p523 = pneg %p166
      %p524 = pneg %p163
      %p525 = pneg %p187
      %p526 = pneg %p184
      %p527 = pneg %p208
      %p528 = pneg %p205
      %p529 = pneg %p229
      %p530 = pneg %p226
      %p531 = pneg %p250
      %p532 = pneg %p247
      %p533 = pneg %p271
      %p534 = pneg %p268
      %p535 = pneg %p292
      %p536 = pneg %p289
      %p537 = pneg %p313
      %p538 = pneg %p310
      %p539 = pneg %p334
      %p540 = pneg %p331
      %p541 = pneg %p355
      %p542 = pneg %p352
      %p543 = pneg %p376
      %p544 = pneg %p373
      %p545 = pneg %p397
      %p546 = pneg %p394
      %p547 = pneg %p423
      %p548 = pneg %p420
      %p549 = scmp.lt.s32.totalorder %s32, 0
      %s550 = scalar_select %p549, %s32, 0
      %s551 = smul.addr %s550, 8
      %s552 = scalar_lea.vmem %s17, %s551
      %s553 = smul.u32 8, %s32
      %p554 = scmp.lt.s32.totalorder %s553, 7
      %s555 = scalar_select %p554, %s553, 7
      %s556 = smul.addr %s555, 2
      %s557 = smul.addr %s556, 4
      %s558 = scalar_lea.vmem %s0, %s557
      %s559 = smul.u32 8, %s32
      %p560 = scmp.lt.s32.totalorder %s32, 0
      %s561 = scalar_select %p560, %s32, 0
      %s562 = smul.addr %s561, 8
      %s563 = scalar_lea.vmem %s17, %s562
      %p565 = scmp.eq.s32.totalorder %s33, 0
      // Predicated region
      $region89: #{vit_forward.1} parent=87 // pred_check
        %p566 = pneg %p565
      $region90: #{vit_forward.1} parent=87 // pred_check_branch
        %568 = sbr.rel (%p566) target = $region92
      $region91: #{vit_forward.1} parent=87 // pred_region
        %v569 = vld [vmem:[%s558] sm:$0xf]
        %v570 = vld [vmem:[%s558 + $0x4] sm:$0xf]
        %v571 = vld [vmem:[%s558 + $0x8] sm:$0xf]
        %v572 = vld [vmem:[%s558 + $0xc] sm:$0xf]
        %v573 = vld [vmem:[%s558 + $0x10] sm:$0xf]
        %v574 = vld [vmem:[%s558 + $0x14] sm:$0xf]
        %v575 = vld [vmem:[%s558 + $0x18] sm:$0xf]
        %v576 = vld [vmem:[%s558 + $0x1c] sm:$0xf]
        %v577 = vld [vmem:[%s558 + $0x20] sm:$0xf]
        %v578 = vld [vmem:[%s558 + $0x24] sm:$0xf]
        %v579 = vld [vmem:[%s558 + $0x28] sm:$0xf]
        %v580 = vld [vmem:[%s558 + $0x2c] sm:$0xf]
        %v581 = vld [vmem:[%s558 + $0x30] sm:$0xf]
        %v582 = vld [vmem:[%s558 + $0x34] sm:$0xf]
        %v583 = vld [vmem:[%s558 + $0x38] sm:$0xf]
        %v584 = vld [vmem:[%s558 + $0x3c] sm:$0xf]
        %v585 = vld [vmem:[%s1] sm:$0xf]
        %v586 = vld [vmem:[%s1 + $0x4] sm:$0xf]
        %v587 = vld [vmem:[%s1 + $0x8] sm:$0xf]
        %v588 = vld [vmem:[%s1 + $0xc] sm:$0xf]
        %v589 = vld [vmem:[%s1 + $0x10] sm:$0xf]
        %v590 = vld [vmem:[%s1 + $0x14] sm:$0xf]
        %v591 = vld [vmem:[%s1 + $0x18] sm:$0xf]
        %v592 = vld [vmem:[%s1 + $0x1c] sm:$0xf]
        %v593 = vld [vmem:[%s2] sm:$0x1]
        %v595 = vlaneseq
        %v596 = vshrl.u32 %v595, 7
        %v597 = vsub.s32 0, %v596
        %v598 = vrot.slane %v593, %v597
        %v616 = vunpack.c.l.b16 %v569
        %v617 = vunpack.c.l.b16 %v570
        %v618 = vunpack.c.l.b16 %v571
        %v619 = vunpack.c.l.b16 %v572
        %v620 = vunpack.c.l.b16 %v573
        %v621 = vunpack.c.l.b16 %v574
        %v622 = vunpack.c.l.b16 %v575
        %v623 = vunpack.c.l.b16 %v576
        %v624 = vunpack.c.l.b16 %v577
        %v625 = vunpack.c.l.b16 %v578
        %v626 = vunpack.c.l.b16 %v579
        %v627 = vunpack.c.l.b16 %v580
        %v628 = vunpack.c.l.b16 %v581
        %v629 = vunpack.c.l.b16 %v582
        %v630 = vunpack.c.l.b16 %v583
        %v631 = vunpack.c.l.b16 %v584
        %v632 = vpack.c.b16 %v617, %v616
        %v633 = vpack.c.b16 %v619, %v618
        %v634 = vpack.c.b16 %v621, %v620
        %v635 = vpack.c.b16 %v623, %v622
        %v636 = vpack.c.b16 %v625, %v624
        %v637 = vpack.c.b16 %v627, %v626
        %v638 = vpack.c.b16 %v629, %v628
        %v639 = vpack.c.b16 %v631, %v630
        %v648 = vunpack.c.l.b16 %v585
        %v649 = vunpack.c.l.b16 %v586
        %v650 = vunpack.c.l.b16 %v587
        %v651 = vunpack.c.l.b16 %v588
        %v652 = vunpack.c.l.b16 %v589
        %v653 = vunpack.c.l.b16 %v590
        %v654 = vunpack.c.l.b16 %v591
        %v655 = vunpack.c.l.b16 %v592
        %v656 = vpack.c.b16 %v649, %v648
        %v657 = vpack.c.b16 %v651, %v650
        %v658 = vpack.c.b16 %v653, %v652
        %v659 = vpack.c.b16 %v655, %v654
        %vm664 = vcmask 523264
        %v666 = vsel %vm664, %v632, 0
        %v669 = vsel %vm664, %v633, 0
        %v672 = vsel %vm664, %v634, 0
        %v675 = vsel %vm664, %v635, 0
        %v678 = vsel %vm664, %v636, 0
        %v681 = vsel %vm664, %v637, 0
        %v684 = vsel %vm664, %v638, 0
        %v687 = vsel %vm664, %v639, 0
        %689 = vmatprep.subr.bf16.mxu0 0
        %690 = vmatpush1.bf16.msra.mxu0 %v656
        %691 = vmatprep.subr.bf16.mxu0 0
        %692 = vmatpush1.bf16.msra.mxu0 %v657
        %693 = vmatprep.subr.bf16.mxu0 0
        %694 = vmatpush1.bf16.msra.mxu0 %v658
        %695 = vmatprep.subr.bf16.mxu0 0
        %696 = vmatpush1.bf16.msra.mxu0 %v659
        %697 = vmatprep.subr.bf16.mxu0 0
        %698 = vmatpush1.bf16.msra.mxu0 0
        %699 = vmatprep.subr.bf16.mxu0 0
        %700 = vmatpush1.bf16.msra.mxu0 0
        %701 = vmatprep.subr.bf16.mxu0 0
        %702 = vmatpush1.bf16.msra.mxu0 0
        %703 = vmatprep.subr.bf16.mxu0 0
        %704 = vmatpush1.bf16.msra.mxu0 0
        %705 = vmatprep.subr.bf16.mxu0 0
        %706 = vmatpush1.bf16.msra.mxu0 0
        %707 = vmatprep.subr.bf16.mxu0 0
        %708 = vmatpush1.bf16.msra.mxu0 0
        %709 = vmatprep.subr.bf16.mxu0 0
        %710 = vmatpush1.bf16.msra.mxu0 0
        %711 = vmatprep.subr.bf16.mxu0 0
        %712 = vmatpush1.bf16.msra.mxu0 0
        %713 = vmatprep.subr.bf16.mxu0 0
        %714 = vmatpush1.bf16.msra.mxu0 0
        %715 = vmatprep.subr.bf16.mxu0 0
        %716 = vmatpush1.bf16.msra.mxu0 0
        %717 = vmatprep.subr.bf16.mxu0 0
        %718 = vmatpush1.bf16.msra.mxu0 0
        %719 = vmatprep.subr.bf16.mxu0 0
        %720 = vmatpush1.bf16.msra.mxu0 0
        %721 = vmatprep.mubr.bf16.mxu0 0
        %722 = vmatmul.mubr.bf16.gmra.mrb[0].mxu0 %v666
        %v723 = vpop.f32.mrb[0].mxu0
        %v724 = vadd.f32 %v598, %v723
        %v725 = vpop.f32.mrb[0].mxu0
        %v726 = vpop.f32.mrb[0].mxu0
        %v727 = vadd.f32 %v598, %v726
        %v728 = vpop.f32.mrb[0].mxu0
        %729 = vmatprep.mubr.bf16.mxu0 0
        %730 = vmatmul.mubr.bf16.gmra.mrb[0].mxu0 %v669
        %v731 = vpop.f32.mrb[0].mxu0
        %v732 = vadd.f32 %v598, %v731
        %v733 = vpop.f32.mrb[0].mxu0
        %v734 = vpop.f32.mrb[0].mxu0
        %v735 = vadd.f32 %v598, %v734
        %v736 = vpop.f32.mrb[0].mxu0
        %737 = vmatprep.mubr.bf16.mxu0 0
        %738 = vmatmul.mubr.bf16.gmra.mrb[0].mxu0 %v672
        %v739 = vpop.f32.mrb[0].mxu0
        %v740 = vadd.f32 %v598, %v739
        %v741 = vpop.f32.mrb[0].mxu0
        %v742 = vpop.f32.mrb[0].mxu0
        %v743 = vadd.f32 %v598, %v742
        %v744 = vpop.f32.mrb[0].mxu0
        %745 = vmatprep.mubr.bf16.mxu0 0
        %746 = vmatmul.mubr.bf16.gmra.mrb[0].mxu0 %v675
        %v747 = vpop.f32.mrb[0].mxu0
        %v748 = vadd.f32 %v598, %v747
        %v749 = vpop.f32.mrb[0].mxu0
        %v750 = vpop.f32.mrb[0].mxu0
        %v751 = vadd.f32 %v598, %v750
        %v752 = vpop.f32.mrb[0].mxu0
        %753 = vmatprep.mubr.bf16.mxu0 0
        %754 = vmatmul.mubr.bf16.gmra.mrb[0].mxu0 %v678
        %v755 = vpop.f32.mrb[0].mxu0
        %v756 = vadd.f32 %v598, %v755
        %v757 = vpop.f32.mrb[0].mxu0
        %v758 = vpop.f32.mrb[0].mxu0
        %v759 = vadd.f32 %v598, %v758
        %v760 = vpop.f32.mrb[0].mxu0
        %761 = vmatprep.mubr.bf16.mxu0 0
        %762 = vmatmul.mubr.bf16.gmra.mrb[0].mxu0 %v681
        %v763 = vpop.f32.mrb[0].mxu0
        %v764 = vadd.f32 %v598, %v763
        %v765 = vpop.f32.mrb[0].mxu0
        %v766 = vpop.f32.mrb[0].mxu0
        %v767 = vadd.f32 %v598, %v766
        %v768 = vpop.f32.mrb[0].mxu0
        %769 = vmatprep.mubr.bf16.mxu0 0
        %770 = vmatmul.mubr.bf16.gmra.mrb[0].mxu0 %v684
        %v771 = vpop.f32.mrb[0].mxu0
        %v772 = vadd.f32 %v598, %v771
        %v773 = vpop.f32.mrb[0].mxu0
        %v774 = vpop.f32.mrb[0].mxu0
        %v775 = vadd.f32 %v598, %v774
        %v776 = vpop.f32.mrb[0].mxu0
        %777 = vmatprep.mubr.bf16.mxu0 0
        %778 = vmatmul.mubr.bf16.gmra.mrb[0].mxu0 %v687
        %v779 = vpop.f32.mrb[0].mxu0
        %v780 = vadd.f32 %v598, %v779
        %v781 = vpop.f32.mrb[0].mxu0
        %v782 = vpop.f32.mrb[0].mxu0
        %v783 = vadd.f32 %v598, %v782
        %v784 = vpop.f32.mrb[0].mxu0
        %785 = vdwg.mxu0
        %786 = vst.msk [vmem:[#allocation2] sm:$0xff] %vm664, %v724
        %787 = vst.msk [vmem:[#allocation2 + $0x8] sm:$0xff] %vm664, %v727
        %788 = vst.msk [vmem:[#allocation2 + $0x10] sm:$0xff] %vm664, %v732
        %789 = vst.msk [vmem:[#allocation2 + $0x18] sm:$0xff] %vm664, %v735
        %790 = vst.msk [vmem:[#allocation2 + $0x20] sm:$0xff] %vm664, %v740
        %791 = vst.msk [vmem:[#allocation2 + $0x28] sm:$0xff] %vm664, %v743
        %792 = vst.msk [vmem:[#allocation2 + $0x30] sm:$0xff] %vm664, %v748
        %793 = vst.msk [vmem:[#allocation2 + $0x38] sm:$0xff] %vm664, %v751
        %794 = vst.msk [vmem:[#allocation2 + $0x40] sm:$0xff] %vm664, %v756
        %795 = vst.msk [vmem:[#allocation2 + $0x48] sm:$0xff] %vm664, %v759
        %796 = vst.msk [vmem:[#allocation2 + $0x50] sm:$0xff] %vm664, %v764
        %797 = vst.msk [vmem:[#allocation2 + $0x58] sm:$0xff] %vm664, %v767
        %798 = vst.msk [vmem:[#allocation2 + $0x60] sm:$0xff] %vm664, %v772
        %799 = vst.msk [vmem:[#allocation2 + $0x68] sm:$0xff] %vm664, %v775
        %800 = vst.msk [vmem:[#allocation2 + $0x70] sm:$0xff] %vm664, %v780
        %801 = vst.msk [vmem:[#allocation2 + $0x78] sm:$0xff] %vm664, %v783
      $region92: #{vit_forward.1} parent=87 // pred_fallthru
        _
      %v802 = vld [vmem:[#allocation2] sm:$0xff]
      %v803 = vld [vmem:[#allocation2 + $0x8] sm:$0xff]
      %v804 = vld [vmem:[#allocation2 + $0x10] sm:$0xff]
      %v805 = vld [vmem:[#allocation2 + $0x18] sm:$0xff]
      %v806 = vld [vmem:[#allocation2 + $0x20] sm:$0xff]
      %v807 = vld [vmem:[#allocation2 + $0x28] sm:$0xff]
      %v808 = vld [vmem:[#allocation2 + $0x30] sm:$0xff]
      %v809 = vld [vmem:[#allocation2 + $0x38] sm:$0xff]
      %v810 = vld [vmem:[#allocation2 + $0x40] sm:$0xff]
      %v811 = vld [vmem:[#allocation2 + $0x48] sm:$0xff]
      %v812 = vld [vmem:[#allocation2 + $0x50] sm:$0xff]
      %v813 = vld [vmem:[#allocation2 + $0x58] sm:$0xff]
      %v814 = vld [vmem:[#allocation2 + $0x60] sm:$0xff]
      %v815 = vld [vmem:[#allocation2 + $0x68] sm:$0xff]
      %v816 = vld [vmem:[#allocation2 + $0x70] sm:$0xff]
      %v817 = vld [vmem:[#allocation2 + $0x78] sm:$0xff]
      %s818 = smul.u32 %s33, 16
      %s819 = smul.addr %s818, 4
      %s820 = scalar_lea.vmem %s3, %s819
      %v821 = vld [vmem:[%s820] sm:$0xff]
      %v822 = vld [vmem:[%s820 + $0x8] sm:$0xff]
      %v823 = vld [vmem:[%s820 + $0x10] sm:$0xff]
      %v824 = vld [vmem:[%s820 + $0x18] sm:$0xff]
      %v825 = vld [vmem:[%s820 + $0x20] sm:$0xff]
      %v826 = vld [vmem:[%s820 + $0x28] sm:$0xff]
      %v827 = vld [vmem:[%s820 + $0x30] sm:$0xff]
      %v828 = vld [vmem:[%s820 + $0x38] sm:$0xff]
      %s829 = smul.u32 %s33, 2
      %s830 = scalar_lea.vmem %s4, %s829
      %v831 = vld [vmem:[%s830] sm:$0x3]
      %s832 = smul.u32 %s33, 8
      %s833 = smul.addr %s832, 4
      %s834 = scalar_lea.vmem %s5, %s833
      %v835 = vld [vmem:[%s834] sm:$0xf]
      %v836 = vld [vmem:[%s834 + $0x4] sm:$0xf]
      %v837 = vld [vmem:[%s834 + $0x8] sm:$0xf]
      %v838 = vld [vmem:[%s834 + $0xc] sm:$0xf]
      %v839 = vld [vmem:[%s834 + $0x10] sm:$0xf]
      %v840 = vld [vmem:[%s834 + $0x14] sm:$0xf]
      %v841 = vld [vmem:[%s834 + $0x18] sm:$0xf]
      %v842 = vld [vmem:[%s834 + $0x1c] sm:$0xf]
      %s843 = scalar_lea.vmem %s6, %s33
      %v844 = vld [vmem:[%s843] sm:$0x1]
      %s845 = scalar_lea.vmem %s7, %s33
      %v846 = vld [vmem:[%s845] sm:$0x1]
      %s847 = scalar_lea.vmem %s8, %s33
      %v848 = vld [vmem:[%s847] sm:$0x1]
      %s849 = smul.u32 %s33, 128
      %s850 = smul.addr %s849, 4
      %s851 = scalar_lea.vmem %s9, %s850
      %v852 = vld [vmem:[%s851] sm:$0xff]
      %v853 = vld [vmem:[%s851 + $0x8] sm:$0xff]
      %v854 = vld [vmem:[%s851 + $0x10] sm:$0xff]
      %v855 = vld [vmem:[%s851 + $0x18] sm:$0xff]
      %v856 = vld [vmem:[%s851 + $0x20] sm:$0xff]
      %v857 = vld [vmem:[%s851 + $0x28] sm:$0xff]
      %v858 = vld [vmem:[%s851 + $0x30] sm:$0xff]
      %v859 = vld [vmem:[%s851 + $0x38] sm:$0xff]
      %v860 = vld [vmem:[%s851 + $0x40] sm:$0xff]
      %v861 = vld [vmem:[%s851 + $0x48] sm:$0xff]
      %v862 = vld [vmem:[%s851 + $0x50] sm:$0xff]
      %v863 = vld [vmem:[%s851 + $0x58] sm:$0xff]
      %v864 = vld [vmem:[%s851 + $0x60] sm:$0xff]
      %v865 = vld [vmem:[%s851 + $0x68] sm:$0xff]
      %v866 = vld [vmem:[%s851 + $0x70] sm:$0xff]
      %v867 = vld [vmem:[%s851 + $0x78] sm:$0xff]
      %v868 = vld [vmem:[%s851 + $0x80] sm:$0xff]
      %v869 = vld [vmem:[%s851 + $0x88] sm:$0xff]
      %v870 = vld [vmem:[%s851 + $0x90] sm:$0xff]
      %v871 = vld [vmem:[%s851 + $0x98] sm:$0xff]
      %v872 = vld [vmem:[%s851 + $0xa0] sm:$0xff]
      %v873 = vld [vmem:[%s851 + $0xa8] sm:$0xff]
      %v874 = vld [vmem:[%s851 + $0xb0] sm:$0xff]
      %v875 = vld [vmem:[%s851 + $0xb8] sm:$0xff]
      %v876 = vld [vmem:[%s851 + $0xc0] sm:$0xff]
      %v877 = vld [vmem:[%s851 + $0xc8] sm:$0xff]
      %v878 = vld [vmem:[%s851 + $0xd0] sm:$0xff]
      %v879 = vld [vmem:[%s851 + $0xd8] sm:$0xff]
      %v880 = vld [vmem:[%s851 + $0xe0] sm:$0xff]
      %v881 = vld [vmem:[%s851 + $0xe8] sm:$0xff]
      %v882 = vld [vmem:[%s851 + $0xf0] sm:$0xff]
      %v883 = vld [vmem:[%s851 + $0xf8] sm:$0xff]
      %v884 = vld [vmem:[%s851 + $0x100] sm:$0xff]
      %v885 = vld [vmem:[%s851 + $0x108] sm:$0xff]
      %v886 = vld [vmem:[%s851 + $0x110] sm:$0xff]
      %v887 = vld [vmem:[%s851 + $0x118] sm:$0xff]
      %v888 = vld [vmem:[%s851 + $0x120] sm:$0xff]
      %v889 = vld [vmem:[%s851 + $0x128] sm:$0xff]
      %v890 = vld [vmem:[%s851 + $0x130] sm:$0xff]
      %v891 = vld [vmem:[%s851 + $0x138] sm:$0xff]
      %v892 = vld [vmem:[%s851 + $0x140] sm:$0xff]
      %v893 = vld [vmem:[%s851 + $0x148] sm:$0xff]
      %v894 = vld [vmem:[%s851 + $0x150] sm:$0xff]
      %v895 = vld [vmem:[%s851 + $0x158] sm:$0xff]
      %v896 = vld [vmem:[%s851 + $0x160] sm:$0xff]
      %v897 = vld [vmem:[%s851 + $0x168] sm:$0xff]
      %v898 = vld [vmem:[%s851 + $0x170] sm:$0xff]
      %v899 = vld [vmem:[%s851 + $0x178] sm:$0xff]
      %v900 = vld [vmem:[%s851 + $0x180] sm:$0xff]
      %v901 = vld [vmem:[%s851 + $0x188] sm:$0xff]
      %v902 = vld [vmem:[%s851 + $0x190] sm:$0xff]
      %v903 = vld [vmem:[%s851 + $0x198] sm:$0xff]
      %v904 = vld [vmem:[%s851 + $0x1a0] sm:$0xff]
      %v905 = vld [vmem:[%s851 + $0x1a8] sm:$0xff]
      %v906 = vld [vmem:[%s851 + $0x1b0] sm:$0xff]
      %v907 = vld [vmem:[%s851 + $0x1b8] sm:$0xff]
      %v908 = vld [vmem:[%s851 + $0x1c0] sm:$0xff]
      %v909 = vld [vmem:[%s851 + $0x1c8] sm:$0xff]
      %v910 = vld [vmem:[%s851 + $0x1d0] sm:$0xff]
      %v911 = vld [vmem:[%s851 + $0x1d8] sm:$0xff]
      %v912 = vld [vmem:[%s851 + $0x1e0] sm:$0xff]
      %v913 = vld [vmem:[%s851 + $0x1e8] sm:$0xff]
      %v914 = vld [vmem:[%s851 + $0x1f0] sm:$0xff]
      %v915 = vld [vmem:[%s851 + $0x1f8] sm:$0xff]
      %s916 = scalar_lea.vmem %s10, %s818
      %v917 = vld [vmem:[%s916] sm:$0xff]
      %v918 = vld [vmem:[%s916 + $0x8] sm:$0xff]
      %s919 = smul.u32 %s33, 256
      %s920 = smul.addr %s919, 4
      %s921 = scalar_lea.vmem %s11, %s920
      %v922 = vld [vmem:[%s921] sm:$0xf]
      %v923 = vld [vmem:[%s921 + $0x4] sm:$0xf]
      %v924 = vld [vmem:[%s921 + $0x8] sm:$0xf]
      %v925 = vld [vmem:[%s921 + $0xc] sm:$0xf]
      %v926 = vld [vmem:[%s921 + $0x10] sm:$0xf]
      %v927 = vld [vmem:[%s921 + $0x14] sm:$0xf]
      %v928 = vld [vmem:[%s921 + $0x18] sm:$0xf]
      %v929 = vld [vmem:[%s921 + $0x1c] sm:$0xf]
      %v930 = vld [vmem:[%s921 + $0x20] sm:$0xf]
      %v931 = vld [vmem:[%s921 + $0x24] sm:$0xf]
      %v932 = vld [vmem:[%s921 + $0x28] sm:$0xf]
      %v933 = vld [vmem:[%s921 + $0x2c] sm:$0xf]
      %v934 = vld [vmem:[%s921 + $0x30] sm:$0xf]
      %v935 = vld [vmem:[%s921 + $0x34] sm:$0xf]
      %v936 = vld [vmem:[%s921 + $0x38] sm:$0xf]
      %v937 = vld [vmem:[%s921 + $0x3c] sm:$0xf]
      %v938 = vld [vmem:[%s921 + $0x40] sm:$0xf]
      %v939 = vld [vmem:[%s921 + $0x44] sm:$0xf]
      %v940 = vld [vmem:[%s921 + $0x48] sm:$0xf]
      %v941 = vld [vmem:[%s921 + $0x4c] sm:$0xf]
      %v942 = vld [vmem:[%s921 + $0x50] sm:$0xf]
      %v943 = vld [vmem:[%s921 + $0x54] sm:$0xf]
      %v944 = vld [vmem:[%s921 + $0x58] sm:$0xf]
      %v945 = vld [vmem:[%s921 + $0x5c] sm:$0xf]
      %v946 = vld [vmem:[%s921 + $0x60] sm:$0xf]
      %v947 = vld [vmem:[%s921 + $0x64] sm:$0xf]
      %v948 = vld [vmem:[%s921 + $0x68] sm:$0xf]
      %v949 = vld [vmem:[%s921 + $0x6c] sm:$0xf]
      %v950 = vld [vmem:[%s921 + $0x70] sm:$0xf]
      %v951 = vld [vmem:[%s921 + $0x74] sm:$0xf]
      %v952 = vld [vmem:[%s921 + $0x78] sm:$0xf]
      %v953 = vld [vmem:[%s921 + $0x7c] sm:$0xf]
      %v954 = vld [vmem:[%s921 + $0x80] sm:$0xf]
      %v955 = vld [vmem:[%s921 + $0x84] sm:$0xf]
      %v956 = vld [vmem:[%s921 + $0x88] sm:$0xf]
      %v957 = vld [vmem:[%s921 + $0x8c] sm:$0xf]
      %v958 = vld [vmem:[%s921 + $0x90] sm:$0xf]
      %v959 = vld [vmem:[%s921 + $0x94] sm:$0xf]
      %v960 = vld [vmem:[%s921 + $0x98] sm:$0xf]
      %v961 = vld [vmem:[%s921 + $0x9c] sm:$0xf]
      %v962 = vld [vmem:[%s921 + $0xa0] sm:$0xf]
      %v963 = vld [vmem:[%s921 + $0xa4] sm:$0xf]
      %v964 = vld [vmem:[%s921 + $0xa8] sm:$0xf]
      %v965 = vld [vmem:[%s921 + $0xac] sm:$0xf]
      %v966 = vld [vmem:[%s921 + $0xb0] sm:$0xf]
      %v967 = vld [vmem:[%s921 + $0xb4] sm:$0xf]
      %v968 = vld [vmem:[%s921 + $0xb8] sm:$0xf]
      %v969 = vld [vmem:[%s921 + $0xbc] sm:$0xf]
      %v970 = vld [vmem:[%s921 + $0xc0] sm:$0xf]
      %v971 = vld [vmem:[%s921 + $0xc4] sm:$0xf]
      %v972 = vld [vmem:[%s921 + $0xc8] sm:$0xf]
      %v973 = vld [vmem:[%s921 + $0xcc] sm:$0xf]
      %v974 = vld [vmem:[%s921 + $0xd0] sm:$0xf]
      %v975 = vld [vmem:[%s921 + $0xd4] sm:$0xf]
      %v976 = vld [vmem:[%s921 + $0xd8] sm:$0xf]
      %v977 = vld [vmem:[%s921 + $0xdc] sm:$0xf]
      %v978 = vld [vmem:[%s921 + $0xe0] sm:$0xf]
      %v979 = vld [vmem:[%s921 + $0xe4] sm:$0xf]
      %v980 = vld [vmem:[%s921 + $0xe8] sm:$0xf]
      %v981 = vld [vmem:[%s921 + $0xec] sm:$0xf]
      %v982 = vld [vmem:[%s921 + $0xf0] sm:$0xf]
      %v983 = vld [vmem:[%s921 + $0xf4] sm:$0xf]
      %v984 = vld [vmem:[%s921 + $0xf8] sm:$0xf]
      %v985 = vld [vmem:[%s921 + $0xfc] sm:$0xf]
      %v986 = vld [vmem:[%s921 + $0x100] sm:$0xf]
      %v987 = vld [vmem:[%s921 + $0x104] sm:$0xf]
      %v988 = vld [vmem:[%s921 + $0x108] sm:$0xf]
      %v989 = vld [vmem:[%s921 + $0x10c] sm:$0xf]
      %v990 = vld [vmem:[%s921 + $0x110] sm:$0xf]
      %v991 = vld [vmem:[%s921 + $0x114] sm:$0xf]
      %v992 = vld [vmem:[%s921 + $0x118] sm:$0xf]
      %v993 = vld [vmem:[%s921 + $0x11c] sm:$0xf]
      %v994 = vld [vmem:[%s921 + $0x120] sm:$0xf]
      %v995 = vld [vmem:[%s921 + $0x124] sm:$0xf]
      %v996 = vld [vmem:[%s921 + $0x128] sm:$0xf]
      %v997 = vld [vmem:[%s921 + $0x12c] sm:$0xf]
      %v998 = vld [vmem:[%s921 + $0x130] sm:$0xf]
      %v999 = vld [vmem:[%s921 + $0x134] sm:$0xf]
      %v1000 = vld [vmem:[%s921 + $0x138] sm:$0xf]
      %v1001 = vld [vmem:[%s921 + $0x13c] sm:$0xf]
      %v1002 = vld [vmem:[%s921 + $0x140] sm:$0xf]
      %v1003 = vld [vmem:[%s921 + $0x144] sm:$0xf]
      %v1004 = vld [vmem:[%s921 + $0x148] sm:$0xf]
      %v1005 = vld [vmem:[%s921 + $0x14c] sm:$0xf]
      %v1006 = vld [vmem:[%s921 + $0x150] sm:$0xf]
      %v1007 = vld [vmem:[%s921 + $0x154] sm:$0xf]
      %v1008 = vld [vmem:[%s921 + $0x158] sm:$0xf]
      %v1009 = vld [vmem:[%s921 + $0x15c] sm:$0xf]
      %v1010 = vld [vmem:[%s921 + $0x160] sm:$0xf]
      %v1011 = vld [vmem:[%s921 + $0x164] sm:$0xf]
      %v1012 = vld [vmem:[%s921 + $0x168] sm:$0xf]
      %v1013 = vld [vmem:[%s921 + $0x16c] sm:$0xf]
      %v1014 = vld [vmem:[%s921 + $0x170] sm:$0xf]
      %v1015 = vld [vmem:[%s921 + $0x174] sm:$0xf]
      %v1016 = vld [vmem:[%s921 + $0x178] sm:$0xf]
      %v1017 = vld [vmem:[%s921 + $0x17c] sm:$0xf]
      %v1018 = vld [vmem:[%s921 + $0x180] sm:$0xf]
      %v1019 = vld [vmem:[%s921 + $0x184] sm:$0xf]
      %v1020 = vld [vmem:[%s921 + $0x188] sm:$0xf]
      %v1021 = vld [vmem:[%s921 + $0x18c] sm:$0xf]
      %v1022 = vld [vmem:[%s921 + $0x190] sm:$0xf]
      %v1023 = vld [vmem:[%s921 + $0x194] sm:$0xf]
      %v1024 = vld [vmem:[%s921 + $0x198] sm:$0xf]
      %v1025 = vld [vmem:[%s921 + $0x19c] sm:$0xf]
      %v1026 = vld [vmem:[%s921 + $0x1a0] sm:$0xf]
      %v1027 = vld [vmem:[%s921 + $0x1a4] sm:$0xf]
      %v1028 = vld [vmem:[%s921 + $0x1a8] sm:$0xf]
      %v1029 = vld [vmem:[%s921 + $0x1ac] sm:$0xf]
      %v1030 = vld [vmem:[%s921 + $0x1b0] sm:$0xf]
      %v1031 = vld [vmem:[%s921 + $0x1b4] sm:$0xf]
      %v1032 = vld [vmem:[%s921 + $0x1b8] sm:$0xf]
      %v1033 = vld [vmem:[%s921 + $0x1bc] sm:$0xf]
      %v1034 = vld [vmem:[%s921 + $0x1c0] sm:$0xf]
      %v1035 = vld [vmem:[%s921 + $0x1c4] sm:$0xf]
      %v1036 = vld [vmem:[%s921 + $0x1c8] sm:$0xf]
      %v1037 = vld [vmem:[%s921 + $0x1cc] sm:$0xf]
      %v1038 = vld [vmem:[%s921 + $0x1d0] sm:$0xf]
      %v1039 = vld [vmem:[%s921 + $0x1d4] sm:$0xf]
      %v1040 = vld [vmem:[%s921 + $0x1d8] sm:$0xf]
      %v1041 = vld [vmem:[%s921 + $0x1dc] sm:$0xf]
      %v1042 = vld [vmem:[%s921 + $0x1e0] sm:$0xf]
      %v1043 = vld [vmem:[%s921 + $0x1e4] sm:$0xf]
      %v1044 = vld [vmem:[%s921 + $0x1e8] sm:$0xf]
      %v1045 = vld [vmem:[%s921 + $0x1ec] sm:$0xf]
      %v1046 = vld [vmem:[%s921 + $0x1f0] sm:$0xf]
      %v1047 = vld [vmem:[%s921 + $0x1f4] sm:$0xf]
      %v1048 = vld [vmem:[%s921 + $0x1f8] sm:$0xf]
      %v1049 = vld [vmem:[%s921 + $0x1fc] sm:$0xf]
      %v1050 = vld [vmem:[%s921 + $0x200] sm:$0xf]
      %v1051 = vld [vmem:[%s921 + $0x204] sm:$0xf]
      %v1052 = vld [vmem:[%s921 + $0x208] sm:$0xf]
      %v1053 = vld [vmem:[%s921 + $0x20c] sm:$0xf]
      %v1054 = vld [vmem:[%s921 + $0x210] sm:$0xf]
      %v1055 = vld [vmem:[%s921 + $0x214] sm:$0xf]
      %v1056 = vld [vmem:[%s921 + $0x218] sm:$0xf]
      %v1057 = vld [vmem:[%s921 + $0x21c] sm:$0xf]
      %v1058 = vld [vmem:[%s921 + $0x220] sm:$0xf]
      %v1059 = vld [vmem:[%s921 + $0x224] sm:$0xf]
      %v1060 = vld [vmem:[%s921 + $0x228] sm:$0xf]
      %v1061 = vld [vmem:[%s921 + $0x22c] sm:$0xf]
      %v1062 = vld [vmem:[%s921 + $0x230] sm:$0xf]
      %v1063 = vld [vmem:[%s921 + $0x234] sm:$0xf]
      %v1064 = vld [vmem:[%s921 + $0x238] sm:$0xf]
      %v1065 = vld [vmem:[%s921 + $0x23c] sm:$0xf]
      %v1066 = vld [vmem:[%s921 + $0x240] sm:$0xf]
      %v1067 = vld [vmem:[%s921 + $0x244] sm:$0xf]
      %v1068 = vld [vmem:[%s921 + $0x248] sm:$0xf]
      %v1069 = vld [vmem:[%s921 + $0x24c] sm:$0xf]
      %v1070 = vld [vmem:[%s921 + $0x250] sm:$0xf]
      %v1071 = vld [vmem:[%s921 + $0x254] sm:$0xf]
      %v1072 = vld [vmem:[%s921 + $0x258] sm:$0xf]
      %v1073 = vld [vmem:[%s921 + $0x25c] sm:$0xf]
      %v1074 = vld [vmem:[%s921 + $0x260] sm:$0xf]
      %v1075 = vld [vmem:[%s921 + $0x264] sm:$0xf]
      %v1076 = vld [vmem:[%s921 + $0x268] sm:$0xf]
      %v1077 = vld [vmem:[%s921 + $0x26c] sm:$0xf]
      %v1078 = vld [vmem:[%s921 + $0x270] sm:$0xf]
      %v1079 = vld [vmem:[%s921 + $0x274] sm:$0xf]
      %v1080 = vld [vmem:[%s921 + $0x278] sm:$0xf]
      %v1081 = vld [vmem:[%s921 + $0x27c] sm:$0xf]
      %v1082 = vld [vmem:[%s921 + $0x280] sm:$0xf]
      %v1083 = vld [vmem:[%s921 + $0x284] sm:$0xf]
      %v1084 = vld [vmem:[%s921 + $0x288] sm:$0xf]
      %v1085 = vld [vmem:[%s921 + $0x28c] sm:$0xf]
      %v1086 = vld [vmem:[%s921 + $0x290] sm:$0xf]
      %v1087 = vld [vmem:[%s921 + $0x294] sm:$0xf]
      %v1088 = vld [vmem:[%s921 + $0x298] sm:$0xf]
      %v1089 = vld [vmem:[%s921 + $0x29c] sm:$0xf]
      %v1090 = vld [vmem:[%s921 + $0x2a0] sm:$0xf]
      %v1091 = vld [vmem:[%s921 + $0x2a4] sm:$0xf]
      %v1092 = vld [vmem:[%s921 + $0x2a8] sm:$0xf]
      %v1093 = vld [vmem:[%s921 + $0x2ac] sm:$0xf]
      %v1094 = vld [vmem:[%s921 + $0x2b0] sm:$0xf]
      %v1095 = vld [vmem:[%s921 + $0x2b4] sm:$0xf]
      %v1096 = vld [vmem:[%s921 + $0x2b8] sm:$0xf]
      %v1097 = vld [vmem:[%s921 + $0x2bc] sm:$0xf]
      %v1098 = vld [vmem:[%s921 + $0x2c0] sm:$0xf]
      %v1099 = vld [vmem:[%s921 + $0x2c4] sm:$0xf]
      %v1100 = vld [vmem:[%s921 + $0x2c8] sm:$0xf]
      %v1101 = vld [vmem:[%s921 + $0x2cc] sm:$0xf]
      %v1102 = vld [vmem:[%s921 + $0x2d0] sm:$0xf]
      %v1103 = vld [vmem:[%s921 + $0x2d4] sm:$0xf]
      %v1104 = vld [vmem:[%s921 + $0x2d8] sm:$0xf]
      %v1105 = vld [vmem:[%s921 + $0x2dc] sm:$0xf]
      %v1106 = vld [vmem:[%s921 + $0x2e0] sm:$0xf]
      %v1107 = vld [vmem:[%s921 + $0x2e4] sm:$0xf]
      %v1108 = vld [vmem:[%s921 + $0x2e8] sm:$0xf]
      %v1109 = vld [vmem:[%s921 + $0x2ec] sm:$0xf]
      %v1110 = vld [vmem:[%s921 + $0x2f0] sm:$0xf]
      %v1111 = vld [vmem:[%s921 + $0x2f4] sm:$0xf]
      %v1112 = vld [vmem:[%s921 + $0x2f8] sm:$0xf]
      %v1113 = vld [vmem:[%s921 + $0x2fc] sm:$0xf]
      %v1114 = vld [vmem:[%s921 + $0x300] sm:$0xf]
      %v1115 = vld [vmem:[%s921 + $0x304] sm:$0xf]
      %v1116 = vld [vmem:[%s921 + $0x308] sm:$0xf]
      %v1117 = vld [vmem:[%s921 + $0x30c] sm:$0xf]
      %v1118 = vld [vmem:[%s921 + $0x310] sm:$0xf]
      %v1119 = vld [vmem:[%s921 + $0x314] sm:$0xf]
      %v1120 = vld [vmem:[%s921 + $0x318] sm:$0xf]
      %v1121 = vld [vmem:[%s921 + $0x31c] sm:$0xf]
      %v1122 = vld [vmem:[%s921 + $0x320] sm:$0xf]
      %v1123 = vld [vmem:[%s921 + $0x324] sm:$0xf]
      %v1124 = vld [vmem:[%s921 + $0x328] sm:$0xf]
      %v1125 = vld [vmem:[%s921 + $0x32c] sm:$0xf]
      %v1126 = vld [vmem:[%s921 + $0x330] sm:$0xf]
      %v1127 = vld [vmem:[%s921 + $0x334] sm:$0xf]
      %v1128 = vld [vmem:[%s921 + $0x338] sm:$0xf]
      %v1129 = vld [vmem:[%s921 + $0x33c] sm:$0xf]
      %v1130 = vld [vmem:[%s921 + $0x340] sm:$0xf]
      %v1131 = vld [vmem:[%s921 + $0x344] sm:$0xf]
      %v1132 = vld [vmem:[%s921 + $0x348] sm:$0xf]
      %v1133 = vld [vmem:[%s921 + $0x34c] sm:$0xf]
      %v1134 = vld [vmem:[%s921 + $0x350] sm:$0xf]
      %v1135 = vld [vmem:[%s921 + $0x354] sm:$0xf]
      %v1136 = vld [vmem:[%s921 + $0x358] sm:$0xf]
      %v1137 = vld [vmem:[%s921 + $0x35c] sm:$0xf]
      %v1138 = vld [vmem:[%s921 + $0x360] sm:$0xf]
      %v1139 = vld [vmem:[%s921 + $0x364] sm:$0xf]
      %v1140 = vld [vmem:[%s921 + $0x368] sm:$0xf]
      %v1141 = vld [vmem:[%s921 + $0x36c] sm:$0xf]
      %v1142 = vld [vmem:[%s921 + $0x370] sm:$0xf]
      %v1143 = vld [vmem:[%s921 + $0x374] sm:$0xf]
      %v1144 = vld [vmem:[%s921 + $0x378] sm:$0xf]
      %v1145 = vld [vmem:[%s921 + $0x37c] sm:$0xf]
      %v1146 = vld [vmem:[%s921 + $0x380] sm:$0xf]
      %v1147 = vld [vmem:[%s921 + $0x384] sm:$0xf]
      %v1148 = vld [vmem:[%s921 + $0x388] sm:$0xf]
      %v1149 = vld [vmem:[%s921 + $0x38c] sm:$0xf]
      %v1150 = vld [vmem:[%s921 + $0x390] sm:$0xf]
      %v1151 = vld [vmem:[%s921 + $0x394] sm:$0xf]
      %v1152 = vld [vmem:[%s921 + $0x398] sm:$0xf]
      %v1153 = vld [vmem:[%s921 + $0x39c] sm:$0xf]
      %v1154 = vld [vmem:[%s921 + $0x3a0] sm:$0xf]
      %v1155 = vld [vmem:[%s921 + $0x3a4] sm:$0xf]
      %v1156 = vld [vmem:[%s921 + $0x3a8] sm:$0xf]
      %v1157 = vld [vmem:[%s921 + $0x3ac] sm:$0xf]
      %v1158 = vld [vmem:[%s921 + $0x3b0] sm:$0xf]
      %v1159 = vld [vmem:[%s921 + $0x3b4] sm:$0xf]
      %v1160 = vld [vmem:[%s921 + $0x3b8] sm:$0xf]
      %v1161 = vld [vmem:[%s921 + $0x3bc] sm:$0xf]
      %v1162 = vld [vmem:[%s921 + $0x3c0] sm:$0xf]
      %v1163 = vld [vmem:[%s921 + $0x3c4] sm:$0xf]
      %v1164 = vld [vmem:[%s921 + $0x3c8] sm:$0xf]
      %v1165 = vld [vmem:[%s921 + $0x3cc] sm:$0xf]
      %v1166 = vld [vmem:[%s921 + $0x3d0] sm:$0xf]
      %v1167 = vld [vmem:[%s921 + $0x3d4] sm:$0xf]
      %v1168 = vld [vmem:[%s921 + $0x3d8] sm:$0xf]
      %v1169 = vld [vmem:[%s921 + $0x3dc] sm:$0xf]
      %v1170 = vld [vmem:[%s921 + $0x3e0] sm:$0xf]
      %v1171 = vld [vmem:[%s921 + $0x3e4] sm:$0xf]
      %v1172 = vld [vmem:[%s921 + $0x3e8] sm:$0xf]
      %v1173 = vld [vmem:[%s921 + $0x3ec] sm:$0xf]
      %v1174 = vld [vmem:[%s921 + $0x3f0] sm:$0xf]
      %v1175 = vld [vmem:[%s921 + $0x3f4] sm:$0xf]
      %v1176 = vld [vmem:[%s921 + $0x3f8] sm:$0xf]
      %v1177 = vld [vmem:[%s921 + $0x3fc] sm:$0xf]
      %s1178 = scalar_lea.vmem %s12, %s33
      %v1179 = vld [vmem:[%s1178] sm:$0x1]
      %s1180 = scalar_lea.vmem %s13, %s33
      %v1181 = vld [vmem:[%s1180] sm:$0x1]
      %s1182 = scalar_lea.vmem %s14, %s33
      %v1183 = vld [vmem:[%s1182] sm:$0x1]
      %v1184 = vpack.c.bf16 %v803, %v802
      %v1185 = vpack.c.bf16 %v805, %v804
      %v1186 = vpack.c.bf16 %v807, %v806
      %v1187 = vpack.c.bf16 %v809, %v808
      %v1188 = vpack.c.bf16 %v811, %v810
      %v1189 = vpack.c.bf16 %v813, %v812
      %v1190 = vpack.c.bf16 %v815, %v814
      %v1191 = vpack.c.bf16 %v817, %v816
      %v1193 = vlaneseq
      %v1194 = vshrl.u32 %v1193, 7
      %v1195 = vsub.s32 0, %v1194
      %v1196 = vrot.slane %v831, %v1195
      %v1197 = vlaneseq
      %v1198 = vshrl.u32 %v1197, 7
      %v1199 = vsub.s32 1, %v1198
      %v1200 = vrot.slane %v831, %v1199
      %v1211 = vunpack.c.l.b16 %v821
      %v1212 = vunpack.c.h.b16 %v821
      %v1213 = vunpack.c.l.b16 %v822
      %v1214 = vunpack.c.h.b16 %v822
      %v1215 = vunpack.c.l.b16 %v823
      %v1216 = vunpack.c.h.b16 %v823
      %v1217 = vunpack.c.l.b16 %v824
      %v1218 = vunpack.c.h.b16 %v824
      %v1219 = vunpack.c.l.b16 %v825
      %v1220 = vunpack.c.h.b16 %v825
      %v1221 = vunpack.c.l.b16 %v826
      %v1222 = vunpack.c.h.b16 %v826
      %v1223 = vunpack.c.l.b16 %v827
      %v1224 = vunpack.c.h.b16 %v827
      %v1225 = vunpack.c.l.b16 %v828
      %v1226 = vunpack.c.h.b16 %v828
      %v1227 = vpack.c.b16 %v1213, %v1211
      %v1228 = vpack.c.b16 %v1214, %v1212
      %v1229 = vpack.c.b16 %v1217, %v1215
      %v1230 = vpack.c.b16 %v1218, %v1216
      %v1231 = vpack.c.b16 %v1221, %v1219
      %v1232 = vpack.c.b16 %v1222, %v1220
      %v1233 = vpack.c.b16 %v1225, %v1223
      %v1234 = vpack.c.b16 %v1226, %v1224
      %vm1243 = vcmask 523264
      %v1245 = vsel %vm1243, %v1184, 0
      %v1248 = vsel %vm1243, %v1185, 0
      %v1251 = vsel %vm1243, %v1186, 0
      %v1254 = vsel %vm1243, %v1187, 0
      %v1257 = vsel %vm1243, %v1188, 0
      %v1260 = vsel %vm1243, %v1189, 0
      %v1263 = vsel %vm1243, %v1190, 0
      %v1266 = vsel %vm1243, %v1191, 0
      %1268 = vmatprep.subr.bf16.mxu0 %v1228
      %1269 = vmatpush1.bf16.msra.mxu0 %v1227
      %1270 = vmatprep.subr.bf16.mxu0 %v1230
      %1271 = vmatpush1.bf16.msra.mxu0 %v1229
      %1272 = vmatprep.subr.bf16.mxu0 %v1232
      %1273 = vmatpush1.bf16.msra.mxu0 %v1231
      %1274 = vmatprep.subr.bf16.mxu0 %v1234
      %1275 = vmatpush1.bf16.msra.mxu0 %v1233
      %1276 = vmatprep.subr.bf16.mxu0 0
      %1277 = vmatpush1.bf16.msra.mxu0 0
      %1278 = vmatprep.subr.bf16.mxu0 0
      %1279 = vmatpush1.bf16.msra.mxu0 0
      %1280 = vmatprep.subr.bf16.mxu0 0
      %1281 = vmatpush1.bf16.msra.mxu0 0
      %1282 = vmatprep.subr.bf16.mxu0 0
      %1283 = vmatpush1.bf16.msra.mxu0 0
      %1284 = vmatprep.subr.bf16.mxu0 0
      %1285 = vmatpush1.bf16.msra.mxu0 0
      %1286 = vmatprep.subr.bf16.mxu0 0
      %1287 = vmatpush1.bf16.msra.mxu0 0
      %1288 = vmatprep.subr.bf16.mxu0 0
      %1289 = vmatpush1.bf16.msra.mxu0 0
      %1290 = vmatprep.subr.bf16.mxu0 0
      %1291 = vmatpush1.bf16.msra.mxu0 0
      %1292 = vmatprep.subr.bf16.mxu0 0
      %1293 = vmatpush1.bf16.msra.mxu0 0
      %1294 = vmatprep.subr.bf16.mxu0 0
      %1295 = vmatpush1.bf16.msra.mxu0 0
      %1296 = vmatprep.subr.bf16.mxu0 0
      %1297 = vmatpush1.bf16.msra.mxu0 0
      %1298 = vmatprep.subr.bf16.mxu0 0
      %1299 = vmatpush1.bf16.msra.mxu0 0
      %1300 = vmatprep.mubr.bf16.mxu0 0
      %1301 = vmatmul.mubr.bf16.gmra.mrb[0].mxu0 %v1245
      %v1302 = vpop.f32.mrb[0].mxu0
      %v1303 = vadd.f32 %v1196, %v1302
      %v1304 = vpop.f32.mrb[0].mxu0
      %v1305 = vadd.f32 %v1200, %v1304
      %v1306 = vpop.f32.mrb[0].mxu0
      %v1307 = vadd.f32 %v1196, %v1306
      %v1308 = vpop.f32.mrb[0].mxu0
      %v1309 = vadd.f32 %v1200, %v1308
      %1310 = vmatprep.mubr.bf16.mxu0 0
      %1311 = vmatmul.mubr.bf16.gmra.mrb[0].mxu0 %v1248
      %v1312 = vpop.f32.mrb[0].mxu0
      %v1313 = vadd.f32 %v1196, %v1312
      %v1314 = vpop.f32.mrb[0].mxu0
      %v1315 = vadd.f32 %v1200, %v1314
      %v1316 = vpop.f32.mrb[0].mxu0
      %v1317 = vadd.f32 %v1196, %v1316
      %v1318 = vpop.f32.mrb[0].mxu0
      %v1319 = vadd.f32 %v1200, %v1318
      %1320 = vmatprep.mubr.bf16.mxu0 0
      %1321 = vmatmul.mubr.bf16.gmra.mrb[0].mxu0 %v1251
      %v1322 = vpop.f32.mrb[0].mxu0
      %v1323 = vadd.f32 %v1196, %v1322
      %v1324 = vpop.f32.mrb[0].mxu0
      %v1325 = vadd.f32 %v1200, %v1324
      %v1326 = vpop.f32.mrb[0].mxu0
      %v1327 = vadd.f32 %v1196, %v1326
      %v1328 = vpop.f32.mrb[0].mxu0
      %v1329 = vadd.f32 %v1200, %v1328
      %1330 = vmatprep.mubr.bf16.mxu0 0
      %1331 = vmatmul.mubr.bf16.gmra.mrb[0].mxu0 %v1254
      %v1332 = vpop.f32.mrb[0].mxu0
      %v1333 = vadd.f32 %v1196, %v1332
      %v1334 = vpop.f32.mrb[0].mxu0
      %v1335 = vadd.f32 %v1200, %v1334
      %v1336 = vpop.f32.mrb[0].mxu0
      %v1337 = vadd.f32 %v1196, %v1336
      %v1338 = vpop.f32.mrb[0].mxu0
      %v1339 = vadd.f32 %v1200, %v1338
      %1340 = vmatprep.mubr.bf16.mxu0 0
      %1341 = vmatmul.mubr.bf16.gmra.mrb[0].mxu0 %v1257
      %v1342 = vpop.f32.mrb[0].mxu0
      %v1343 = vadd.f32 %v1196, %v1342
      %v1344 = vpop.f32.mrb[0].mxu0
      %v1345 = vadd.f32 %v1200, %v1344
      %v1346 = vpop.f32.mrb[0].mxu0
      %v1347 = vadd.f32 %v1196, %v1346
      %v1348 = vpop.f32.mrb[0].mxu0
      %v1349 = vadd.f32 %v1200, %v1348
      %1350 = vmatprep.mubr.bf16.mxu0 0
      %1351 = vmatmul.mubr.bf16.gmra.mrb[0].mxu0 %v1260
      %v1352 = vpop.f32.mrb[0].mxu0
      %v1353 = vadd.f32 %v1196, %v1352
      %v1354 = vpop.f32.mrb[0].mxu0
      %v1355 = vadd.f32 %v1200, %v1354
      %v1356 = vpop.f32.mrb[0].mxu0
      %v1357 = vadd.f32 %v1196, %v1356
      %v1358 = vpop.f32.mrb[0].mxu0
      %v1359 = vadd.f32 %v1200, %v1358
      %1360 = vmatprep.mubr.bf16.mxu0 0
      %1361 = vmatmul.mubr.bf16.gmra.mrb[0].mxu0 %v1263
      %v1362 = vpop.f32.mrb[0].mxu0
      %v1363 = vadd.f32 %v1196, %v1362
      %v1364 = vpop.f32.mrb[0].mxu0
      %v1365 = vadd.f32 %v1200, %v1364
      %v1366 = vpop.f32.mrb[0].mxu0
      %v1367 = vadd.f32 %v1196, %v1366
      %v1368 = vpop.f32.mrb[0].mxu0
      %v1369 = vadd.f32 %v1200, %v1368
      %1370 = vmatprep.mubr.bf16.mxu0 0
      %1371 = vmatmul.mubr.bf16.gmra.mrb[0].mxu0 %v1266
      %v1372 = vpop.f32.mrb[0].mxu0
      %v1373 = vadd.f32 %v1196, %v1372
      %v1374 = vpop.f32.mrb[0].mxu0
      %v1375 = vadd.f32 %v1200, %v1374
      %v1376 = vpop.f32.mrb[0].mxu0
      %v1377 = vadd.f32 %v1196, %v1376
      %v1378 = vpop.f32.mrb[0].mxu0
      %v1379 = vadd.f32 %v1200, %v1378
      %1380 = vdwg.mxu0
      %v1381 = vpack.c.bf16 %v1307, %v1303
      %v1382 = vpack.c.bf16 %v1309, %v1305
      %v1383 = vpack.c.bf16 %v1317, %v1313
      %v1384 = vpack.c.bf16 %v1319, %v1315
      %v1385 = vpack.c.bf16 %v1327, %v1323
      %v1386 = vpack.c.bf16 %v1329, %v1325
      %v1387 = vpack.c.bf16 %v1337, %v1333
      %v1388 = vpack.c.bf16 %v1339, %v1335
      %v1389 = vpack.c.bf16 %v1347, %v1343
      %v1390 = vpack.c.bf16 %v1349, %v1345
      %v1391 = vpack.c.bf16 %v1357, %v1353
      %v1392 = vpack.c.bf16 %v1359, %v1355
      %v1393 = vpack.c.bf16 %v1367, %v1363
      %v1394 = vpack.c.bf16 %v1369, %v1365
      %v1395 = vpack.c.bf16 %v1377, %v1373
      %v1396 = vpack.c.bf16 %v1379, %v1375
      %1398 = vrot.lane.b32.xlu0 %v1381, 64
      %v1399 = vpop.permute.xlu0 %1398
      %vm1400 = vcmask 130048
      %v1402 = vsel %vm1400, %v1381, 0
      %v1405 = vsel %vm1400, %v1399, 0
      %1407 = vmatprep.subr.bf16.mxu0 0
      %1408 = vmatpush1.bf16.xpose.msra.mxu0 %v1405
      %1409 = vmatprep.subr.bf16.mxu0 0
      %1410 = vmatpush1.bf16.xpose.msra.mxu0 0
      %1411 = vmatprep.subr.bf16.mxu0 0
      %1412 = vmatpush1.bf16.xpose.msra.mxu0 0
      %1413 = vmatprep.subr.bf16.mxu0 0
      %1414 = vmatpush1.bf16.xpose.msra.mxu0 0
      %1415 = vmatprep.subr.bf16.mxu0 0
      %1416 = vmatpush1.bf16.xpose.msra.mxu0 0
      %1417 = vmatprep.subr.bf16.mxu0 0
      %1418 = vmatpush1.bf16.xpose.msra.mxu0 0
      %1419 = vmatprep.subr.bf16.mxu0 0
      %1420 = vmatpush1.bf16.xpose.msra.mxu0 0
      %1421 = vmatprep.subr.bf16.mxu0 0
      %1422 = vmatpush1.bf16.xpose.msra.mxu0 0
      %1423 = vmatprep.subr.bf16.mxu0 0
      %1424 = vmatpush1.bf16.xpose.msra.mxu0 0
      %1425 = vmatprep.subr.bf16.mxu0 0
      %1426 = vmatpush1.bf16.xpose.msra.mxu0 0
      %1427 = vmatprep.subr.bf16.mxu0 0
      %1428 = vmatpush1.bf16.xpose.msra.mxu0 0
      %1429 = vmatprep.subr.bf16.mxu0 0
      %1430 = vmatpush1.bf16.xpose.msra.mxu0 0
      %1431 = vmatprep.subr.bf16.mxu0 0
      %1432 = vmatpush1.bf16.xpose.msra.mxu0 0
      %1433 = vmatprep.subr.bf16.mxu0 0
      %1434 = vmatpush1.bf16.xpose.msra.mxu0 0
      %1435 = vmatprep.subr.bf16.mxu0 0
      %1436 = vmatpush1.bf16.xpose.msra.mxu0 0
      %1437 = vmatprep.subr.bf16.mxu0 0
      %1438 = vmatpush1.bf16.xpose.msra.mxu0 0
      %1439 = vmatprep.mubr.bf16.mxu0 0
      %1440 = vmatmul.mubr.bf16.gmra.mrb[0].mxu0 %v1402
      %v1441 = vpop.f32.mrb[0].mxu0
      %v1442 = vadd.f32 0.0, %v1441
      %v1443 = vpop.f32.mrb[0].mxu0
      %v1444 = vpop.f32.mrb[0].mxu0
      %v1445 = vadd.f32 0.0, %v1444
      %v1446 = vpop.f32.mrb[0].mxu0
      %1447 = vdwg.mxu0
      %1449 = vrot.lane.b32.xlu0 %v1383, 64
      %v1450 = vpop.permute.xlu0 %1449
      %v1452 = vsel %vm1400, %v1383, 0
      %v1455 = vsel %vm1400, %v1450, 0
      %1457 = vmatprep.subr.bf16.mxu0 0
      %1458 = vmatpush1.bf16.xpose.msra.mxu0 %v1455
      %1459 = vmatprep.subr.bf16.mxu0 0
      %1460 = vmatpush1.bf16.xpose.msra.mxu0 0
      %1461 = vmatprep.subr.bf16.mxu0 0
      %1462 = vmatpush1.bf16.xpose.msra.mxu0 0
      %1463 = vmatprep.subr.bf16.mxu0 0
      %1464 = vmatpush1.bf16.xpose.msra.mxu0 0
      %1465 = vmatprep.subr.bf16.mxu0 0
      %1466 = vmatpush1.bf16.xpose.msra.mxu0 0
      %1467 = vmatprep.subr.bf16.mxu0 0
      %1468 = vmatpush1.bf16.xpose.msra.mxu0 0
      %1469 = vmatprep.subr.bf16.mxu0 0
      %1470 = vmatpush1.bf16.xpose.msra.mxu0 0
      %1471 = vmatprep.subr.bf16.mxu0 0
      %1472 = vmatpush1.bf16.xpose.msra.mxu0 0
      %1473 = vmatprep.subr.bf16.mxu0 0
      %1474 = vmatpush1.bf16.xpose.msra.mxu0 0
      %1475 = vmatprep.subr.bf16.mxu0 0
      %1476 = vmatpush1.bf16.xpose.msra.mxu0 0
      %1477 = vmatprep.subr.bf16.mxu0 0
      %1478 = vmatpush1.bf16.xpose.msra.mxu0 0
      %1479 = vmatprep.subr.bf16.mxu0 0
      %1480 = vmatpush1.bf16.xpose.msra.mxu0 0
      %1481 = vmatprep.subr.bf16.mxu0 0
      %1482 = vmatpush1.bf16.xpose.msra.mxu0 0
      %1483 = vmatprep.subr.bf16.mxu0 0
      %1484 = vmatpush1.bf16.xpose.msra.mxu0 0
      %1485 = vmatprep.subr.bf16.mxu0 0
      %1486 = vmatpush1.bf16.xpose.msra.mxu0 0
      %1487 = vmatprep.subr.bf16.mxu0 0
      %1488 = vmatpush1.bf16.xpose.msra.mxu0 0
      %1489 = vmatprep.mubr.bf16.mxu0 0
      %1490 = vmatmul.mubr.bf16.gmra.mrb[0].mxu0 %v1452
      %v1491 = vpop.f32.mrb[0].mxu0
      %v1492 = vadd.f32 0.0, %v1491
      %v1493 = vpop.f32.mrb[0].mxu0
      %v1494 = vpop.f32.mrb[0].mxu0
      %v1495 = vadd.f32 0.0, %v1494
      %v1496 = vpop.f32.mrb[0].mxu0
      %1497 = vdwg.mxu0
      %1499 = vrot.lane.b32.xlu0 %v1385, 64
      %v1500 = vpop.permute.xlu0 %1499
      %v1502 = vsel %vm1400, %v1385, 0
      %v1505 = vsel %vm1400, %v1500, 0
      %1507 = vmatprep.subr.bf16.mxu0 0
      %1508 = vmatpush1.bf16.xpose.msra.mxu0 %v1505
      %1509 = vmatprep.subr.bf16.mxu0 0
      %1510 = vmatpush1.bf16.xpose.msra.mxu0 0
      %1511 = vmatprep.subr.bf16.mxu0 0
      %1512 = vmatpush1.bf16.xpose.msra.mxu0 0
      %1513 = vmatprep.subr.bf16.mxu0 0
      %1514 = vmatpush1.bf16.xpose.msra.mxu0 0
      %1515 = vmatprep.subr.bf16.mxu0 0
      %1516 = vmatpush1.bf16.xpose.msra.mxu0 0
      %1517 = vmatprep.subr.bf16.mxu0 0
      %1518 = vmatpush1.bf16.xpose.msra.mxu0 0
      %1519 = vmatprep.subr.bf16.mxu0 0
      %1520 = vmatpush1.bf16.xpose.msra.mxu0 0
      %1521 = vmatprep.subr.bf16.mxu0 0
      %1522 = vmatpush1.bf16.xpose.msra.mxu0 0
      %1523 = vmatprep.subr.bf16.mxu0 0
      %1524 = vmatpush1.bf16.xpose.msra.mxu0 0
      %1525 = vmatprep.subr.bf16.mxu0 0
      %1526 = vmatpush1.bf16.xpose.msra.mxu0 0
      %1527 = vmatprep.subr.bf16.mxu0 0
      %1528 = vmatpush1.bf16.xpose.msra.mxu0 0
      %1529 = vmatprep.subr.bf16.mxu0 0
      %1530 = vmatpush1.bf16.xpose.msra.mxu0 0
      %1531 = vmatprep.subr.bf16.mxu0 0
      %1532 = vmatpush1.bf16.xpose.msra.mxu0 0
      %1533 = vmatprep.subr.bf16.mxu0 0
      %1534 = vmatpush1.bf16.xpose.msra.mxu0 0
      %1535 = vmatprep.subr.bf16.mxu0 0
      %1536 = vmatpush1.bf16.xpose.msra.mxu0 0
      %1537 = vmatprep.subr.bf16.mxu0 0
      %1538 = vmatpush1.bf16.xpose.msra.mxu0 0
      %1539 = vmatprep.mubr.bf16.mxu0 0
      %1540 = vmatmul.mubr.bf16.gmra.mrb[0].mxu0 %v1502
      %v1541 = vpop.f32.mrb[0].mxu0
      %v1542 = vadd.f32 0.0, %v1541
      %v1543 = vpop.f32.mrb[0].mxu0
      %v1544 = vpop.f32.mrb[0].mxu0
      %v1545 = vadd.f32 0.0, %v1544
      %v1546 = vpop.f32.mrb[0].mxu0
      %1547 = vdwg.mxu0
      %1549 = vrot.lane.b32.xlu0 %v1387, 64
      %v1550 = vpop.permute.xlu0 %1549
      %v1552 = vsel %vm1400, %v1387, 0
      %v1555 = vsel %vm1400, %v1550, 0
      %1557 = vmatprep.subr.bf16.mxu0 0
      %1558 = vmatpush1.bf16.xpose.msra.mxu0 %v1555
      %1559 = vmatprep.subr.bf16.mxu0 0
      %1560 = vmatpush1.bf16.xpose.msra.mxu0 0
      %1561 = vmatprep.subr.bf16.mxu0 0
      %1562 = vmatpush1.bf16.xpose.msra.mxu0 0
      %1563 = vmatprep.subr.bf16.mxu0 0
      %1564 = vmatpush1.bf16.xpose.msra.mxu0 0
      %1565 = vmatprep.subr.bf16.mxu0 0
      %1566 = vmatpush1.bf16.xpose.msra.mxu0 0
      %1567 = vmatprep.subr.bf16.mxu0 0
      %1568 = vmatpush1.bf16.xpose.msra.mxu0 0
      %1569 = vmatprep.subr.bf16.mxu0 0
      %1570 = vmatpush1.bf16.xpose.msra.mxu0 0
      %1571 = vmatprep.subr.bf16.mxu0 0
      %1572 = vmatpush1.bf16.xpose.msra.mxu0 0
      %1573 = vmatprep.subr.bf16.mxu0 0
      %1574 = vmatpush1.bf16.xpose.msra.mxu0 0
      %1575 = vmatprep.subr.bf16.mxu0 0
      %1576 = vmatpush1.bf16.xpose.msra.mxu0 0
      %1577 = vmatprep.subr.bf16.mxu0 0
      %1578 = vmatpush1.bf16.xpose.msra.mxu0 0
      %1579 = vmatprep.subr.bf16.mxu0 0
      %1580 = vmatpush1.bf16.xpose.msra.mxu0 0
      %1581 = vmatprep.subr.bf16.mxu0 0
      %1582 = vmatpush1.bf16.xpose.msra.mxu0 0
      %1583 = vmatprep.subr.bf16.mxu0 0
      %1584 = vmatpush1.bf16.xpose.msra.mxu0 0
      %1585 = vmatprep.subr.bf16.mxu0 0
      %1586 = vmatpush1.bf16.xpose.msra.mxu0 0
      %1587 = vmatprep.subr.bf16.mxu0 0
      %1588 = vmatpush1.bf16.xpose.msra.mxu0 0
      %1589 = vmatprep.mubr.bf16.mxu0 0
      %1590 = vmatmul.mubr.bf16.gmra.mrb[0].mxu0 %v1552
      %v1591 = vpop.f32.mrb[0].mxu0
      %v1592 = vadd.f32 0.0, %v1591
      %v1593 = vpop.f32.mrb[0].mxu0
      %v1594 = vpop.f32.mrb[0].mxu0
      %v1595 = vadd.f32 0.0, %v1594
      %v1596 = vpop.f32.mrb[0].mxu0
      %1597 = vdwg.mxu0
      %1599 = vrot.lane.b32.xlu0 %v1389, 64
      %v1600 = vpop.permute.xlu0 %1599
      %v1602 = vsel %vm1400, %v1389, 0
      %v1605 = vsel %vm1400, %v1600, 0
      %1607 = vmatprep.subr.bf16.mxu0 0
      %1608 = vmatpush1.bf16.xpose.msra.mxu0 %v1605
      %1609 = vmatprep.subr.bf16.mxu0 0
      %1610 = vmatpush1.bf16.xpose.msra.mxu0 0
      %1611 = vmatprep.subr.bf16.mxu0 0
      %1612 = vmatpush1.bf16.xpose.msra.mxu0 0
      %1613 = vmatprep.subr.bf16.mxu0 0
      %1614 = vmatpush1.bf16.xpose.msra.mxu0 0
      %1615 = vmatprep.subr.bf16.mxu0 0
      %1616 = vmatpush1.bf16.xpose.msra.mxu0 0
      %1617 = vmatprep.subr.bf16.mxu0 0
      %1618 = vmatpush1.bf16.xpose.msra.mxu0 0
      %1619 = vmatprep.subr.bf16.mxu0 0
      %1620 = vmatpush1.bf16.xpose.msra.mxu0 0
      %1621 = vmatprep.subr.bf16.mxu0 0
      %1622 = vmatpush1.bf16.xpose.msra.mxu0 0
      %1623 = vmatprep.subr.bf16.mxu0 0
      %1624 = vmatpush1.bf16.xpose.msra.mxu0 0
      %1625 = vmatprep.subr.bf16.mxu0 0
      %1626 = vmatpush1.bf16.xpose.msra.mxu0 0
      %1627 = vmatprep.subr.bf16.mxu0 0
      %1628 = vmatpush1.bf16.xpose.msra.mxu0 0
      %1629 = vmatprep.subr.bf16.mxu0 0
      %1630 = vmatpush1.bf16.xpose.msra.mxu0 0
      %1631 = vmatprep.subr.bf16.mxu0 0
      %1632 = vmatpush1.bf16.xpose.msra.mxu0 0
      %1633 = vmatprep.subr.bf16.mxu0 0
      %1634 = vmatpush1.bf16.xpose.msra.mxu0 0
      %1635 = vmatprep.subr.bf16.mxu0 0
      %1636 = vmatpush1.bf16.xpose.msra.mxu0 0
      %1637 = vmatprep.subr.bf16.mxu0 0
      %1638 = vmatpush1.bf16.xpose.msra.mxu0 0
      %1639 = vmatprep.mubr.bf16.mxu0 0
      %1640 = vmatmul.mubr.bf16.gmra.mrb[0].mxu0 %v1602
      %v1641 = vpop.f32.mrb[0].mxu0
      %v1642 = vadd.f32 0.0, %v1641
      %v1643 = vpop.f32.mrb[0].mxu0
      %v1644 = vpop.f32.mrb[0].mxu0
      %v1645 = vadd.f32 0.0, %v1644
      %v1646 = vpop.f32.mrb[0].mxu0
      %1647 = vdwg.mxu0
      %1649 = vrot.lane.b32.xlu0 %v1391, 64
      %v1650 = vpop.permute.xlu0 %1649
      %v1652 = vsel %vm1400, %v1391, 0
      %v1655 = vsel %vm1400, %v1650, 0
      %1657 = vmatprep.subr.bf16.mxu0 0
      %1658 = vmatpush1.bf16.xpose.msra.mxu0 %v1655
      %1659 = vmatprep.subr.bf16.mxu0 0
      %1660 = vmatpush1.bf16.xpose.msra.mxu0 0
      %1661 = vmatprep.subr.bf16.mxu0 0
      %1662 = vmatpush1.bf16.xpose.msra.mxu0 0
      %1663 = vmatprep.subr.bf16.mxu0 0
      %1664 = vmatpush1.bf16.xpose.msra.mxu0 0
      %1665 = vmatprep.subr.bf16.mxu0 0
      %1666 = vmatpush1.bf16.xpose.msra.mxu0 0
      %1667 = vmatprep.subr.bf16.mxu0 0
      %1668 = vmatpush1.bf16.xpose.msra.mxu0 0
      %1669 = vmatprep.subr.bf16.mxu0 0
      %1670 = vmatpush1.bf16.xpose.msra.mxu0 0
      %1671 = vmatprep.subr.bf16.mxu0 0
      %1672 = vmatpush1.bf16.xpose.msra.mxu0 0
      %1673 = vmatprep.subr.bf16.mxu0 0
      %1674 = vmatpush1.bf16.xpose.msra.mxu0 0
      %1675 = vmatprep.subr.bf16.mxu0 0
      %1676 = vmatpush1.bf16.xpose.msra.mxu0 0
      %1677 = vmatprep.subr.bf16.mxu0 0
      %1678 = vmatpush1.bf16.xpose.msra.mxu0 0
      %1679 = vmatprep.subr.bf16.mxu0 0
      %1680 = vmatpush1.bf16.xpose.msra.mxu0 0
      %1681 = vmatprep.subr.bf16.mxu0 0
      %1682 = vmatpush1.bf16.xpose.msra.mxu0 0
      %1683 = vmatprep.subr.bf16.mxu0 0
      %1684 = vmatpush1.bf16.xpose.msra.mxu0 0
      %1685 = vmatprep.subr.bf16.mxu0 0
      %1686 = vmatpush1.bf16.xpose.msra.mxu0 0
      %1687 = vmatprep.subr.bf16.mxu0 0
      %1688 = vmatpush1.bf16.xpose.msra.mxu0 0
      %1689 = vmatprep.mubr.bf16.mxu0 0
      %1690 = vmatmul.mubr.bf16.gmra.mrb[0].mxu0 %v1652
      %v1691 = vpop.f32.mrb[0].mxu0
      %v1692 = vadd.f32 0.0, %v1691
      %v1693 = vpop.f32.mrb[0].mxu0
      %v1694 = vpop.f32.mrb[0].mxu0
      %v1695 = vadd.f32 0.0, %v1694
      %v1696 = vpop.f32.mrb[0].mxu0
      %1697 = vdwg.mxu0
      %1699 = vrot.lane.b32.xlu0 %v1393, 64
      %v1700 = vpop.permute.xlu0 %1699
      %v1702 = vsel %vm1400, %v1393, 0
      %v1705 = vsel %vm1400, %v1700, 0
      %1707 = vmatprep.subr.bf16.mxu0 0
      %1708 = vmatpush1.bf16.xpose.msra.mxu0 %v1705
      %1709 = vmatprep.subr.bf16.mxu0 0
      %1710 = vmatpush1.bf16.xpose.msra.mxu0 0
      %1711 = vmatprep.subr.bf16.mxu0 0
      %1712 = vmatpush1.bf16.xpose.msra.mxu0 0
      %1713 = vmatprep.subr.bf16.mxu0 0
      %1714 = vmatpush1.bf16.xpose.msra.mxu0 0
      %1715 = vmatprep.subr.bf16.mxu0 0
      %1716 = vmatpush1.bf16.xpose.msra.mxu0 0
      %1717 = vmatprep.subr.bf16.mxu0 0
      %1718 = vmatpush1.bf16.xpose.msra.mxu0 0
      %1719 = vmatprep.subr.bf16.mxu0 0
      %1720 = vmatpush1.bf16.xpose.msra.mxu0 0
      %1721 = vmatprep.subr.bf16.mxu0 0
      %1722 = vmatpush1.bf16.xpose.msra.mxu0 0
      %1723 = vmatprep.subr.bf16.mxu0 0
      %1724 = vmatpush1.bf16.xpose.msra.mxu0 0
      %1725 = vmatprep.subr.bf16.mxu0 0
      %1726 = vmatpush1.bf16.xpose.msra.mxu0 0
      %1727 = vmatprep.subr.bf16.mxu0 0
      %1728 = vmatpush1.bf16.xpose.msra.mxu0 0
      %1729 = vmatprep.subr.bf16.mxu0 0
      %1730 = vmatpush1.bf16.xpose.msra.mxu0 0
      %1731 = vmatprep.subr.bf16.mxu0 0
      %1732 = vmatpush1.bf16.xpose.msra.mxu0 0
      %1733 = vmatprep.subr.bf16.mxu0 0
      %1734 = vmatpush1.bf16.xpose.msra.mxu0 0
      %1735 = vmatprep.subr.bf16.mxu0 0
      %1736 = vmatpush1.bf16.xpose.msra.mxu0 0
      %1737 = vmatprep.subr.bf16.mxu0 0
      %1738 = vmatpush1.bf16.xpose.msra.mxu0 0
      %1739 = vmatprep.mubr.bf16.mxu0 0
      %1740 = vmatmul.mubr.bf16.gmra.mrb[0].mxu0 %v1702
      %v1741 = vpop.f32.mrb[0].mxu0
      %v1742 = vadd.f32 0.0, %v1741
      %v1743 = vpop.f32.mrb[0].mxu0
      %v1744 = vpop.f32.mrb[0].mxu0
      %v1745 = vadd.f32 0.0, %v1744
      %v1746 = vpop.f32.mrb[0].mxu0
      %1747 = vdwg.mxu0
      %1749 = vrot.lane.b32.xlu0 %v1395, 64
      %v1750 = vpop.permute.xlu0 %1749
      %v1752 = vsel %vm1400, %v1395, 0
      %v1755 = vsel %vm1400, %v1750, 0
      %1757 = vmatprep.subr.bf16.mxu0 0
      %1758 = vmatpush1.bf16.xpose.msra.mxu0 %v1755
      %1759 = vmatprep.subr.bf16.mxu0 0
      %1760 = vmatpush1.bf16.xpose.msra.mxu0 0
      %1761 = vmatprep.subr.bf16.mxu0 0
      %1762 = vmatpush1.bf16.xpose.msra.mxu0 0
      %1763 = vmatprep.subr.bf16.mxu0 0
      %1764 = vmatpush1.bf16.xpose.msra.mxu0 0
      %1765 = vmatprep.subr.bf16.mxu0 0
      %1766 = vmatpush1.bf16.xpose.msra.mxu0 0
      %1767 = vmatprep.subr.bf16.mxu0 0
      %1768 = vmatpush1.bf16.xpose.msra.mxu0 0
      %1769 = vmatprep.subr.bf16.mxu0 0
      %1770 = vmatpush1.bf16.xpose.msra.mxu0 0
      %1771 = vmatprep.subr.bf16.mxu0 0
      %1772 = vmatpush1.bf16.xpose.msra.mxu0 0
      %1773 = vmatprep.subr.bf16.mxu0 0
      %1774 = vmatpush1.bf16.xpose.msra.mxu0 0
      %1775 = vmatprep.subr.bf16.mxu0 0
      %1776 = vmatpush1.bf16.xpose.msra.mxu0 0
      %1777 = vmatprep.subr.bf16.mxu0 0
      %1778 = vmatpush1.bf16.xpose.msra.mxu0 0
      %1779 = vmatprep.subr.bf16.mxu0 0
      %1780 = vmatpush1.bf16.xpose.msra.mxu0 0
      %1781 = vmatprep.subr.bf16.mxu0 0
      %1782 = vmatpush1.bf16.xpose.msra.mxu0 0
      %1783 = vmatprep.subr.bf16.mxu0 0
      %1784 = vmatpush1.bf16.xpose.msra.mxu0 0
      %1785 = vmatprep.subr.bf16.mxu0 0
      %1786 = vmatpush1.bf16.xpose.msra.mxu0 0
      %1787 = vmatprep.subr.bf16.mxu0 0
      %1788 = vmatpush1.bf16.xpose.msra.mxu0 0
      %1789 = vmatprep.mubr.bf16.mxu0 0
      %1790 = vmatmul.mubr.bf16.gmra.mrb[0].mxu0 %v1752
      %v1791 = vpop.f32.mrb[0].mxu0
      %v1792 = vadd.f32 0.0, %v1791
      %v1793 = vpop.f32.mrb[0].mxu0
      %v1794 = vpop.f32.mrb[0].mxu0
      %v1795 = vadd.f32 0.0, %v1794
      %v1796 = vpop.f32.mrb[0].mxu0
      %1797 = vdwg.mxu0
      %v1798 = vsel %vm1400, %v1442, -inf
      %1799 = vmax.xlane.f32.xlu0 %v1798
      %v1800 = vpop.xlane.xlu0 %1799
      %v1801 = vsel %vm1400, %v1445, -inf
      %1802 = vmax.xlane.f32.xlu0 %v1801
      %v1803 = vpop.xlane.xlu0 %1802
      %v1804 = vsel %vm1400, %v1492, -inf
      %1805 = vmax.xlane.f32.xlu0 %v1804
      %v1806 = vpop.xlane.xlu0 %1805
      %v1807 = vsel %vm1400, %v1495, -inf
      %1808 = vmax.xlane.f32.xlu0 %v1807
      %v1809 = vpop.xlane.xlu0 %1808
      %v1810 = vsel %vm1400, %v1542, -inf
      %1811 = vmax.xlane.f32.xlu0 %v1810
      %v1812 = vpop.xlane.xlu0 %1811
      %v1813 = vsel %vm1400, %v1545, -inf
      %1814 = vmax.xlane.f32.xlu0 %v1813
      %v1815 = vpop.xlane.xlu0 %1814
      %v1816 = vsel %vm1400, %v1592, -inf
      %1817 = vmax.xlane.f32.xlu0 %v1816
      %v1818 = vpop.xlane.xlu0 %1817
      %v1819 = vsel %vm1400, %v1595, -inf
      %1820 = vmax.xlane.f32.xlu0 %v1819
      %v1821 = vpop.xlane.xlu0 %1820
      %v1822 = vsel %vm1400, %v1642, -inf
      %1823 = vmax.xlane.f32.xlu0 %v1822
      %v1824 = vpop.xlane.xlu0 %1823
      %v1825 = vsel %vm1400, %v1645, -inf
      %1826 = vmax.xlane.f32.xlu0 %v1825
      %v1827 = vpop.xlane.xlu0 %1826
      %v1828 = vsel %vm1400, %v1692, -inf
      %1829 = vmax.xlane.f32.xlu0 %v1828
      %v1830 = vpop.xlane.xlu0 %1829
      %v1831 = vsel %vm1400, %v1695, -inf
      %1832 = vmax.xlane.f32.xlu0 %v1831
      %v1833 = vpop.xlane.xlu0 %1832
      %v1834 = vsel %vm1400, %v1742, -inf
      %1835 = vmax.xlane.f32.xlu0 %v1834
      %v1836 = vpop.xlane.xlu0 %1835
      %v1837 = vsel %vm1400, %v1745, -inf
      %1838 = vmax.xlane.f32.xlu0 %v1837
      %v1839 = vpop.xlane.xlu0 %1838
      %v1840 = vsel %vm1400, %v1792, -inf
      %1841 = vmax.xlane.f32.xlu0 %v1840
      %v1842 = vpop.xlane.xlu0 %1841
      %v1843 = vsel %vm1400, %v1795, -inf
      %1844 = vmax.xlane.f32.xlu0 %v1843
      %v1845 = vpop.xlane.xlu0 %1844
      %v1846 = vsub.f32 %v1442, %v1800
      %v1847 = vsub.f32 %v1445, %v1803
      %v1848 = vsub.f32 %v1492, %v1806
      %v1849 = vsub.f32 %v1495, %v1809
      %v1850 = vsub.f32 %v1542, %v1812
      %v1851 = vsub.f32 %v1545, %v1815
      %v1852 = vsub.f32 %v1592, %v1818
      %v1853 = vsub.f32 %v1595, %v1821
      %v1854 = vsub.f32 %v1642, %v1824
      %v1855 = vsub.f32 %v1645, %v1827
      %v1856 = vsub.f32 %v1692, %v1830
      %v1857 = vsub.f32 %v1695, %v1833
      %v1858 = vsub.f32 %v1742, %v1836
      %v1859 = vsub.f32 %v1745, %v1839
      %v1860 = vsub.f32 %v1792, %v1842
      %v1861 = vsub.f32 %v1795, %v1845
      %v1862 = vmul.f32 %v1846, 1.442695
      %v1863 = vpow.pop %v1862
      %v1864 = vmul.f32 %v1847, 1.442695
      %v1865 = vpow.pop %v1864
      %v1866 = vmul.f32 %v1848, 1.442695
      %v1867 = vpow.pop %v1866
      %v1868 = vmul.f32 %v1849, 1.442695
      %v1869 = vpow.pop %v1868
      %v1870 = vmul.f32 %v1850, 1.442695
      %v1871 = vpow.pop %v1870
      %v1872 = vmul.f32 %v1851, 1.442695
      %v1873 = vpow.pop %v1872
      %v1874 = vmul.f32 %v1852, 1.442695
      %v1875 = vpow.pop %v1874
      %v1876 = vmul.f32 %v1853, 1.442695
      %v1877 = vpow.pop %v1876
      %v1878 = vmul.f32 %v1854, 1.442695
      %v1879 = vpow.pop %v1878
      %v1880 = vmul.f32 %v1855, 1.442695
      %v1881 = vpow.pop %v1880
      %v1882 = vmul.f32 %v1856, 1.442695
      %v1883 = vpow.pop %v1882
      %v1884 = vmul.f32 %v1857, 1.442695
      %v1885 = vpow.pop %v1884
      %v1886 = vmul.f32 %v1858, 1.442695
      %v1887 = vpow.pop %v1886
      %v1888 = vmul.f32 %v1859, 1.442695
      %v1889 = vpow.pop %v1888
      %v1890 = vmul.f32 %v1860, 1.442695
      %v1891 = vpow.pop %v1890
      %v1892 = vmul.f32 %v1861, 1.442695
      %v1893 = vpow.pop %v1892
      %v1894 = vsel %vm1400, %v1863, 0.0
      %1895 = vadd.xlane.f32.xlu0 %v1894
      %v1896 = vpop.xlane.xlu0 %1895
      %v1897 = vsel %vm1400, %v1865, 0.0
      %1898 = vadd.xlane.f32.xlu0 %v1897
      %v1899 = vpop.xlane.xlu0 %1898
      %v1900 = vsel %vm1400, %v1867, 0.0
      %1901 = vadd.xlane.f32.xlu0 %v1900
      %v1902 = vpop.xlane.xlu0 %1901
      %v1903 = vsel %vm1400, %v1869, 0.0
      %1904 = vadd.xlane.f32.xlu0 %v1903
      %v1905 = vpop.xlane.xlu0 %1904
      %v1906 = vsel %vm1400, %v1871, 0.0
      %1907 = vadd.xlane.f32.xlu0 %v1906
      %v1908 = vpop.xlane.xlu0 %1907
      %v1909 = vsel %vm1400, %v1873, 0.0
      %1910 = vadd.xlane.f32.xlu0 %v1909
      %v1911 = vpop.xlane.xlu0 %1910
      %v1912 = vsel %vm1400, %v1875, 0.0
      %1913 = vadd.xlane.f32.xlu0 %v1912
      %v1914 = vpop.xlane.xlu0 %1913
      %v1915 = vsel %vm1400, %v1877, 0.0
      %1916 = vadd.xlane.f32.xlu0 %v1915
      %v1917 = vpop.xlane.xlu0 %1916
      %v1918 = vsel %vm1400, %v1879, 0.0
      %1919 = vadd.xlane.f32.xlu0 %v1918
      %v1920 = vpop.xlane.xlu0 %1919
      %v1921 = vsel %vm1400, %v1881, 0.0
      %1922 = vadd.xlane.f32.xlu0 %v1921
      %v1923 = vpop.xlane.xlu0 %1922
      %v1924 = vsel %vm1400, %v1883, 0.0
      %1925 = vadd.xlane.f32.xlu0 %v1924
      %v1926 = vpop.xlane.xlu0 %1925
      %v1927 = vsel %vm1400, %v1885, 0.0
      %1928 = vadd.xlane.f32.xlu0 %v1927
      %v1929 = vpop.xlane.xlu0 %1928
      %v1930 = vsel %vm1400, %v1887, 0.0
      %1931 = vadd.xlane.f32.xlu0 %v1930
      %v1932 = vpop.xlane.xlu0 %1931
      %v1933 = vsel %vm1400, %v1889, 0.0
      %1934 = vadd.xlane.f32.xlu0 %v1933
      %v1935 = vpop.xlane.xlu0 %1934
      %v1936 = vsel %vm1400, %v1891, 0.0
      %1937 = vadd.xlane.f32.xlu0 %v1936
      %v1938 = vpop.xlane.xlu0 %1937
      %v1939 = vsel %vm1400, %v1893, 0.0
      %1940 = vadd.xlane.f32.xlu0 %v1939
      %v1941 = vpop.xlane.xlu0 %1940
      %v1942 = vrcp.pop %v1896
      %v1943 = vrcp.pop %v1899
      %v1944 = vrcp.pop %v1902
      %v1945 = vrcp.pop %v1905
      %v1946 = vrcp.pop %v1908
      %v1947 = vrcp.pop %v1911
      %v1948 = vrcp.pop %v1914
      %v1949 = vrcp.pop %v1917
      %v1950 = vrcp.pop %v1920
      %v1951 = vrcp.pop %v1923
      %v1952 = vrcp.pop %v1926
      %v1953 = vrcp.pop %v1929
      %v1954 = vrcp.pop %v1932
      %v1955 = vrcp.pop %v1935
      %v1956 = vrcp.pop %v1938
      %v1957 = vrcp.pop %v1941
      %v1958 = vmul.f32 %v1863, %v1942
      %v1959 = vmul.f32 %v1865, %v1943
      %v1960 = vmul.f32 %v1867, %v1944
      %v1961 = vmul.f32 %v1869, %v1945
      %v1962 = vmul.f32 %v1871, %v1946
      %v1963 = vmul.f32 %v1873, %v1947
      %v1964 = vmul.f32 %v1875, %v1948
      %v1965 = vmul.f32 %v1877, %v1949
      %v1966 = vmul.f32 %v1879, %v1950
      %v1967 = vmul.f32 %v1881, %v1951
      %v1968 = vmul.f32 %v1883, %v1952
      %v1969 = vmul.f32 %v1885, %v1953
      %v1970 = vmul.f32 %v1887, %v1954
      %v1971 = vmul.f32 %v1889, %v1955
      %v1972 = vmul.f32 %v1891, %v1956
      %v1973 = vmul.f32 %v1893, %v1957
      %v1974 = vpack.c.bf16 %v1959, %v1958
      %v1975 = vpack.c.bf16 %v1961, %v1960
      %v1976 = vpack.c.bf16 %v1963, %v1962
      %v1977 = vpack.c.bf16 %v1965, %v1964
      %v1978 = vpack.c.bf16 %v1967, %v1966
      %v1979 = vpack.c.bf16 %v1969, %v1968
      %v1980 = vpack.c.bf16 %v1971, %v1970
      %v1981 = vpack.c.bf16 %v1973, %v1972
      %v1983 = vsel %vm1400, %v1974, 0
      %1985 = vmatprep.subr.bf16.mxu0 0
      %1986 = vmatpush1.bf16.msra.mxu0 %v1382
      %1987 = vmatprep.subr.bf16.mxu0 0
      %1988 = vmatpush1.bf16.msra.mxu0 0
      %1989 = vmatprep.subr.bf16.mxu0 0
      %1990 = vmatpush1.bf16.msra.mxu0 0
      %1991 = vmatprep.subr.bf16.mxu0 0
      %1992 = vmatpush1.bf16.msra.mxu0 0
      %1993 = vmatprep.subr.bf16.mxu0 0
      %1994 = vmatpush1.bf16.msra.mxu0 0
      %1995 = vmatprep.subr.bf16.mxu0 0
      %1996 = vmatpush1.bf16.msra.mxu0 0
      %1997 = vmatprep.subr.bf16.mxu0 0
      %1998 = vmatpush1.bf16.msra.mxu0 0
      %1999 = vmatprep.subr.bf16.mxu0 0
      %2000 = vmatpush1.bf16.msra.mxu0 0
      %2001 = vmatprep.subr.bf16.mxu0 0
      %2002 = vmatpush1.bf16.msra.mxu0 0
      %2003 = vmatprep.subr.bf16.mxu0 0
      %2004 = vmatpush1.bf16.msra.mxu0 0
      %2005 = vmatprep.subr.bf16.mxu0 0
      %2006 = vmatpush1.bf16.msra.mxu0 0
      %2007 = vmatprep.subr.bf16.mxu0 0
      %2008 = vmatpush1.bf16.msra.mxu0 0
      %2009 = vmatprep.subr.bf16.mxu0 0
      %2010 = vmatpush1.bf16.msra.mxu0 0
      %2011 = vmatprep.subr.bf16.mxu0 0
      %2012 = vmatpush1.bf16.msra.mxu0 0
      %2013 = vmatprep.subr.bf16.mxu0 0
      %2014 = vmatpush1.bf16.msra.mxu0 0
      %2015 = vmatprep.subr.bf16.mxu0 0
      %2016 = vmatpush1.bf16.msra.mxu0 0
      %2017 = vmatprep.mubr.bf16.mxu0 0
      %2018 = vmatmul.mubr.bf16.gmra.mrb[0].mxu0 %v1983
      %v2019 = vpop.f32.mrb[0].mxu0
      %v2020 = vadd.f32 0.0, %v2019
      %v2021 = vpop.f32.mrb[0].mxu0
      %v2022 = vpop.f32.mrb[0].mxu0
      %v2023 = vadd.f32 0.0, %v2022
      %v2024 = vpop.f32.mrb[0].mxu0
      %2025 = vdwg.mxu0
      %v2027 = vsel %vm1400, %v1975, 0
      %2029 = vmatprep.subr.bf16.mxu0 0
      %2030 = vmatpush1.bf16.msra.mxu0 %v1384
      %2031 = vmatprep.subr.bf16.mxu0 0
      %2032 = vmatpush1.bf16.msra.mxu0 0
      %2033 = vmatprep.subr.bf16.mxu0 0
      %2034 = vmatpush1.bf16.msra.mxu0 0
      %2035 = vmatprep.subr.bf16.mxu0 0
      %2036 = vmatpush1.bf16.msra.mxu0 0
      %2037 = vmatprep.subr.bf16.mxu0 0
      %2038 = vmatpush1.bf16.msra.mxu0 0
      %2039 = vmatprep.subr.bf16.mxu0 0
      %2040 = vmatpush1.bf16.msra.mxu0 0
      %2041 = vmatprep.subr.bf16.mxu0 0
      %2042 = vmatpush1.bf16.msra.mxu0 0
      %2043 = vmatprep.subr.bf16.mxu0 0
      %2044 = vmatpush1.bf16.msra.mxu0 0
      %2045 = vmatprep.subr.bf16.mxu0 0
      %2046 = vmatpush1.bf16.msra.mxu0 0
      %2047 = vmatprep.subr.bf16.mxu0 0
      %2048 = vmatpush1.bf16.msra.mxu0 0
      %2049 = vmatprep.subr.bf16.mxu0 0
      %2050 = vmatpush1.bf16.msra.mxu0 0
      %2051 = vmatprep.subr.bf16.mxu0 0
      %2052 = vmatpush1.bf16.msra.mxu0 0
      %2053 = vmatprep.subr.bf16.mxu0 0
      %2054 = vmatpush1.bf16.msra.mxu0 0
      %2055 = vmatprep.subr.bf16.mxu0 0
      %2056 = vmatpush1.bf16.msra.mxu0 0
      %2057 = vmatprep.subr.bf16.mxu0 0
      %2058 = vmatpush1.bf16.msra.mxu0 0
      %2059 = vmatprep.subr.bf16.mxu0 0
      %2060 = vmatpush1.bf16.msra.mxu0 0
      %2061 = vmatprep.mubr.bf16.mxu0 0
      %2062 = vmatmul.mubr.bf16.gmra.mrb[0].mxu0 %v2027
      %v2063 = vpop.f32.mrb[0].mxu0
      %v2064 = vadd.f32 0.0, %v2063
      %v2065 = vpop.f32.mrb[0].mxu0
      %v2066 = vpop.f32.mrb[0].mxu0
      %v2067 = vadd.f32 0.0, %v2066
      %v2068 = vpop.f32.mrb[0].mxu0
      %2069 = vdwg.mxu0
      %v2071 = vsel %vm1400, %v1976, 0
      %2073 = vmatprep.subr.bf16.mxu0 0
      %2074 = vmatpush1.bf16.msra.mxu0 %v1386
      %2075 = vmatprep.subr.bf16.mxu0 0
      %2076 = vmatpush1.bf16.msra.mxu0 0
      %2077 = vmatprep.subr.bf16.mxu0 0
      %2078 = vmatpush1.bf16.msra.mxu0 0
      %2079 = vmatprep.subr.bf16.mxu0 0
      %2080 = vmatpush1.bf16.msra.mxu0 0
      %2081 = vmatprep.subr.bf16.mxu0 0
      %2082 = vmatpush1.bf16.msra.mxu0 0
      %2083 = vmatprep.subr.bf16.mxu0 0
      %2084 = vmatpush1.bf16.msra.mxu0 0
      %2085 = vmatprep.subr.bf16.mxu0 0
      %2086 = vmatpush1.bf16.msra.mxu0 0
      %2087 = vmatprep.subr.bf16.mxu0 0
      %2088 = vmatpush1.bf16.msra.mxu0 0
      %2089 = vmatprep.subr.bf16.mxu0 0
      %2090 = vmatpush1.bf16.msra.mxu0 0
      %2091 = vmatprep.subr.bf16.mxu0 0
      %2092 = vmatpush1.bf16.msra.mxu0 0
      %2093 = vmatprep.subr.bf16.mxu0 0
      %2094 = vmatpush1.bf16.msra.mxu0 0
      %2095 = vmatprep.subr.bf16.mxu0 0
      %2096 = vmatpush1.bf16.msra.mxu0 0
      %2097 = vmatprep.subr.bf16.mxu0 0
      %2098 = vmatpush1.bf16.msra.mxu0 0
      %2099 = vmatprep.subr.bf16.mxu0 0
      %2100 = vmatpush1.bf16.msra.mxu0 0
      %2101 = vmatprep.subr.bf16.mxu0 0
      %2102 = vmatpush1.bf16.msra.mxu0 0
      %2103 = vmatprep.subr.bf16.mxu0 0
      %2104 = vmatpush1.bf16.msra.mxu0 0
      %2105 = vmatprep.mubr.bf16.mxu0 0
      %2106 = vmatmul.mubr.bf16.gmra.mrb[0].mxu0 %v2071
      %v2107 = vpop.f32.mrb[0].mxu0
      %v2108 = vadd.f32 0.0, %v2107
      %v2109 = vpop.f32.mrb[0].mxu0
      %v2110 = vpop.f32.mrb[0].mxu0
      %v2111 = vadd.f32 0.0, %v2110
      %v2112 = vpop.f32.mrb[0].mxu0
      %2113 = vdwg.mxu0
      %v2115 = vsel %vm1400, %v1977, 0
      %2117 = vmatprep.subr.bf16.mxu0 0
      %2118 = vmatpush1.bf16.msra.mxu0 %v1388
      %2119 = vmatprep.subr.bf16.mxu0 0
      %2120 = vmatpush1.bf16.msra.mxu0 0
      %2121 = vmatprep.subr.bf16.mxu0 0
      %2122 = vmatpush1.bf16.msra.mxu0 0
      %2123 = vmatprep.subr.bf16.mxu0 0
      %2124 = vmatpush1.bf16.msra.mxu0 0
      %2125 = vmatprep.subr.bf16.mxu0 0
      %2126 = vmatpush1.bf16.msra.mxu0 0
      %2127 = vmatprep.subr.bf16.mxu0 0
      %2128 = vmatpush1.bf16.msra.mxu0 0
      %2129 = vmatprep.subr.bf16.mxu0 0
      %2130 = vmatpush1.bf16.msra.mxu0 0
      %2131 = vmatprep.subr.bf16.mxu0 0
      %2132 = vmatpush1.bf16.msra.mxu0 0
      %2133 = vmatprep.subr.bf16.mxu0 0
      %2134 = vmatpush1.bf16.msra.mxu0 0
      %2135 = vmatprep.subr.bf16.mxu0 0
      %2136 = vmatpush1.bf16.msra.mxu0 0
      %2137 = vmatprep.subr.bf16.mxu0 0
      %2138 = vmatpush1.bf16.msra.mxu0 0
      %2139 = vmatprep.subr.bf16.mxu0 0
      %2140 = vmatpush1.bf16.msra.mxu0 0
      %2141 = vmatprep.subr.bf16.mxu0 0
      %2142 = vmatpush1.bf16.msra.mxu0 0
      %2143 = vmatprep.subr.bf16.mxu0 0
      %2144 = vmatpush1.bf16.msra.mxu0 0
      %2145 = vmatprep.subr.bf16.mxu0 0
      %2146 = vmatpush1.bf16.msra.mxu0 0
      %2147 = vmatprep.subr.bf16.mxu0 0
      %2148 = vmatpush1.bf16.msra.mxu0 0
      %2149 = vmatprep.mubr.bf16.mxu0 0
      %2150 = vmatmul.mubr.bf16.gmra.mrb[0].mxu0 %v2115
      %v2151 = vpop.f32.mrb[0].mxu0
      %v2152 = vadd.f32 0.0, %v2151
      %v2153 = vpop.f32.mrb[0].mxu0
      %v2154 = vpop.f32.mrb[0].mxu0
      %v2155 = vadd.f32 0.0, %v2154
      %v2156 = vpop.f32.mrb[0].mxu0
      %2157 = vdwg.mxu0
      %v2159 = vsel %vm1400, %v1978, 0
      %2161 = vmatprep.subr.bf16.mxu0 0
      %2162 = vmatpush1.bf16.msra.mxu0 %v1390
      %2163 = vmatprep.subr.bf16.mxu0 0
      %2164 = vmatpush1.bf16.msra.mxu0 0
      %2165 = vmatprep.subr.bf16.mxu0 0
      %2166 = vmatpush1.bf16.msra.mxu0 0
      %2167 = vmatprep.subr.bf16.mxu0 0
      %2168 = vmatpush1.bf16.msra.mxu0 0
      %2169 = vmatprep.subr.bf16.mxu0 0
      %2170 = vmatpush1.bf16.msra.mxu0 0
      %2171 = vmatprep.subr.bf16.mxu0 0
      %2172 = vmatpush1.bf16.msra.mxu0 0
      %2173 = vmatprep.subr.bf16.mxu0 0
      %2174 = vmatpush1.bf16.msra.mxu0 0
      %2175 = vmatprep.subr.bf16.mxu0 0
      %2176 = vmatpush1.bf16.msra.mxu0 0
      %2177 = vmatprep.subr.bf16.mxu0 0
      %2178 = vmatpush1.bf16.msra.mxu0 0
      %2179 = vmatprep.subr.bf16.mxu0 0
      %2180 = vmatpush1.bf16.msra.mxu0 0
      %2181 = vmatprep.subr.bf16.mxu0 0
      %2182 = vmatpush1.bf16.msra.mxu0 0
      %2183 = vmatprep.subr.bf16.mxu0 0
      %2184 = vmatpush1.bf16.msra.mxu0 0
      %2185 = vmatprep.subr.bf16.mxu0 0
      %2186 = vmatpush1.bf16.msra.mxu0 0
      %2187 = vmatprep.subr.bf16.mxu0 0
      %2188 = vmatpush1.bf16.msra.mxu0 0
      %2189 = vmatprep.subr.bf16.mxu0 0
      %2190 = vmatpush1.bf16.msra.mxu0 0
      %2191 = vmatprep.subr.bf16.mxu0 0
      %2192 = vmatpush1.bf16.msra.mxu0 0
      %2193 = vmatprep.mubr.bf16.mxu0 0
      %2194 = vmatmul.mubr.bf16.gmra.mrb[0].mxu0 %v2159
      %v2195 = vpop.f32.mrb[0].mxu0
      %v2196 = vadd.f32 0.0, %v2195
      %v2197 = vpop.f32.mrb[0].mxu0
      %v2198 = vpop.f32.mrb[0].mxu0
      %v2199 = vadd.f32 0.0, %v2198
      %v2200 = vpop.f32.mrb[0].mxu0
      %2201 = vdwg.mxu0
      %v2203 = vsel %vm1400, %v1979, 0
      %2205 = vmatprep.subr.bf16.mxu0 0
      %2206 = vmatpush1.bf16.msra.mxu0 %v1392
      %2207 = vmatprep.subr.bf16.mxu0 0
      %2208 = vmatpush1.bf16.msra.mxu0 0
      %2209 = vmatprep.subr.bf16.mxu0 0
      %2210 = vmatpush1.bf16.msra.mxu0 0
      %2211 = vmatprep.subr.bf16.mxu0 0
      %2212 = vmatpush1.bf16.msra.mxu0 0
      %2213 = vmatprep.subr.bf16.mxu0 0
      %2214 = vmatpush1.bf16.msra.mxu0 0
      %2215 = vmatprep.subr.bf16.mxu0 0
      %2216 = vmatpush1.bf16.msra.mxu0 0
      %2217 = vmatprep.subr.bf16.mxu0 0
      %2218 = vmatpush1.bf16.msra.mxu0 0
      %2219 = vmatprep.subr.bf16.mxu0 0
      %2220 = vmatpush1.bf16.msra.mxu0 0
      %2221 = vmatprep.subr.bf16.mxu0 0
      %2222 = vmatpush1.bf16.msra.mxu0 0
      %2223 = vmatprep.subr.bf16.mxu0 0
      %2224 = vmatpush1.bf16.msra.mxu0 0
      %2225 = vmatprep.subr.bf16.mxu0 0
      %2226 = vmatpush1.bf16.msra.mxu0 0
      %2227 = vmatprep.subr.bf16.mxu0 0
      %2228 = vmatpush1.bf16.msra.mxu0 0
      %2229 = vmatprep.subr.bf16.mxu0 0
      %2230 = vmatpush1.bf16.msra.mxu0 0
      %2231 = vmatprep.subr.bf16.mxu0 0
      %2232 = vmatpush1.bf16.msra.mxu0 0
      %2233 = vmatprep.subr.bf16.mxu0 0
      %2234 = vmatpush1.bf16.msra.mxu0 0
      %2235 = vmatprep.subr.bf16.mxu0 0
      %2236 = vmatpush1.bf16.msra.mxu0 0
      %2237 = vmatprep.mubr.bf16.mxu0 0
      %2238 = vmatmul.mubr.bf16.gmra.mrb[0].mxu0 %v2203
      %v2239 = vpop.f32.mrb[0].mxu0
      %v2240 = vadd.f32 0.0, %v2239
      %v2241 = vpop.f32.mrb[0].mxu0
      %v2242 = vpop.f32.mrb[0].mxu0
      %v2243 = vadd.f32 0.0, %v2242
      %v2244 = vpop.f32.mrb[0].mxu0
      %2245 = vdwg.mxu0
      %v2247 = vsel %vm1400, %v1980, 0
      %2249 = vmatprep.subr.bf16.mxu0 0
      %2250 = vmatpush1.bf16.msra.mxu0 %v1394
      %2251 = vmatprep.subr.bf16.mxu0 0
      %2252 = vmatpush1.bf16.msra.mxu0 0
      %2253 = vmatprep.subr.bf16.mxu0 0
      %2254 = vmatpush1.bf16.msra.mxu0 0
      %2255 = vmatprep.subr.bf16.mxu0 0
      %2256 = vmatpush1.bf16.msra.mxu0 0
      %2257 = vmatprep.subr.bf16.mxu0 0
      %2258 = vmatpush1.bf16.msra.mxu0 0
      %2259 = vmatprep.subr.bf16.mxu0 0
      %2260 = vmatpush1.bf16.msra.mxu0 0
      %2261 = vmatprep.subr.bf16.mxu0 0
      %2262 = vmatpush1.bf16.msra.mxu0 0
      %2263 = vmatprep.subr.bf16.mxu0 0
      %2264 = vmatpush1.bf16.msra.mxu0 0
      %2265 = vmatprep.subr.bf16.mxu0 0
      %2266 = vmatpush1.bf16.msra.mxu0 0
      %2267 = vmatprep.subr.bf16.mxu0 0
      %2268 = vmatpush1.bf16.msra.mxu0 0
      %2269 = vmatprep.subr.bf16.mxu0 0
      %2270 = vmatpush1.bf16.msra.mxu0 0
      %2271 = vmatprep.subr.bf16.mxu0 0
      %2272 = vmatpush1.bf16.msra.mxu0 0
      %2273 = vmatprep.subr.bf16.mxu0 0
      %2274 = vmatpush1.bf16.msra.mxu0 0
      %2275 = vmatprep.subr.bf16.mxu0 0
      %2276 = vmatpush1.bf16.msra.mxu0 0
      %2277 = vmatprep.subr.bf16.mxu0 0
      %2278 = vmatpush1.bf16.msra.mxu0 0
      %2279 = vmatprep.subr.bf16.mxu0 0
      %2280 = vmatpush1.bf16.msra.mxu0 0
      %2281 = vmatprep.mubr.bf16.mxu0 0
      %2282 = vmatmul.mubr.bf16.gmra.mrb[0].mxu0 %v2247
      %v2283 = vpop.f32.mrb[0].mxu0
      %v2284 = vadd.f32 0.0, %v2283
      %v2285 = vpop.f32.mrb[0].mxu0
      %v2286 = vpop.f32.mrb[0].mxu0
      %v2287 = vadd.f32 0.0, %v2286
      %v2288 = vpop.f32.mrb[0].mxu0
      %2289 = vdwg.mxu0
      %v2291 = vsel %vm1400, %v1981, 0
      %2293 = vmatprep.subr.bf16.mxu0 0
      %2294 = vmatpush1.bf16.msra.mxu0 %v1396
      %2295 = vmatprep.subr.bf16.mxu0 0
      %2296 = vmatpush1.bf16.msra.mxu0 0
      %2297 = vmatprep.subr.bf16.mxu0 0
      %2298 = vmatpush1.bf16.msra.mxu0 0
      %2299 = vmatprep.subr.bf16.mxu0 0
      %2300 = vmatpush1.bf16.msra.mxu0 0
      %2301 = vmatprep.subr.bf16.mxu0 0
      %2302 = vmatpush1.bf16.msra.mxu0 0
      %2303 = vmatprep.subr.bf16.mxu0 0
      %2304 = vmatpush1.bf16.msra.mxu0 0
      %2305 = vmatprep.subr.bf16.mxu0 0
      %2306 = vmatpush1.bf16.msra.mxu0 0
      %2307 = vmatprep.subr.bf16.mxu0 0
      %2308 = vmatpush1.bf16.msra.mxu0 0
      %2309 = vmatprep.subr.bf16.mxu0 0
      %2310 = vmatpush1.bf16.msra.mxu0 0
      %2311 = vmatprep.subr.bf16.mxu0 0
      %2312 = vmatpush1.bf16.msra.mxu0 0
      %2313 = vmatprep.subr.bf16.mxu0 0
      %2314 = vmatpush1.bf16.msra.mxu0 0
      %2315 = vmatprep.subr.bf16.mxu0 0
      %2316 = vmatpush1.bf16.msra.mxu0 0
      %2317 = vmatprep.subr.bf16.mxu0 0
      %2318 = vmatpush1.bf16.msra.mxu0 0
      %2319 = vmatprep.subr.bf16.mxu0 0
      %2320 = vmatpush1.bf16.msra.mxu0 0
      %2321 = vmatprep.subr.bf16.mxu0 0
      %2322 = vmatpush1.bf16.msra.mxu0 0
      %2323 = vmatprep.subr.bf16.mxu0 0
      %2324 = vmatpush1.bf16.msra.mxu0 0
      %2325 = vmatprep.mubr.bf16.mxu0 0
      %2326 = vmatmul.mubr.bf16.gmra.mrb[0].mxu0 %v2291
      %v2327 = vpop.f32.mrb[0].mxu0
      %v2328 = vadd.f32 0.0, %v2327
      %v2329 = vpop.f32.mrb[0].mxu0
      %v2330 = vpop.f32.mrb[0].mxu0
      %v2331 = vadd.f32 0.0, %v2330
      %v2332 = vpop.f32.mrb[0].mxu0
      %2333 = vdwg.mxu0
      %v2334 = vpack.c.bf16 %v2023, %v2020
      %v2335 = vpack.c.bf16 %v2067, %v2064
      %v2336 = vpack.c.bf16 %v2111, %v2108
      %v2337 = vpack.c.bf16 %v2155, %v2152
      %v2338 = vpack.c.bf16 %v2199, %v2196
      %v2339 = vpack.c.bf16 %v2243, %v2240
      %v2340 = vpack.c.bf16 %v2287, %v2284
      %v2341 = vpack.c.bf16 %v2331, %v2328
      %2342 = vrot.lane.b32.xlu0 %v1381, 112
      %v2343 = vpop.permute.xlu0 %2342
      %2344 = vrot.lane.b32.xlu0 %v1381, 48
      %v2345 = vpop.permute.xlu0 %2344
      %v2347 = vsel %vm1400, %v2343, 0
      %v2350 = vsel %vm1400, %v2345, 0
      %2352 = vmatprep.subr.bf16.mxu0 0
      %2353 = vmatpush1.bf16.xpose.msra.mxu0 %v2350
      %2354 = vmatprep.subr.bf16.mxu0 0
      %2355 = vmatpush1.bf16.xpose.msra.mxu0 0
      %2356 = vmatprep.subr.bf16.mxu0 0
      %2357 = vmatpush1.bf16.xpose.msra.mxu0 0
      %2358 = vmatprep.subr.bf16.mxu0 0
      %2359 = vmatpush1.bf16.xpose.msra.mxu0 0
      %2360 = vmatprep.subr.bf16.mxu0 0
      %2361 = vmatpush1.bf16.xpose.msra.mxu0 0
      %2362 = vmatprep.subr.bf16.mxu0 0
      %2363 = vmatpush1.bf16.xpose.msra.mxu0 0
      %2364 = vmatprep.subr.bf16.mxu0 0
      %2365 = vmatpush1.bf16.xpose.msra.mxu0 0
      %2366 = vmatprep.subr.bf16.mxu0 0
      %2367 = vmatpush1.bf16.xpose.msra.mxu0 0
      %2368 = vmatprep.subr.bf16.mxu0 0
      %2369 = vmatpush1.bf16.xpose.msra.mxu0 0
      %2370 = vmatprep.subr.bf16.mxu0 0
      %2371 = vmatpush1.bf16.xpose.msra.mxu0 0
      %2372 = vmatprep.subr.bf16.mxu0 0
      %2373 = vmatpush1.bf16.xpose.msra.mxu0 0
      %2374 = vmatprep.subr.bf16.mxu0 0
      %2375 = vmatpush1.bf16.xpose.msra.mxu0 0
      %2376 = vmatprep.subr.bf16.mxu0 0
      %2377 = vmatpush1.bf16.xpose.msra.mxu0 0
      %2378 = vmatprep.subr.bf16.mxu0 0
      %2379 = vmatpush1.bf16.xpose.msra.mxu0 0
      %2380 = vmatprep.subr.bf16.mxu0 0
      %2381 = vmatpush1.bf16.xpose.msra.mxu0 0
      %2382 = vmatprep.subr.bf16.mxu0 0
      %2383 = vmatpush1.bf16.xpose.msra.mxu0 0
      %2384 = vmatprep.mubr.bf16.mxu0 0
      %2385 = vmatmul.mubr.bf16.gmra.mrb[0].mxu0 %v2347
      %v2386 = vpop.f32.mrb[0].mxu0
      %v2387 = vadd.f32 0.0, %v2386
      %v2388 = vpop.f32.mrb[0].mxu0
      %v2389 = vpop.f32.mrb[0].mxu0
      %v2390 = vadd.f32 0.0, %v2389
      %v2391 = vpop.f32.mrb[0].mxu0
      %2392 = vdwg.mxu0
      %2393 = vrot.lane.b32.xlu0 %v1383, 112
      %v2394 = vpop.permute.xlu0 %2393
      %2395 = vrot.lane.b32.xlu0 %v1383, 48
      %v2396 = vpop.permute.xlu0 %2395
      %v2398 = vsel %vm1400, %v2394, 0
      %v2401 = vsel %vm1400, %v2396, 0
      %2403 = vmatprep.subr.bf16.mxu0 0
      %2404 = vmatpush1.bf16.xpose.msra.mxu0 %v2401
      %2405 = vmatprep.subr.bf16.mxu0 0
      %2406 = vmatpush1.bf16.xpose.msra.mxu0 0
      %2407 = vmatprep.subr.bf16.mxu0 0
      %2408 = vmatpush1.bf16.xpose.msra.mxu0 0
      %2409 = vmatprep.subr.bf16.mxu0 0
      %2410 = vmatpush1.bf16.xpose.msra.mxu0 0
      %2411 = vmatprep.subr.bf16.mxu0 0
      %2412 = vmatpush1.bf16.xpose.msra.mxu0 0
      %2413 = vmatprep.subr.bf16.mxu0 0
      %2414 = vmatpush1.bf16.xpose.msra.mxu0 0
      %2415 = vmatprep.subr.bf16.mxu0 0
      %2416 = vmatpush1.bf16.xpose.msra.mxu0 0
      %2417 = vmatprep.subr.bf16.mxu0 0
      %2418 = vmatpush1.bf16.xpose.msra.mxu0 0
      %2419 = vmatprep.subr.bf16.mxu0 0
      %2420 = vmatpush1.bf16.xpose.msra.mxu0 0
      %2421 = vmatprep.subr.bf16.mxu0 0
      %2422 = vmatpush1.bf16.xpose.msra.mxu0 0
      %2423 = vmatprep.subr.bf16.mxu0 0
      %2424 = vmatpush1.bf16.xpose.msra.mxu0 0
      %2425 = vmatprep.subr.bf16.mxu0 0
      %2426 = vmatpush1.bf16.xpose.msra.mxu0 0
      %2427 = vmatprep.subr.bf16.mxu0 0
      %2428 = vmatpush1.bf16.xpose.msra.mxu0 0
      %2429 = vmatprep.subr.bf16.mxu0 0
      %2430 = vmatpush1.bf16.xpose.msra.mxu0 0
      %2431 = vmatprep.subr.bf16.mxu0 0
      %2432 = vmatpush1.bf16.xpose.msra.mxu0 0
      %2433 = vmatprep.subr.bf16.mxu0 0
      %2434 = vmatpush1.bf16.xpose.msra.mxu0 0
      %2435 = vmatprep.mubr.bf16.mxu0 0
      %2436 = vmatmul.mubr.bf16.gmra.mrb[0].mxu0 %v2398
      %v2437 = vpop.f32.mrb[0].mxu0
      %v2438 = vadd.f32 0.0, %v2437
      %v2439 = vpop.f32.mrb[0].mxu0
      %v2440 = vpop.f32.mrb[0].mxu0
      %v2441 = vadd.f32 0.0, %v2440
      %v2442 = vpop.f32.mrb[0].mxu0
      %2443 = vdwg.mxu0
      %2444 = vrot.lane.b32.xlu0 %v1385, 112
      %v2445 = vpop.permute.xlu0 %2444
      %2446 = vrot.lane.b32.xlu0 %v1385, 48
      %v2447 = vpop.permute.xlu0 %2446
      %v2449 = vsel %vm1400, %v2445, 0
      %v2452 = vsel %vm1400, %v2447, 0
      %2454 = vmatprep.subr.bf16.mxu0 0
      %2455 = vmatpush1.bf16.xpose.msra.mxu0 %v2452
      %2456 = vmatprep.subr.bf16.mxu0 0
      %2457 = vmatpush1.bf16.xpose.msra.mxu0 0
      %2458 = vmatprep.subr.bf16.mxu0 0
      %2459 = vmatpush1.bf16.xpose.msra.mxu0 0
      %2460 = vmatprep.subr.bf16.mxu0 0
      %2461 = vmatpush1.bf16.xpose.msra.mxu0 0
      %2462 = vmatprep.subr.bf16.mxu0 0
      %2463 = vmatpush1.bf16.xpose.msra.mxu0 0
      %2464 = vmatprep.subr.bf16.mxu0 0
      %2465 = vmatpush1.bf16.xpose.msra.mxu0 0
      %2466 = vmatprep.subr.bf16.mxu0 0
      %2467 = vmatpush1.bf16.xpose.msra.mxu0 0
      %2468 = vmatprep.subr.bf16.mxu0 0
      %2469 = vmatpush1.bf16.xpose.msra.mxu0 0
      %2470 = vmatprep.subr.bf16.mxu0 0
      %2471 = vmatpush1.bf16.xpose.msra.mxu0 0
      %2472 = vmatprep.subr.bf16.mxu0 0
      %2473 = vmatpush1.bf16.xpose.msra.mxu0 0
      %2474 = vmatprep.subr.bf16.mxu0 0
      %2475 = vmatpush1.bf16.xpose.msra.mxu0 0
      %2476 = vmatprep.subr.bf16.mxu0 0
      %2477 = vmatpush1.bf16.xpose.msra.mxu0 0
      %2478 = vmatprep.subr.bf16.mxu0 0
      %2479 = vmatpush1.bf16.xpose.msra.mxu0 0
      %2480 = vmatprep.subr.bf16.mxu0 0
      %2481 = vmatpush1.bf16.xpose.msra.mxu0 0
      %2482 = vmatprep.subr.bf16.mxu0 0
      %2483 = vmatpush1.bf16.xpose.msra.mxu0 0
      %2484 = vmatprep.subr.bf16.mxu0 0
      %2485 = vmatpush1.bf16.xpose.msra.mxu0 0
      %2486 = vmatprep.mubr.bf16.mxu0 0
      %2487 = vmatmul.mubr.bf16.gmra.mrb[0].mxu0 %v2449
      %v2488 = vpop.f32.mrb[0].mxu0
      %v2489 = vadd.f32 0.0, %v2488
      %v2490 = vpop.f32.mrb[0].mxu0
      %v2491 = vpop.f32.mrb[0].mxu0
      %v2492 = vadd.f32 0.0, %v2491
      %v2493 = vpop.f32.mrb[0].mxu0
      %2494 = vdwg.mxu0
      %2495 = vrot.lane.b32.xlu0 %v1387, 112
      %v2496 = vpop.permute.xlu0 %2495
      %2497 = vrot.lane.b32.xlu0 %v1387, 48
      %v2498 = vpop.permute.xlu0 %2497
      %v2500 = vsel %vm1400, %v2496, 0
      %v2503 = vsel %vm1400, %v2498, 0
      %2505 = vmatprep.subr.bf16.mxu0 0
      %2506 = vmatpush1.bf16.xpose.msra.mxu0 %v2503
      %2507 = vmatprep.subr.bf16.mxu0 0
      %2508 = vmatpush1.bf16.xpose.msra.mxu0 0
      %2509 = vmatprep.subr.bf16.mxu0 0
      %2510 = vmatpush1.bf16.xpose.msra.mxu0 0
      %2511 = vmatprep.subr.bf16.mxu0 0
      %2512 = vmatpush1.bf16.xpose.msra.mxu0 0
      %2513 = vmatprep.subr.bf16.mxu0 0
      %2514 = vmatpush1.bf16.xpose.msra.mxu0 0
      %2515 = vmatprep.subr.bf16.mxu0 0
      %2516 = vmatpush1.bf16.xpose.msra.mxu0 0
      %2517 = vmatprep.subr.bf16.mxu0 0
      %2518 = vmatpush1.bf16.xpose.msra.mxu0 0
      %2519 = vmatprep.subr.bf16.mxu0 0
      %2520 = vmatpush1.bf16.xpose.msra.mxu0 0
      %2521 = vmatprep.subr.bf16.mxu0 0
      %2522 = vmatpush1.bf16.xpose.msra.mxu0 0
      %2523 = vmatprep.subr.bf16.mxu0 0
      %2524 = vmatpush1.bf16.xpose.msra.mxu0 0
      %2525 = vmatprep.subr.bf16.mxu0 0
      %2526 = vmatpush1.bf16.xpose.msra.mxu0 0
      %2527 = vmatprep.subr.bf16.mxu0 0
      %2528 = vmatpush1.bf16.xpose.msra.mxu0 0
      %2529 = vmatprep.subr.bf16.mxu0 0
      %2530 = vmatpush1.bf16.xpose.msra.mxu0 0
      %2531 = vmatprep.subr.bf16.mxu0 0
      %2532 = vmatpush1.bf16.xpose.msra.mxu0 0
      %2533 = vmatprep.subr.bf16.mxu0 0
      %2534 = vmatpush1.bf16.xpose.msra.mxu0 0
      %2535 = vmatprep.subr.bf16.mxu0 0
      %2536 = vmatpush1.bf16.xpose.msra.mxu0 0
      %2537 = vmatprep.mubr.bf16.mxu0 0
      %2538 = vmatmul.mubr.bf16.gmra.mrb[0].mxu0 %v2500
      %v2539 = vpop.f32.mrb[0].mxu0
      %v2540 = vadd.f32 0.0, %v2539
      %v2541 = vpop.f32.mrb[0].mxu0
      %v2542 = vpop.f32.mrb[0].mxu0
      %v2543 = vadd.f32 0.0, %v2542
      %v2544 = vpop.f32.mrb[0].mxu0
      %2545 = vdwg.mxu0
      %2546 = vrot.lane.b32.xlu0 %v1389, 112
      %v2547 = vpop.permute.xlu0 %2546
      %2548 = vrot.lane.b32.xlu0 %v1389, 48
      %v2549 = vpop.permute.xlu0 %2548
      %v2551 = vsel %vm1400, %v2547, 0
      %v2554 = vsel %vm1400, %v2549, 0
      %2556 = vmatprep.subr.bf16.mxu0 0
      %2557 = vmatpush1.bf16.xpose.msra.mxu0 %v2554
      %2558 = vmatprep.subr.bf16.mxu0 0
      %2559 = vmatpush1.bf16.xpose.msra.mxu0 0
      %2560 = vmatprep.subr.bf16.mxu0 0
      %2561 = vmatpush1.bf16.xpose.msra.mxu0 0
      %2562 = vmatprep.subr.bf16.mxu0 0
      %2563 = vmatpush1.bf16.xpose.msra.mxu0 0
      %2564 = vmatprep.subr.bf16.mxu0 0
      %2565 = vmatpush1.bf16.xpose.msra.mxu0 0
      %2566 = vmatprep.subr.bf16.mxu0 0
      %2567 = vmatpush1.bf16.xpose.msra.mxu0 0
      %2568 = vmatprep.subr.bf16.mxu0 0
      %2569 = vmatpush1.bf16.xpose.msra.mxu0 0
      %2570 = vmatprep.subr.bf16.mxu0 0
      %2571 = vmatpush1.bf16.xpose.msra.mxu0 0
      %2572 = vmatprep.subr.bf16.mxu0 0
      %2573 = vmatpush1.bf16.xpose.msra.mxu0 0
      %2574 = vmatprep.subr.bf16.mxu0 0
      %2575 = vmatpush1.bf16.xpose.msra.mxu0 0
      %2576 = vmatprep.subr.bf16.mxu0 0
      %2577 = vmatpush1.bf16.xpose.msra.mxu0 0
      %2578 = vmatprep.subr.bf16.mxu0 0
      %2579 = vmatpush1.bf16.xpose.msra.mxu0 0
      %2580 = vmatprep.subr.bf16.mxu0 0
      %2581 = vmatpush1.bf16.xpose.msra.mxu0 0
      %2582 = vmatprep.subr.bf16.mxu0 0
      %2583 = vmatpush1.bf16.xpose.msra.mxu0 0
      %2584 = vmatprep.subr.bf16.mxu0 0
      %2585 = vmatpush1.bf16.xpose.msra.mxu0 0
      %2586 = vmatprep.subr.bf16.mxu0 0
      %2587 = vmatpush1.bf16.xpose.msra.mxu0 0
      %2588 = vmatprep.mubr.bf16.mxu0 0
      %2589 = vmatmul.mubr.bf16.gmra.mrb[0].mxu0 %v2551
      %v2590 = vpop.f32.mrb[0].mxu0
      %v2591 = vadd.f32 0.0, %v2590
      %v2592 = vpop.f32.mrb[0].mxu0
      %v2593 = vpop.f32.mrb[0].mxu0
      %v2594 = vadd.f32 0.0, %v2593
      %v2595 = vpop.f32.mrb[0].mxu0
      %2596 = vdwg.mxu0
      %2597 = vrot.lane.b32.xlu0 %v1391, 112
      %v2598 = vpop.permute.xlu0 %2597
      %2599 = vrot.lane.b32.xlu0 %v1391, 48
      %v2600 = vpop.permute.xlu0 %2599
      %v2602 = vsel %vm1400, %v2598, 0
      %v2605 = vsel %vm1400, %v2600, 0
      %2607 = vmatprep.subr.bf16.mxu0 0
      %2608 = vmatpush1.bf16.xpose.msra.mxu0 %v2605
      %2609 = vmatprep.subr.bf16.mxu0 0
      %2610 = vmatpush1.bf16.xpose.msra.mxu0 0
      %2611 = vmatprep.subr.bf16.mxu0 0
      %2612 = vmatpush1.bf16.xpose.msra.mxu0 0
      %2613 = vmatprep.subr.bf16.mxu0 0
      %2614 = vmatpush1.bf16.xpose.msra.mxu0 0
      %2615 = vmatprep.subr.bf16.mxu0 0
      %2616 = vmatpush1.bf16.xpose.msra.mxu0 0
      %2617 = vmatprep.subr.bf16.mxu0 0
      %2618 = vmatpush1.bf16.xpose.msra.mxu0 0
      %2619 = vmatprep.subr.bf16.mxu0 0
      %2620 = vmatpush1.bf16.xpose.msra.mxu0 0
      %2621 = vmatprep.subr.bf16.mxu0 0
      %2622 = vmatpush1.bf16.xpose.msra.mxu0 0
      %2623 = vmatprep.subr.bf16.mxu0 0
      %2624 = vmatpush1.bf16.xpose.msra.mxu0 0
      %2625 = vmatprep.subr.bf16.mxu0 0
      %2626 = vmatpush1.bf16.xpose.msra.mxu0 0
      %2627 = vmatprep.subr.bf16.mxu0 0
      %2628 = vmatpush1.bf16.xpose.msra.mxu0 0
      %2629 = vmatprep.subr.bf16.mxu0 0
      %2630 = vmatpush1.bf16.xpose.msra.mxu0 0
      %2631 = vmatprep.subr.bf16.mxu0 0
      %2632 = vmatpush1.bf16.xpose.msra.mxu0 0
      %2633 = vmatprep.subr.bf16.mxu0 0
      %2634 = vmatpush1.bf16.xpose.msra.mxu0 0
      %2635 = vmatprep.subr.bf16.mxu0 0
      %2636 = vmatpush1.bf16.xpose.msra.mxu0 0
      %2637 = vmatprep.subr.bf16.mxu0 0
      %2638 = vmatpush1.bf16.xpose.msra.mxu0 0
      %2639 = vmatprep.mubr.bf16.mxu0 0
      %2640 = vmatmul.mubr.bf16.gmra.mrb[0].mxu0 %v2602
      %v2641 = vpop.f32.mrb[0].mxu0
      %v2642 = vadd.f32 0.0, %v2641
      %v2643 = vpop.f32.mrb[0].mxu0
      %v2644 = vpop.f32.mrb[0].mxu0
      %v2645 = vadd.f32 0.0, %v2644
      %v2646 = vpop.f32.mrb[0].mxu0
      %2647 = vdwg.mxu0
      %2648 = vrot.lane.b32.xlu0 %v1393, 112
      %v2649 = vpop.permute.xlu0 %2648
      %2650 = vrot.lane.b32.xlu0 %v1393, 48
      %v2651 = vpop.permute.xlu0 %2650
      %v2653 = vsel %vm1400, %v2649, 0
      %v2656 = vsel %vm1400, %v2651, 0
      %2658 = vmatprep.subr.bf16.mxu0 0
      %2659 = vmatpush1.bf16.xpose.msra.mxu0 %v2656
      %2660 = vmatprep.subr.bf16.mxu0 0
      %2661 = vmatpush1.bf16.xpose.msra.mxu0 0
      %2662 = vmatprep.subr.bf16.mxu0 0
      %2663 = vmatpush1.bf16.xpose.msra.mxu0 0
      %2664 = vmatprep.subr.bf16.mxu0 0
      %2665 = vmatpush1.bf16.xpose.msra.mxu0 0
      %2666 = vmatprep.subr.bf16.mxu0 0
      %2667 = vmatpush1.bf16.xpose.msra.mxu0 0
      %2668 = vmatprep.subr.bf16.mxu0 0
      %2669 = vmatpush1.bf16.xpose.msra.mxu0 0
      %2670 = vmatprep.subr.bf16.mxu0 0
      %2671 = vmatpush1.bf16.xpose.msra.mxu0 0
      %2672 = vmatprep.subr.bf16.mxu0 0
      %2673 = vmatpush1.bf16.xpose.msra.mxu0 0
      %2674 = vmatprep.subr.bf16.mxu0 0
      %2675 = vmatpush1.bf16.xpose.msra.mxu0 0
      %2676 = vmatprep.subr.bf16.mxu0 0
      %2677 = vmatpush1.bf16.xpose.msra.mxu0 0
      %2678 = vmatprep.subr.bf16.mxu0 0
      %2679 = vmatpush1.bf16.xpose.msra.mxu0 0
      %2680 = vmatprep.subr.bf16.mxu0 0
      %2681 = vmatpush1.bf16.xpose.msra.mxu0 0
      %2682 = vmatprep.subr.bf16.mxu0 0
      %2683 = vmatpush1.bf16.xpose.msra.mxu0 0
      %2684 = vmatprep.subr.bf16.mxu0 0
      %2685 = vmatpush1.bf16.xpose.msra.mxu0 0
      %2686 = vmatprep.subr.bf16.mxu0 0
      %2687 = vmatpush1.bf16.xpose.msra.mxu0 0
      %2688 = vmatprep.subr.bf16.mxu0 0
      %2689 = vmatpush1.bf16.xpose.msra.mxu0 0
      %2690 = vmatprep.mubr.bf16.mxu0 0
      %2691 = vmatmul.mubr.bf16.gmra.mrb[0].mxu0 %v2653
      %v2692 = vpop.f32.mrb[0].mxu0
      %v2693 = vadd.f32 0.0, %v2692
      %v2694 = vpop.f32.mrb[0].mxu0
      %v2695 = vpop.f32.mrb[0].mxu0
      %v2696 = vadd.f32 0.0, %v2695
      %v2697 = vpop.f32.mrb[0].mxu0
      %2698 = vdwg.mxu0
      %2699 = vrot.lane.b32.xlu0 %v1395, 112
      %v2700 = vpop.permute.xlu0 %2699
      %2701 = vrot.lane.b32.xlu0 %v1395, 48
      %v2702 = vpop.permute.xlu0 %2701
      %v2704 = vsel %vm1400, %v2700, 0
      %v2707 = vsel %vm1400, %v2702, 0
      %2709 = vmatprep.subr.bf16.mxu0 0
      %2710 = vmatpush1.bf16.xpose.msra.mxu0 %v2707
      %2711 = vmatprep.subr.bf16.mxu0 0
      %2712 = vmatpush1.bf16.xpose.msra.mxu0 0
      %2713 = vmatprep.subr.bf16.mxu0 0
      %2714 = vmatpush1.bf16.xpose.msra.mxu0 0
      %2715 = vmatprep.subr.bf16.mxu0 0
      %2716 = vmatpush1.bf16.xpose.msra.mxu0 0
      %2717 = vmatprep.subr.bf16.mxu0 0
      %2718 = vmatpush1.bf16.xpose.msra.mxu0 0
      %2719 = vmatprep.subr.bf16.mxu0 0
      %2720 = vmatpush1.bf16.xpose.msra.mxu0 0
      %2721 = vmatprep.subr.bf16.mxu0 0
      %2722 = vmatpush1.bf16.xpose.msra.mxu0 0
      %2723 = vmatprep.subr.bf16.mxu0 0
      %2724 = vmatpush1.bf16.xpose.msra.mxu0 0
      %2725 = vmatprep.subr.bf16.mxu0 0
      %2726 = vmatpush1.bf16.xpose.msra.mxu0 0
      %2727 = vmatprep.subr.bf16.mxu0 0
      %2728 = vmatpush1.bf16.xpose.msra.mxu0 0
      %2729 = vmatprep.subr.bf16.mxu0 0
      %2730 = vmatpush1.bf16.xpose.msra.mxu0 0
      %2731 = vmatprep.subr.bf16.mxu0 0
      %2732 = vmatpush1.bf16.xpose.msra.mxu0 0
      %2733 = vmatprep.subr.bf16.mxu0 0
      %2734 = vmatpush1.bf16.xpose.msra.mxu0 0
      %2735 = vmatprep.subr.bf16.mxu0 0
      %2736 = vmatpush1.bf16.xpose.msra.mxu0 0
      %2737 = vmatprep.subr.bf16.mxu0 0
      %2738 = vmatpush1.bf16.xpose.msra.mxu0 0
      %2739 = vmatprep.subr.bf16.mxu0 0
      %2740 = vmatpush1.bf16.xpose.msra.mxu0 0
      %2741 = vmatprep.mubr.bf16.mxu0 0
      %2742 = vmatmul.mubr.bf16.gmra.mrb[0].mxu0 %v2704
      %v2743 = vpop.f32.mrb[0].mxu0
      %v2744 = vadd.f32 0.0, %v2743
      %v2745 = vpop.f32.mrb[0].mxu0
      %v2746 = vpop.f32.mrb[0].mxu0
      %v2747 = vadd.f32 0.0, %v2746
      %v2748 = vpop.f32.mrb[0].mxu0
      %2749 = vdwg.mxu0
      %v2750 = vsel %vm1400, %v2387, -inf
      %2751 = vmax.xlane.f32.xlu0 %v2750
      %v2752 = vpop.xlane.xlu0 %2751
      %v2753 = vsel %vm1400, %v2390, -inf
      %2754 = vmax.xlane.f32.xlu0 %v2753
      %v2755 = vpop.xlane.xlu0 %2754
      %v2756 = vsel %vm1400, %v2438, -inf
      %2757 = vmax.xlane.f32.xlu0 %v2756
      %v2758 = vpop.xlane.xlu0 %2757
      %v2759 = vsel %vm1400, %v2441, -inf
      %2760 = vmax.xlane.f32.xlu0 %v2759
      %v2761 = vpop.xlane.xlu0 %2760
      %v2762 = vsel %vm1400, %v2489, -inf
      %2763 = vmax.xlane.f32.xlu0 %v2762
      %v2764 = vpop.xlane.xlu0 %2763
      %v2765 = vsel %vm1400, %v2492, -inf
      %2766 = vmax.xlane.f32.xlu0 %v2765
      %v2767 = vpop.xlane.xlu0 %2766
      %v2768 = vsel %vm1400, %v2540, -inf
      %2769 = vmax.xlane.f32.xlu0 %v2768
      %v2770 = vpop.xlane.xlu0 %2769
      %v2771 = vsel %vm1400, %v2543, -inf
      %2772 = vmax.xlane.f32.xlu0 %v2771
      %v2773 = vpop.xlane.xlu0 %2772
      %v2774 = vsel %vm1400, %v2591, -inf
      %2775 = vmax.xlane.f32.xlu0 %v2774
      %v2776 = vpop.xlane.xlu0 %2775
      %v2777 = vsel %vm1400, %v2594, -inf
      %2778 = vmax.xlane.f32.xlu0 %v2777
      %v2779 = vpop.xlane.xlu0 %2778
      %v2780 = vsel %vm1400, %v2642, -inf
      %2781 = vmax.xlane.f32.xlu0 %v2780
      %v2782 = vpop.xlane.xlu0 %2781
      %v2783 = vsel %vm1400, %v2645, -inf
      %2784 = vmax.xlane.f32.xlu0 %v2783
      %v2785 = vpop.xlane.xlu0 %2784
      %v2786 = vsel %vm1400, %v2693, -inf
      %2787 = vmax.xlane.f32.xlu0 %v2786
      %v2788 = vpop.xlane.xlu0 %2787
      %v2789 = vsel %vm1400, %v2696, -inf
      %2790 = vmax.xlane.f32.xlu0 %v2789
      %v2791 = vpop.xlane.xlu0 %2790
      %v2792 = vsel %vm1400, %v2744, -inf
      %2793 = vmax.xlane.f32.xlu0 %v2792
      %v2794 = vpop.xlane.xlu0 %2793
      %v2795 = vsel %vm1400, %v2747, -inf
      %2796 = vmax.xlane.f32.xlu0 %v2795
      %v2797 = vpop.xlane.xlu0 %2796
      %v2798 = vsub.f32 %v2387, %v2752
      %v2799 = vsub.f32 %v2390, %v2755
      %v2800 = vsub.f32 %v2438, %v2758
      %v2801 = vsub.f32 %v2441, %v2761
      %v2802 = vsub.f32 %v2489, %v2764
      %v2803 = vsub.f32 %v2492, %v2767
      %v2804 = vsub.f32 %v2540, %v2770
      %v2805 = vsub.f32 %v2543, %v2773
      %v2806 = vsub.f32 %v2591, %v2776
      %v2807 = vsub.f32 %v2594, %v2779
      %v2808 = vsub.f32 %v2642, %v2782
      %v2809 = vsub.f32 %v2645, %v2785
      %v2810 = vsub.f32 %v2693, %v2788
      %v2811 = vsub.f32 %v2696, %v2791
      %v2812 = vsub.f32 %v2744, %v2794
      %v2813 = vsub.f32 %v2747, %v2797
      %v2814 = vmul.f32 %v2798, 1.442695
      %v2815 = vpow.pop %v2814
      %v2816 = vmul.f32 %v2799, 1.442695
      %v2817 = vpow.pop %v2816
      %v2818 = vmul.f32 %v2800, 1.442695
      %v2819 = vpow.pop %v2818
      %v2820 = vmul.f32 %v2801, 1.442695
      %v2821 = vpow.pop %v2820
      %v2822 = vmul.f32 %v2802, 1.442695
      %v2823 = vpow.pop %v2822
      %v2824 = vmul.f32 %v2803, 1.442695
      %v2825 = vpow.pop %v2824
      %v2826 = vmul.f32 %v2804, 1.442695
      %v2827 = vpow.pop %v2826
      %v2828 = vmul.f32 %v2805, 1.442695
      %v2829 = vpow.pop %v2828
      %v2830 = vmul.f32 %v2806, 1.442695
      %v2831 = vpow.pop %v2830
      %v2832 = vmul.f32 %v2807, 1.442695
      %v2833 = vpow.pop %v2832
      %v2834 = vmul.f32 %v2808, 1.442695
      %v2835 = vpow.pop %v2834
      %v2836 = vmul.f32 %v2809, 1.442695
      %v2837 = vpow.pop %v2836
      %v2838 = vmul.f32 %v2810, 1.442695
      %v2839 = vpow.pop %v2838
      %v2840 = vmul.f32 %v2811, 1.442695
      %v2841 = vpow.pop %v2840
      %v2842 = vmul.f32 %v2812, 1.442695
      %v2843 = vpow.pop %v2842
      %v2844 = vmul.f32 %v2813, 1.442695
      %v2845 = vpow.pop %v2844
      %v2846 = vsel %vm1400, %v2815, 0.0
      %2847 = vadd.xlane.f32.xlu0 %v2846
      %v2848 = vpop.xlane.xlu0 %2847
      %v2849 = vsel %vm1400, %v2817, 0.0
      %2850 = vadd.xlane.f32.xlu0 %v2849
      %v2851 = vpop.xlane.xlu0 %2850
      %v2852 = vsel %vm1400, %v2819, 0.0
      %2853 = vadd.xlane.f32.xlu0 %v2852
      %v2854 = vpop.xlane.xlu0 %2853
      %v2855 = vsel %vm1400, %v2821, 0.0
      %2856 = vadd.xlane.f32.xlu0 %v2855
      %v2857 = vpop.xlane.xlu0 %2856
      %v2858 = vsel %vm1400, %v2823, 0.0
      %2859 = vadd.xlane.f32.xlu0 %v2858
      %v2860 = vpop.xlane.xlu0 %2859
      %v2861 = vsel %vm1400, %v2825, 0.0
      %2862 = vadd.xlane.f32.xlu0 %v2861
      %v2863 = vpop.xlane.xlu0 %2862
      %v2864 = vsel %vm1400, %v2827, 0.0
      %2865 = vadd.xlane.f32.xlu0 %v2864
      %v2866 = vpop.xlane.xlu0 %2865
      %v2867 = vsel %vm1400, %v2829, 0.0
      %2868 = vadd.xlane.f32.xlu0 %v2867
      %v2869 = vpop.xlane.xlu0 %2868
      %v2870 = vsel %vm1400, %v2831, 0.0
      %2871 = vadd.xlane.f32.xlu0 %v2870
      %v2872 = vpop.xlane.xlu0 %2871
      %v2873 = vsel %vm1400, %v2833, 0.0
      %2874 = vadd.xlane.f32.xlu0 %v2873
      %v2875 = vpop.xlane.xlu0 %2874
      %v2876 = vsel %vm1400, %v2835, 0.0
      %2877 = vadd.xlane.f32.xlu0 %v2876
      %v2878 = vpop.xlane.xlu0 %2877
      %v2879 = vsel %vm1400, %v2837, 0.0
      %2880 = vadd.xlane.f32.xlu0 %v2879
      %v2881 = vpop.xlane.xlu0 %2880
      %v2882 = vsel %vm1400, %v2839, 0.0
      %2883 = vadd.xlane.f32.xlu0 %v2882
      %v2884 = vpop.xlane.xlu0 %2883
      %v2885 = vsel %vm1400, %v2841, 0.0
      %2886 = vadd.xlane.f32.xlu0 %v2885
      %v2887 = vpop.xlane.xlu0 %2886
      %v2888 = vsel %vm1400, %v2843, 0.0
      %2889 = vadd.xlane.f32.xlu0 %v2888
      %v2890 = vpop.xlane.xlu0 %2889
      %v2891 = vsel %vm1400, %v2845, 0.0
      %2892 = vadd.xlane.f32.xlu0 %v2891
      %v2893 = vpop.xlane.xlu0 %2892
      %v2894 = vrcp.pop %v2848
      %v2895 = vrcp.pop %v2851
      %v2896 = vrcp.pop %v2854
      %v2897 = vrcp.pop %v2857
      %v2898 = vrcp.pop %v2860
      %v2899 = vrcp.pop %v2863
      %v2900 = vrcp.pop %v2866
      %v2901 = vrcp.pop %v2869
      %v2902 = vrcp.pop %v2872
      %v2903 = vrcp.pop %v2875
      %v2904 = vrcp.pop %v2878
      %v2905 = vrcp.pop %v2881
      %v2906 = vrcp.pop %v2884
      %v2907 = vrcp.pop %v2887
      %v2908 = vrcp.pop %v2890
      %v2909 = vrcp.pop %v2893
      %v2910 = vmul.f32 %v2815, %v2894
      %v2911 = vmul.f32 %v2817, %v2895
      %v2912 = vmul.f32 %v2819, %v2896
      %v2913 = vmul.f32 %v2821, %v2897
      %v2914 = vmul.f32 %v2823, %v2898
      %v2915 = vmul.f32 %v2825, %v2899
      %v2916 = vmul.f32 %v2827, %v2900
      %v2917 = vmul.f32 %v2829, %v2901
      %v2918 = vmul.f32 %v2831, %v2902
      %v2919 = vmul.f32 %v2833, %v2903
      %v2920 = vmul.f32 %v2835, %v2904
      %v2921 = vmul.f32 %v2837, %v2905
      %v2922 = vmul.f32 %v2839, %v2906
      %v2923 = vmul.f32 %v2841, %v2907
      %v2924 = vmul.f32 %v2843, %v2908
      %v2925 = vmul.f32 %v2845, %v2909
      %v2926 = vpack.c.bf16 %v2911, %v2910
      %v2927 = vpack.c.bf16 %v2913, %v2912
      %v2928 = vpack.c.bf16 %v2915, %v2914
      %v2929 = vpack.c.bf16 %v2917, %v2916
      %v2930 = vpack.c.bf16 %v2919, %v2918
      %v2931 = vpack.c.bf16 %v2921, %v2920
      %v2932 = vpack.c.bf16 %v2923, %v2922
      %v2933 = vpack.c.bf16 %v2925, %v2924
      %2935 = vrot.lane.b32.xlu0 %v1382, 112
      %v2936 = vpop.permute.xlu0 %2935
      %v2939 = vsel %vm1400, %v2926, 0
      %2941 = vmatprep.subr.bf16.mxu0 0
      %2942 = vmatpush1.bf16.msra.mxu0 %v2936
      %2943 = vmatprep.subr.bf16.mxu0 0
      %2944 = vmatpush1.bf16.msra.mxu0 0
      %2945 = vmatprep.subr.bf16.mxu0 0
      %2946 = vmatpush1.bf16.msra.mxu0 0
      %2947 = vmatprep.subr.bf16.mxu0 0
      %2948 = vmatpush1.bf16.msra.mxu0 0
      %2949 = vmatprep.subr.bf16.mxu0 0
      %2950 = vmatpush1.bf16.msra.mxu0 0
      %2951 = vmatprep.subr.bf16.mxu0 0
      %2952 = vmatpush1.bf16.msra.mxu0 0
      %2953 = vmatprep.subr.bf16.mxu0 0
      %2954 = vmatpush1.bf16.msra.mxu0 0
      %2955 = vmatprep.subr.bf16.mxu0 0
      %2956 = vmatpush1.bf16.msra.mxu0 0
      %2957 = vmatprep.subr.bf16.mxu0 0
      %2958 = vmatpush1.bf16.msra.mxu0 0
      %2959 = vmatprep.subr.bf16.mxu0 0
      %2960 = vmatpush1.bf16.msra.mxu0 0
      %2961 = vmatprep.subr.bf16.mxu0 0
      %2962 = vmatpush1.bf16.msra.mxu0 0
      %2963 = vmatprep.subr.bf16.mxu0 0
      %2964 = vmatpush1.bf16.msra.mxu0 0
      %2965 = vmatprep.subr.bf16.mxu0 0
      %2966 = vmatpush1.bf16.msra.mxu0 0
      %2967 = vmatprep.subr.bf16.mxu0 0
      %2968 = vmatpush1.bf16.msra.mxu0 0
      %2969 = vmatprep.subr.bf16.mxu0 0
      %2970 = vmatpush1.bf16.msra.mxu0 0
      %2971 = vmatprep.subr.bf16.mxu0 0
      %2972 = vmatpush1.bf16.msra.mxu0 0
      %2973 = vmatprep.mubr.bf16.mxu0 0
      %2974 = vmatmul.mubr.bf16.gmra.mrb[0].mxu0 %v2939
      %v2975 = vpop.f32.mrb[0].mxu0
      %v2976 = vadd.f32 0.0, %v2975
      %v2977 = vpop.f32.mrb[0].mxu0
      %v2978 = vpop.f32.mrb[0].mxu0
      %v2979 = vadd.f32 0.0, %v2978
      %v2980 = vpop.f32.mrb[0].mxu0
      %2981 = vdwg.mxu0
      %2983 = vrot.lane.b32.xlu0 %v1384, 112
      %v2984 = vpop.permute.xlu0 %2983
      %v2987 = vsel %vm1400, %v2927, 0
      %2989 = vmatprep.subr.bf16.mxu0 0
      %2990 = vmatpush1.bf16.msra.mxu0 %v2984
      %2991 = vmatprep.subr.bf16.mxu0 0
      %2992 = vmatpush1.bf16.msra.mxu0 0
      %2993 = vmatprep.subr.bf16.mxu0 0
      %2994 = vmatpush1.bf16.msra.mxu0 0
      %2995 = vmatprep.subr.bf16.mxu0 0
      %2996 = vmatpush1.bf16.msra.mxu0 0
      %2997 = vmatprep.subr.bf16.mxu0 0
      %2998 = vmatpush1.bf16.msra.mxu0 0
      %2999 = vmatprep.subr.bf16.mxu0 0
      %3000 = vmatpush1.bf16.msra.mxu0 0
      %3001 = vmatprep.subr.bf16.mxu0 0
      %3002 = vmatpush1.bf16.msra.mxu0 0
      %3003 = vmatprep.subr.bf16.mxu0 0
      %3004 = vmatpush1.bf16.msra.mxu0 0
      %3005 = vmatprep.subr.bf16.mxu0 0
      %3006 = vmatpush1.bf16.msra.mxu0 0
      %3007 = vmatprep.subr.bf16.mxu0 0
      %3008 = vmatpush1.bf16.msra.mxu0 0
      %3009 = vmatprep.subr.bf16.mxu0 0
      %3010 = vmatpush1.bf16.msra.mxu0 0
      %3011 = vmatprep.subr.bf16.mxu0 0
      %3012 = vmatpush1.bf16.msra.mxu0 0
      %3013 = vmatprep.subr.bf16.mxu0 0
      %3014 = vmatpush1.bf16.msra.mxu0 0
      %3015 = vmatprep.subr.bf16.mxu0 0
      %3016 = vmatpush1.bf16.msra.mxu0 0
      %3017 = vmatprep.subr.bf16.mxu0 0
      %3018 = vmatpush1.bf16.msra.mxu0 0
      %3019 = vmatprep.subr.bf16.mxu0 0
      %3020 = vmatpush1.bf16.msra.mxu0 0
      %3021 = vmatprep.mubr.bf16.mxu0 0
      %3022 = vmatmul.mubr.bf16.gmra.mrb[0].mxu0 %v2987
      %v3023 = vpop.f32.mrb[0].mxu0
      %v3024 = vadd.f32 0.0, %v3023
      %v3025 = vpop.f32.mrb[0].mxu0
      %v3026 = vpop.f32.mrb[0].mxu0
      %v3027 = vadd.f32 0.0, %v3026
      %v3028 = vpop.f32.mrb[0].mxu0
      %3029 = vdwg.mxu0
      %3031 = vrot.lane.b32.xlu0 %v1386, 112
      %v3032 = vpop.permute.xlu0 %3031
      %v3035 = vsel %vm1400, %v2928, 0
      %3037 = vmatprep.subr.bf16.mxu0 0
      %3038 = vmatpush1.bf16.msra.mxu0 %v3032
      %3039 = vmatprep.subr.bf16.mxu0 0
      %3040 = vmatpush1.bf16.msra.mxu0 0
      %3041 = vmatprep.subr.bf16.mxu0 0
      %3042 = vmatpush1.bf16.msra.mxu0 0
      %3043 = vmatprep.subr.bf16.mxu0 0
      %3044 = vmatpush1.bf16.msra.mxu0 0
      %3045 = vmatprep.subr.bf16.mxu0 0
      %3046 = vmatpush1.bf16.msra.mxu0 0
      %3047 = vmatprep.subr.bf16.mxu0 0
      %3048 = vmatpush1.bf16.msra.mxu0 0
      %3049 = vmatprep.subr.bf16.mxu0 0
      %3050 = vmatpush1.bf16.msra.mxu0 0
      %3051 = vmatprep.subr.bf16.mxu0 0
      %3052 = vmatpush1.bf16.msra.mxu0 0
      %3053 = vmatprep.subr.bf16.mxu0 0
      %3054 = vmatpush1.bf16.msra.mxu0 0
      %3055 = vmatprep.subr.bf16.mxu0 0
      %3056 = vmatpush1.bf16.msra.mxu0 0
      %3057 = vmatprep.subr.bf16.mxu0 0
      %3058 = vmatpush1.bf16.msra.mxu0 0
      %3059 = vmatprep.subr.bf16.mxu0 0
      %3060 = vmatpush1.bf16.msra.mxu0 0
      %3061 = vmatprep.subr.bf16.mxu0 0
      %3062 = vmatpush1.bf16.msra.mxu0 0
      %3063 = vmatprep.subr.bf16.mxu0 0
      %3064 = vmatpush1.bf16.msra.mxu0 0
      %3065 = vmatprep.subr.bf16.mxu0 0
      %3066 = vmatpush1.bf16.msra.mxu0 0
      %3067 = vmatprep.subr.bf16.mxu0 0
      %3068 = vmatpush1.bf16.msra.mxu0 0
      %3069 = vmatprep.mubr.bf16.mxu0 0
      %3070 = vmatmul.mubr.bf16.gmra.mrb[0].mxu0 %v3035
      %v3071 = vpop.f32.mrb[0].mxu0
      %v3072 = vadd.f32 0.0, %v3071
      %v3073 = vpop.f32.mrb[0].mxu0
      %v3074 = vpop.f32.mrb[0].mxu0
      %v3075 = vadd.f32 0.0, %v3074
      %v3076 = vpop.f32.mrb[0].mxu0
      %3077 = vdwg.mxu0
      %3079 = vrot.lane.b32.xlu0 %v1388, 112
      %v3080 = vpop.permute.xlu0 %3079
      %v3083 = vsel %vm1400, %v2929, 0
      %3085 = vmatprep.subr.bf16.mxu0 0
      %3086 = vmatpush1.bf16.msra.mxu0 %v3080
      %3087 = vmatprep.subr.bf16.mxu0 0
      %3088 = vmatpush1.bf16.msra.mxu0 0
      %3089 = vmatprep.subr.bf16.mxu0 0
      %3090 = vmatpush1.bf16.msra.mxu0 0
      %3091 = vmatprep.subr.bf16.mxu0 0
      %3092 = vmatpush1.bf16.msra.mxu0 0
      %3093 = vmatprep.subr.bf16.mxu0 0
      %3094 = vmatpush1.bf16.msra.mxu0 0
      %3095 = vmatprep.subr.bf16.mxu0 0
      %3096 = vmatpush1.bf16.msra.mxu0 0
      %3097 = vmatprep.subr.bf16.mxu0 0
      %3098 = vmatpush1.bf16.msra.mxu0 0
      %3099 = vmatprep.subr.bf16.mxu0 0
      %3100 = vmatpush1.bf16.msra.mxu0 0
      %3101 = vmatprep.subr.bf16.mxu0 0
      %3102 = vmatpush1.bf16.msra.mxu0 0
      %3103 = vmatprep.subr.bf16.mxu0 0
      %3104 = vmatpush1.bf16.msra.mxu0 0
      %3105 = vmatprep.subr.bf16.mxu0 0
      %3106 = vmatpush1.bf16.msra.mxu0 0
      %3107 = vmatprep.subr.bf16.mxu0 0
      %3108 = vmatpush1.bf16.msra.mxu0 0
      %3109 = vmatprep.subr.bf16.mxu0 0
      %3110 = vmatpush1.bf16.msra.mxu0 0
      %3111 = vmatprep.subr.bf16.mxu0 0
      %3112 = vmatpush1.bf16.msra.mxu0 0
      %3113 = vmatprep.subr.bf16.mxu0 0
      %3114 = vmatpush1.bf16.msra.mxu0 0
      %3115 = vmatprep.subr.bf16.mxu0 0
      %3116 = vmatpush1.bf16.msra.mxu0 0
      %3117 = vmatprep.mubr.bf16.mxu0 0
      %3118 = vmatmul.mubr.bf16.gmra.mrb[0].mxu0 %v3083
      %v3119 = vpop.f32.mrb[0].mxu0
      %v3120 = vadd.f32 0.0, %v3119
      %v3121 = vpop.f32.mrb[0].mxu0
      %v3122 = vpop.f32.mrb[0].mxu0
      %v3123 = vadd.f32 0.0, %v3122
      %v3124 = vpop.f32.mrb[0].mxu0
      %3125 = vdwg.mxu0
      %3127 = vrot.lane.b32.xlu0 %v1390, 112
      %v3128 = vpop.permute.xlu0 %3127
      %v3131 = vsel %vm1400, %v2930, 0
      %3133 = vmatprep.subr.bf16.mxu0 0
      %3134 = vmatpush1.bf16.msra.mxu0 %v3128
      %3135 = vmatprep.subr.bf16.mxu0 0
      %3136 = vmatpush1.bf16.msra.mxu0 0
      %3137 = vmatprep.subr.bf16.mxu0 0
      %3138 = vmatpush1.bf16.msra.mxu0 0
      %3139 = vmatprep.subr.bf16.mxu0 0
      %3140 = vmatpush1.bf16.msra.mxu0 0
      %3141 = vmatprep.subr.bf16.mxu0 0
      %3142 = vmatpush1.bf16.msra.mxu0 0
      %3143 = vmatprep.subr.bf16.mxu0 0
      %3144 = vmatpush1.bf16.msra.mxu0 0
      %3145 = vmatprep.subr.bf16.mxu0 0
      %3146 = vmatpush1.bf16.msra.mxu0 0
      %3147 = vmatprep.subr.bf16.mxu0 0
      %3148 = vmatpush1.bf16.msra.mxu0 0
      %3149 = vmatprep.subr.bf16.mxu0 0
      %3150 = vmatpush1.bf16.msra.mxu0 0
      %3151 = vmatprep.subr.bf16.mxu0 0
      %3152 = vmatpush1.bf16.msra.mxu0 0
      %3153 = vmatprep.subr.bf16.mxu0 0
      %3154 = vmatpush1.bf16.msra.mxu0 0
      %3155 = vmatprep.subr.bf16.mxu0 0
      %3156 = vmatpush1.bf16.msra.mxu0 0
      %3157 = vmatprep.subr.bf16.mxu0 0
      %3158 = vmatpush1.bf16.msra.mxu0 0
      %3159 = vmatprep.subr.bf16.mxu0 0
      %3160 = vmatpush1.bf16.msra.mxu0 0
      %3161 = vmatprep.subr.bf16.mxu0 0
      %3162 = vmatpush1.bf16.msra.mxu0 0
      %3163 = vmatprep.subr.bf16.mxu0 0
      %3164 = vmatpush1.bf16.msra.mxu0 0
      %3165 = vmatprep.mubr.bf16.mxu0 0
      %3166 = vmatmul.mubr.bf16.gmra.mrb[0].mxu0 %v3131
      %v3167 = vpop.f32.mrb[0].mxu0
      %v3168 = vadd.f32 0.0, %v3167
      %v3169 = vpop.f32.mrb[0].mxu0
      %v3170 = vpop.f32.mrb[0].mxu0
      %v3171 = vadd.f32 0.0, %v3170
      %v3172 = vpop.f32.mrb[0].mxu0
      %3173 = vdwg.mxu0
      %3175 = vrot.lane.b32.xlu0 %v1392, 112
      %v3176 = vpop.permute.xlu0 %3175
      %v3179 = vsel %vm1400, %v2931, 0
      %3181 = vmatprep.subr.bf16.mxu0 0
      %3182 = vmatpush1.bf16.msra.mxu0 %v3176
      %3183 = vmatprep.subr.bf16.mxu0 0
      %3184 = vmatpush1.bf16.msra.mxu0 0
      %3185 = vmatprep.subr.bf16.mxu0 0
      %3186 = vmatpush1.bf16.msra.mxu0 0
      %3187 = vmatprep.subr.bf16.mxu0 0
      %3188 = vmatpush1.bf16.msra.mxu0 0
      %3189 = vmatprep.subr.bf16.mxu0 0
      %3190 = vmatpush1.bf16.msra.mxu0 0
      %3191 = vmatprep.subr.bf16.mxu0 0
      %3192 = vmatpush1.bf16.msra.mxu0 0
      %3193 = vmatprep.subr.bf16.mxu0 0
      %3194 = vmatpush1.bf16.msra.mxu0 0
      %3195 = vmatprep.subr.bf16.mxu0 0
      %3196 = vmatpush1.bf16.msra.mxu0 0
      %3197 = vmatprep.subr.bf16.mxu0 0
      %3198 = vmatpush1.bf16.msra.mxu0 0
      %3199 = vmatprep.subr.bf16.mxu0 0
      %3200 = vmatpush1.bf16.msra.mxu0 0
      %3201 = vmatprep.subr.bf16.mxu0 0
      %3202 = vmatpush1.bf16.msra.mxu0 0
      %3203 = vmatprep.subr.bf16.mxu0 0
      %3204 = vmatpush1.bf16.msra.mxu0 0
      %3205 = vmatprep.subr.bf16.mxu0 0
      %3206 = vmatpush1.bf16.msra.mxu0 0
      %3207 = vmatprep.subr.bf16.mxu0 0
      %3208 = vmatpush1.bf16.msra.mxu0 0
      %3209 = vmatprep.subr.bf16.mxu0 0
      %3210 = vmatpush1.bf16.msra.mxu0 0
      %3211 = vmatprep.subr.bf16.mxu0 0
      %3212 = vmatpush1.bf16.msra.mxu0 0
      %3213 = vmatprep.mubr.bf16.mxu0 0
      %3214 = vmatmul.mubr.bf16.gmra.mrb[0].mxu0 %v3179
      %v3215 = vpop.f32.mrb[0].mxu0
      %v3216 = vadd.f32 0.0, %v3215
      %v3217 = vpop.f32.mrb[0].mxu0
      %v3218 = vpop.f32.mrb[0].mxu0
      %v3219 = vadd.f32 0.0, %v3218
      %v3220 = vpop.f32.mrb[0].mxu0
      %3221 = vdwg.mxu0
      %3223 = vrot.lane.b32.xlu0 %v1394, 112
      %v3224 = vpop.permute.xlu0 %3223
      %v3227 = vsel %vm1400, %v2932, 0
      %3229 = vmatprep.subr.bf16.mxu0 0
      %3230 = vmatpush1.bf16.msra.mxu0 %v3224
      %3231 = vmatprep.subr.bf16.mxu0 0
      %3232 = vmatpush1.bf16.msra.mxu0 0
      %3233 = vmatprep.subr.bf16.mxu0 0
      %3234 = vmatpush1.bf16.msra.mxu0 0
      %3235 = vmatprep.subr.bf16.mxu0 0
      %3236 = vmatpush1.bf16.msra.mxu0 0
      %3237 = vmatprep.subr.bf16.mxu0 0
      %3238 = vmatpush1.bf16.msra.mxu0 0
      %3239 = vmatprep.subr.bf16.mxu0 0
      %3240 = vmatpush1.bf16.msra.mxu0 0
      %3241 = vmatprep.subr.bf16.mxu0 0
      %3242 = vmatpush1.bf16.msra.mxu0 0
      %3243 = vmatprep.subr.bf16.mxu0 0
      %3244 = vmatpush1.bf16.msra.mxu0 0
      %3245 = vmatprep.subr.bf16.mxu0 0
      %3246 = vmatpush1.bf16.msra.mxu0 0
      %3247 = vmatprep.subr.bf16.mxu0 0
      %3248 = vmatpush1.bf16.msra.mxu0 0
      %3249 = vmatprep.subr.bf16.mxu0 0
      %3250 = vmatpush1.bf16.msra.mxu0 0
      %3251 = vmatprep.subr.bf16.mxu0 0
      %3252 = vmatpush1.bf16.msra.mxu0 0
      %3253 = vmatprep.subr.bf16.mxu0 0
      %3254 = vmatpush1.bf16.msra.mxu0 0
      %3255 = vmatprep.subr.bf16.mxu0 0
      %3256 = vmatpush1.bf16.msra.mxu0 0
      %3257 = vmatprep.subr.bf16.mxu0 0
      %3258 = vmatpush1.bf16.msra.mxu0 0
      %3259 = vmatprep.subr.bf16.mxu0 0
      %3260 = vmatpush1.bf16.msra.mxu0 0
      %3261 = vmatprep.mubr.bf16.mxu0 0
      %3262 = vmatmul.mubr.bf16.gmra.mrb[0].mxu0 %v3227
      %v3263 = vpop.f32.mrb[0].mxu0
      %v3264 = vadd.f32 0.0, %v3263
      %v3265 = vpop.f32.mrb[0].mxu0
      %v3266 = vpop.f32.mrb[0].mxu0
      %v3267 = vadd.f32 0.0, %v3266
      %v3268 = vpop.f32.mrb[0].mxu0
      %3269 = vdwg.mxu0
      %3271 = vrot.lane.b32.xlu0 %v1396, 112
      %v3272 = vpop.permute.xlu0 %3271
      %v3275 = vsel %vm1400, %v2933, 0
      %3277 = vmatprep.subr.bf16.mxu0 0
      %3278 = vmatpush1.bf16.msra.mxu0 %v3272
      %3279 = vmatprep.subr.bf16.mxu0 0
      %3280 = vmatpush1.bf16.msra.mxu0 0
      %3281 = vmatprep.subr.bf16.mxu0 0
      %3282 = vmatpush1.bf16.msra.mxu0 0
      %3283 = vmatprep.subr.bf16.mxu0 0
      %3284 = vmatpush1.bf16.msra.mxu0 0
      %3285 = vmatprep.subr.bf16.mxu0 0
      %3286 = vmatpush1.bf16.msra.mxu0 0
      %3287 = vmatprep.subr.bf16.mxu0 0
      %3288 = vmatpush1.bf16.msra.mxu0 0
      %3289 = vmatprep.subr.bf16.mxu0 0
      %3290 = vmatpush1.bf16.msra.mxu0 0
      %3291 = vmatprep.subr.bf16.mxu0 0
      %3292 = vmatpush1.bf16.msra.mxu0 0
      %3293 = vmatprep.subr.bf16.mxu0 0
      %3294 = vmatpush1.bf16.msra.mxu0 0
      %3295 = vmatprep.subr.bf16.mxu0 0
      %3296 = vmatpush1.bf16.msra.mxu0 0
      %3297 = vmatprep.subr.bf16.mxu0 0
      %3298 = vmatpush1.bf16.msra.mxu0 0
      %3299 = vmatprep.subr.bf16.mxu0 0
      %3300 = vmatpush1.bf16.msra.mxu0 0
      %3301 = vmatprep.subr.bf16.mxu0 0
      %3302 = vmatpush1.bf16.msra.mxu0 0
      %3303 = vmatprep.subr.bf16.mxu0 0
      %3304 = vmatpush1.bf16.msra.mxu0 0
      %3305 = vmatprep.subr.bf16.mxu0 0
      %3306 = vmatpush1.bf16.msra.mxu0 0
      %3307 = vmatprep.subr.bf16.mxu0 0
      %3308 = vmatpush1.bf16.msra.mxu0 0
      %3309 = vmatprep.mubr.bf16.mxu0 0
      %3310 = vmatmul.mubr.bf16.gmra.mrb[0].mxu0 %v3275
      %v3311 = vpop.f32.mrb[0].mxu0
      %v3312 = vadd.f32 0.0, %v3311
      %v3313 = vpop.f32.mrb[0].mxu0
      %v3314 = vpop.f32.mrb[0].mxu0
      %v3315 = vadd.f32 0.0, %v3314
      %v3316 = vpop.f32.mrb[0].mxu0
      %3317 = vdwg.mxu0
      %v3318 = vpack.c.bf16 %v2979, %v2976
      %v3319 = vpack.c.bf16 %v3027, %v3024
      %v3320 = vpack.c.bf16 %v3075, %v3072
      %v3321 = vpack.c.bf16 %v3123, %v3120
      %v3322 = vpack.c.bf16 %v3171, %v3168
      %v3323 = vpack.c.bf16 %v3219, %v3216
      %v3324 = vpack.c.bf16 %v3267, %v3264
      %v3325 = vpack.c.bf16 %v3315, %v3312
      %v3328 = vunpack.c.l.b16 %v837
      %v3329 = vunpack.c.l.b16 %v838
      %v3330 = vpack.c.b16 %v3329, %v3328
      %v3333 = vsel %vm1400, %v3318, 0
      %v3336 = vsel %vm1400, %v3319, 0
      %v3339 = vsel %vm1400, %v3320, 0
      %v3342 = vsel %vm1400, %v3321, 0
      %v3345 = vsel %vm1400, %v3322, 0
      %v3348 = vsel %vm1400, %v3323, 0
      %v3351 = vsel %vm1400, %v3324, 0
      %v3354 = vsel %vm1400, %v3325, 0
      %3356 = vmatprep.subr.bf16.mxu0 0
      %3357 = vmatpush1.bf16.msra.mxu0 %v3330
      %3358 = vmatprep.subr.bf16.mxu0 0
      %3359 = vmatpush1.bf16.msra.mxu0 0
      %3360 = vmatprep.subr.bf16.mxu0 0
      %3361 = vmatpush1.bf16.msra.mxu0 0
      %3362 = vmatprep.subr.bf16.mxu0 0
      %3363 = vmatpush1.bf16.msra.mxu0 0
      %3364 = vmatprep.subr.bf16.mxu0 0
      %3365 = vmatpush1.bf16.msra.mxu0 0
      %3366 = vmatprep.subr.bf16.mxu0 0
      %3367 = vmatpush1.bf16.msra.mxu0 0
      %3368 = vmatprep.subr.bf16.mxu0 0
      %3369 = vmatpush1.bf16.msra.mxu0 0
      %3370 = vmatprep.subr.bf16.mxu0 0
      %3371 = vmatpush1.bf16.msra.mxu0 0
      %3372 = vmatprep.subr.bf16.mxu0 0
      %3373 = vmatpush1.bf16.msra.mxu0 0
      %3374 = vmatprep.subr.bf16.mxu0 0
      %3375 = vmatpush1.bf16.msra.mxu0 0
      %3376 = vmatprep.subr.bf16.mxu0 0
      %3377 = vmatpush1.bf16.msra.mxu0 0
      %3378 = vmatprep.subr.bf16.mxu0 0
      %3379 = vmatpush1.bf16.msra.mxu0 0
      %3380 = vmatprep.subr.bf16.mxu0 0
      %3381 = vmatpush1.bf16.msra.mxu0 0
      %3382 = vmatprep.subr.bf16.mxu0 0
      %3383 = vmatpush1.bf16.msra.mxu0 0
      %3384 = vmatprep.subr.bf16.mxu0 0
      %3385 = vmatpush1.bf16.msra.mxu0 0
      %3386 = vmatprep.subr.bf16.mxu0 0
      %3387 = vmatpush1.bf16.msra.mxu0 0
      %3388 = vmatprep.mubr.bf16.mxu0 0
      %3389 = vmatmul.mubr.bf16.gmra.mrb[0].mxu0 %v3333
      %v3390 = vpop.f32.mrb[0].mxu0
      %v3391 = vadd.f32 0.0, %v3390
      %v3392 = vpop.f32.mrb[0].mxu0
      %v3393 = vpop.f32.mrb[0].mxu0
      %v3394 = vadd.f32 0.0, %v3393
      %v3395 = vpop.f32.mrb[0].mxu0
      %3396 = vmatprep.mubr.bf16.mxu0 0
      %3397 = vmatmul.mubr.bf16.gmra.mrb[0].mxu0 %v3336
      %v3398 = vpop.f32.mrb[0].mxu0
      %v3399 = vadd.f32 0.0, %v3398
      %v3400 = vpop.f32.mrb[0].mxu0
      %v3401 = vpop.f32.mrb[0].mxu0
      %v3402 = vadd.f32 0.0, %v3401
      %v3403 = vpop.f32.mrb[0].mxu0
      %3404 = vmatprep.mubr.bf16.mxu0 0
      %3405 = vmatmul.mubr.bf16.gmra.mrb[0].mxu0 %v3339
      %v3406 = vpop.f32.mrb[0].mxu0
      %v3407 = vadd.f32 0.0, %v3406
      %v3408 = vpop.f32.mrb[0].mxu0
      %v3409 = vpop.f32.mrb[0].mxu0
      %v3410 = vadd.f32 0.0, %v3409
      %v3411 = vpop.f32.mrb[0].mxu0
      %3412 = vmatprep.mubr.bf16.mxu0 0
      %3413 = vmatmul.mubr.bf16.gmra.mrb[0].mxu0 %v3342
      %v3414 = vpop.f32.mrb[0].mxu0
      %v3415 = vadd.f32 0.0, %v3414
      %v3416 = vpop.f32.mrb[0].mxu0
      %v3417 = vpop.f32.mrb[0].mxu0
      %v3418 = vadd.f32 0.0, %v3417
      %v3419 = vpop.f32.mrb[0].mxu0
      %3420 = vmatprep.mubr.bf16.mxu0 0
      %3421 = vmatmul.mubr.bf16.gmra.mrb[0].mxu0 %v3345
      %v3422 = vpop.f32.mrb[0].mxu0
      %v3423 = vadd.f32 0.0, %v3422
      %v3424 = vpop.f32.mrb[0].mxu0
      %v3425 = vpop.f32.mrb[0].mxu0
      %v3426 = vadd.f32 0.0, %v3425
      %v3427 = vpop.f32.mrb[0].mxu0
      %3428 = vmatprep.mubr.bf16.mxu0 0
      %3429 = vmatmul.mubr.bf16.gmra.mrb[0].mxu0 %v3348
      %v3430 = vpop.f32.mrb[0].mxu0
      %v3431 = vadd.f32 0.0, %v3430
      %v3432 = vpop.f32.mrb[0].mxu0
      %v3433 = vpop.f32.mrb[0].mxu0
      %v3434 = vadd.f32 0.0, %v3433
      %v3435 = vpop.f32.mrb[0].mxu0
      %3436 = vmatprep.mubr.bf16.mxu0 0
      %3437 = vmatmul.mubr.bf16.gmra.mrb[0].mxu0 %v3351
      %v3438 = vpop.f32.mrb[0].mxu0
      %v3439 = vadd.f32 0.0, %v3438
      %v3440 = vpop.f32.mrb[0].mxu0
      %v3441 = vpop.f32.mrb[0].mxu0
      %v3442 = vadd.f32 0.0, %v3441
      %v3443 = vpop.f32.mrb[0].mxu0
      %3444 = vmatprep.mubr.bf16.mxu0 0
      %3445 = vmatmul.mubr.bf16.gmra.mrb[0].mxu0 %v3354
      %v3446 = vpop.f32.mrb[0].mxu0
      %v3447 = vadd.f32 0.0, %v3446
      %v3448 = vpop.f32.mrb[0].mxu0
      %v3449 = vpop.f32.mrb[0].mxu0
      %v3450 = vadd.f32 0.0, %v3449
      %v3451 = vpop.f32.mrb[0].mxu0
      %3452 = vdwg.mxu0
      %v3455 = vunpack.c.l.b16 %v835
      %v3456 = vunpack.c.l.b16 %v836
      %v3457 = vpack.c.b16 %v3456, %v3455
      %v3460 = vsel %vm1400, %v2334, 0
      %v3463 = vsel %vm1400, %v2335, 0
      %v3466 = vsel %vm1400, %v2336, 0
      %v3469 = vsel %vm1400, %v2337, 0
      %v3472 = vsel %vm1400, %v2338, 0
      %v3475 = vsel %vm1400, %v2339, 0
      %v3478 = vsel %vm1400, %v2340, 0
      %v3481 = vsel %vm1400, %v2341, 0
      %3483 = vmatprep.subr.bf16.mxu0 0
      %3484 = vmatpush1.bf16.msra.mxu0 %v3457
      %3485 = vmatprep.subr.bf16.mxu0 0
      %3486 = vmatpush1.bf16.msra.mxu0 0
      %3487 = vmatprep.subr.bf16.mxu0 0
      %3488 = vmatpush1.bf16.msra.mxu0 0
      %3489 = vmatprep.subr.bf16.mxu0 0
      %3490 = vmatpush1.bf16.msra.mxu0 0
      %3491 = vmatprep.subr.bf16.mxu0 0
      %3492 = vmatpush1.bf16.msra.mxu0 0
      %3493 = vmatprep.subr.bf16.mxu0 0
      %3494 = vmatpush1.bf16.msra.mxu0 0
      %3495 = vmatprep.subr.bf16.mxu0 0
      %3496 = vmatpush1.bf16.msra.mxu0 0
      %3497 = vmatprep.subr.bf16.mxu0 0
      %3498 = vmatpush1.bf16.msra.mxu0 0
      %3499 = vmatprep.subr.bf16.mxu0 0
      %3500 = vmatpush1.bf16.msra.mxu0 0
      %3501 = vmatprep.subr.bf16.mxu0 0
      %3502 = vmatpush1.bf16.msra.mxu0 0
      %3503 = vmatprep.subr.bf16.mxu0 0
      %3504 = vmatpush1.bf16.msra.mxu0 0
      %3505 = vmatprep.subr.bf16.mxu0 0
      %3506 = vmatpush1.bf16.msra.mxu0 0
      %3507 = vmatprep.subr.bf16.mxu0 0
      %3508 = vmatpush1.bf16.msra.mxu0 0
      %3509 = vmatprep.subr.bf16.mxu0 0
      %3510 = vmatpush1.bf16.msra.mxu0 0
      %3511 = vmatprep.subr.bf16.mxu0 0
      %3512 = vmatpush1.bf16.msra.mxu0 0
      %3513 = vmatprep.subr.bf16.mxu0 0
      %3514 = vmatpush1.bf16.msra.mxu0 0
      %3515 = vmatprep.mubr.bf16.mxu0 0
      %3516 = vmatmul.mubr.bf16.gmra.mrb[0].mxu0 %v3460
      %v3517 = vpop.f32.mrb[0].mxu0
      %v3518 = vadd.f32 %v3391, %v3517
      %v3519 = vpop.f32.mrb[0].mxu0
      %v3520 = vpop.f32.mrb[0].mxu0
      %v3521 = vadd.f32 %v3394, %v3520
      %v3522 = vpop.f32.mrb[0].mxu0
      %3523 = vmatprep.mubr.bf16.mxu0 0
      %3524 = vmatmul.mubr.bf16.gmra.mrb[0].mxu0 %v3463
      %v3525 = vpop.f32.mrb[0].mxu0
      %v3526 = vadd.f32 %v3399, %v3525
      %v3527 = vpop.f32.mrb[0].mxu0
      %v3528 = vpop.f32.mrb[0].mxu0
      %v3529 = vadd.f32 %v3402, %v3528
      %v3530 = vpop.f32.mrb[0].mxu0
      %3531 = vmatprep.mubr.bf16.mxu0 0
      %3532 = vmatmul.mubr.bf16.gmra.mrb[0].mxu0 %v3466
      %v3533 = vpop.f32.mrb[0].mxu0
      %v3534 = vadd.f32 %v3407, %v3533
      %v3535 = vpop.f32.mrb[0].mxu0
      %v3536 = vpop.f32.mrb[0].mxu0
      %v3537 = vadd.f32 %v3410, %v3536
      %v3538 = vpop.f32.mrb[0].mxu0
      %3539 = vmatprep.mubr.bf16.mxu0 0
      %3540 = vmatmul.mubr.bf16.gmra.mrb[0].mxu0 %v3469
      %v3541 = vpop.f32.mrb[0].mxu0
      %v3542 = vadd.f32 %v3415, %v3541
      %v3543 = vpop.f32.mrb[0].mxu0
      %v3544 = vpop.f32.mrb[0].mxu0
      %v3545 = vadd.f32 %v3418, %v3544
      %v3546 = vpop.f32.mrb[0].mxu0
      %3547 = vmatprep.mubr.bf16.mxu0 0
      %3548 = vmatmul.mubr.bf16.gmra.mrb[0].mxu0 %v3472
      %v3549 = vpop.f32.mrb[0].mxu0
      %v3550 = vadd.f32 %v3423, %v3549
      %v3551 = vpop.f32.mrb[0].mxu0
      %v3552 = vpop.f32.mrb[0].mxu0
      %v3553 = vadd.f32 %v3426, %v3552
      %v3554 = vpop.f32.mrb[0].mxu0
      %3555 = vmatprep.mubr.bf16.mxu0 0
      %3556 = vmatmul.mubr.bf16.gmra.mrb[0].mxu0 %v3475
      %v3557 = vpop.f32.mrb[0].mxu0
      %v3558 = vadd.f32 %v3431, %v3557
      %v3559 = vpop.f32.mrb[0].mxu0
      %v3560 = vpop.f32.mrb[0].mxu0
      %v3561 = vadd.f32 %v3434, %v3560
      %v3562 = vpop.f32.mrb[0].mxu0
      %3563 = vmatprep.mubr.bf16.mxu0 0
      %3564 = vmatmul.mubr.bf16.gmra.mrb[0].mxu0 %v3478
      %v3565 = vpop.f32.mrb[0].mxu0
      %v3566 = vadd.f32 %v3439, %v3565
      %v3567 = vpop.f32.mrb[0].mxu0
      %v3568 = vpop.f32.mrb[0].mxu0
      %v3569 = vadd.f32 %v3442, %v3568
      %v3570 = vpop.f32.mrb[0].mxu0
      %3571 = vmatprep.mubr.bf16.mxu0 0
      %3572 = vmatmul.mubr.bf16.gmra.mrb[0].mxu0 %v3481
      %v3573 = vpop.f32.mrb[0].mxu0
      %v3574 = vadd.f32 %v3447, %v3573
      %v3575 = vpop.f32.mrb[0].mxu0
      %v3576 = vpop.f32.mrb[0].mxu0
      %v3577 = vadd.f32 %v3450, %v3576
      %v3578 = vpop.f32.mrb[0].mxu0
      %3579 = vdwg.mxu0
      %3580 = vrot.lane.b32.xlu0 %v1381, 96
      %v3581 = vpop.permute.xlu0 %3580
      %3582 = vrot.lane.b32.xlu0 %v1381, 32
      %v3583 = vpop.permute.xlu0 %3582
      %v3585 = vsel %vm1400, %v3581, 0
      %v3588 = vsel %vm1400, %v3583, 0
      %3590 = vmatprep.subr.bf16.mxu0 0
      %3591 = vmatpush1.bf16.xpose.msra.mxu0 %v3588
      %3592 = vmatprep.subr.bf16.mxu0 0
      %3593 = vmatpush1.bf16.xpose.msra.mxu0 0
      %3594 = vmatprep.subr.bf16.mxu0 0
      %3595 = vmatpush1.bf16.xpose.msra.mxu0 0
      %3596 = vmatprep.subr.bf16.mxu0 0
      %3597 = vmatpush1.bf16.xpose.msra.mxu0 0
      %3598 = vmatprep.subr.bf16.mxu0 0
      %3599 = vmatpush1.bf16.xpose.msra.mxu0 0
      %3600 = vmatprep.subr.bf16.mxu0 0
      %3601 = vmatpush1.bf16.xpose.msra.mxu0 0
      %3602 = vmatprep.subr.bf16.mxu0 0
      %3603 = vmatpush1.bf16.xpose.msra.mxu0 0
      %3604 = vmatprep.subr.bf16.mxu0 0
      %3605 = vmatpush1.bf16.xpose.msra.mxu0 0
      %3606 = vmatprep.subr.bf16.mxu0 0
      %3607 = vmatpush1.bf16.xpose.msra.mxu0 0
      %3608 = vmatprep.subr.bf16.mxu0 0
      %3609 = vmatpush1.bf16.xpose.msra.mxu0 0
      %3610 = vmatprep.subr.bf16.mxu0 0
      %3611 = vmatpush1.bf16.xpose.msra.mxu0 0
      %3612 = vmatprep.subr.bf16.mxu0 0
      %3613 = vmatpush1.bf16.xpose.msra.mxu0 0
      %3614 = vmatprep.subr.bf16.mxu0 0
      %3615 = vmatpush1.bf16.xpose.msra.mxu0 0
      %3616 = vmatprep.subr.bf16.mxu0 0
      %3617 = vmatpush1.bf16.xpose.msra.mxu0 0
      %3618 = vmatprep.subr.bf16.mxu0 0
      %3619 = vmatpush1.bf16.xpose.msra.mxu0 0
      %3620 = vmatprep.subr.bf16.mxu0 0
      %3621 = vmatpush1.bf16.xpose.msra.mxu0 0
      %3622 = vmatprep.mubr.bf16.mxu0 0
      %3623 = vmatmul.mubr.bf16.gmra.mrb[0].mxu0 %v3585
      %v3624 = vpop.f32.mrb[0].mxu0
      %v3625 = vadd.f32 0.0, %v3624
      %v3626 = vpop.f32.mrb[0].mxu0
      %v3627 = vpop.f32.mrb[0].mxu0
      %v3628 = vadd.f32 0.0, %v3627
      %v3629 = vpop.f32.mrb[0].mxu0
      %3630 = vdwg.mxu0
      %3631 = vrot.lane.b32.xlu0 %v1383, 96
      %v3632 = vpop.permute.xlu0 %3631
      %3633 = vrot.lane.b32.xlu0 %v1383, 32
      %v3634 = vpop.permute.xlu0 %3633
      %v3636 = vsel %vm1400, %v3632, 0
      %v3639 = vsel %vm1400, %v3634, 0
      %3641 = vmatprep.subr.bf16.mxu0 0
      %3642 = vmatpush1.bf16.xpose.msra.mxu0 %v3639
      %3643 = vmatprep.subr.bf16.mxu0 0
      %3644 = vmatpush1.bf16.xpose.msra.mxu0 0
      %3645 = vmatprep.subr.bf16.mxu0 0
      %3646 = vmatpush1.bf16.xpose.msra.mxu0 0
      %3647 = vmatprep.subr.bf16.mxu0 0
      %3648 = vmatpush1.bf16.xpose.msra.mxu0 0
      %3649 = vmatprep.subr.bf16.mxu0 0
      %3650 = vmatpush1.bf16.xpose.msra.mxu0 0
      %3651 = vmatprep.subr.bf16.mxu0 0
      %3652 = vmatpush1.bf16.xpose.msra.mxu0 0
      %3653 = vmatprep.subr.bf16.mxu0 0
      %3654 = vmatpush1.bf16.xpose.msra.mxu0 0
      %3655 = vmatprep.subr.bf16.mxu0 0
      %3656 = vmatpush1.bf16.xpose.msra.mxu0 0
      %3657 = vmatprep.subr.bf16.mxu0 0
      %3658 = vmatpush1.bf16.xpose.msra.mxu0 0
      %3659 = vmatprep.subr.bf16.mxu0 0
      %3660 = vmatpush1.bf16.xpose.msra.mxu0 0
      %3661 = vmatprep.subr.bf16.mxu0 0
      %3662 = vmatpush1.bf16.xpose.msra.mxu0 0
      %3663 = vmatprep.subr.bf16.mxu0 0
      %3664 = vmatpush1.bf16.xpose.msra.mxu0 0
      %3665 = vmatprep.subr.bf16.mxu0 0
      %3666 = vmatpush1.bf16.xpose.msra.mxu0 0
      %3667 = vmatprep.subr.bf16.mxu0 0
      %3668 = vmatpush1.bf16.xpose.msra.mxu0 0
      %3669 = vmatprep.subr.bf16.mxu0 0
      %3670 = vmatpush1.bf16.xpose.msra.mxu0 0
      %3671 = vmatprep.subr.bf16.mxu0 0
      %3672 = vmatpush1.bf16.xpose.msra.mxu0 0
      %3673 = vmatprep.mubr.bf16.mxu0 0
      %3674 = vmatmul.mubr.bf16.gmra.mrb[0].mxu0 %v3636
      %v3675 = vpop.f32.mrb[0].mxu0
      %v3676 = vadd.f32 0.0, %v3675
      %v3677 = vpop.f32.mrb[0].mxu0
      %v3678 = vpop.f32.mrb[0].mxu0
      %v3679 = vadd.f32 0.0, %v3678
      %v3680 = vpop.f32.mrb[0].mxu0
      %3681 = vdwg.mxu0
      %3682 = vrot.lane.b32.xlu0 %v1385, 96
      %v3683 = vpop.permute.xlu0 %3682
      %3684 = vrot.lane.b32.xlu0 %v1385, 32
      %v3685 = vpop.permute.xlu0 %3684
      %v3687 = vsel %vm1400, %v3683, 0
      %v3690 = vsel %vm1400, %v3685, 0
      %3692 = vmatprep.subr.bf16.mxu0 0
      %3693 = vmatpush1.bf16.xpose.msra.mxu0 %v3690
      %3694 = vmatprep.subr.bf16.mxu0 0
      %3695 = vmatpush1.bf16.xpose.msra.mxu0 0
      %3696 = vmatprep.subr.bf16.mxu0 0
      %3697 = vmatpush1.bf16.xpose.msra.mxu0 0
      %3698 = vmatprep.subr.bf16.mxu0 0
      %3699 = vmatpush1.bf16.xpose.msra.mxu0 0
      %3700 = vmatprep.subr.bf16.mxu0 0
      %3701 = vmatpush1.bf16.xpose.msra.mxu0 0
      %3702 = vmatprep.subr.bf16.mxu0 0
      %3703 = vmatpush1.bf16.xpose.msra.mxu0 0
      %3704 = vmatprep.subr.bf16.mxu0 0
      %3705 = vmatpush1.bf16.xpose.msra.mxu0 0
      %3706 = vmatprep.subr.bf16.mxu0 0
      %3707 = vmatpush1.bf16.xpose.msra.mxu0 0
      %3708 = vmatprep.subr.bf16.mxu0 0
      %3709 = vmatpush1.bf16.xpose.msra.mxu0 0
      %3710 = vmatprep.subr.bf16.mxu0 0
      %3711 = vmatpush1.bf16.xpose.msra.mxu0 0
      %3712 = vmatprep.subr.bf16.mxu0 0
      %3713 = vmatpush1.bf16.xpose.msra.mxu0 0
      %3714 = vmatprep.subr.bf16.mxu0 0
      %3715 = vmatpush1.bf16.xpose.msra.mxu0 0
      %3716 = vmatprep.subr.bf16.mxu0 0
      %3717 = vmatpush1.bf16.xpose.msra.mxu0 0
      %3718 = vmatprep.subr.bf16.mxu0 0
      %3719 = vmatpush1.bf16.xpose.msra.mxu0 0
      %3720 = vmatprep.subr.bf16.mxu0 0
      %3721 = vmatpush1.bf16.xpose.msra.mxu0 0
      %3722 = vmatprep.subr.bf16.mxu0 0
      %3723 = vmatpush1.bf16.xpose.msra.mxu0 0
      %3724 = vmatprep.mubr.bf16.mxu0 0
      %3725 = vmatmul.mubr.bf16.gmra.mrb[0].mxu0 %v3687
      %v3726 = vpop.f32.mrb[0].mxu0
      %v3727 = vadd.f32 0.0, %v3726
      %v3728 = vpop.f32.mrb[0].mxu0
      %v3729 = vpop.f32.mrb[0].mxu0
      %v3730 = vadd.f32 0.0, %v3729
      %v3731 = vpop.f32.mrb[0].mxu0
      %3732 = vdwg.mxu0
      %3733 = vrot.lane.b32.xlu0 %v1387, 96
      %v3734 = vpop.permute.xlu0 %3733
      %3735 = vrot.lane.b32.xlu0 %v1387, 32
      %v3736 = vpop.permute.xlu0 %3735
      %v3738 = vsel %vm1400, %v3734, 0
      %v3741 = vsel %vm1400, %v3736, 0
      %3743 = vmatprep.subr.bf16.mxu0 0
      %3744 = vmatpush1.bf16.xpose.msra.mxu0 %v3741
      %3745 = vmatprep.subr.bf16.mxu0 0
      %3746 = vmatpush1.bf16.xpose.msra.mxu0 0
      %3747 = vmatprep.subr.bf16.mxu0 0
      %3748 = vmatpush1.bf16.xpose.msra.mxu0 0
      %3749 = vmatprep.subr.bf16.mxu0 0
      %3750 = vmatpush1.bf16.xpose.msra.mxu0 0
      %3751 = vmatprep.subr.bf16.mxu0 0
      %3752 = vmatpush1.bf16.xpose.msra.mxu0 0
      %3753 = vmatprep.subr.bf16.mxu0 0
      %3754 = vmatpush1.bf16.xpose.msra.mxu0 0
      %3755 = vmatprep.subr.bf16.mxu0 0
      %3756 = vmatpush1.bf16.xpose.msra.mxu0 0
      %3757 = vmatprep.subr.bf16.mxu0 0
      %3758 = vmatpush1.bf16.xpose.msra.mxu0 0
      %3759 = vmatprep.subr.bf16.mxu0 0
      %3760 = vmatpush1.bf16.xpose.msra.mxu0 0
      %3761 = vmatprep.subr.bf16.mxu0 0
      %3762 = vmatpush1.bf16.xpose.msra.mxu0 0
      %3763 = vmatprep.subr.bf16.mxu0 0
      %3764 = vmatpush1.bf16.xpose.msra.mxu0 0
      %3765 = vmatprep.subr.bf16.mxu0 0
      %3766 = vmatpush1.bf16.xpose.msra.mxu0 0
      %3767 = vmatprep.subr.bf16.mxu0 0
      %3768 = vmatpush1.bf16.xpose.msra.mxu0 0
      %3769 = vmatprep.subr.bf16.mxu0 0
      %3770 = vmatpush1.bf16.xpose.msra.mxu0 0
      %3771 = vmatprep.subr.bf16.mxu0 0
      %3772 = vmatpush1.bf16.xpose.msra.mxu0 0
      %3773 = vmatprep.subr.bf16.mxu0 0
      %3774 = vmatpush1.bf16.xpose.msra.mxu0 0
      %3775 = vmatprep.mubr.bf16.mxu0 0
      %3776 = vmatmul.mubr.bf16.gmra.mrb[0].mxu0 %v3738
      %v3777 = vpop.f32.mrb[0].mxu0
      %v3778 = vadd.f32 0.0, %v3777
      %v3779 = vpop.f32.mrb[0].mxu0
      %v3780 = vpop.f32.mrb[0].mxu0
      %v3781 = vadd.f32 0.0, %v3780
      %v3782 = vpop.f32.mrb[0].mxu0
      %3783 = vdwg.mxu0
      %3784 = vrot.lane.b32.xlu0 %v1389, 96
      %v3785 = vpop.permute.xlu0 %3784
      %3786 = vrot.lane.b32.xlu0 %v1389, 32
      %v3787 = vpop.permute.xlu0 %3786
      %v3789 = vsel %vm1400, %v3785, 0
      %v3792 = vsel %vm1400, %v3787, 0
      %3794 = vmatprep.subr.bf16.mxu0 0
      %3795 = vmatpush1.bf16.xpose.msra.mxu0 %v3792
      %3796 = vmatprep.subr.bf16.mxu0 0
      %3797 = vmatpush1.bf16.xpose.msra.mxu0 0
      %3798 = vmatprep.subr.bf16.mxu0 0
      %3799 = vmatpush1.bf16.xpose.msra.mxu0 0
      %3800 = vmatprep.subr.bf16.mxu0 0
      %3801 = vmatpush1.bf16.xpose.msra.mxu0 0
      %3802 = vmatprep.subr.bf16.mxu0 0
      %3803 = vmatpush1.bf16.xpose.msra.mxu0 0
      %3804 = vmatprep.subr.bf16.mxu0 0
      %3805 = vmatpush1.bf16.xpose.msra.mxu0 0
      %3806 = vmatprep.subr.bf16.mxu0 0
      %3807 = vmatpush1.bf16.xpose.msra.mxu0 0
      %3808 = vmatprep.subr.bf16.mxu0 0
      %3809 = vmatpush1.bf16.xpose.msra.mxu0 0
      %3810 = vmatprep.subr.bf16.mxu0 0
      %3811 = vmatpush1.bf16.xpose.msra.mxu0 0
      %3812 = vmatprep.subr.bf16.mxu0 0
      %3813 = vmatpush1.bf16.xpose.msra.mxu0 0
      %3814 = vmatprep.subr.bf16.mxu0 0
      %3815 = vmatpush1.bf16.xpose.msra.mxu0 0
      %3816 = vmatprep.subr.bf16.mxu0 0
      %3817 = vmatpush1.bf16.xpose.msra.mxu0 0
      %3818 = vmatprep.subr.bf16.mxu0 0
      %3819 = vmatpush1.bf16.xpose.msra.mxu0 0
      %3820 = vmatprep.subr.bf16.mxu0 0
      %3821 = vmatpush1.bf16.xpose.msra.mxu0 0
      %3822 = vmatprep.subr.bf16.mxu0 0
      %3823 = vmatpush1.bf16.xpose.msra.mxu0 0
      %3824 = vmatprep.subr.bf16.mxu0 0
      %3825 = vmatpush1.bf16.xpose.msra.mxu0 0
      %3826 = vmatprep.mubr.bf16.mxu0 0
      %3827 = vmatmul.mubr.bf16.gmra.mrb[0].mxu0 %v3789
      %v3828 = vpop.f32.mrb[0].mxu0
      %v3829 = vadd.f32 0.0, %v3828
      %v3830 = vpop.f32.mrb[0].mxu0
      %v3831 = vpop.f32.mrb[0].mxu0
      %v3832 = vadd.f32 0.0, %v3831
      %v3833 = vpop.f32.mrb[0].mxu0
      %3834 = vdwg.mxu0
      %3835 = vrot.lane.b32.xlu0 %v1391, 96
      %v3836 = vpop.permute.xlu0 %3835
      %3837 = vrot.lane.b32.xlu0 %v1391, 32
      %v3838 = vpop.permute.xlu0 %3837
      %v3840 = vsel %vm1400, %v3836, 0
      %v3843 = vsel %vm1400, %v3838, 0
      %3845 = vmatprep.subr.bf16.mxu0 0
      %3846 = vmatpush1.bf16.xpose.msra.mxu0 %v3843
      %3847 = vmatprep.subr.bf16.mxu0 0
      %3848 = vmatpush1.bf16.xpose.msra.mxu0 0
      %3849 = vmatprep.subr.bf16.mxu0 0
      %3850 = vmatpush1.bf16.xpose.msra.mxu0 0
      %3851 = vmatprep.subr.bf16.mxu0 0
      %3852 = vmatpush1.bf16.xpose.msra.mxu0 0
      %3853 = vmatprep.subr.bf16.mxu0 0
      %3854 = vmatpush1.bf16.xpose.msra.mxu0 0
      %3855 = vmatprep.subr.bf16.mxu0 0
      %3856 = vmatpush1.bf16.xpose.msra.mxu0 0
      %3857 = vmatprep.subr.bf16.mxu0 0
      %3858 = vmatpush1.bf16.xpose.msra.mxu0 0
      %3859 = vmatprep.subr.bf16.mxu0 0
      %3860 = vmatpush1.bf16.xpose.msra.mxu0 0
      %3861 = vmatprep.subr.bf16.mxu0 0
      %3862 = vmatpush1.bf16.xpose.msra.mxu0 0
      %3863 = vmatprep.subr.bf16.mxu0 0
      %3864 = vmatpush1.bf16.xpose.msra.mxu0 0
      %3865 = vmatprep.subr.bf16.mxu0 0
      %3866 = vmatpush1.bf16.xpose.msra.mxu0 0
      %3867 = vmatprep.subr.bf16.mxu0 0
      %3868 = vmatpush1.bf16.xpose.msra.mxu0 0
      %3869 = vmatprep.subr.bf16.mxu0 0
      %3870 = vmatpush1.bf16.xpose.msra.mxu0 0
      %3871 = vmatprep.subr.bf16.mxu0 0
      %3872 = vmatpush1.bf16.xpose.msra.mxu0 0
      %3873 = vmatprep.subr.bf16.mxu0 0
      %3874 = vmatpush1.bf16.xpose.msra.mxu0 0
      %3875 = vmatprep.subr.bf16.mxu0 0
      %3876 = vmatpush1.bf16.xpose.msra.mxu0 0
      %3877 = vmatprep.mubr.bf16.mxu0 0
      %3878 = vmatmul.mubr.bf16.gmra.mrb[0].mxu0 %v3840
      %v3879 = vpop.f32.mrb[0].mxu0
      %v3880 = vadd.f32 0.0, %v3879
      %v3881 = vpop.f32.mrb[0].mxu0
      %v3882 = vpop.f32.mrb[0].mxu0
      %v3883 = vadd.f32 0.0, %v3882
      %v3884 = vpop.f32.mrb[0].mxu0
      %3885 = vdwg.mxu0
      %3886 = vrot.lane.b32.xlu0 %v1393, 96
      %v3887 = vpop.permute.xlu0 %3886
      %3888 = vrot.lane.b32.xlu0 %v1393, 32
      %v3889 = vpop.permute.xlu0 %3888
      %v3891 = vsel %vm1400, %v3887, 0
      %v3894 = vsel %vm1400, %v3889, 0
      %3896 = vmatprep.subr.bf16.mxu0 0
      %3897 = vmatpush1.bf16.xpose.msra.mxu0 %v3894
      %3898 = vmatprep.subr.bf16.mxu0 0
      %3899 = vmatpush1.bf16.xpose.msra.mxu0 0
      %3900 = vmatprep.subr.bf16.mxu0 0
      %3901 = vmatpush1.bf16.xpose.msra.mxu0 0
      %3902 = vmatprep.subr.bf16.mxu0 0
      %3903 = vmatpush1.bf16.xpose.msra.mxu0 0
      %3904 = vmatprep.subr.bf16.mxu0 0
      %3905 = vmatpush1.bf16.xpose.msra.mxu0 0
      %3906 = vmatprep.subr.bf16.mxu0 0
      %3907 = vmatpush1.bf16.xpose.msra.mxu0 0
      %3908 = vmatprep.subr.bf16.mxu0 0
      %3909 = vmatpush1.bf16.xpose.msra.mxu0 0
      %3910 = vmatprep.subr.bf16.mxu0 0
      %3911 = vmatpush1.bf16.xpose.msra.mxu0 0
      %3912 = vmatprep.subr.bf16.mxu0 0
      %3913 = vmatpush1.bf16.xpose.msra.mxu0 0
      %3914 = vmatprep.subr.bf16.mxu0 0
      %3915 = vmatpush1.bf16.xpose.msra.mxu0 0
      %3916 = vmatprep.subr.bf16.mxu0 0
      %3917 = vmatpush1.bf16.xpose.msra.mxu0 0
      %3918 = vmatprep.subr.bf16.mxu0 0
      %3919 = vmatpush1.bf16.xpose.msra.mxu0 0
      %3920 = vmatprep.subr.bf16.mxu0 0
      %3921 = vmatpush1.bf16.xpose.msra.mxu0 0
      %3922 = vmatprep.subr.bf16.mxu0 0
      %3923 = vmatpush1.bf16.xpose.msra.mxu0 0
      %3924 = vmatprep.subr.bf16.mxu0 0
      %3925 = vmatpush1.bf16.xpose.msra.mxu0 0
      %3926 = vmatprep.subr.bf16.mxu0 0
      %3927 = vmatpush1.bf16.xpose.msra.mxu0 0
      %3928 = vmatprep.mubr.bf16.mxu0 0
      %3929 = vmatmul.mubr.bf16.gmra.mrb[0].mxu0 %v3891
      %v3930 = vpop.f32.mrb[0].mxu0
      %v3931 = vadd.f32 0.0, %v3930
      %v3932 = vpop.f32.mrb[0].mxu0
      %v3933 = vpop.f32.mrb[0].mxu0
      %v3934 = vadd.f32 0.0, %v3933
      %v3935 = vpop.f32.mrb[0].mxu0
      %3936 = vdwg.mxu0
      %3937 = vrot.lane.b32.xlu0 %v1395, 96
      %v3938 = vpop.permute.xlu0 %3937
      %3939 = vrot.lane.b32.xlu0 %v1395, 32
      %v3940 = vpop.permute.xlu0 %3939
      %v3942 = vsel %vm1400, %v3938, 0
      %v3945 = vsel %vm1400, %v3940, 0
      %3947 = vmatprep.subr.bf16.mxu0 0
      %3948 = vmatpush1.bf16.xpose.msra.mxu0 %v3945
      %3949 = vmatprep.subr.bf16.mxu0 0
      %3950 = vmatpush1.bf16.xpose.msra.mxu0 0
      %3951 = vmatprep.subr.bf16.mxu0 0
      %3952 = vmatpush1.bf16.xpose.msra.mxu0 0
      %3953 = vmatprep.subr.bf16.mxu0 0
      %3954 = vmatpush1.bf16.xpose.msra.mxu0 0
      %3955 = vmatprep.subr.bf16.mxu0 0
      %3956 = vmatpush1.bf16.xpose.msra.mxu0 0
      %3957 = vmatprep.subr.bf16.mxu0 0
      %3958 = vmatpush1.bf16.xpose.msra.mxu0 0
      %3959 = vmatprep.subr.bf16.mxu0 0
      %3960 = vmatpush1.bf16.xpose.msra.mxu0 0
      %3961 = vmatprep.subr.bf16.mxu0 0
      %3962 = vmatpush1.bf16.xpose.msra.mxu0 0
      %3963 = vmatprep.subr.bf16.mxu0 0
      %3964 = vmatpush1.bf16.xpose.msra.mxu0 0
      %3965 = vmatprep.subr.bf16.mxu0 0
      %3966 = vmatpush1.bf16.xpose.msra.mxu0 0
      %3967 = vmatprep.subr.bf16.mxu0 0
      %3968 = vmatpush1.bf16.xpose.msra.mxu0 0
      %3969 = vmatprep.subr.bf16.mxu0 0
      %3970 = vmatpush1.bf16.xpose.msra.mxu0 0
      %3971 = vmatprep.subr.bf16.mxu0 0
      %3972 = vmatpush1.bf16.xpose.msra.mxu0 0
      %3973 = vmatprep.subr.bf16.mxu0 0
      %3974 = vmatpush1.bf16.xpose.msra.mxu0 0
      %3975 = vmatprep.subr.bf16.mxu0 0
      %3976 = vmatpush1.bf16.xpose.msra.mxu0 0
      %3977 = vmatprep.subr.bf16.mxu0 0
      %3978 = vmatpush1.bf16.xpose.msra.mxu0 0
      %3979 = vmatprep.mubr.bf16.mxu0 0
      %3980 = vmatmul.mubr.bf16.gmra.mrb[0].mxu0 %v3942
      %v3981 = vpop.f32.mrb[0].mxu0
      %v3982 = vadd.f32 0.0, %v3981
      %v3983 = vpop.f32.mrb[0].mxu0
      %v3984 = vpop.f32.mrb[0].mxu0
      %v3985 = vadd.f32 0.0, %v3984
      %v3986 = vpop.f32.mrb[0].mxu0
      %3987 = vdwg.mxu0
      %v3988 = vsel %vm1400, %v3625, -inf
      %3989 = vmax.xlane.f32.xlu0 %v3988
      %v3990 = vpop.xlane.xlu0 %3989
      %v3991 = vsel %vm1400, %v3628, -inf
      %3992 = vmax.xlane.f32.xlu0 %v3991
      %v3993 = vpop.xlane.xlu0 %3992
      %v3994 = vsel %vm1400, %v3676, -inf
      %3995 = vmax.xlane.f32.xlu0 %v3994
      %v3996 = vpop.xlane.xlu0 %3995
      %v3997 = vsel %vm1400, %v3679, -inf
      %3998 = vmax.xlane.f32.xlu0 %v3997
      %v3999 = vpop.xlane.xlu0 %3998
      %v4000 = vsel %vm1400, %v3727, -inf
      %4001 = vmax.xlane.f32.xlu0 %v4000
      %v4002 = vpop.xlane.xlu0 %4001
      %v4003 = vsel %vm1400, %v3730, -inf
      %4004 = vmax.xlane.f32.xlu0 %v4003
      %v4005 = vpop.xlane.xlu0 %4004
      %v4006 = vsel %vm1400, %v3778, -inf
      %4007 = vmax.xlane.f32.xlu0 %v4006
      %v4008 = vpop.xlane.xlu0 %4007
      %v4009 = vsel %vm1400, %v3781, -inf
      %4010 = vmax.xlane.f32.xlu0 %v4009
      %v4011 = vpop.xlane.xlu0 %4010
      %v4012 = vsel %vm1400, %v3829, -inf
      %4013 = vmax.xlane.f32.xlu0 %v4012
      %v4014 = vpop.xlane.xlu0 %4013
      %v4015 = vsel %vm1400, %v3832, -inf
      %4016 = vmax.xlane.f32.xlu0 %v4015
      %v4017 = vpop.xlane.xlu0 %4016
      %v4018 = vsel %vm1400, %v3880, -inf
      %4019 = vmax.xlane.f32.xlu0 %v4018
      %v4020 = vpop.xlane.xlu0 %4019
      %v4021 = vsel %vm1400, %v3883, -inf
      %4022 = vmax.xlane.f32.xlu0 %v4021
      %v4023 = vpop.xlane.xlu0 %4022
      %v4024 = vsel %vm1400, %v3931, -inf
      %4025 = vmax.xlane.f32.xlu0 %v4024
      %v4026 = vpop.xlane.xlu0 %4025
      %v4027 = vsel %vm1400, %v3934, -inf
      %4028 = vmax.xlane.f32.xlu0 %v4027
      %v4029 = vpop.xlane.xlu0 %4028
      %v4030 = vsel %vm1400, %v3982, -inf
      %4031 = vmax.xlane.f32.xlu0 %v4030
      %v4032 = vpop.xlane.xlu0 %4031
      %v4033 = vsel %vm1400, %v3985, -inf
      %4034 = vmax.xlane.f32.xlu0 %v4033
      %v4035 = vpop.xlane.xlu0 %4034
      %v4036 = vsub.f32 %v3625, %v3990
      %v4037 = vsub.f32 %v3628, %v3993
      %v4038 = vsub.f32 %v3676, %v3996
      %v4039 = vsub.f32 %v3679, %v3999
      %v4040 = vsub.f32 %v3727, %v4002
      %v4041 = vsub.f32 %v3730, %v4005
      %v4042 = vsub.f32 %v3778, %v4008
      %v4043 = vsub.f32 %v3781, %v4011
      %v4044 = vsub.f32 %v3829, %v4014
      %v4045 = vsub.f32 %v3832, %v4017
      %v4046 = vsub.f32 %v3880, %v4020
      %v4047 = vsub.f32 %v3883, %v4023
      %v4048 = vsub.f32 %v3931, %v4026
      %v4049 = vsub.f32 %v3934, %v4029
      %v4050 = vsub.f32 %v3982, %v4032
      %v4051 = vsub.f32 %v3985, %v4035
      %v4052 = vmul.f32 %v4036, 1.442695
      %v4053 = vpow.pop %v4052
      %v4054 = vmul.f32 %v4037, 1.442695
      %v4055 = vpow.pop %v4054
      %v4056 = vmul.f32 %v4038, 1.442695
      %v4057 = vpow.pop %v4056
      %v4058 = vmul.f32 %v4039, 1.442695
      %v4059 = vpow.pop %v4058
      %v4060 = vmul.f32 %v4040, 1.442695
      %v4061 = vpow.pop %v4060
      %v4062 = vmul.f32 %v4041, 1.442695
      %v4063 = vpow.pop %v4062
      %v4064 = vmul.f32 %v4042, 1.442695
      %v4065 = vpow.pop %v4064
      %v4066 = vmul.f32 %v4043, 1.442695
      %v4067 = vpow.pop %v4066
      %v4068 = vmul.f32 %v4044, 1.442695
      %v4069 = vpow.pop %v4068
      %v4070 = vmul.f32 %v4045, 1.442695
      %v4071 = vpow.pop %v4070
      %v4072 = vmul.f32 %v4046, 1.442695
      %v4073 = vpow.pop %v4072
      %v4074 = vmul.f32 %v4047, 1.442695
      %v4075 = vpow.pop %v4074
      %v4076 = vmul.f32 %v4048, 1.442695
      %v4077 = vpow.pop %v4076
      %v4078 = vmul.f32 %v4049, 1.442695
      %v4079 = vpow.pop %v4078
      %v4080 = vmul.f32 %v4050, 1.442695
      %v4081 = vpow.pop %v4080
      %v4082 = vmul.f32 %v4051, 1.442695
      %v4083 = vpow.pop %v4082
      %v4084 = vsel %vm1400, %v4053, 0.0
      %4085 = vadd.xlane.f32.xlu0 %v4084
      %v4086 = vpop.xlane.xlu0 %4085
      %v4087 = vsel %vm1400, %v4055, 0.0
      %4088 = vadd.xlane.f32.xlu0 %v4087
      %v4089 = vpop.xlane.xlu0 %4088
      %v4090 = vsel %vm1400, %v4057, 0.0
      %4091 = vadd.xlane.f32.xlu0 %v4090
      %v4092 = vpop.xlane.xlu0 %4091
      %v4093 = vsel %vm1400, %v4059, 0.0
      %4094 = vadd.xlane.f32.xlu0 %v4093
      %v4095 = vpop.xlane.xlu0 %4094
      %v4096 = vsel %vm1400, %v4061, 0.0
      %4097 = vadd.xlane.f32.xlu0 %v4096
      %v4098 = vpop.xlane.xlu0 %4097
      %v4099 = vsel %vm1400, %v4063, 0.0
      %4100 = vadd.xlane.f32.xlu0 %v4099
      %v4101 = vpop.xlane.xlu0 %4100
      %v4102 = vsel %vm1400, %v4065, 0.0
      %4103 = vadd.xlane.f32.xlu0 %v4102
      %v4104 = vpop.xlane.xlu0 %4103
      %v4105 = vsel %vm1400, %v4067, 0.0
      %4106 = vadd.xlane.f32.xlu0 %v4105
      %v4107 = vpop.xlane.xlu0 %4106
      %v4108 = vsel %vm1400, %v4069, 0.0
      %4109 = vadd.xlane.f32.xlu0 %v4108
      %v4110 = vpop.xlane.xlu0 %4109
      %v4111 = vsel %vm1400, %v4071, 0.0
      %4112 = vadd.xlane.f32.xlu0 %v4111
      %v4113 = vpop.xlane.xlu0 %4112
      %v4114 = vsel %vm1400, %v4073, 0.0
      %4115 = vadd.xlane.f32.xlu0 %v4114
      %v4116 = vpop.xlane.xlu0 %4115
      %v4117 = vsel %vm1400, %v4075, 0.0
      %4118 = vadd.xlane.f32.xlu0 %v4117
      %v4119 = vpop.xlane.xlu0 %4118
      %v4120 = vsel %vm1400, %v4077, 0.0
      %4121 = vadd.xlane.f32.xlu0 %v4120
      %v4122 = vpop.xlane.xlu0 %4121
      %v4123 = vsel %vm1400, %v4079, 0.0
      %4124 = vadd.xlane.f32.xlu0 %v4123
      %v4125 = vpop.xlane.xlu0 %4124
      %v4126 = vsel %vm1400, %v4081, 0.0
      %4127 = vadd.xlane.f32.xlu0 %v4126
      %v4128 = vpop.xlane.xlu0 %4127
      %v4129 = vsel %vm1400, %v4083, 0.0
      %4130 = vadd.xlane.f32.xlu0 %v4129
      %v4131 = vpop.xlane.xlu0 %4130
      %v4132 = vrcp.pop %v4086
      %v4133 = vrcp.pop %v4089
      %v4134 = vrcp.pop %v4092
      %v4135 = vrcp.pop %v4095
      %v4136 = vrcp.pop %v4098
      %v4137 = vrcp.pop %v4101
      %v4138 = vrcp.pop %v4104
      %v4139 = vrcp.pop %v4107
      %v4140 = vrcp.pop %v4110
      %v4141 = vrcp.pop %v4113
      %v4142 = vrcp.pop %v4116
      %v4143 = vrcp.pop %v4119
      %v4144 = vrcp.pop %v4122
      %v4145 = vrcp.pop %v4125
      %v4146 = vrcp.pop %v4128
      %v4147 = vrcp.pop %v4131
      %v4148 = vmul.f32 %v4053, %v4132
      %v4149 = vmul.f32 %v4055, %v4133
      %v4150 = vmul.f32 %v4057, %v4134
      %v4151 = vmul.f32 %v4059, %v4135
      %v4152 = vmul.f32 %v4061, %v4136
      %v4153 = vmul.f32 %v4063, %v4137
      %v4154 = vmul.f32 %v4065, %v4138
      %v4155 = vmul.f32 %v4067, %v4139
      %v4156 = vmul.f32 %v4069, %v4140
      %v4157 = vmul.f32 %v4071, %v4141
      %v4158 = vmul.f32 %v4073, %v4142
      %v4159 = vmul.f32 %v4075, %v4143
      %v4160 = vmul.f32 %v4077, %v4144
      %v4161 = vmul.f32 %v4079, %v4145
      %v4162 = vmul.f32 %v4081, %v4146
      %v4163 = vmul.f32 %v4083, %v4147
      %v4164 = vpack.c.bf16 %v4149, %v4148
      %v4165 = vpack.c.bf16 %v4151, %v4150
      %v4166 = vpack.c.bf16 %v4153, %v4152
      %v4167 = vpack.c.bf16 %v4155, %v4154
      %v4168 = vpack.c.bf16 %v4157, %v4156
      %v4169 = vpack.c.bf16 %v4159, %v4158
      %v4170 = vpack.c.bf16 %v4161, %v4160
      %v4171 = vpack.c.bf16 %v4163, %v4162
      %4172 = vrot.lane.b32.xlu0 %v1382, 96
      %v4173 = vpop.permute.xlu0 %4172
      %v4176 = vsel %vm1400, %v4164, 0
      %4178 = vmatprep.subr.bf16.mxu0 0
      %4179 = vmatpush1.bf16.msra.mxu0 %v4173
      %4180 = vmatprep.subr.bf16.mxu0 0
      %4181 = vmatpush1.bf16.msra.mxu0 0
      %4182 = vmatprep.subr.bf16.mxu0 0
      %4183 = vmatpush1.bf16.msra.mxu0 0
      %4184 = vmatprep.subr.bf16.mxu0 0
      %4185 = vmatpush1.bf16.msra.mxu0 0
      %4186 = vmatprep.subr.bf16.mxu0 0
      %4187 = vmatpush1.bf16.msra.mxu0 0
      %4188 = vmatprep.subr.bf16.mxu0 0
      %4189 = vmatpush1.bf16.msra.mxu0 0
      %4190 = vmatprep.subr.bf16.mxu0 0
      %4191 = vmatpush1.bf16.msra.mxu0 0
      %4192 = vmatprep.subr.bf16.mxu0 0
      %4193 = vmatpush1.bf16.msra.mxu0 0
      %4194 = vmatprep.subr.bf16.mxu0 0
      %4195 = vmatpush1.bf16.msra.mxu0 0
      %4196 = vmatprep.subr.bf16.mxu0 0
      %4197 = vmatpush1.bf16.msra.mxu0 0
      %4198 = vmatprep.subr.bf16.mxu0 0
      %4199 = vmatpush1.bf16.msra.mxu0 0
      %4200 = vmatprep.subr.bf16.mxu0 0
      %4201 = vmatpush1.bf16.msra.mxu0 0
      %4202 = vmatprep.subr.bf16.mxu0 0
      %4203 = vmatpush1.bf16.msra.mxu0 0
      %4204 = vmatprep.subr.bf16.mxu0 0
      %4205 = vmatpush1.bf16.msra.mxu0 0
      %4206 = vmatprep.subr.bf16.mxu0 0
      %4207 = vmatpush1.bf16.msra.mxu0 0
      %4208 = vmatprep.subr.bf16.mxu0 0
      %4209 = vmatpush1.bf16.msra.mxu0 0
      %4210 = vmatprep.mubr.bf16.mxu0 0
      %4211 = vmatmul.mubr.bf16.gmra.mrb[0].mxu0 %v4176
      %v4212 = vpop.f32.mrb[0].mxu0
      %v4213 = vadd.f32 0.0, %v4212
      %v4214 = vpop.f32.mrb[0].mxu0
      %v4215 = vpop.f32.mrb[0].mxu0
      %v4216 = vadd.f32 0.0, %v4215
      %v4217 = vpop.f32.mrb[0].mxu0
      %4218 = vdwg.mxu0
      %4219 = vrot.lane.b32.xlu0 %v1384, 96
      %v4220 = vpop.permute.xlu0 %4219
      %v4223 = vsel %vm1400, %v4165, 0
      %4225 = vmatprep.subr.bf16.mxu0 0
      %4226 = vmatpush1.bf16.msra.mxu0 %v4220
      %4227 = vmatprep.subr.bf16.mxu0 0
      %4228 = vmatpush1.bf16.msra.mxu0 0
      %4229 = vmatprep.subr.bf16.mxu0 0
      %4230 = vmatpush1.bf16.msra.mxu0 0
      %4231 = vmatprep.subr.bf16.mxu0 0
      %4232 = vmatpush1.bf16.msra.mxu0 0
      %4233 = vmatprep.subr.bf16.mxu0 0
      %4234 = vmatpush1.bf16.msra.mxu0 0
      %4235 = vmatprep.subr.bf16.mxu0 0
      %4236 = vmatpush1.bf16.msra.mxu0 0
      %4237 = vmatprep.subr.bf16.mxu0 0
      %4238 = vmatpush1.bf16.msra.mxu0 0
      %4239 = vmatprep.subr.bf16.mxu0 0
      %4240 = vmatpush1.bf16.msra.mxu0 0
      %4241 = vmatprep.subr.bf16.mxu0 0
      %4242 = vmatpush1.bf16.msra.mxu0 0
      %4243 = vmatprep.subr.bf16.mxu0 0
      %4244 = vmatpush1.bf16.msra.mxu0 0
      %4245 = vmatprep.subr.bf16.mxu0 0
      %4246 = vmatpush1.bf16.msra.mxu0 0
      %4247 = vmatprep.subr.bf16.mxu0 0
      %4248 = vmatpush1.bf16.msra.mxu0 0
      %4249 = vmatprep.subr.bf16.mxu0 0
      %4250 = vmatpush1.bf16.msra.mxu0 0
      %4251 = vmatprep.subr.bf16.mxu0 0
      %4252 = vmatpush1.bf16.msra.mxu0 0
      %4253 = vmatprep.subr.bf16.mxu0 0
      %4254 = vmatpush1.bf16.msra.mxu0 0
      %4255 = vmatprep.subr.bf16.mxu0 0
      %4256 = vmatpush1.bf16.msra.mxu0 0
      %4257 = vmatprep.mubr.bf16.mxu0 0
      %4258 = vmatmul.mubr.bf16.gmra.mrb[0].mxu0 %v4223
      %v4259 = vpop.f32.mrb[0].mxu0
      %v4260 = vadd.f32 0.0, %v4259
      %v4261 = vpop.f32.mrb[0].mxu0
      %v4262 = vpop.f32.mrb[0].mxu0
      %v4263 = vadd.f32 0.0, %v4262
      %v4264 = vpop.f32.mrb[0].mxu0
      %4265 = vdwg.mxu0
      %4266 = vrot.lane.b32.xlu0 %v1386, 96
      %v4267 = vpop.permute.xlu0 %4266
      %v4270 = vsel %vm1400, %v4166, 0
      %4272 = vmatprep.subr.bf16.mxu0 0
      %4273 = vmatpush1.bf16.msra.mxu0 %v4267
      %4274 = vmatprep.subr.bf16.mxu0 0
      %4275 = vmatpush1.bf16.msra.mxu0 0
      %4276 = vmatprep.subr.bf16.mxu0 0
      %4277 = vmatpush1.bf16.msra.mxu0 0
      %4278 = vmatprep.subr.bf16.mxu0 0
      %4279 = vmatpush1.bf16.msra.mxu0 0
      %4280 = vmatprep.subr.bf16.mxu0 0
      %4281 = vmatpush1.bf16.msra.mxu0 0
      %4282 = vmatprep.subr.bf16.mxu0 0
      %4283 = vmatpush1.bf16.msra.mxu0 0
      %4284 = vmatprep.subr.bf16.mxu0 0
      %4285 = vmatpush1.bf16.msra.mxu0 0
      %4286 = vmatprep.subr.bf16.mxu0 0
      %4287 = vmatpush1.bf16.msra.mxu0 0
      %4288 = vmatprep.subr.bf16.mxu0 0
      %4289 = vmatpush1.bf16.msra.mxu0 0
      %4290 = vmatprep.subr.bf16.mxu0 0
      %4291 = vmatpush1.bf16.msra.mxu0 0
      %4292 = vmatprep.subr.bf16.mxu0 0
      %4293 = vmatpush1.bf16.msra.mxu0 0
      %4294 = vmatprep.subr.bf16.mxu0 0
      %4295 = vmatpush1.bf16.msra.mxu0 0
      %4296 = vmatprep.subr.bf16.mxu0 0
      %4297 = vmatpush1.bf16.msra.mxu0 0
      %4298 = vmatprep.subr.bf16.mxu0 0
      %4299 = vmatpush1.bf16.msra.mxu0 0
      %4300 = vmatprep.subr.bf16.mxu0 0
      %4301 = vmatpush1.bf16.msra.mxu0 0
      %4302 = vmatprep.subr.bf16.mxu0 0
      %4303 = vmatpush1.bf16.msra.mxu0 0
      %4304 = vmatprep.mubr.bf16.mxu0 0
      %4305 = vmatmul.mubr.bf16.gmra.mrb[0].mxu0 %v4270
      %v4306 = vpop.f32.mrb[0].mxu0
      %v4307 = vadd.f32 0.0, %v4306
      %v4308 = vpop.f32.mrb[0].mxu0
      %v4309 = vpop.f32.mrb[0].mxu0
      %v4310 = vadd.f32 0.0, %v4309
      %v4311 = vpop.f32.mrb[0].mxu0
      %4312 = vdwg.mxu0
      %4313 = vrot.lane.b32.xlu0 %v1388, 96
      %v4314 = vpop.permute.xlu0 %4313
      %v4317 = vsel %vm1400, %v4167, 0
      %4319 = vmatprep.subr.bf16.mxu0 0
      %4320 = vmatpush1.bf16.msra.mxu0 %v4314
      %4321 = vmatprep.subr.bf16.mxu0 0
      %4322 = vmatpush1.bf16.msra.mxu0 0
      %4323 = vmatprep.subr.bf16.mxu0 0
      %4324 = vmatpush1.bf16.msra.mxu0 0
      %4325 = vmatprep.subr.bf16.mxu0 0
      %4326 = vmatpush1.bf16.msra.mxu0 0
      %4327 = vmatprep.subr.bf16.mxu0 0
      %4328 = vmatpush1.bf16.msra.mxu0 0
      %4329 = vmatprep.subr.bf16.mxu0 0
      %4330 = vmatpush1.bf16.msra.mxu0 0
      %4331 = vmatprep.subr.bf16.mxu0 0
      %4332 = vmatpush1.bf16.msra.mxu0 0
      %4333 = vmatprep.subr.bf16.mxu0 0
      %4334 = vmatpush1.bf16.msra.mxu0 0
      %4335 = vmatprep.subr.bf16.mxu0 0
      %4336 = vmatpush1.bf16.msra.mxu0 0
      %4337 = vmatprep.subr.bf16.mxu0 0
      %4338 = vmatpush1.bf16.msra.mxu0 0
      %4339 = vmatprep.subr.bf16.mxu0 0
      %4340 = vmatpush1.bf16.msra.mxu0 0
      %4341 = vmatprep.subr.bf16.mxu0 0
      %4342 = vmatpush1.bf16.msra.mxu0 0
      %4343 = vmatprep.subr.bf16.mxu0 0
      %4344 = vmatpush1.bf16.msra.mxu0 0
      %4345 = vmatprep.subr.bf16.mxu0 0
      %4346 = vmatpush1.bf16.msra.mxu0 0
      %4347 = vmatprep.subr.bf16.mxu0 0
      %4348 = vmatpush1.bf16.msra.mxu0 0
      %4349 = vmatprep.subr.bf16.mxu0 0
      %4350 = vmatpush1.bf16.msra.mxu0 0
      %4351 = vmatprep.mubr.bf16.mxu0 0
      %4352 = vmatmul.mubr.bf16.gmra.mrb[0].mxu0 %v4317
      %v4353 = vpop.f32.mrb[0].mxu0
      %v4354 = vadd.f32 0.0, %v4353
      %v4355 = vpop.f32.mrb[0].mxu0
      %v4356 = vpop.f32.mrb[0].mxu0
      %v4357 = vadd.f32 0.0, %v4356
      %v4358 = vpop.f32.mrb[0].mxu0
      %4359 = vdwg.mxu0
      %4360 = vrot.lane.b32.xlu0 %v1390, 96
      %v4361 = vpop.permute.xlu0 %4360
      %v4364 = vsel %vm1400, %v4168, 0
      %4366 = vmatprep.subr.bf16.mxu0 0
      %4367 = vmatpush1.bf16.msra.mxu0 %v4361
      %4368 = vmatprep.subr.bf16.mxu0 0
      %4369 = vmatpush1.bf16.msra.mxu0 0
      %4370 = vmatprep.subr.bf16.mxu0 0
      %4371 = vmatpush1.bf16.msra.mxu0 0
      %4372 = vmatprep.subr.bf16.mxu0 0
      %4373 = vmatpush1.bf16.msra.mxu0 0
      %4374 = vmatprep.subr.bf16.mxu0 0
      %4375 = vmatpush1.bf16.msra.mxu0 0
      %4376 = vmatprep.subr.bf16.mxu0 0
      %4377 = vmatpush1.bf16.msra.mxu0 0
      %4378 = vmatprep.subr.bf16.mxu0 0
      %4379 = vmatpush1.bf16.msra.mxu0 0
      %4380 = vmatprep.subr.bf16.mxu0 0
      %4381 = vmatpush1.bf16.msra.mxu0 0
      %4382 = vmatprep.subr.bf16.mxu0 0
      %4383 = vmatpush1.bf16.msra.mxu0 0
      %4384 = vmatprep.subr.bf16.mxu0 0
      %4385 = vmatpush1.bf16.msra.mxu0 0
      %4386 = vmatprep.subr.bf16.mxu0 0
      %4387 = vmatpush1.bf16.msra.mxu0 0
      %4388 = vmatprep.subr.bf16.mxu0 0
      %4389 = vmatpush1.bf16.msra.mxu0 0
      %4390 = vmatprep.subr.bf16.mxu0 0
      %4391 = vmatpush1.bf16.msra.mxu0 0
      %4392 = vmatprep.subr.bf16.mxu0 0
      %4393 = vmatpush1.bf16.msra.mxu0 0
      %4394 = vmatprep.subr.bf16.mxu0 0
      %4395 = vmatpush1.bf16.msra.mxu0 0
      %4396 = vmatprep.subr.bf16.mxu0 0
      %4397 = vmatpush1.bf16.msra.mxu0 0
      %4398 = vmatprep.mubr.bf16.mxu0 0
      %4399 = vmatmul.mubr.bf16.gmra.mrb[0].mxu0 %v4364
      %v4400 = vpop.f32.mrb[0].mxu0
      %v4401 = vadd.f32 0.0, %v4400
      %v4402 = vpop.f32.mrb[0].mxu0
      %v4403 = vpop.f32.mrb[0].mxu0
      %v4404 = vadd.f32 0.0, %v4403
      %v4405 = vpop.f32.mrb[0].mxu0
      %4406 = vdwg.mxu0
      %4407 = vrot.lane.b32.xlu0 %v1392, 96
      %v4408 = vpop.permute.xlu0 %4407
      %v4411 = vsel %vm1400, %v4169, 0
      %4413 = vmatprep.subr.bf16.mxu0 0
      %4414 = vmatpush1.bf16.msra.mxu0 %v4408
      %4415 = vmatprep.subr.bf16.mxu0 0
      %4416 = vmatpush1.bf16.msra.mxu0 0
      %4417 = vmatprep.subr.bf16.mxu0 0
      %4418 = vmatpush1.bf16.msra.mxu0 0
      %4419 = vmatprep.subr.bf16.mxu0 0
      %4420 = vmatpush1.bf16.msra.mxu0 0
      %4421 = vmatprep.subr.bf16.mxu0 0
      %4422 = vmatpush1.bf16.msra.mxu0 0
      %4423 = vmatprep.subr.bf16.mxu0 0
      %4424 = vmatpush1.bf16.msra.mxu0 0
      %4425 = vmatprep.subr.bf16.mxu0 0
      %4426 = vmatpush1.bf16.msra.mxu0 0
      %4427 = vmatprep.subr.bf16.mxu0 0
      %4428 = vmatpush1.bf16.msra.mxu0 0
      %4429 = vmatprep.subr.bf16.mxu0 0
      %4430 = vmatpush1.bf16.msra.mxu0 0
      %4431 = vmatprep.subr.bf16.mxu0 0
      %4432 = vmatpush1.bf16.msra.mxu0 0
      %4433 = vmatprep.subr.bf16.mxu0 0
      %4434 = vmatpush1.bf16.msra.mxu0 0
      %4435 = vmatprep.subr.bf16.mxu0 0
      %4436 = vmatpush1.bf16.msra.mxu0 0
      %4437 = vmatprep.subr.bf16.mxu0 0
      %4438 = vmatpush1.bf16.msra.mxu0 0
      %4439 = vmatprep.subr.bf16.mxu0 0
      %4440 = vmatpush1.bf16.msra.mxu0 0
      %4441 = vmatprep.subr.bf16.mxu0 0
      %4442 = vmatpush1.bf16.msra.mxu0 0
      %4443 = vmatprep.subr.bf16.mxu0 0
      %4444 = vmatpush1.bf16.msra.mxu0 0
      %4445 = vmatprep.mubr.bf16.mxu0 0
      %4446 = vmatmul.mubr.bf16.gmra.mrb[0].mxu0 %v4411
      %v4447 = vpop.f32.mrb[0].mxu0
      %v4448 = vadd.f32 0.0, %v4447
      %v4449 = vpop.f32.mrb[0].mxu0
      %v4450 = vpop.f32.mrb[0].mxu0
      %v4451 = vadd.f32 0.0, %v4450
      %v4452 = vpop.f32.mrb[0].mxu0
      %4453 = vdwg.mxu0
      %4454 = vrot.lane.b32.xlu0 %v1394, 96
      %v4455 = vpop.permute.xlu0 %4454
      %v4458 = vsel %vm1400, %v4170, 0
      %4460 = vmatprep.subr.bf16.mxu0 0
      %4461 = vmatpush1.bf16.msra.mxu0 %v4455
      %4462 = vmatprep.subr.bf16.mxu0 0
      %4463 = vmatpush1.bf16.msra.mxu0 0
      %4464 = vmatprep.subr.bf16.mxu0 0
      %4465 = vmatpush1.bf16.msra.mxu0 0
      %4466 = vmatprep.subr.bf16.mxu0 0
      %4467 = vmatpush1.bf16.msra.mxu0 0
      %4468 = vmatprep.subr.bf16.mxu0 0
      %4469 = vmatpush1.bf16.msra.mxu0 0
      %4470 = vmatprep.subr.bf16.mxu0 0
      %4471 = vmatpush1.bf16.msra.mxu0 0
      %4472 = vmatprep.subr.bf16.mxu0 0
      %4473 = vmatpush1.bf16.msra.mxu0 0
      %4474 = vmatprep.subr.bf16.mxu0 0
      %4475 = vmatpush1.bf16.msra.mxu0 0
      %4476 = vmatprep.subr.bf16.mxu0 0
      %4477 = vmatpush1.bf16.msra.mxu0 0
      %4478 = vmatprep.subr.bf16.mxu0 0
      %4479 = vmatpush1.bf16.msra.mxu0 0
      %4480 = vmatprep.subr.bf16.mxu0 0
      %4481 = vmatpush1.bf16.msra.mxu0 0
      %4482 = vmatprep.subr.bf16.mxu0 0
      %4483 = vmatpush1.bf16.msra.mxu0 0
      %4484 = vmatprep.subr.bf16.mxu0 0
      %4485 = vmatpush1.bf16.msra.mxu0 0
      %4486 = vmatprep.subr.bf16.mxu0 0
      %4487 = vmatpush1.bf16.msra.mxu0 0
      %4488 = vmatprep.subr.bf16.mxu0 0
      %4489 = vmatpush1.bf16.msra.mxu0 0
      %4490 = vmatprep.subr.bf16.mxu0 0
      %4491 = vmatpush1.bf16.msra.mxu0 0
      %4492 = vmatprep.mubr.bf16.mxu0 0
      %4493 = vmatmul.mubr.bf16.gmra.mrb[0].mxu0 %v4458
      %v4494 = vpop.f32.mrb[0].mxu0
      %v4495 = vadd.f32 0.0, %v4494
      %v4496 = vpop.f32.mrb[0].mxu0
      %v4497 = vpop.f32.mrb[0].mxu0
      %v4498 = vadd.f32 0.0, %v4497
      %v4499 = vpop.f32.mrb[0].mxu0
      %4500 = vdwg.mxu0
      %4501 = vrot.lane.b32.xlu0 %v1396, 96
      %v4502 = vpop.permute.xlu0 %4501
      %v4505 = vsel %vm1400, %v4171, 0
      %4507 = vmatprep.subr.bf16.mxu0 0
      %4508 = vmatpush1.bf16.msra.mxu0 %v4502
      %4509 = vmatprep.subr.bf16.mxu0 0
      %4510 = vmatpush1.bf16.msra.mxu0 0
      %4511 = vmatprep.subr.bf16.mxu0 0
      %4512 = vmatpush1.bf16.msra.mxu0 0
      %4513 = vmatprep.subr.bf16.mxu0 0
      %4514 = vmatpush1.bf16.msra.mxu0 0
      %4515 = vmatprep.subr.bf16.mxu0 0
      %4516 = vmatpush1.bf16.msra.mxu0 0
      %4517 = vmatprep.subr.bf16.mxu0 0
      %4518 = vmatpush1.bf16.msra.mxu0 0
      %4519 = vmatprep.subr.bf16.mxu0 0
      %4520 = vmatpush1.bf16.msra.mxu0 0
      %4521 = vmatprep.subr.bf16.mxu0 0
      %4522 = vmatpush1.bf16.msra.mxu0 0
      %4523 = vmatprep.subr.bf16.mxu0 0
      %4524 = vmatpush1.bf16.msra.mxu0 0
      %4525 = vmatprep.subr.bf16.mxu0 0
      %4526 = vmatpush1.bf16.msra.mxu0 0
      %4527 = vmatprep.subr.bf16.mxu0 0
      %4528 = vmatpush1.bf16.msra.mxu0 0
      %4529 = vmatprep.subr.bf16.mxu0 0
      %4530 = vmatpush1.bf16.msra.mxu0 0
      %4531 = vmatprep.subr.bf16.mxu0 0
      %4532 = vmatpush1.bf16.msra.mxu0 0
      %4533 = vmatprep.subr.bf16.mxu0 0
      %4534 = vmatpush1.bf16.msra.mxu0 0
      %4535 = vmatprep.subr.bf16.mxu0 0
      %4536 = vmatpush1.bf16.msra.mxu0 0
      %4537 = vmatprep.subr.bf16.mxu0 0
      %4538 = vmatpush1.bf16.msra.mxu0 0
      %4539 = vmatprep.mubr.bf16.mxu0 0
      %4540 = vmatmul.mubr.bf16.gmra.mrb[0].mxu0 %v4505
      %v4541 = vpop.f32.mrb[0].mxu0
      %v4542 = vadd.f32 0.0, %v4541
      %v4543 = vpop.f32.mrb[0].mxu0
      %v4544 = vpop.f32.mrb[0].mxu0
      %v4545 = vadd.f32 0.0, %v4544
      %v4546 = vpop.f32.mrb[0].mxu0
      %4547 = vdwg.mxu0
      %v4548 = vpack.c.bf16 %v4216, %v4213
      %v4549 = vpack.c.bf16 %v4263, %v4260
      %v4550 = vpack.c.bf16 %v4310, %v4307
      %v4551 = vpack.c.bf16 %v4357, %v4354
      %v4552 = vpack.c.bf16 %v4404, %v4401
      %v4553 = vpack.c.bf16 %v4451, %v4448
      %v4554 = vpack.c.bf16 %v4498, %v4495
      %v4555 = vpack.c.bf16 %v4545, %v4542
      %v4558 = vunpack.c.l.b16 %v839
      %v4559 = vunpack.c.l.b16 %v840
      %v4560 = vpack.c.b16 %v4559, %v4558
      %v4563 = vsel %vm1400, %v4548, 0
      %v4566 = vsel %vm1400, %v4549, 0
      %v4569 = vsel %vm1400, %v4550, 0
      %v4572 = vsel %vm1400, %v4551, 0
      %v4575 = vsel %vm1400, %v4552, 0
      %v4578 = vsel %vm1400, %v4553, 0
      %v4581 = vsel %vm1400, %v4554, 0
      %v4584 = vsel %vm1400, %v4555, 0
      %4586 = vmatprep.subr.bf16.mxu0 0
      %4587 = vmatpush1.bf16.msra.mxu0 %v4560
      %4588 = vmatprep.subr.bf16.mxu0 0
      %4589 = vmatpush1.bf16.msra.mxu0 0
      %4590 = vmatprep.subr.bf16.mxu0 0
      %4591 = vmatpush1.bf16.msra.mxu0 0
      %4592 = vmatprep.subr.bf16.mxu0 0
      %4593 = vmatpush1.bf16.msra.mxu0 0
      %4594 = vmatprep.subr.bf16.mxu0 0
      %4595 = vmatpush1.bf16.msra.mxu0 0
      %4596 = vmatprep.subr.bf16.mxu0 0
      %4597 = vmatpush1.bf16.msra.mxu0 0
      %4598 = vmatprep.subr.bf16.mxu0 0
      %4599 = vmatpush1.bf16.msra.mxu0 0
      %4600 = vmatprep.subr.bf16.mxu0 0
      %4601 = vmatpush1.bf16.msra.mxu0 0
      %4602 = vmatprep.subr.bf16.mxu0 0
      %4603 = vmatpush1.bf16.msra.mxu0 0
      %4604 = vmatprep.subr.bf16.mxu0 0
      %4605 = vmatpush1.bf16.msra.mxu0 0
      %4606 = vmatprep.subr.bf16.mxu0 0
      %4607 = vmatpush1.bf16.msra.mxu0 0
      %4608 = vmatprep.subr.bf16.mxu0 0
      %4609 = vmatpush1.bf16.msra.mxu0 0
      %4610 = vmatprep.subr.bf16.mxu0 0
      %4611 = vmatpush1.bf16.msra.mxu0 0
      %4612 = vmatprep.subr.bf16.mxu0 0
      %4613 = vmatpush1.bf16.msra.mxu0 0
      %4614 = vmatprep.subr.bf16.mxu0 0
      %4615 = vmatpush1.bf16.msra.mxu0 0
      %4616 = vmatprep.subr.bf16.mxu0 0
      %4617 = vmatpush1.bf16.msra.mxu0 0
      %4618 = vmatprep.mubr.bf16.mxu0 0
      %4619 = vmatmul.mubr.bf16.gmra.mrb[0].mxu0 %v4563
      %v4620 = vpop.f32.mrb[0].mxu0
      %v4621 = vadd.f32 0.0, %v4620
      %v4622 = vpop.f32.mrb[0].mxu0
      %v4623 = vpop.f32.mrb[0].mxu0
      %v4624 = vadd.f32 0.0, %v4623
      %v4625 = vpop.f32.mrb[0].mxu0
      %4626 = vmatprep.mubr.bf16.mxu0 0
      %4627 = vmatmul.mubr.bf16.gmra.mrb[0].mxu0 %v4566
      %v4628 = vpop.f32.mrb[0].mxu0
      %v4629 = vadd.f32 0.0, %v4628
      %v4630 = vpop.f32.mrb[0].mxu0
      %v4631 = vpop.f32.mrb[0].mxu0
      %v4632 = vadd.f32 0.0, %v4631
      %v4633 = vpop.f32.mrb[0].mxu0
      %4634 = vmatprep.mubr.bf16.mxu0 0
      %4635 = vmatmul.mubr.bf16.gmra.mrb[0].mxu0 %v4569
      %v4636 = vpop.f32.mrb[0].mxu0
      %v4637 = vadd.f32 0.0, %v4636
      %v4638 = vpop.f32.mrb[0].mxu0
      %v4639 = vpop.f32.mrb[0].mxu0
      %v4640 = vadd.f32 0.0, %v4639
      %v4641 = vpop.f32.mrb[0].mxu0
      %4642 = vmatprep.mubr.bf16.mxu0 0
      %4643 = vmatmul.mubr.bf16.gmra.mrb[0].mxu0 %v4572
      %v4644 = vpop.f32.mrb[0].mxu0
      %v4645 = vadd.f32 0.0, %v4644
      %v4646 = vpop.f32.mrb[0].mxu0
      %v4647 = vpop.f32.mrb[0].mxu0
      %v4648 = vadd.f32 0.0, %v4647
      %v4649 = vpop.f32.mrb[0].mxu0
      %4650 = vmatprep.mubr.bf16.mxu0 0
      %4651 = vmatmul.mubr.bf16.gmra.mrb[0].mxu0 %v4575
      %v4652 = vpop.f32.mrb[0].mxu0
      %v4653 = vadd.f32 0.0, %v4652
      %v4654 = vpop.f32.mrb[0].mxu0
      %v4655 = vpop.f32.mrb[0].mxu0
      %v4656 = vadd.f32 0.0, %v4655
      %v4657 = vpop.f32.mrb[0].mxu0
      %4658 = vmatprep.mubr.bf16.mxu0 0
      %4659 = vmatmul.mubr.bf16.gmra.mrb[0].mxu0 %v4578
      %v4660 = vpop.f32.mrb[0].mxu0
      %v4661 = vadd.f32 0.0, %v4660
      %v4662 = vpop.f32.mrb[0].mxu0
      %v4663 = vpop.f32.mrb[0].mxu0
      %v4664 = vadd.f32 0.0, %v4663
      %v4665 = vpop.f32.mrb[0].mxu0
      %4666 = vmatprep.mubr.bf16.mxu0 0
      %4667 = vmatmul.mubr.bf16.gmra.mrb[0].mxu0 %v4581
      %v4668 = vpop.f32.mrb[0].mxu0
      %v4669 = vadd.f32 0.0, %v4668
      %v4670 = vpop.f32.mrb[0].mxu0
      %v4671 = vpop.f32.mrb[0].mxu0
      %v4672 = vadd.f32 0.0, %v4671
      %v4673 = vpop.f32.mrb[0].mxu0
      %4674 = vmatprep.mubr.bf16.mxu0 0
      %4675 = vmatmul.mubr.bf16.gmra.mrb[0].mxu0 %v4584
      %v4676 = vpop.f32.mrb[0].mxu0
      %v4677 = vadd.f32 0.0, %v4676
      %v4678 = vpop.f32.mrb[0].mxu0
      %v4679 = vpop.f32.mrb[0].mxu0
      %v4680 = vadd.f32 0.0, %v4679
      %v4681 = vpop.f32.mrb[0].mxu0
      %4682 = vdwg.mxu0
      %v4683 = vadd.f32 %v3518, %v4621
      %v4684 = vadd.f32 %v3521, %v4624
      %v4685 = vadd.f32 %v3526, %v4629
      %v4686 = vadd.f32 %v3529, %v4632
      %v4687 = vadd.f32 %v3534, %v4637
      %v4688 = vadd.f32 %v3537, %v4640
      %v4689 = vadd.f32 %v3542, %v4645
      %v4690 = vadd.f32 %v3545, %v4648
      %v4691 = vadd.f32 %v3550, %v4653
      %v4692 = vadd.f32 %v3553, %v4656
      %v4693 = vadd.f32 %v3558, %v4661
      %v4694 = vadd.f32 %v3561, %v4664
      %v4695 = vadd.f32 %v3566, %v4669
      %v4696 = vadd.f32 %v3569, %v4672
      %v4697 = vadd.f32 %v3574, %v4677
      %v4698 = vadd.f32 %v3577, %v4680
      %4699 = vrot.lane.b32.xlu0 %v1381, 80
      %v4700 = vpop.permute.xlu0 %4699
      %4701 = vrot.lane.b32.xlu0 %v1381, 16
      %v4702 = vpop.permute.xlu0 %4701
      %v4704 = vsel %vm1400, %v4700, 0
      %v4707 = vsel %vm1400, %v4702, 0
      %4709 = vmatprep.subr.bf16.mxu0 0
      %4710 = vmatpush1.bf16.xpose.msra.mxu0 %v4707
      %4711 = vmatprep.subr.bf16.mxu0 0
      %4712 = vmatpush1.bf16.xpose.msra.mxu0 0
      %4713 = vmatprep.subr.bf16.mxu0 0
      %4714 = vmatpush1.bf16.xpose.msra.mxu0 0
      %4715 = vmatprep.subr.bf16.mxu0 0
      %4716 = vmatpush1.bf16.xpose.msra.mxu0 0
      %4717 = vmatprep.subr.bf16.mxu0 0
      %4718 = vmatpush1.bf16.xpose.msra.mxu0 0
      %4719 = vmatprep.subr.bf16.mxu0 0
      %4720 = vmatpush1.bf16.xpose.msra.mxu0 0
      %4721 = vmatprep.subr.bf16.mxu0 0
      %4722 = vmatpush1.bf16.xpose.msra.mxu0 0
      %4723 = vmatprep.subr.bf16.mxu0 0
      %4724 = vmatpush1.bf16.xpose.msra.mxu0 0
      %4725 = vmatprep.subr.bf16.mxu0 0
      %4726 = vmatpush1.bf16.xpose.msra.mxu0 0
      %4727 = vmatprep.subr.bf16.mxu0 0
      %4728 = vmatpush1.bf16.xpose.msra.mxu0 0
      %4729 = vmatprep.subr.bf16.mxu0 0
      %4730 = vmatpush1.bf16.xpose.msra.mxu0 0
      %4731 = vmatprep.subr.bf16.mxu0 0
      %4732 = vmatpush1.bf16.xpose.msra.mxu0 0
      %4733 = vmatprep.subr.bf16.mxu0 0
      %4734 = vmatpush1.bf16.xpose.msra.mxu0 0
      %4735 = vmatprep.subr.bf16.mxu0 0
      %4736 = vmatpush1.bf16.xpose.msra.mxu0 0
      %4737 = vmatprep.subr.bf16.mxu0 0
      %4738 = vmatpush1.bf16.xpose.msra.mxu0 0
      %4739 = vmatprep.subr.bf16.mxu0 0
      %4740 = vmatpush1.bf16.xpose.msra.mxu0 0
      %4741 = vmatprep.mubr.bf16.mxu0 0
      %4742 = vmatmul.mubr.bf16.gmra.mrb[0].mxu0 %v4704
      %v4743 = vpop.f32.mrb[0].mxu0
      %v4744 = vadd.f32 0.0, %v4743
      %v4745 = vpop.f32.mrb[0].mxu0
      %v4746 = vpop.f32.mrb[0].mxu0
      %v4747 = vadd.f32 0.0, %v4746
      %v4748 = vpop.f32.mrb[0].mxu0
      %4749 = vdwg.mxu0
      %4750 = vrot.lane.b32.xlu0 %v1383, 80
      %v4751 = vpop.permute.xlu0 %4750
      %4752 = vrot.lane.b32.xlu0 %v1383, 16
      %v4753 = vpop.permute.xlu0 %4752
      %v4755 = vsel %vm1400, %v4751, 0
      %v4758 = vsel %vm1400, %v4753, 0
      %4760 = vmatprep.subr.bf16.mxu0 0
      %4761 = vmatpush1.bf16.xpose.msra.mxu0 %v4758
      %4762 = vmatprep.subr.bf16.mxu0 0
      %4763 = vmatpush1.bf16.xpose.msra.mxu0 0
      %4764 = vmatprep.subr.bf16.mxu0 0
      %4765 = vmatpush1.bf16.xpose.msra.mxu0 0
      %4766 = vmatprep.subr.bf16.mxu0 0
      %4767 = vmatpush1.bf16.xpose.msra.mxu0 0
      %4768 = vmatprep.subr.bf16.mxu0 0
      %4769 = vmatpush1.bf16.xpose.msra.mxu0 0
      %4770 = vmatprep.subr.bf16.mxu0 0
      %4771 = vmatpush1.bf16.xpose.msra.mxu0 0
      %4772 = vmatprep.subr.bf16.mxu0 0
      %4773 = vmatpush1.bf16.xpose.msra.mxu0 0
      %4774 = vmatprep.subr.bf16.mxu0 0
      %4775 = vmatpush1.bf16.xpose.msra.mxu0 0
      %4776 = vmatprep.subr.bf16.mxu0 0
      %4777 = vmatpush1.bf16.xpose.msra.mxu0 0
      %4778 = vmatprep.subr.bf16.mxu0 0
      %4779 = vmatpush1.bf16.xpose.msra.mxu0 0
      %4780 = vmatprep.subr.bf16.mxu0 0
      %4781 = vmatpush1.bf16.xpose.msra.mxu0 0
      %4782 = vmatprep.subr.bf16.mxu0 0
      %4783 = vmatpush1.bf16.xpose.msra.mxu0 0
      %4784 = vmatprep.subr.bf16.mxu0 0
      %4785 = vmatpush1.bf16.xpose.msra.mxu0 0
      %4786 = vmatprep.subr.bf16.mxu0 0
      %4787 = vmatpush1.bf16.xpose.msra.mxu0 0
      %4788 = vmatprep.subr.bf16.mxu0 0
      %4789 = vmatpush1.bf16.xpose.msra.mxu0 0
      %4790 = vmatprep.subr.bf16.mxu0 0
      %4791 = vmatpush1.bf16.xpose.msra.mxu0 0
      %4792 = vmatprep.mubr.bf16.mxu0 0
      %4793 = vmatmul.mubr.bf16.gmra.mrb[0].mxu0 %v4755
      %v4794 = vpop.f32.mrb[0].mxu0
      %v4795 = vadd.f32 0.0, %v4794
      %v4796 = vpop.f32.mrb[0].mxu0
      %v4797 = vpop.f32.mrb[0].mxu0
      %v4798 = vadd.f32 0.0, %v4797
      %v4799 = vpop.f32.mrb[0].mxu0
      %4800 = vdwg.mxu0
      %4801 = vrot.lane.b32.xlu0 %v1385, 80
      %v4802 = vpop.permute.xlu0 %4801
      %4803 = vrot.lane.b32.xlu0 %v1385, 16
      %v4804 = vpop.permute.xlu0 %4803
      %v4806 = vsel %vm1400, %v4802, 0
      %v4809 = vsel %vm1400, %v4804, 0
      %4811 = vmatprep.subr.bf16.mxu0 0
      %4812 = vmatpush1.bf16.xpose.msra.mxu0 %v4809
      %4813 = vmatprep.subr.bf16.mxu0 0
      %4814 = vmatpush1.bf16.xpose.msra.mxu0 0
      %4815 = vmatprep.subr.bf16.mxu0 0
      %4816 = vmatpush1.bf16.xpose.msra.mxu0 0
      %4817 = vmatprep.subr.bf16.mxu0 0
      %4818 = vmatpush1.bf16.xpose.msra.mxu0 0
      %4819 = vmatprep.subr.bf16.mxu0 0
      %4820 = vmatpush1.bf16.xpose.msra.mxu0 0
      %4821 = vmatprep.subr.bf16.mxu0 0
      %4822 = vmatpush1.bf16.xpose.msra.mxu0 0
      %4823 = vmatprep.subr.bf16.mxu0 0
      %4824 = vmatpush1.bf16.xpose.msra.mxu0 0
      %4825 = vmatprep.subr.bf16.mxu0 0
      %4826 = vmatpush1.bf16.xpose.msra.mxu0 0
      %4827 = vmatprep.subr.bf16.mxu0 0
      %4828 = vmatpush1.bf16.xpose.msra.mxu0 0
      %4829 = vmatprep.subr.bf16.mxu0 0
      %4830 = vmatpush1.bf16.xpose.msra.mxu0 0
      %4831 = vmatprep.subr.bf16.mxu0 0
      %4832 = vmatpush1.bf16.xpose.msra.mxu0 0
      %4833 = vmatprep.subr.bf16.mxu0 0
      %4834 = vmatpush1.bf16.xpose.msra.mxu0 0
      %4835 = vmatprep.subr.bf16.mxu0 0
      %4836 = vmatpush1.bf16.xpose.msra.mxu0 0
      %4837 = vmatprep.subr.bf16.mxu0 0
      %4838 = vmatpush1.bf16.xpose.msra.mxu0 0
      %4839 = vmatprep.subr.bf16.mxu0 0
      %4840 = vmatpush1.bf16.xpose.msra.mxu0 0
      %4841 = vmatprep.subr.bf16.mxu0 0
      %4842 = vmatpush1.bf16.xpose.msra.mxu0 0
      %4843 = vmatprep.mubr.bf16.mxu0 0
      %4844 = vmatmul.mubr.bf16.gmra.mrb[0].mxu0 %v4806
      %v4845 = vpop.f32.mrb[0].mxu0
      %v4846 = vadd.f32 0.0, %v4845
      %v4847 = vpop.f32.mrb[0].mxu0
      %v4848 = vpop.f32.mrb[0].mxu0
      %v4849 = vadd.f32 0.0, %v4848
      %v4850 = vpop.f32.mrb[0].mxu0
      %4851 = vdwg.mxu0
      %4852 = vrot.lane.b32.xlu0 %v1387, 80
      %v4853 = vpop.permute.xlu0 %4852
      %4854 = vrot.lane.b32.xlu0 %v1387, 16
      %v4855 = vpop.permute.xlu0 %4854
      %v4857 = vsel %vm1400, %v4853, 0
      %v4860 = vsel %vm1400, %v4855, 0
      %4862 = vmatprep.subr.bf16.mxu0 0
      %4863 = vmatpush1.bf16.xpose.msra.mxu0 %v4860
      %4864 = vmatprep.subr.bf16.mxu0 0
      %4865 = vmatpush1.bf16.xpose.msra.mxu0 0
      %4866 = vmatprep.subr.bf16.mxu0 0
      %4867 = vmatpush1.bf16.xpose.msra.mxu0 0
      %4868 = vmatprep.subr.bf16.mxu0 0
      %4869 = vmatpush1.bf16.xpose.msra.mxu0 0
      %4870 = vmatprep.subr.bf16.mxu0 0
      %4871 = vmatpush1.bf16.xpose.msra.mxu0 0
      %4872 = vmatprep.subr.bf16.mxu0 0
      %4873 = vmatpush1.bf16.xpose.msra.mxu0 0
      %4874 = vmatprep.subr.bf16.mxu0 0
      %4875 = vmatpush1.bf16.xpose.msra.mxu0 0
      %4876 = vmatprep.subr.bf16.mxu0 0
      %4877 = vmatpush1.bf16.xpose.msra.mxu0 0
      %4878 = vmatprep.subr.bf16.mxu0 0
      %4879 = vmatpush1.bf16.xpose.msra.mxu0 0
      %4880 = vmatprep.subr.bf16.mxu0 0
      %4881 = vmatpush1.bf16.xpose.msra.mxu0 0
      %4882 = vmatprep.subr.bf16.mxu0 0
      %4883 = vmatpush1.bf16.xpose.msra.mxu0 0
      %4884 = vmatprep.subr.bf16.mxu0 0
      %4885 = vmatpush1.bf16.xpose.msra.mxu0 0
      %4886 = vmatprep.subr.bf16.mxu0 0
      %4887 = vmatpush1.bf16.xpose.msra.mxu0 0
      %4888 = vmatprep.subr.bf16.mxu0 0
      %4889 = vmatpush1.bf16.xpose.msra.mxu0 0
      %4890 = vmatprep.subr.bf16.mxu0 0
      %4891 = vmatpush1.bf16.xpose.msra.mxu0 0
      %4892 = vmatprep.subr.bf16.mxu0 0
      %4893 = vmatpush1.bf16.xpose.msra.mxu0 0
      %4894 = vmatprep.mubr.bf16.mxu0 0
      %4895 = vmatmul.mubr.bf16.gmra.mrb[0].mxu0 %v4857
      %v4896 = vpop.f32.mrb[0].mxu0
      %v4897 = vadd.f32 0.0, %v4896
      %v4898 = vpop.f32.mrb[0].mxu0
      %v4899 = vpop.f32.mrb[0].mxu0
      %v4900 = vadd.f32 0.0, %v4899
      %v4901 = vpop.f32.mrb[0].mxu0
      %4902 = vdwg.mxu0
      %4903 = vrot.lane.b32.xlu0 %v1389, 80
      %v4904 = vpop.permute.xlu0 %4903
      %4905 = vrot.lane.b32.xlu0 %v1389, 16
      %v4906 = vpop.permute.xlu0 %4905
      %v4908 = vsel %vm1400, %v4904, 0
      %v4911 = vsel %vm1400, %v4906, 0
      %4913 = vmatprep.subr.bf16.mxu0 0
      %4914 = vmatpush1.bf16.xpose.msra.mxu0 %v4911
      %4915 = vmatprep.subr.bf16.mxu0 0
      %4916 = vmatpush1.bf16.xpose.msra.mxu0 0
      %4917 = vmatprep.subr.bf16.mxu0 0
      %4918 = vmatpush1.bf16.xpose.msra.mxu0 0
      %4919 = vmatprep.subr.bf16.mxu0 0
      %4920 = vmatpush1.bf16.xpose.msra.mxu0 0
      %4921 = vmatprep.subr.bf16.mxu0 0
      %4922 = vmatpush1.bf16.xpose.msra.mxu0 0
      %4923 = vmatprep.subr.bf16.mxu0 0
      %4924 = vmatpush1.bf16.xpose.msra.mxu0 0
      %4925 = vmatprep.subr.bf16.mxu0 0
      %4926 = vmatpush1.bf16.xpose.msra.mxu0 0
      %4927 = vmatprep.subr.bf16.mxu0 0
      %4928 = vmatpush1.bf16.xpose.msra.mxu0 0
      %4929 = vmatprep.subr.bf16.mxu0 0
      %4930 = vmatpush1.bf16.xpose.msra.mxu0 0
      %4931 = vmatprep.subr.bf16.mxu0 0
      %4932 = vmatpush1.bf16.xpose.msra.mxu0 0
      %4933 = vmatprep.subr.bf16.mxu0 0
      %4934 = vmatpush1.bf16.xpose.msra.mxu0 0
      %4935 = vmatprep.subr.bf16.mxu0 0
      %4936 = vmatpush1.bf16.xpose.msra.mxu0 0
      %4937 = vmatprep.subr.bf16.mxu0 0
      %4938 = vmatpush1.bf16.xpose.msra.mxu0 0
      %4939 = vmatprep.subr.bf16.mxu0 0
      %4940 = vmatpush1.bf16.xpose.msra.mxu0 0
      %4941 = vmatprep.subr.bf16.mxu0 0
      %4942 = vmatpush1.bf16.xpose.msra.mxu0 0
      %4943 = vmatprep.subr.bf16.mxu0 0
      %4944 = vmatpush1.bf16.xpose.msra.mxu0 0
      %4945 = vmatprep.mubr.bf16.mxu0 0
      %4946 = vmatmul.mubr.bf16.gmra.mrb[0].mxu0 %v4908
      %v4947 = vpop.f32.mrb[0].mxu0
      %v4948 = vadd.f32 0.0, %v4947
      %v4949 = vpop.f32.mrb[0].mxu0
      %v4950 = vpop.f32.mrb[0].mxu0
      %v4951 = vadd.f32 0.0, %v4950
      %v4952 = vpop.f32.mrb[0].mxu0
      %4953 = vdwg.mxu0
      %4954 = vrot.lane.b32.xlu0 %v1391, 80
      %v4955 = vpop.permute.xlu0 %4954
      %4956 = vrot.lane.b32.xlu0 %v1391, 16
      %v4957 = vpop.permute.xlu0 %4956
      %v4959 = vsel %vm1400, %v4955, 0
      %v4962 = vsel %vm1400, %v4957, 0
      %4964 = vmatprep.subr.bf16.mxu0 0
      %4965 = vmatpush1.bf16.xpose.msra.mxu0 %v4962
      %4966 = vmatprep.subr.bf16.mxu0 0
      %4967 = vmatpush1.bf16.xpose.msra.mxu0 0
      %4968 = vmatprep.subr.bf16.mxu0 0
      %4969 = vmatpush1.bf16.xpose.msra.mxu0 0
      %4970 = vmatprep.subr.bf16.mxu0 0
      %4971 = vmatpush1.bf16.xpose.msra.mxu0 0
      %4972 = vmatprep.subr.bf16.mxu0 0
      %4973 = vmatpush1.bf16.xpose.msra.mxu0 0
      %4974 = vmatprep.subr.bf16.mxu0 0
      %4975 = vmatpush1.bf16.xpose.msra.mxu0 0
      %4976 = vmatprep.subr.bf16.mxu0 0
      %4977 = vmatpush1.bf16.xpose.msra.mxu0 0
      %4978 = vmatprep.subr.bf16.mxu0 0
      %4979 = vmatpush1.bf16.xpose.msra.mxu0 0
      %4980 = vmatprep.subr.bf16.mxu0 0
      %4981 = vmatpush1.bf16.xpose.msra.mxu0 0
      %4982 = vmatprep.subr.bf16.mxu0 0
      %4983 = vmatpush1.bf16.xpose.msra.mxu0 0
      %4984 = vmatprep.subr.bf16.mxu0 0
      %4985 = vmatpush1.bf16.xpose.msra.mxu0 0
      %4986 = vmatprep.subr.bf16.mxu0 0
      %4987 = vmatpush1.bf16.xpose.msra.mxu0 0
      %4988 = vmatprep.subr.bf16.mxu0 0
      %4989 = vmatpush1.bf16.xpose.msra.mxu0 0
      %4990 = vmatprep.subr.bf16.mxu0 0
      %4991 = vmatpush1.bf16.xpose.msra.mxu0 0
      %4992 = vmatprep.subr.bf16.mxu0 0
      %4993 = vmatpush1.bf16.xpose.msra.mxu0 0
      %4994 = vmatprep.subr.bf16.mxu0 0
      %4995 = vmatpush1.bf16.xpose.msra.mxu0 0
      %4996 = vmatprep.mubr.bf16.mxu0 0
      %4997 = vmatmul.mubr.bf16.gmra.mrb[0].mxu0 %v4959
      %v4998 = vpop.f32.mrb[0].mxu0
      %v4999 = vadd.f32 0.0, %v4998
      %v5000 = vpop.f32.mrb[0].mxu0
      %v5001 = vpop.f32.mrb[0].mxu0
      %v5002 = vadd.f32 0.0, %v5001
      %v5003 = vpop.f32.mrb[0].mxu0
      %5004 = vdwg.mxu0
      %5005 = vrot.lane.b32.xlu0 %v1393, 80
      %v5006 = vpop.permute.xlu0 %5005
      %5007 = vrot.lane.b32.xlu0 %v1393, 16
      %v5008 = vpop.permute.xlu0 %5007
      %v5010 = vsel %vm1400, %v5006, 0
      %v5013 = vsel %vm1400, %v5008, 0
      %5015 = vmatprep.subr.bf16.mxu0 0
      %5016 = vmatpush1.bf16.xpose.msra.mxu0 %v5013
      %5017 = vmatprep.subr.bf16.mxu0 0
      %5018 = vmatpush1.bf16.xpose.msra.mxu0 0
      %5019 = vmatprep.subr.bf16.mxu0 0
      %5020 = vmatpush1.bf16.xpose.msra.mxu0 0
      %5021 = vmatprep.subr.bf16.mxu0 0
      %5022 = vmatpush1.bf16.xpose.msra.mxu0 0
      %5023 = vmatprep.subr.bf16.mxu0 0
      %5024 = vmatpush1.bf16.xpose.msra.mxu0 0
      %5025 = vmatprep.subr.bf16.mxu0 0
      %5026 = vmatpush1.bf16.xpose.msra.mxu0 0
      %5027 = vmatprep.subr.bf16.mxu0 0
      %5028 = vmatpush1.bf16.xpose.msra.mxu0 0
      %5029 = vmatprep.subr.bf16.mxu0 0
      %5030 = vmatpush1.bf16.xpose.msra.mxu0 0
      %5031 = vmatprep.subr.bf16.mxu0 0
      %5032 = vmatpush1.bf16.xpose.msra.mxu0 0
      %5033 = vmatprep.subr.bf16.mxu0 0
      %5034 = vmatpush1.bf16.xpose.msra.mxu0 0
      %5035 = vmatprep.subr.bf16.mxu0 0
      %5036 = vmatpush1.bf16.xpose.msra.mxu0 0
      %5037 = vmatprep.subr.bf16.mxu0 0
      %5038 = vmatpush1.bf16.xpose.msra.mxu0 0
      %5039 = vmatprep.subr.bf16.mxu0 0
      %5040 = vmatpush1.bf16.xpose.msra.mxu0 0
      %5041 = vmatprep.subr.bf16.mxu0 0
      %5042 = vmatpush1.bf16.xpose.msra.mxu0 0
      %5043 = vmatprep.subr.bf16.mxu0 0
      %5044 = vmatpush1.bf16.xpose.msra.mxu0 0
      %5045 = vmatprep.subr.bf16.mxu0 0
      %5046 = vmatpush1.bf16.xpose.msra.mxu0 0
      %5047 = vmatprep.mubr.bf16.mxu0 0
      %5048 = vmatmul.mubr.bf16.gmra.mrb[0].mxu0 %v5010
      %v5049 = vpop.f32.mrb[0].mxu0
      %v5050 = vadd.f32 0.0, %v5049
      %v5051 = vpop.f32.mrb[0].mxu0
      %v5052 = vpop.f32.mrb[0].mxu0
      %v5053 = vadd.f32 0.0, %v5052
      %v5054 = vpop.f32.mrb[0].mxu0
      %5055 = vdwg.mxu0
      %5056 = vrot.lane.b32.xlu0 %v1395, 80
      %v5057 = vpop.permute.xlu0 %5056
      %5058 = vrot.lane.b32.xlu0 %v1395, 16
      %v5059 = vpop.permute.xlu0 %5058
      %v5061 = vsel %vm1400, %v5057, 0
      %v5064 = vsel %vm1400, %v5059, 0
      %5066 = vmatprep.subr.bf16.mxu0 0
      %5067 = vmatpush1.bf16.xpose.msra.mxu0 %v5064
      %5068 = vmatprep.subr.bf16.mxu0 0
      %5069 = vmatpush1.bf16.xpose.msra.mxu0 0
      %5070 = vmatprep.subr.bf16.mxu0 0
      %5071 = vmatpush1.bf16.xpose.msra.mxu0 0
      %5072 = vmatprep.subr.bf16.mxu0 0
      %5073 = vmatpush1.bf16.xpose.msra.mxu0 0
      %5074 = vmatprep.subr.bf16.mxu0 0
      %5075 = vmatpush1.bf16.xpose.msra.mxu0 0
      %5076 = vmatprep.subr.bf16.mxu0 0
      %5077 = vmatpush1.bf16.xpose.msra.mxu0 0
      %5078 = vmatprep.subr.bf16.mxu0 0
      %5079 = vmatpush1.bf16.xpose.msra.mxu0 0
      %5080 = vmatprep.subr.bf16.mxu0 0
      %5081 = vmatpush1.bf16.xpose.msra.mxu0 0
      %5082 = vmatprep.subr.bf16.mxu0 0
      %5083 = vmatpush1.bf16.xpose.msra.mxu0 0
      %5084 = vmatprep.subr.bf16.mxu0 0
      %5085 = vmatpush1.bf16.xpose.msra.mxu0 0
      %5086 = vmatprep.subr.bf16.mxu0 0
      %5087 = vmatpush1.bf16.xpose.msra.mxu0 0
      %5088 = vmatprep.subr.bf16.mxu0 0
      %5089 = vmatpush1.bf16.xpose.msra.mxu0 0
      %5090 = vmatprep.subr.bf16.mxu0 0
      %5091 = vmatpush1.bf16.xpose.msra.mxu0 0
      %5092 = vmatprep.subr.bf16.mxu0 0
      %5093 = vmatpush1.bf16.xpose.msra.mxu0 0
      %5094 = vmatprep.subr.bf16.mxu0 0
      %5095 = vmatpush1.bf16.xpose.msra.mxu0 0
      %5096 = vmatprep.subr.bf16.mxu0 0
      %5097 = vmatpush1.bf16.xpose.msra.mxu0 0
      %5098 = vmatprep.mubr.bf16.mxu0 0
      %5099 = vmatmul.mubr.bf16.gmra.mrb[0].mxu0 %v5061
      %v5100 = vpop.f32.mrb[0].mxu0
      %v5101 = vadd.f32 0.0, %v5100
      %v5102 = vpop.f32.mrb[0].mxu0
      %v5103 = vpop.f32.mrb[0].mxu0
      %v5104 = vadd.f32 0.0, %v5103
      %v5105 = vpop.f32.mrb[0].mxu0
      %5106 = vdwg.mxu0
      %v5107 = vsel %vm1400, %v4744, -inf
      %5108 = vmax.xlane.f32.xlu0 %v5107
      %v5109 = vpop.xlane.xlu0 %5108
      %v5110 = vsel %vm1400, %v4747, -inf
      %5111 = vmax.xlane.f32.xlu0 %v5110
      %v5112 = vpop.xlane.xlu0 %5111
      %v5113 = vsel %vm1400, %v4795, -inf
      %5114 = vmax.xlane.f32.xlu0 %v5113
      %v5115 = vpop.xlane.xlu0 %5114
      %v5116 = vsel %vm1400, %v4798, -inf
      %5117 = vmax.xlane.f32.xlu0 %v5116
      %v5118 = vpop.xlane.xlu0 %5117
      %v5119 = vsel %vm1400, %v4846, -inf
      %5120 = vmax.xlane.f32.xlu0 %v5119
      %v5121 = vpop.xlane.xlu0 %5120
      %v5122 = vsel %vm1400, %v4849, -inf
      %5123 = vmax.xlane.f32.xlu0 %v5122
      %v5124 = vpop.xlane.xlu0 %5123
      %v5125 = vsel %vm1400, %v4897, -inf
      %5126 = vmax.xlane.f32.xlu0 %v5125
      %v5127 = vpop.xlane.xlu0 %5126
      %v5128 = vsel %vm1400, %v4900, -inf
      %5129 = vmax.xlane.f32.xlu0 %v5128
      %v5130 = vpop.xlane.xlu0 %5129
      %v5131 = vsel %vm1400, %v4948, -inf
      %5132 = vmax.xlane.f32.xlu0 %v5131
      %v5133 = vpop.xlane.xlu0 %5132
      %v5134 = vsel %vm1400, %v4951, -inf
      %5135 = vmax.xlane.f32.xlu0 %v5134
      %v5136 = vpop.xlane.xlu0 %5135
      %v5137 = vsel %vm1400, %v4999, -inf
      %5138 = vmax.xlane.f32.xlu0 %v5137
      %v5139 = vpop.xlane.xlu0 %5138
      %v5140 = vsel %vm1400, %v5002, -inf
      %5141 = vmax.xlane.f32.xlu0 %v5140
      %v5142 = vpop.xlane.xlu0 %5141
      %v5143 = vsel %vm1400, %v5050, -inf
      %5144 = vmax.xlane.f32.xlu0 %v5143
      %v5145 = vpop.xlane.xlu0 %5144
      %v5146 = vsel %vm1400, %v5053, -inf
      %5147 = vmax.xlane.f32.xlu0 %v5146
      %v5148 = vpop.xlane.xlu0 %5147
      %v5149 = vsel %vm1400, %v5101, -inf
      %5150 = vmax.xlane.f32.xlu0 %v5149
      %v5151 = vpop.xlane.xlu0 %5150
      %v5152 = vsel %vm1400, %v5104, -inf
      %5153 = vmax.xlane.f32.xlu0 %v5152
      %v5154 = vpop.xlane.xlu0 %5153
      %v5155 = vsub.f32 %v4744, %v5109
      %v5156 = vsub.f32 %v4747, %v5112
      %v5157 = vsub.f32 %v4795, %v5115
      %v5158 = vsub.f32 %v4798, %v5118
      %v5159 = vsub.f32 %v4846, %v5121
      %v5160 = vsub.f32 %v4849, %v5124
      %v5161 = vsub.f32 %v4897, %v5127
      %v5162 = vsub.f32 %v4900, %v5130
      %v5163 = vsub.f32 %v4948, %v5133
      %v5164 = vsub.f32 %v4951, %v5136
      %v5165 = vsub.f32 %v4999, %v5139
      %v5166 = vsub.f32 %v5002, %v5142
      %v5167 = vsub.f32 %v5050, %v5145
      %v5168 = vsub.f32 %v5053, %v5148
      %v5169 = vsub.f32 %v5101, %v5151
      %v5170 = vsub.f32 %v5104, %v5154
      %v5171 = vmul.f32 %v5155, 1.442695
      %v5172 = vpow.pop %v5171
      %v5173 = vmul.f32 %v5156, 1.442695
      %v5174 = vpow.pop %v5173
      %v5175 = vmul.f32 %v5157, 1.442695
      %v5176 = vpow.pop %v5175
      %v5177 = vmul.f32 %v5158, 1.442695
      %v5178 = vpow.pop %v5177
      %v5179 = vmul.f32 %v5159, 1.442695
      %v5180 = vpow.pop %v5179
      %v5181 = vmul.f32 %v5160, 1.442695
      %v5182 = vpow.pop %v5181
      %v5183 = vmul.f32 %v5161, 1.442695
      %v5184 = vpow.pop %v5183
      %v5185 = vmul.f32 %v5162, 1.442695
      %v5186 = vpow.pop %v5185
      %v5187 = vmul.f32 %v5163, 1.442695
      %v5188 = vpow.pop %v5187
      %v5189 = vmul.f32 %v5164, 1.442695
      %v5190 = vpow.pop %v5189
      %v5191 = vmul.f32 %v5165, 1.442695
      %v5192 = vpow.pop %v5191
      %v5193 = vmul.f32 %v5166, 1.442695
      %v5194 = vpow.pop %v5193
      %v5195 = vmul.f32 %v5167, 1.442695
      %v5196 = vpow.pop %v5195
      %v5197 = vmul.f32 %v5168, 1.442695
      %v5198 = vpow.pop %v5197
      %v5199 = vmul.f32 %v5169, 1.442695
      %v5200 = vpow.pop %v5199
      %v5201 = vmul.f32 %v5170, 1.442695
      %v5202 = vpow.pop %v5201
      %v5203 = vsel %vm1400, %v5172, 0.0
      %5204 = vadd.xlane.f32.xlu0 %v5203
      %v5205 = vpop.xlane.xlu0 %5204
      %v5206 = vsel %vm1400, %v5174, 0.0
      %5207 = vadd.xlane.f32.xlu0 %v5206
      %v5208 = vpop.xlane.xlu0 %5207
      %v5209 = vsel %vm1400, %v5176, 0.0
      %5210 = vadd.xlane.f32.xlu0 %v5209
      %v5211 = vpop.xlane.xlu0 %5210
      %v5212 = vsel %vm1400, %v5178, 0.0
      %5213 = vadd.xlane.f32.xlu0 %v5212
      %v5214 = vpop.xlane.xlu0 %5213
      %v5215 = vsel %vm1400, %v5180, 0.0
      %5216 = vadd.xlane.f32.xlu0 %v5215
      %v5217 = vpop.xlane.xlu0 %5216
      %v5218 = vsel %vm1400, %v5182, 0.0
      %5219 = vadd.xlane.f32.xlu0 %v5218
      %v5220 = vpop.xlane.xlu0 %5219
      %v5221 = vsel %vm1400, %v5184, 0.0
      %5222 = vadd.xlane.f32.xlu0 %v5221
      %v5223 = vpop.xlane.xlu0 %5222
      %v5224 = vsel %vm1400, %v5186, 0.0
      %5225 = vadd.xlane.f32.xlu0 %v5224
      %v5226 = vpop.xlane.xlu0 %5225
      %v5227 = vsel %vm1400, %v5188, 0.0
      %5228 = vadd.xlane.f32.xlu0 %v5227
      %v5229 = vpop.xlane.xlu0 %5228
      %v5230 = vsel %vm1400, %v5190, 0.0
      %5231 = vadd.xlane.f32.xlu0 %v5230
      %v5232 = vpop.xlane.xlu0 %5231
      %v5233 = vsel %vm1400, %v5192, 0.0
      %5234 = vadd.xlane.f32.xlu0 %v5233
      %v5235 = vpop.xlane.xlu0 %5234
      %v5236 = vsel %vm1400, %v5194, 0.0
      %5237 = vadd.xlane.f32.xlu0 %v5236
      %v5238 = vpop.xlane.xlu0 %5237
      %v5239 = vsel %vm1400, %v5196, 0.0
      %5240 = vadd.xlane.f32.xlu0 %v5239
      %v5241 = vpop.xlane.xlu0 %5240
      %v5242 = vsel %vm1400, %v5198, 0.0
      %5243 = vadd.xlane.f32.xlu0 %v5242
      %v5244 = vpop.xlane.xlu0 %5243
      %v5245 = vsel %vm1400, %v5200, 0.0
      %5246 = vadd.xlane.f32.xlu0 %v5245
      %v5247 = vpop.xlane.xlu0 %5246
      %v5248 = vsel %vm1400, %v5202, 0.0
      %5249 = vadd.xlane.f32.xlu0 %v5248
      %v5250 = vpop.xlane.xlu0 %5249
      %v5251 = vrcp.pop %v5205
      %v5252 = vrcp.pop %v5208
      %v5253 = vrcp.pop %v5211
      %v5254 = vrcp.pop %v5214
      %v5255 = vrcp.pop %v5217
      %v5256 = vrcp.pop %v5220
      %v5257 = vrcp.pop %v5223
      %v5258 = vrcp.pop %v5226
      %v5259 = vrcp.pop %v5229
      %v5260 = vrcp.pop %v5232
      %v5261 = vrcp.pop %v5235
      %v5262 = vrcp.pop %v5238
      %v5263 = vrcp.pop %v5241
      %v5264 = vrcp.pop %v5244
      %v5265 = vrcp.pop %v5247
      %v5266 = vrcp.pop %v5250
      %v5267 = vmul.f32 %v5172, %v5251
      %v5268 = vmul.f32 %v5174, %v5252
      %v5269 = vmul.f32 %v5176, %v5253
      %v5270 = vmul.f32 %v5178, %v5254
      %v5271 = vmul.f32 %v5180, %v5255
      %v5272 = vmul.f32 %v5182, %v5256
      %v5273 = vmul.f32 %v5184, %v5257
      %v5274 = vmul.f32 %v5186, %v5258
      %v5275 = vmul.f32 %v5188, %v5259
      %v5276 = vmul.f32 %v5190, %v5260
      %v5277 = vmul.f32 %v5192, %v5261
      %v5278 = vmul.f32 %v5194, %v5262
      %v5279 = vmul.f32 %v5196, %v5263
      %v5280 = vmul.f32 %v5198, %v5264
      %v5281 = vmul.f32 %v5200, %v5265
      %v5282 = vmul.f32 %v5202, %v5266
      %v5283 = vpack.c.bf16 %v5268, %v5267
      %v5284 = vpack.c.bf16 %v5270, %v5269
      %v5285 = vpack.c.bf16 %v5272, %v5271
      %v5286 = vpack.c.bf16 %v5274, %v5273
      %v5287 = vpack.c.bf16 %v5276, %v5275
      %v5288 = vpack.c.bf16 %v5278, %v5277
      %v5289 = vpack.c.bf16 %v5280, %v5279
      %v5290 = vpack.c.bf16 %v5282, %v5281
      %5291 = vrot.lane.b32.xlu0 %v1382, 80
      %v5292 = vpop.permute.xlu0 %5291
      %v5295 = vsel %vm1400, %v5283, 0
      %5297 = vmatprep.subr.bf16.mxu0 0
      %5298 = vmatpush1.bf16.msra.mxu0 %v5292
      %5299 = vmatprep.subr.bf16.mxu0 0
      %5300 = vmatpush1.bf16.msra.mxu0 0
      %5301 = vmatprep.subr.bf16.mxu0 0
      %5302 = vmatpush1.bf16.msra.mxu0 0
      %5303 = vmatprep.subr.bf16.mxu0 0
      %5304 = vmatpush1.bf16.msra.mxu0 0
      %5305 = vmatprep.subr.bf16.mxu0 0
      %5306 = vmatpush1.bf16.msra.mxu0 0
      %5307 = vmatprep.subr.bf16.mxu0 0
      %5308 = vmatpush1.bf16.msra.mxu0 0
      %5309 = vmatprep.subr.bf16.mxu0 0
      %5310 = vmatpush1.bf16.msra.mxu0 0
      %5311 = vmatprep.subr.bf16.mxu0 0
      %5312 = vmatpush1.bf16.msra.mxu0 0
      %5313 = vmatprep.subr.bf16.mxu0 0
      %5314 = vmatpush1.bf16.msra.mxu0 0
      %5315 = vmatprep.subr.bf16.mxu0 0
      %5316 = vmatpush1.bf16.msra.mxu0 0
      %5317 = vmatprep.subr.bf16.mxu0 0
      %5318 = vmatpush1.bf16.msra.mxu0 0
      %5319 = vmatprep.subr.bf16.mxu0 0
      %5320 = vmatpush1.bf16.msra.mxu0 0
      %5321 = vmatprep.subr.bf16.mxu0 0
      %5322 = vmatpush1.bf16.msra.mxu0 0
      %5323 = vmatprep.subr.bf16.mxu0 0
      %5324 = vmatpush1.bf16.msra.mxu0 0
      %5325 = vmatprep.subr.bf16.mxu0 0
      %5326 = vmatpush1.bf16.msra.mxu0 0
      %5327 = vmatprep.subr.bf16.mxu0 0
      %5328 = vmatpush1.bf16.msra.mxu0 0
      %5329 = vmatprep.mubr.bf16.mxu0 0
      %5330 = vmatmul.mubr.bf16.gmra.mrb[0].mxu0 %v5295
      %v5331 = vpop.f32.mrb[0].mxu0
      %v5332 = vadd.f32 0.0, %v5331
      %v5333 = vpop.f32.mrb[0].mxu0
      %v5334 = vpop.f32.mrb[0].mxu0
      %v5335 = vadd.f32 0.0, %v5334
      %v5336 = vpop.f32.mrb[0].mxu0
      %5337 = vdwg.mxu0
      %5338 = vrot.lane.b32.xlu0 %v1384, 80
      %v5339 = vpop.permute.xlu0 %5338
      %v5342 = vsel %vm1400, %v5284, 0
      %5344 = vmatprep.subr.bf16.mxu0 0
      %5345 = vmatpush1.bf16.msra.mxu0 %v5339
      %5346 = vmatprep.subr.bf16.mxu0 0
      %5347 = vmatpush1.bf16.msra.mxu0 0
      %5348 = vmatprep.subr.bf16.mxu0 0
      %5349 = vmatpush1.bf16.msra.mxu0 0
      %5350 = vmatprep.subr.bf16.mxu0 0
      %5351 = vmatpush1.bf16.msra.mxu0 0
      %5352 = vmatprep.subr.bf16.mxu0 0
      %5353 = vmatpush1.bf16.msra.mxu0 0
      %5354 = vmatprep.subr.bf16.mxu0 0
      %5355 = vmatpush1.bf16.msra.mxu0 0
      %5356 = vmatprep.subr.bf16.mxu0 0
      %5357 = vmatpush1.bf16.msra.mxu0 0
      %5358 = vmatprep.subr.bf16.mxu0 0
      %5359 = vmatpush1.bf16.msra.mxu0 0
      %5360 = vmatprep.subr.bf16.mxu0 0
      %5361 = vmatpush1.bf16.msra.mxu0 0
      %5362 = vmatprep.subr.bf16.mxu0 0
      %5363 = vmatpush1.bf16.msra.mxu0 0
      %5364 = vmatprep.subr.bf16.mxu0 0
      %5365 = vmatpush1.bf16.msra.mxu0 0
      %5366 = vmatprep.subr.bf16.mxu0 0
      %5367 = vmatpush1.bf16.msra.mxu0 0
      %5368 = vmatprep.subr.bf16.mxu0 0
      %5369 = vmatpush1.bf16.msra.mxu0 0
      %5370 = vmatprep.subr.bf16.mxu0 0
      %5371 = vmatpush1.bf16.msra.mxu0 0
      %5372 = vmatprep.subr.bf16.mxu0 0
      %5373 = vmatpush1.bf16.msra.mxu0 0
      %5374 = vmatprep.subr.bf16.mxu0 0
      %5375 = vmatpush1.bf16.msra.mxu0 0
      %5376 = vmatprep.mubr.bf16.mxu0 0
      %5377 = vmatmul.mubr.bf16.gmra.mrb[0].mxu0 %v5342
      %v5378 = vpop.f32.mrb[0].mxu0
      %v5379 = vadd.f32 0.0, %v5378
      %v5380 = vpop.f32.mrb[0].mxu0
      %v5381 = vpop.f32.mrb[0].mxu0
      %v5382 = vadd.f32 0.0, %v5381
      %v5383 = vpop.f32.mrb[0].mxu0
      %5384 = vdwg.mxu0
      %5385 = vrot.lane.b32.xlu0 %v1386, 80
      %v5386 = vpop.permute.xlu0 %5385
      %v5389 = vsel %vm1400, %v5285, 0
      %5391 = vmatprep.subr.bf16.mxu0 0
      %5392 = vmatpush1.bf16.msra.mxu0 %v5386
      %5393 = vmatprep.subr.bf16.mxu0 0
      %5394 = vmatpush1.bf16.msra.mxu0 0
      %5395 = vmatprep.subr.bf16.mxu0 0
      %5396 = vmatpush1.bf16.msra.mxu0 0
      %5397 = vmatprep.subr.bf16.mxu0 0
      %5398 = vmatpush1.bf16.msra.mxu0 0
      %5399 = vmatprep.subr.bf16.mxu0 0
      %5400 = vmatpush1.bf16.msra.mxu0 0
      %5401 = vmatprep.subr.bf16.mxu0 0
      %5402 = vmatpush1.bf16.msra.mxu0 0
      %5403 = vmatprep.subr.bf16.mxu0 0
      %5404 = vmatpush1.bf16.msra.mxu0 0
      %5405 = vmatprep.subr.bf16.mxu0 0
      %5406 = vmatpush1.bf16.msra.mxu0 0
      %5407 = vmatprep.subr.bf16.mxu0 0
      %5408 = vmatpush1.bf16.msra.mxu0 0
      %5409 = vmatprep.subr.bf16.mxu0 0
      %5410 = vmatpush1.bf16.msra.mxu0 0
      %5411 = vmatprep.subr.bf16.mxu0 0
      %5412 = vmatpush1.bf16.msra.mxu0 0
      %5413 = vmatprep.subr.bf16.mxu0 0
      %5414 = vmatpush1.bf16.msra.mxu0 0
      %5415 = vmatprep.subr.bf16.mxu0 0
      %5416 = vmatpush1.bf16.msra.mxu0 0
      %5417 = vmatprep.subr.bf16.mxu0 0
      %5418 = vmatpush1.bf16.msra.mxu0 0
      %5419 = vmatprep.subr.bf16.mxu0 0
      %5420 = vmatpush1.bf16.msra.mxu0 0
      %5421 = vmatprep.subr.bf16.mxu0 0
      %5422 = vmatpush1.bf16.msra.mxu0 0
      %5423 = vmatprep.mubr.bf16.mxu0 0
      %5424 = vmatmul.mubr.bf16.gmra.mrb[0].mxu0 %v5389
      %v5425 = vpop.f32.mrb[0].mxu0
      %v5426 = vadd.f32 0.0, %v5425
      %v5427 = vpop.f32.mrb[0].mxu0
      %v5428 = vpop.f32.mrb[0].mxu0
      %v5429 = vadd.f32 0.0, %v5428
      %v5430 = vpop.f32.mrb[0].mxu0
      %5431 = vdwg.mxu0
      %5432 = vrot.lane.b32.xlu0 %v1388, 80
      %v5433 = vpop.permute.xlu0 %5432
      %v5436 = vsel %vm1400, %v5286, 0
      %5438 = vmatprep.subr.bf16.mxu0 0
      %5439 = vmatpush1.bf16.msra.mxu0 %v5433
      %5440 = vmatprep.subr.bf16.mxu0 0
      %5441 = vmatpush1.bf16.msra.mxu0 0
      %5442 = vmatprep.subr.bf16.mxu0 0
      %5443 = vmatpush1.bf16.msra.mxu0 0
      %5444 = vmatprep.subr.bf16.mxu0 0
      %5445 = vmatpush1.bf16.msra.mxu0 0
      %5446 = vmatprep.subr.bf16.mxu0 0
      %5447 = vmatpush1.bf16.msra.mxu0 0
      %5448 = vmatprep.subr.bf16.mxu0 0
      %5449 = vmatpush1.bf16.msra.mxu0 0
      %5450 = vmatprep.subr.bf16.mxu0 0
      %5451 = vmatpush1.bf16.msra.mxu0 0
      %5452 = vmatprep.subr.bf16.mxu0 0
      %5453 = vmatpush1.bf16.msra.mxu0 0
      %5454 = vmatprep.subr.bf16.mxu0 0
      %5455 = vmatpush1.bf16.msra.mxu0 0
      %5456 = vmatprep.subr.bf16.mxu0 0
      %5457 = vmatpush1.bf16.msra.mxu0 0
      %5458 = vmatprep.subr.bf16.mxu0 0
      %5459 = vmatpush1.bf16.msra.mxu0 0
      %5460 = vmatprep.subr.bf16.mxu0 0
      %5461 = vmatpush1.bf16.msra.mxu0 0
      %5462 = vmatprep.subr.bf16.mxu0 0
      %5463 = vmatpush1.bf16.msra.mxu0 0
      %5464 = vmatprep.subr.bf16.mxu0 0
      %5465 = vmatpush1.bf16.msra.mxu0 0
      %5466 = vmatprep.subr.bf16.mxu0 0
      %5467 = vmatpush1.bf16.msra.mxu0 0
      %5468 = vmatprep.subr.bf16.mxu0 0
      %5469 = vmatpush1.bf16.msra.mxu0 0
      %5470 = vmatprep.mubr.bf16.mxu0 0
      %5471 = vmatmul.mubr.bf16.gmra.mrb[0].mxu0 %v5436
      %v5472 = vpop.f32.mrb[0].mxu0
      %v5473 = vadd.f32 0.0, %v5472
      %v5474 = vpop.f32.mrb[0].mxu0
      %v5475 = vpop.f32.mrb[0].mxu0
      %v5476 = vadd.f32 0.0, %v5475
      %v5477 = vpop.f32.mrb[0].mxu0
      %5478 = vdwg.mxu0
      %5479 = vrot.lane.b32.xlu0 %v1390, 80
      %v5480 = vpop.permute.xlu0 %5479
      %v5483 = vsel %vm1400, %v5287, 0
      %5485 = vmatprep.subr.bf16.mxu0 0
      %5486 = vmatpush1.bf16.msra.mxu0 %v5480
      %5487 = vmatprep.subr.bf16.mxu0 0
      %5488 = vmatpush1.bf16.msra.mxu0 0
      %5489 = vmatprep.subr.bf16.mxu0 0
      %5490 = vmatpush1.bf16.msra.mxu0 0
      %5491 = vmatprep.subr.bf16.mxu0 0
      %5492 = vmatpush1.bf16.msra.mxu0 0
      %5493 = vmatprep.subr.bf16.mxu0 0
      %5494 = vmatpush1.bf16.msra.mxu0 0
      %5495 = vmatprep.subr.bf16.mxu0 0
      %5496 = vmatpush1.bf16.msra.mxu0 0
      %5497 = vmatprep.subr.bf16.mxu0 0
      %5498 = vmatpush1.bf16.msra.mxu0 0
      %5499 = vmatprep.subr.bf16.mxu0 0
      %5500 = vmatpush1.bf16.msra.mxu0 0
      %5501 = vmatprep.subr.bf16.mxu0 0
      %5502 = vmatpush1.bf16.msra.mxu0 0
      %5503 = vmatprep.subr.bf16.mxu0 0
      %5504 = vmatpush1.bf16.msra.mxu0 0
      %5505 = vmatprep.subr.bf16.mxu0 0
      %5506 = vmatpush1.bf16.msra.mxu0 0
      %5507 = vmatprep.subr.bf16.mxu0 0
      %5508 = vmatpush1.bf16.msra.mxu0 0
      %5509 = vmatprep.subr.bf16.mxu0 0
      %5510 = vmatpush1.bf16.msra.mxu0 0
      %5511 = vmatprep.subr.bf16.mxu0 0
      %5512 = vmatpush1.bf16.msra.mxu0 0
      %5513 = vmatprep.subr.bf16.mxu0 0
      %5514 = vmatpush1.bf16.msra.mxu0 0
      %5515 = vmatprep.subr.bf16.mxu0 0
      %5516 = vmatpush1.bf16.msra.mxu0 0
      %5517 = vmatprep.mubr.bf16.mxu0 0
      %5518 = vmatmul.mubr.bf16.gmra.mrb[0].mxu0 %v5483
      %v5519 = vpop.f32.mrb[0].mxu0
      %v5520 = vadd.f32 0.0, %v5519
      %v5521 = vpop.f32.mrb[0].mxu0
      %v5522 = vpop.f32.mrb[0].mxu0
      %v5523 = vadd.f32 0.0, %v5522
      %v5524 = vpop.f32.mrb[0].mxu0
      %5525 = vdwg.mxu0
      %5526 = vrot.lane.b32.xlu0 %v1392, 80
      %v5527 = vpop.permute.xlu0 %5526
      %v5530 = vsel %vm1400, %v5288, 0
      %5532 = vmatprep.subr.bf16.mxu0 0
      %5533 = vmatpush1.bf16.msra.mxu0 %v5527
      %5534 = vmatprep.subr.bf16.mxu0 0
      %5535 = vmatpush1.bf16.msra.mxu0 0
      %5536 = vmatprep.subr.bf16.mxu0 0
      %5537 = vmatpush1.bf16.msra.mxu0 0
      %5538 = vmatprep.subr.bf16.mxu0 0
      %5539 = vmatpush1.bf16.msra.mxu0 0
      %5540 = vmatprep.subr.bf16.mxu0 0
      %5541 = vmatpush1.bf16.msra.mxu0 0
      %5542 = vmatprep.subr.bf16.mxu0 0
      %5543 = vmatpush1.bf16.msra.mxu0 0
      %5544 = vmatprep.subr.bf16.mxu0 0
      %5545 = vmatpush1.bf16.msra.mxu0 0
      %5546 = vmatprep.subr.bf16.mxu0 0
      %5547 = vmatpush1.bf16.msra.mxu0 0
      %5548 = vmatprep.subr.bf16.mxu0 0
      %5549 = vmatpush1.bf16.msra.mxu0 0
      %5550 = vmatprep.subr.bf16.mxu0 0
      %5551 = vmatpush1.bf16.msra.mxu0 0
      %5552 = vmatprep.subr.bf16.mxu0 0
      %5553 = vmatpush1.bf16.msra.mxu0 0
      %5554 = vmatprep.subr.bf16.mxu0 0
      %5555 = vmatpush1.bf16.msra.mxu0 0
      %5556 = vmatprep.subr.bf16.mxu0 0
      %5557 = vmatpush1.bf16.msra.mxu0 0
      %5558 = vmatprep.subr.bf16.mxu0 0
      %5559 = vmatpush1.bf16.msra.mxu0 0
      %5560 = vmatprep.subr.bf16.mxu0 0
      %5561 = vmatpush1.bf16.msra.mxu0 0
      %5562 = vmatprep.subr.bf16.mxu0 0
      %5563 = vmatpush1.bf16.msra.mxu0 0
      %5564 = vmatprep.mubr.bf16.mxu0 0
      %5565 = vmatmul.mubr.bf16.gmra.mrb[0].mxu0 %v5530
      %v5566 = vpop.f32.mrb[0].mxu0
      %v5567 = vadd.f32 0.0, %v5566
      %v5568 = vpop.f32.mrb[0].mxu0
      %v5569 = vpop.f32.mrb[0].mxu0
      %v5570 = vadd.f32 0.0, %v5569
      %v5571 = vpop.f32.mrb[0].mxu0
      %5572 = vdwg.mxu0
      %5573 = vrot.lane.b32.xlu0 %v1394, 80
      %v5574 = vpop.permute.xlu0 %5573
      %v5577 = vsel %vm1400, %v5289, 0
      %5579 = vmatprep.subr.bf16.mxu0 0
      %5580 = vmatpush1.bf16.msra.mxu0 %v5574
      %5581 = vmatprep.subr.bf16.mxu0 0
      %5582 = vmatpush1.bf16.msra.mxu0 0
      %5583 = vmatprep.subr.bf16.mxu0 0
      %5584 = vmatpush1.bf16.msra.mxu0 0
      %5585 = vmatprep.subr.bf16.mxu0 0
      %5586 = vmatpush1.bf16.msra.mxu0 0
      %5587 = vmatprep.subr.bf16.mxu0 0
      %5588 = vmatpush1.bf16.msra.mxu0 0
      %5589 = vmatprep.subr.bf16.mxu0 0
      %5590 = vmatpush1.bf16.msra.mxu0 0
      %5591 = vmatprep.subr.bf16.mxu0 0
      %5592 = vmatpush1.bf16.msra.mxu0 0
      %5593 = vmatprep.subr.bf16.mxu0 0
      %5594 = vmatpush1.bf16.msra.mxu0 0
      %5595 = vmatprep.subr.bf16.mxu0 0
      %5596 = vmatpush1.bf16.msra.mxu0 0
      %5597 = vmatprep.subr.bf16.mxu0 0
      %5598 = vmatpush1.bf16.msra.mxu0 0
      %5599 = vmatprep.subr.bf16.mxu0 0
      %5600 = vmatpush1.bf16.msra.mxu0 0
      %5601 = vmatprep.subr.bf16.mxu0 0
      %5602 = vmatpush1.bf16.msra.mxu0 0
      %5603 = vmatprep.subr.bf16.mxu0 0
      %5604 = vmatpush1.bf16.msra.mxu0 0
      %5605 = vmatprep.subr.bf16.mxu0 0
      %5606 = vmatpush1.bf16.msra.mxu0 0
      %5607 = vmatprep.subr.bf16.mxu0 0
      %5608 = vmatpush1.bf16.msra.mxu0 0
      %5609 = vmatprep.subr.bf16.mxu0 0
      %5610 = vmatpush1.bf16.msra.mxu0 0
      %5611 = vmatprep.mubr.bf16.mxu0 0
      %5612 = vmatmul.mubr.bf16.gmra.mrb[0].mxu0 %v5577
      %v5613 = vpop.f32.mrb[0].mxu0
      %v5614 = vadd.f32 0.0, %v5613
      %v5615 = vpop.f32.mrb[0].mxu0
      %v5616 = vpop.f32.mrb[0].mxu0
      %v5617 = vadd.f32 0.0, %v5616
      %v5618 = vpop.f32.mrb[0].mxu0
      %5619 = vdwg.mxu0
      %5620 = vrot.lane.b32.xlu0 %v1396, 80
      %v5621 = vpop.permute.xlu0 %5620
      %v5624 = vsel %vm1400, %v5290, 0
      %5626 = vmatprep.subr.bf16.mxu0 0
      %5627 = vmatpush1.bf16.msra.mxu0 %v5621
      %5628 = vmatprep.subr.bf16.mxu0 0
      %5629 = vmatpush1.bf16.msra.mxu0 0
      %5630 = vmatprep.subr.bf16.mxu0 0
      %5631 = vmatpush1.bf16.msra.mxu0 0
      %5632 = vmatprep.subr.bf16.mxu0 0
      %5633 = vmatpush1.bf16.msra.mxu0 0
      %5634 = vmatprep.subr.bf16.mxu0 0
      %5635 = vmatpush1.bf16.msra.mxu0 0
      %5636 = vmatprep.subr.bf16.mxu0 0
      %5637 = vmatpush1.bf16.msra.mxu0 0
      %5638 = vmatprep.subr.bf16.mxu0 0
      %5639 = vmatpush1.bf16.msra.mxu0 0
      %5640 = vmatprep.subr.bf16.mxu0 0
      %5641 = vmatpush1.bf16.msra.mxu0 0
      %5642 = vmatprep.subr.bf16.mxu0 0
      %5643 = vmatpush1.bf16.msra.mxu0 0
      %5644 = vmatprep.subr.bf16.mxu0 0
      %5645 = vmatpush1.bf16.msra.mxu0 0
      %5646 = vmatprep.subr.bf16.mxu0 0
      %5647 = vmatpush1.bf16.msra.mxu0 0
      %5648 = vmatprep.subr.bf16.mxu0 0
      %5649 = vmatpush1.bf16.msra.mxu0 0
      %5650 = vmatprep.subr.bf16.mxu0 0
      %5651 = vmatpush1.bf16.msra.mxu0 0
      %5652 = vmatprep.subr.bf16.mxu0 0
      %5653 = vmatpush1.bf16.msra.mxu0 0
      %5654 = vmatprep.subr.bf16.mxu0 0
      %5655 = vmatpush1.bf16.msra.mxu0 0
      %5656 = vmatprep.subr.bf16.mxu0 0
      %5657 = vmatpush1.bf16.msra.mxu0 0
      %5658 = vmatprep.mubr.bf16.mxu0 0
      %5659 = vmatmul.mubr.bf16.gmra.mrb[0].mxu0 %v5624
      %v5660 = vpop.f32.mrb[0].mxu0
      %v5661 = vadd.f32 0.0, %v5660
      %v5662 = vpop.f32.mrb[0].mxu0
      %v5663 = vpop.f32.mrb[0].mxu0
      %v5664 = vadd.f32 0.0, %v5663
      %v5665 = vpop.f32.mrb[0].mxu0
      %5666 = vdwg.mxu0
      %v5667 = vpack.c.bf16 %v5335, %v5332
      %v5668 = vpack.c.bf16 %v5382, %v5379
      %v5669 = vpack.c.bf16 %v5429, %v5426
      %v5670 = vpack.c.bf16 %v5476, %v5473
      %v5671 = vpack.c.bf16 %v5523, %v5520
      %v5672 = vpack.c.bf16 %v5570, %v5567
      %v5673 = vpack.c.bf16 %v5617, %v5614
      %v5674 = vpack.c.bf16 %v5664, %v5661
      %v5677 = vunpack.c.l.b16 %v841
      %v5678 = vunpack.c.l.b16 %v842
      %v5679 = vpack.c.b16 %v5678, %v5677
      %v5682 = vsel %vm1400, %v5667, 0
      %v5685 = vsel %vm1400, %v5668, 0
      %v5688 = vsel %vm1400, %v5669, 0
      %v5691 = vsel %vm1400, %v5670, 0
      %v5694 = vsel %vm1400, %v5671, 0
      %v5697 = vsel %vm1400, %v5672, 0
      %v5700 = vsel %vm1400, %v5673, 0
      %v5703 = vsel %vm1400, %v5674, 0
      %5705 = vmatprep.subr.bf16.mxu0 0
      %5706 = vmatpush1.bf16.msra.mxu0 %v5679
      %5707 = vmatprep.subr.bf16.mxu0 0
      %5708 = vmatpush1.bf16.msra.mxu0 0
      %5709 = vmatprep.subr.bf16.mxu0 0
      %5710 = vmatpush1.bf16.msra.mxu0 0
      %5711 = vmatprep.subr.bf16.mxu0 0
      %5712 = vmatpush1.bf16.msra.mxu0 0
      %5713 = vmatprep.subr.bf16.mxu0 0
      %5714 = vmatpush1.bf16.msra.mxu0 0
      %5715 = vmatprep.subr.bf16.mxu0 0
      %5716 = vmatpush1.bf16.msra.mxu0 0
      %5717 = vmatprep.subr.bf16.mxu0 0
      %5718 = vmatpush1.bf16.msra.mxu0 0
      %5719 = vmatprep.subr.bf16.mxu0 0
      %5720 = vmatpush1.bf16.msra.mxu0 0
      %5721 = vmatprep.subr.bf16.mxu0 0
      %5722 = vmatpush1.bf16.msra.mxu0 0
      %5723 = vmatprep.subr.bf16.mxu0 0
      %5724 = vmatpush1.bf16.msra.mxu0 0
      %5725 = vmatprep.subr.bf16.mxu0 0
      %5726 = vmatpush1.bf16.msra.mxu0 0
      %5727 = vmatprep.subr.bf16.mxu0 0
      %5728 = vmatpush1.bf16.msra.mxu0 0
      %5729 = vmatprep.subr.bf16.mxu0 0
      %5730 = vmatpush1.bf16.msra.mxu0 0
      %5731 = vmatprep.subr.bf16.mxu0 0
      %5732 = vmatpush1.bf16.msra.mxu0 0
      %5733 = vmatprep.subr.bf16.mxu0 0
      %5734 = vmatpush1.bf16.msra.mxu0 0
      %5735 = vmatprep.subr.bf16.mxu0 0
      %5736 = vmatpush1.bf16.msra.mxu0 0
      %5737 = vmatprep.mubr.bf16.mxu0 0
      %5738 = vmatmul.mubr.bf16.gmra.mrb[0].mxu0 %v5682
      %v5739 = vpop.f32.mrb[0].mxu0
      %v5740 = vadd.f32 0.0, %v5739
      %v5741 = vpop.f32.mrb[0].mxu0
      %v5742 = vpop.f32.mrb[0].mxu0
      %v5743 = vadd.f32 0.0, %v5742
      %v5744 = vpop.f32.mrb[0].mxu0
      %5745 = vmatprep.mubr.bf16.mxu0 0
      %5746 = vmatmul.mubr.bf16.gmra.mrb[0].mxu0 %v5685
      %v5747 = vpop.f32.mrb[0].mxu0
      %v5748 = vadd.f32 0.0, %v5747
      %v5749 = vpop.f32.mrb[0].mxu0
      %v5750 = vpop.f32.mrb[0].mxu0
      %v5751 = vadd.f32 0.0, %v5750
      %v5752 = vpop.f32.mrb[0].mxu0
      %5753 = vmatprep.mubr.bf16.mxu0 0
      %5754 = vmatmul.mubr.bf16.gmra.mrb[0].mxu0 %v5688
      %v5755 = vpop.f32.mrb[0].mxu0
      %v5756 = vadd.f32 0.0, %v5755
      %v5757 = vpop.f32.mrb[0].mxu0
      %v5758 = vpop.f32.mrb[0].mxu0
      %v5759 = vadd.f32 0.0, %v5758
      %v5760 = vpop.f32.mrb[0].mxu0
      %5761 = vmatprep.mubr.bf16.mxu0 0
      %5762 = vmatmul.mubr.bf16.gmra.mrb[0].mxu0 %v5691
      %v5763 = vpop.f32.mrb[0].mxu0
      %v5764 = vadd.f32 0.0, %v5763
      %v5765 = vpop.f32.mrb[0].mxu0
      %v5766 = vpop.f32.mrb[0].mxu0
      %v5767 = vadd.f32 0.0, %v5766
      %v5768 = vpop.f32.mrb[0].mxu0
      %5769 = vmatprep.mubr.bf16.mxu0 0
      %5770 = vmatmul.mubr.bf16.gmra.mrb[0].mxu0 %v5694
      %v5771 = vpop.f32.mrb[0].mxu0
      %v5772 = vadd.f32 0.0, %v5771
      %v5773 = vpop.f32.mrb[0].mxu0
      %v5774 = vpop.f32.mrb[0].mxu0
      %v5775 = vadd.f32 0.0, %v5774
      %v5776 = vpop.f32.mrb[0].mxu0
      %5777 = vmatprep.mubr.bf16.mxu0 0
      %5778 = vmatmul.mubr.bf16.gmra.mrb[0].mxu0 %v5697
      %v5779 = vpop.f32.mrb[0].mxu0
      %v5780 = vadd.f32 0.0, %v5779
      %v5781 = vpop.f32.mrb[0].mxu0
      %v5782 = vpop.f32.mrb[0].mxu0
      %v5783 = vadd.f32 0.0, %v5782
      %v5784 = vpop.f32.mrb[0].mxu0
      %5785 = vmatprep.mubr.bf16.mxu0 0
      %5786 = vmatmul.mubr.bf16.gmra.mrb[0].mxu0 %v5700
      %v5787 = vpop.f32.mrb[0].mxu0
      %v5788 = vadd.f32 0.0, %v5787
      %v5789 = vpop.f32.mrb[0].mxu0
      %v5790 = vpop.f32.mrb[0].mxu0
      %v5791 = vadd.f32 0.0, %v5790
      %v5792 = vpop.f32.mrb[0].mxu0
      %5793 = vmatprep.mubr.bf16.mxu0 0
      %5794 = vmatmul.mubr.bf16.gmra.mrb[0].mxu0 %v5703
      %v5795 = vpop.f32.mrb[0].mxu0
      %v5796 = vadd.f32 0.0, %v5795
      %v5797 = vpop.f32.mrb[0].mxu0
      %v5798 = vpop.f32.mrb[0].mxu0
      %v5799 = vadd.f32 0.0, %v5798
      %v5800 = vpop.f32.mrb[0].mxu0
      %5801 = vdwg.mxu0
      %v5802 = vadd.f32 %v4683, %v5740
      %v5803 = vadd.f32 %v4684, %v5743
      %v5804 = vadd.f32 %v4685, %v5748
      %v5805 = vadd.f32 %v4686, %v5751
      %v5806 = vadd.f32 %v4687, %v5756
      %v5807 = vadd.f32 %v4688, %v5759
      %v5808 = vadd.f32 %v4689, %v5764
      %v5809 = vadd.f32 %v4690, %v5767
      %v5810 = vadd.f32 %v4691, %v5772
      %v5811 = vadd.f32 %v4692, %v5775
      %v5812 = vadd.f32 %v4693, %v5780
      %v5813 = vadd.f32 %v4694, %v5783
      %v5814 = vadd.f32 %v4695, %v5788
      %v5815 = vadd.f32 %v4696, %v5791
      %v5816 = vadd.f32 %v4697, %v5796
      %v5817 = vadd.f32 %v4698, %v5799
      %v5819 = vlaneseq
      %v5820 = vshrl.u32 %v5819, 7
      %v5821 = vsub.s32 0, %v5820
      %v5822 = vrot.slane %v844, %v5821
      %v5824 = vadd.f32 %v5802, %v5822
      %v5825 = vadd.f32 %v5803, %v5822
      %v5826 = vadd.f32 %v5804, %v5822
      %v5827 = vadd.f32 %v5805, %v5822
      %v5828 = vadd.f32 %v5806, %v5822
      %v5829 = vadd.f32 %v5807, %v5822
      %v5830 = vadd.f32 %v5808, %v5822
      %v5831 = vadd.f32 %v5809, %v5822
      %v5832 = vadd.f32 %v5810, %v5822
      %v5833 = vadd.f32 %v5811, %v5822
      %v5834 = vadd.f32 %v5812, %v5822
      %v5835 = vadd.f32 %v5813, %v5822
      %v5836 = vadd.f32 %v5814, %v5822
      %v5837 = vadd.f32 %v5815, %v5822
      %v5838 = vadd.f32 %v5816, %v5822
      %v5839 = vadd.f32 %v5817, %v5822
      %v5840 = vadd.f32 %v802, %v5824
      %v5841 = vadd.f32 %v803, %v5825
      %v5842 = vadd.f32 %v804, %v5826
      %v5843 = vadd.f32 %v805, %v5827
      %v5844 = vadd.f32 %v806, %v5828
      %v5845 = vadd.f32 %v807, %v5829
      %v5846 = vadd.f32 %v808, %v5830
      %v5847 = vadd.f32 %v809, %v5831
      %v5848 = vadd.f32 %v810, %v5832
      %v5849 = vadd.f32 %v811, %v5833
      %v5850 = vadd.f32 %v812, %v5834
      %v5851 = vadd.f32 %v813, %v5835
      %v5852 = vadd.f32 %v814, %v5836
      %v5853 = vadd.f32 %v815, %v5837
      %v5854 = vadd.f32 %v816, %v5838
      %v5855 = vadd.f32 %v817, %v5839
      %v5856 = vsel %vm1243, %v5840, 0.0
      %5857 = vadd.xlane.f32.xlu0 %v5856
      %v5858 = vpop.xlane.xlu0 %5857
      %v5859 = vsel %vm1243, %v5841, 0.0
      %5860 = vadd.xlane.f32.xlu0 %v5859
      %v5861 = vpop.xlane.xlu0 %5860
      %v5862 = vsel %vm1243, %v5842, 0.0
      %5863 = vadd.xlane.f32.xlu0 %v5862
      %v5864 = vpop.xlane.xlu0 %5863
      %v5865 = vsel %vm1243, %v5843, 0.0
      %5866 = vadd.xlane.f32.xlu0 %v5865
      %v5867 = vpop.xlane.xlu0 %5866
      %v5868 = vsel %vm1243, %v5844, 0.0
      %5869 = vadd.xlane.f32.xlu0 %v5868
      %v5870 = vpop.xlane.xlu0 %5869
      %v5871 = vsel %vm1243, %v5845, 0.0
      %5872 = vadd.xlane.f32.xlu0 %v5871
      %v5873 = vpop.xlane.xlu0 %5872
      %v5874 = vsel %vm1243, %v5846, 0.0
      %5875 = vadd.xlane.f32.xlu0 %v5874
      %v5876 = vpop.xlane.xlu0 %5875
      %v5877 = vsel %vm1243, %v5847, 0.0
      %5878 = vadd.xlane.f32.xlu0 %v5877
      %v5879 = vpop.xlane.xlu0 %5878
      %v5880 = vsel %vm1243, %v5848, 0.0
      %5881 = vadd.xlane.f32.xlu0 %v5880
      %v5882 = vpop.xlane.xlu0 %5881
      %v5883 = vsel %vm1243, %v5849, 0.0
      %5884 = vadd.xlane.f32.xlu0 %v5883
      %v5885 = vpop.xlane.xlu0 %5884
      %v5886 = vsel %vm1243, %v5850, 0.0
      %5887 = vadd.xlane.f32.xlu0 %v5886
      %v5888 = vpop.xlane.xlu0 %5887
      %v5889 = vsel %vm1243, %v5851, 0.0
      %5890 = vadd.xlane.f32.xlu0 %v5889
      %v5891 = vpop.xlane.xlu0 %5890
      %v5892 = vsel %vm1243, %v5852, 0.0
      %5893 = vadd.xlane.f32.xlu0 %v5892
      %v5894 = vpop.xlane.xlu0 %5893
      %v5895 = vsel %vm1243, %v5853, 0.0
      %5896 = vadd.xlane.f32.xlu0 %v5895
      %v5897 = vpop.xlane.xlu0 %5896
      %v5898 = vsel %vm1243, %v5854, 0.0
      %5899 = vadd.xlane.f32.xlu0 %v5898
      %v5900 = vpop.xlane.xlu0 %5899
      %v5901 = vsel %vm1243, %v5855, 0.0
      %5902 = vadd.xlane.f32.xlu0 %v5901
      %v5903 = vpop.xlane.xlu0 %5902
      %v5904 = vrcp.pop 64.0
      %v5905 = vmul.f32 %v5858, %v5904
      %v5906 = vmul.f32 %v5861, %v5904
      %v5907 = vmul.f32 %v5864, %v5904
      %v5908 = vmul.f32 %v5867, %v5904
      %v5909 = vmul.f32 %v5870, %v5904
      %v5910 = vmul.f32 %v5873, %v5904
      %v5911 = vmul.f32 %v5876, %v5904
      %v5912 = vmul.f32 %v5879, %v5904
      %v5913 = vmul.f32 %v5882, %v5904
      %v5914 = vmul.f32 %v5885, %v5904
      %v5915 = vmul.f32 %v5888, %v5904
      %v5916 = vmul.f32 %v5891, %v5904
      %v5917 = vmul.f32 %v5894, %v5904
      %v5918 = vmul.f32 %v5897, %v5904
      %v5919 = vmul.f32 %v5900, %v5904
      %v5920 = vmul.f32 %v5903, %v5904
      %v5921 = vsub.f32 %v5840, %v5905
      %v5922 = vsub.f32 %v5841, %v5906
      %v5923 = vsub.f32 %v5842, %v5907
      %v5924 = vsub.f32 %v5843, %v5908
      %v5925 = vsub.f32 %v5844, %v5909
      %v5926 = vsub.f32 %v5845, %v5910
      %v5927 = vsub.f32 %v5846, %v5911
      %v5928 = vsub.f32 %v5847, %v5912
      %v5929 = vsub.f32 %v5848, %v5913
      %v5930 = vsub.f32 %v5849, %v5914
      %v5931 = vsub.f32 %v5850, %v5915
      %v5932 = vsub.f32 %v5851, %v5916
      %v5933 = vsub.f32 %v5852, %v5917
      %v5934 = vsub.f32 %v5853, %v5918
      %v5935 = vsub.f32 %v5854, %v5919
      %v5936 = vsub.f32 %v5855, %v5920
      %v5937 = vmul.f32 %v5921, %v5921
      %v5938 = vmul.f32 %v5922, %v5922
      %v5939 = vmul.f32 %v5923, %v5923
      %v5940 = vmul.f32 %v5924, %v5924
      %v5941 = vmul.f32 %v5925, %v5925
      %v5942 = vmul.f32 %v5926, %v5926
      %v5943 = vmul.f32 %v5927, %v5927
      %v5944 = vmul.f32 %v5928, %v5928
      %v5945 = vmul.f32 %v5929, %v5929
      %v5946 = vmul.f32 %v5930, %v5930
      %v5947 = vmul.f32 %v5931, %v5931
      %v5948 = vmul.f32 %v5932, %v5932
      %v5949 = vmul.f32 %v5933, %v5933
      %v5950 = vmul.f32 %v5934, %v5934
      %v5951 = vmul.f32 %v5935, %v5935
      %v5952 = vmul.f32 %v5936, %v5936
      %v5953 = vsel %vm1243, %v5937, 0.0
      %5954 = vadd.xlane.f32.xlu0 %v5953
      %v5955 = vpop.xlane.xlu0 %5954
      %v5956 = vsel %vm1243, %v5938, 0.0
      %5957 = vadd.xlane.f32.xlu0 %v5956
      %v5958 = vpop.xlane.xlu0 %5957
      %v5959 = vsel %vm1243, %v5939, 0.0
      %5960 = vadd.xlane.f32.xlu0 %v5959
      %v5961 = vpop.xlane.xlu0 %5960
      %v5962 = vsel %vm1243, %v5940, 0.0
      %5963 = vadd.xlane.f32.xlu0 %v5962
      %v5964 = vpop.xlane.xlu0 %5963
      %v5965 = vsel %vm1243, %v5941, 0.0
      %5966 = vadd.xlane.f32.xlu0 %v5965
      %v5967 = vpop.xlane.xlu0 %5966
      %v5968 = vsel %vm1243, %v5942, 0.0
      %5969 = vadd.xlane.f32.xlu0 %v5968
      %v5970 = vpop.xlane.xlu0 %5969
      %v5971 = vsel %vm1243, %v5943, 0.0
      %5972 = vadd.xlane.f32.xlu0 %v5971
      %v5973 = vpop.xlane.xlu0 %5972
      %v5974 = vsel %vm1243, %v5944, 0.0
      %5975 = vadd.xlane.f32.xlu0 %v5974
      %v5976 = vpop.xlane.xlu0 %5975
      %v5977 = vsel %vm1243, %v5945, 0.0
      %5978 = vadd.xlane.f32.xlu0 %v5977
      %v5979 = vpop.xlane.xlu0 %5978
      %v5980 = vsel %vm1243, %v5946, 0.0
      %5981 = vadd.xlane.f32.xlu0 %v5980
      %v5982 = vpop.xlane.xlu0 %5981
      %v5983 = vsel %vm1243, %v5947, 0.0
      %5984 = vadd.xlane.f32.xlu0 %v5983
      %v5985 = vpop.xlane.xlu0 %5984
      %v5986 = vsel %vm1243, %v5948, 0.0
      %5987 = vadd.xlane.f32.xlu0 %v5986
      %v5988 = vpop.xlane.xlu0 %5987
      %v5989 = vsel %vm1243, %v5949, 0.0
      %5990 = vadd.xlane.f32.xlu0 %v5989
      %v5991 = vpop.xlane.xlu0 %5990
      %v5992 = vsel %vm1243, %v5950, 0.0
      %5993 = vadd.xlane.f32.xlu0 %v5992
      %v5994 = vpop.xlane.xlu0 %5993
      %v5995 = vsel %vm1243, %v5951, 0.0
      %5996 = vadd.xlane.f32.xlu0 %v5995
      %v5997 = vpop.xlane.xlu0 %5996
      %v5998 = vsel %vm1243, %v5952, 0.0
      %5999 = vadd.xlane.f32.xlu0 %v5998
      %v6000 = vpop.xlane.xlu0 %5999
      %v6001 = vmul.f32 %v5955, %v5904
      %v6002 = vmul.f32 %v5958, %v5904
      %v6003 = vmul.f32 %v5961, %v5904
      %v6004 = vmul.f32 %v5964, %v5904
      %v6005 = vmul.f32 %v5967, %v5904
      %v6006 = vmul.f32 %v5970, %v5904
      %v6007 = vmul.f32 %v5973, %v5904
      %v6008 = vmul.f32 %v5976, %v5904
      %v6009 = vmul.f32 %v5979, %v5904
      %v6010 = vmul.f32 %v5982, %v5904
      %v6011 = vmul.f32 %v5985, %v5904
      %v6012 = vmul.f32 %v5988, %v5904
      %v6013 = vmul.f32 %v5991, %v5904
      %v6014 = vmul.f32 %v5994, %v5904
      %v6015 = vmul.f32 %v5997, %v5904
      %v6016 = vmul.f32 %v6000, %v5904
      %v6017 = vadd.f32 %v6001, 1e-05
      %v6018 = vadd.f32 %v6002, 1e-05
      %v6019 = vadd.f32 %v6003, 1e-05
      %v6020 = vadd.f32 %v6004, 1e-05
      %v6021 = vadd.f32 %v6005, 1e-05
      %v6022 = vadd.f32 %v6006, 1e-05
      %v6023 = vadd.f32 %v6007, 1e-05
      %v6024 = vadd.f32 %v6008, 1e-05
      %v6025 = vadd.f32 %v6009, 1e-05
      %v6026 = vadd.f32 %v6010, 1e-05
      %v6027 = vadd.f32 %v6011, 1e-05
      %v6028 = vadd.f32 %v6012, 1e-05
      %v6029 = vadd.f32 %v6013, 1e-05
      %v6030 = vadd.f32 %v6014, 1e-05
      %v6031 = vadd.f32 %v6015, 1e-05
      %v6032 = vadd.f32 %v6016, 1e-05
      %v6033 = vrsqrt.pop %v6017
      %v6034 = vrsqrt.pop %v6018
      %v6035 = vrsqrt.pop %v6019
      %v6036 = vrsqrt.pop %v6020
      %v6037 = vrsqrt.pop %v6021
      %v6038 = vrsqrt.pop %v6022
      %v6039 = vrsqrt.pop %v6023
      %v6040 = vrsqrt.pop %v6024
      %v6041 = vrsqrt.pop %v6025
      %v6042 = vrsqrt.pop %v6026
      %v6043 = vrsqrt.pop %v6027
      %v6044 = vrsqrt.pop %v6028
      %v6045 = vrsqrt.pop %v6029
      %v6046 = vrsqrt.pop %v6030
      %v6047 = vrsqrt.pop %v6031
      %v6048 = vrsqrt.pop %v6032
      %v6049 = vmul.f32 %v5921, %v6033
      %v6050 = vmul.f32 %v5922, %v6034
      %v6051 = vmul.f32 %v5923, %v6035
      %v6052 = vmul.f32 %v5924, %v6036
      %v6053 = vmul.f32 %v5925, %v6037
      %v6054 = vmul.f32 %v5926, %v6038
      %v6055 = vmul.f32 %v5927, %v6039
      %v6056 = vmul.f32 %v5928, %v6040
      %v6057 = vmul.f32 %v5929, %v6041
      %v6058 = vmul.f32 %v5930, %v6042
      %v6059 = vmul.f32 %v5931, %v6043
      %v6060 = vmul.f32 %v5932, %v6044
      %v6061 = vmul.f32 %v5933, %v6045
      %v6062 = vmul.f32 %v5934, %v6046
      %v6063 = vmul.f32 %v5935, %v6047
      %v6064 = vmul.f32 %v5936, %v6048
      %v6066 = vlaneseq
      %v6067 = vshrl.u32 %v6066, 7
      %v6068 = vsub.s32 0, %v6067
      %v6069 = vrot.slane %v846, %v6068
      %v6071 = vmul.f32 %v6049, %v6069
      %v6072 = vmul.f32 %v6050, %v6069
      %v6073 = vmul.f32 %v6051, %v6069
      %v6074 = vmul.f32 %v6052, %v6069
      %v6075 = vmul.f32 %v6053, %v6069
      %v6076 = vmul.f32 %v6054, %v6069
      %v6077 = vmul.f32 %v6055, %v6069
      %v6078 = vmul.f32 %v6056, %v6069
      %v6079 = vmul.f32 %v6057, %v6069
      %v6080 = vmul.f32 %v6058, %v6069
      %v6081 = vmul.f32 %v6059, %v6069
      %v6082 = vmul.f32 %v6060, %v6069
      %v6083 = vmul.f32 %v6061, %v6069
      %v6084 = vmul.f32 %v6062, %v6069
      %v6085 = vmul.f32 %v6063, %v6069
      %v6086 = vmul.f32 %v6064, %v6069
      %v6088 = vlaneseq
      %v6089 = vshrl.u32 %v6088, 7
      %v6090 = vsub.s32 0, %v6089
      %v6091 = vrot.slane %v848, %v6090
      %v6093 = vadd.f32 %v6071, %v6091
      %v6094 = vadd.f32 %v6072, %v6091
      %v6095 = vadd.f32 %v6073, %v6091
      %v6096 = vadd.f32 %v6074, %v6091
      %v6097 = vadd.f32 %v6075, %v6091
      %v6098 = vadd.f32 %v6076, %v6091
      %v6099 = vadd.f32 %v6077, %v6091
      %v6100 = vadd.f32 %v6078, %v6091
      %v6101 = vadd.f32 %v6079, %v6091
      %v6102 = vadd.f32 %v6080, %v6091
      %v6103 = vadd.f32 %v6081, %v6091
      %v6104 = vadd.f32 %v6082, %v6091
      %v6105 = vadd.f32 %v6083, %v6091
      %v6106 = vadd.f32 %v6084, %v6091
      %v6107 = vadd.f32 %v6085, %v6091
      %v6108 = vadd.f32 %v6086, %v6091
      %v6109 = vpack.c.bf16 %v6094, %v6093
      %v6110 = vpack.c.bf16 %v6096, %v6095
      %v6111 = vpack.c.bf16 %v6098, %v6097
      %v6112 = vpack.c.bf16 %v6100, %v6099
      %v6113 = vpack.c.bf16 %v6102, %v6101
      %v6114 = vpack.c.bf16 %v6104, %v6103
      %v6115 = vpack.c.bf16 %v6106, %v6105
      %v6116 = vpack.c.bf16 %v6108, %v6107
      %v6119 = vlaneseq
      %v6120 = vshrl.u32 %v6119, 7
      %v6121 = vsub.s32 0, %v6120
      %v6122 = vrot.slane %v917, %v6121
      %v6123 = vlaneseq
      %v6124 = vshrl.u32 %v6123, 7
      %v6125 = vsub.s32 1, %v6124
      %v6126 = vrot.slane %v917, %v6125
      %v6127 = vlaneseq
      %v6128 = vshrl.u32 %v6127, 7
      %v6129 = vsub.s32 2, %v6128
      %v6130 = vrot.slane %v917, %v6129
      %v6131 = vlaneseq
      %v6132 = vshrl.u32 %v6131, 7
      %v6133 = vsub.s32 3, %v6132
      %v6134 = vrot.slane %v917, %v6133
      %v6135 = vlaneseq
      %v6136 = vshrl.u32 %v6135, 7
      %v6137 = vsub.s32 4, %v6136
      %v6138 = vrot.slane %v917, %v6137
      %v6139 = vlaneseq
      %v6140 = vshrl.u32 %v6139, 7
      %v6141 = vsub.s32 5, %v6140
      %v6142 = vrot.slane %v917, %v6141
      %v6143 = vlaneseq
      %v6144 = vshrl.u32 %v6143, 7
      %v6145 = vsub.s32 6, %v6144
      %v6146 = vrot.slane %v917, %v6145
      %v6147 = vlaneseq
      %v6148 = vshrl.u32 %v6147, 7
      %v6149 = vsub.s32 7, %v6148
      %v6150 = vrot.slane %v917, %v6149
      %v6151 = vlaneseq
      %v6152 = vshrl.u32 %v6151, 7
      %v6153 = vsub.s32 0, %v6152
      %v6154 = vrot.slane %v918, %v6153
      %v6155 = vlaneseq
      %v6156 = vshrl.u32 %v6155, 7
      %v6157 = vsub.s32 1, %v6156
      %v6158 = vrot.slane %v918, %v6157
      %v6159 = vlaneseq
      %v6160 = vshrl.u32 %v6159, 7
      %v6161 = vsub.s32 2, %v6160
      %v6162 = vrot.slane %v918, %v6161
      %v6163 = vlaneseq
      %v6164 = vshrl.u32 %v6163, 7
      %v6165 = vsub.s32 3, %v6164
      %v6166 = vrot.slane %v918, %v6165
      %v6167 = vlaneseq
      %v6168 = vshrl.u32 %v6167, 7
      %v6169 = vsub.s32 4, %v6168
      %v6170 = vrot.slane %v918, %v6169
      %v6171 = vlaneseq
      %v6172 = vshrl.u32 %v6171, 7
      %v6173 = vsub.s32 5, %v6172
      %v6174 = vrot.slane %v918, %v6173
      %v6175 = vlaneseq
      %v6176 = vshrl.u32 %v6175, 7
      %v6177 = vsub.s32 6, %v6176
      %v6178 = vrot.slane %v918, %v6177
      %v6179 = vlaneseq
      %v6180 = vshrl.u32 %v6179, 7
      %v6181 = vsub.s32 7, %v6180
      %v6182 = vrot.slane %v918, %v6181
      %v6263 = vunpack.c.l.b16 %v852
      %v6264 = vunpack.c.h.b16 %v852
      %v6265 = vunpack.c.l.b16 %v853
      %v6266 = vunpack.c.h.b16 %v853
      %v6267 = vunpack.c.l.b16 %v854
      %v6268 = vunpack.c.h.b16 %v854
      %v6269 = vunpack.c.l.b16 %v855
      %v6270 = vunpack.c.h.b16 %v855
      %v6271 = vunpack.c.l.b16 %v856
      %v6272 = vunpack.c.h.b16 %v856
      %v6273 = vunpack.c.l.b16 %v857
      %v6274 = vunpack.c.h.b16 %v857
      %v6275 = vunpack.c.l.b16 %v858
      %v6276 = vunpack.c.h.b16 %v858
      %v6277 = vunpack.c.l.b16 %v859
      %v6278 = vunpack.c.h.b16 %v859
      %v6279 = vunpack.c.l.b16 %v860
      %v6280 = vunpack.c.h.b16 %v860
      %v6281 = vunpack.c.l.b16 %v861
      %v6282 = vunpack.c.h.b16 %v861
      %v6283 = vunpack.c.l.b16 %v862
      %v6284 = vunpack.c.h.b16 %v862
      %v6285 = vunpack.c.l.b16 %v863
      %v6286 = vunpack.c.h.b16 %v863
      %v6287 = vunpack.c.l.b16 %v864
      %v6288 = vunpack.c.h.b16 %v864
      %v6289 = vunpack.c.l.b16 %v865
      %v6290 = vunpack.c.h.b16 %v865
      %v6291 = vunpack.c.l.b16 %v866
      %v6292 = vunpack.c.h.b16 %v866
      %v6293 = vunpack.c.l.b16 %v867
      %v6294 = vunpack.c.h.b16 %v867
      %v6295 = vunpack.c.l.b16 %v868
      %v6296 = vunpack.c.h.b16 %v868
      %v6297 = vunpack.c.l.b16 %v869
      %v6298 = vunpack.c.h.b16 %v869
      %v6299 = vunpack.c.l.b16 %v870
      %v6300 = vunpack.c.h.b16 %v870
      %v6301 = vunpack.c.l.b16 %v871
      %v6302 = vunpack.c.h.b16 %v871
      %v6303 = vunpack.c.l.b16 %v872
      %v6304 = vunpack.c.h.b16 %v872
      %v6305 = vunpack.c.l.b16 %v873
      %v6306 = vunpack.c.h.b16 %v873
      %v6307 = vunpack.c.l.b16 %v874
      %v6308 = vunpack.c.h.b16 %v874
      %v6309 = vunpack.c.l.b16 %v875
      %v6310 = vunpack.c.h.b16 %v875
      %v6311 = vunpack.c.l.b16 %v876
      %v6312 = vunpack.c.h.b16 %v876
      %v6313 = vunpack.c.l.b16 %v877
      %v6314 = vunpack.c.h.b16 %v877
      %v6315 = vunpack.c.l.b16 %v878
      %v6316 = vunpack.c.h.b16 %v878
      %v6317 = vunpack.c.l.b16 %v879
      %v6318 = vunpack.c.h.b16 %v879
      %v6319 = vunpack.c.l.b16 %v880
      %v6320 = vunpack.c.h.b16 %v880
      %v6321 = vunpack.c.l.b16 %v881
      %v6322 = vunpack.c.h.b16 %v881
      %v6323 = vunpack.c.l.b16 %v882
      %v6324 = vunpack.c.h.b16 %v882
      %v6325 = vunpack.c.l.b16 %v883
      %v6326 = vunpack.c.h.b16 %v883
      %v6327 = vunpack.c.l.b16 %v884
      %v6328 = vunpack.c.h.b16 %v884
      %v6329 = vunpack.c.l.b16 %v885
      %v6330 = vunpack.c.h.b16 %v885
      %v6331 = vunpack.c.l.b16 %v886
      %v6332 = vunpack.c.h.b16 %v886
      %v6333 = vunpack.c.l.b16 %v887
      %v6334 = vunpack.c.h.b16 %v887
      %v6335 = vunpack.c.l.b16 %v888
      %v6336 = vunpack.c.h.b16 %v888
      %v6337 = vunpack.c.l.b16 %v889
      %v6338 = vunpack.c.h.b16 %v889
      %v6339 = vunpack.c.l.b16 %v890
      %v6340 = vunpack.c.h.b16 %v890
      %v6341 = vunpack.c.l.b16 %v891
      %v6342 = vunpack.c.h.b16 %v891
      %v6343 = vunpack.c.l.b16 %v892
      %v6344 = vunpack.c.h.b16 %v892
      %v6345 = vunpack.c.l.b16 %v893
      %v6346 = vunpack.c.h.b16 %v893
      %v6347 = vunpack.c.l.b16 %v894
      %v6348 = vunpack.c.h.b16 %v894
      %v6349 = vunpack.c.l.b16 %v895
      %v6350 = vunpack.c.h.b16 %v895
      %v6351 = vunpack.c.l.b16 %v896
      %v6352 = vunpack.c.h.b16 %v896
      %v6353 = vunpack.c.l.b16 %v897
      %v6354 = vunpack.c.h.b16 %v897
      %v6355 = vunpack.c.l.b16 %v898
      %v6356 = vunpack.c.h.b16 %v898
      %v6357 = vunpack.c.l.b16 %v899
      %v6358 = vunpack.c.h.b16 %v899
      %v6359 = vunpack.c.l.b16 %v900
      %v6360 = vunpack.c.h.b16 %v900
      %v6361 = vunpack.c.l.b16 %v901
      %v6362 = vunpack.c.h.b16 %v901
      %v6363 = vunpack.c.l.b16 %v902
      %v6364 = vunpack.c.h.b16 %v902
      %v6365 = vunpack.c.l.b16 %v903
      %v6366 = vunpack.c.h.b16 %v903
      %v6367 = vunpack.c.l.b16 %v904
      %v6368 = vunpack.c.h.b16 %v904
      %v6369 = vunpack.c.l.b16 %v905
      %v6370 = vunpack.c.h.b16 %v905
      %v6371 = vunpack.c.l.b16 %v906
      %v6372 = vunpack.c.h.b16 %v906
      %v6373 = vunpack.c.l.b16 %v907
      %v6374 = vunpack.c.h.b16 %v907
      %v6375 = vunpack.c.l.b16 %v908
      %v6376 = vunpack.c.h.b16 %v908
      %v6377 = vunpack.c.l.b16 %v909
      %v6378 = vunpack.c.h.b16 %v909
      %v6379 = vunpack.c.l.b16 %v910
      %v6380 = vunpack.c.h.b16 %v910
      %v6381 = vunpack.c.l.b16 %v911
      %v6382 = vunpack.c.h.b16 %v911
      %v6383 = vunpack.c.l.b16 %v912
      %v6384 = vunpack.c.h.b16 %v912
      %v6385 = vunpack.c.l.b16 %v913
      %v6386 = vunpack.c.h.b16 %v913
      %v6387 = vunpack.c.l.b16 %v914
      %v6388 = vunpack.c.h.b16 %v914
      %v6389 = vunpack.c.l.b16 %v915
      %v6390 = vunpack.c.h.b16 %v915
      %v6391 = vpack.c.b16 %v6279, %v6263
      %v6392 = vpack.c.b16 %v6280, %v6264
      %v6393 = vpack.c.b16 %v6281, %v6265
      %v6394 = vpack.c.b16 %v6282, %v6266
      %v6395 = vpack.c.b16 %v6283, %v6267
      %v6396 = vpack.c.b16 %v6284, %v6268
      %v6397 = vpack.c.b16 %v6285, %v6269
      %v6398 = vpack.c.b16 %v6286, %v6270
      %v6399 = vpack.c.b16 %v6287, %v6271
      %v6400 = vpack.c.b16 %v6288, %v6272
      %v6401 = vpack.c.b16 %v6289, %v6273
      %v6402 = vpack.c.b16 %v6290, %v6274
      %v6403 = vpack.c.b16 %v6291, %v6275
      %v6404 = vpack.c.b16 %v6292, %v6276
      %v6405 = vpack.c.b16 %v6293, %v6277
      %v6406 = vpack.c.b16 %v6294, %v6278
      %v6407 = vpack.c.b16 %v6311, %v6295
      %v6408 = vpack.c.b16 %v6312, %v6296
      %v6409 = vpack.c.b16 %v6313, %v6297
      %v6410 = vpack.c.b16 %v6314, %v6298
      %v6411 = vpack.c.b16 %v6315, %v6299
      %v6412 = vpack.c.b16 %v6316, %v6300
      %v6413 = vpack.c.b16 %v6317, %v6301
      %v6414 = vpack.c.b16 %v6318, %v6302
      %v6415 = vpack.c.b16 %v6319, %v6303
      %v6416 = vpack.c.b16 %v6320, %v6304
      %v6417 = vpack.c.b16 %v6321, %v6305
      %v6418 = vpack.c.b16 %v6322, %v6306
      %v6419 = vpack.c.b16 %v6323, %v6307
      %v6420 = vpack.c.b16 %v6324, %v6308
      %v6421 = vpack.c.b16 %v6325, %v6309
      %v6422 = vpack.c.b16 %v6326, %v6310
      %v6423 = vpack.c.b16 %v6343, %v6327
      %v6424 = vpack.c.b16 %v6344, %v6328
      %v6425 = vpack.c.b16 %v6345, %v6329
      %v6426 = vpack.c.b16 %v6346, %v6330
      %v6427 = vpack.c.b16 %v6347, %v6331
      %v6428 = vpack.c.b16 %v6348, %v6332
      %v6429 = vpack.c.b16 %v6349, %v6333
      %v6430 = vpack.c.b16 %v6350, %v6334
      %v6431 = vpack.c.b16 %v6351, %v6335
      %v6432 = vpack.c.b16 %v6352, %v6336
      %v6433 = vpack.c.b16 %v6353, %v6337
      %v6434 = vpack.c.b16 %v6354, %v6338
      %v6435 = vpack.c.b16 %v6355, %v6339
      %v6436 = vpack.c.b16 %v6356, %v6340
      %v6437 = vpack.c.b16 %v6357, %v6341
      %v6438 = vpack.c.b16 %v6358, %v6342
      %v6439 = vpack.c.b16 %v6375, %v6359
      %v6440 = vpack.c.b16 %v6376, %v6360
      %v6441 = vpack.c.b16 %v6377, %v6361
      %v6442 = vpack.c.b16 %v6378, %v6362
      %v6443 = vpack.c.b16 %v6379, %v6363
      %v6444 = vpack.c.b16 %v6380, %v6364
      %v6445 = vpack.c.b16 %v6381, %v6365
      %v6446 = vpack.c.b16 %v6382, %v6366
      %v6447 = vpack.c.b16 %v6383, %v6367
      %v6448 = vpack.c.b16 %v6384, %v6368
      %v6449 = vpack.c.b16 %v6385, %v6369
      %v6450 = vpack.c.b16 %v6386, %v6370
      %v6451 = vpack.c.b16 %v6387, %v6371
      %v6452 = vpack.c.b16 %v6388, %v6372
      %v6453 = vpack.c.b16 %v6389, %v6373
      %v6454 = vpack.c.b16 %v6390, %v6374
      %v6520 = vsel %vm1243, %v6109, 0
      %v6523 = vsel %vm1243, %v6110, 0
      %v6526 = vsel %vm1243, %v6111, 0
      %v6529 = vsel %vm1243, %v6112, 0
      %v6532 = vsel %vm1243, %v6113, 0
      %v6535 = vsel %vm1243, %v6114, 0
      %v6538 = vsel %vm1243, %v6115, 0
      %v6541 = vsel %vm1243, %v6116, 0
      %6543 = vmatprep.subr.bf16.mxu0 %v6392
      %6544 = vmatpush1.bf16.msra.mxu0 %v6391
      %6545 = vmatprep.subr.bf16.mxu0 %v6408
      %6546 = vmatpush1.bf16.msra.mxu0 %v6407
      %6547 = vmatprep.subr.bf16.mxu0 %v6424
      %6548 = vmatpush1.bf16.msra.mxu0 %v6423
      %6549 = vmatprep.subr.bf16.mxu0 %v6440
      %6550 = vmatpush1.bf16.msra.mxu0 %v6439
      %6551 = vmatprep.subr.bf16.mxu0 0
      %6552 = vmatpush1.bf16.msra.mxu0 0
      %6553 = vmatprep.subr.bf16.mxu0 0
      %6554 = vmatpush1.bf16.msra.mxu0 0
      %6555 = vmatprep.subr.bf16.mxu0 0
      %6556 = vmatpush1.bf16.msra.mxu0 0
      %6557 = vmatprep.subr.bf16.mxu0 0
      %6558 = vmatpush1.bf16.msra.mxu0 0
      %6559 = vmatprep.subr.bf16.mxu0 0
      %6560 = vmatpush1.bf16.msra.mxu0 0
      %6561 = vmatprep.subr.bf16.mxu0 0
      %6562 = vmatpush1.bf16.msra.mxu0 0
      %6563 = vmatprep.subr.bf16.mxu0 0
      %6564 = vmatpush1.bf16.msra.mxu0 0
      %6565 = vmatprep.subr.bf16.mxu0 0
      %6566 = vmatpush1.bf16.msra.mxu0 0
      %6567 = vmatprep.subr.bf16.mxu0 0
      %6568 = vmatpush1.bf16.msra.mxu0 0
      %6569 = vmatprep.subr.bf16.mxu0 0
      %6570 = vmatpush1.bf16.msra.mxu0 0
      %6571 = vmatprep.subr.bf16.mxu0 0
      %6572 = vmatpush1.bf16.msra.mxu0 0
      %6573 = vmatprep.subr.bf16.mxu0 0
      %6574 = vmatpush1.bf16.msra.mxu0 0
      %6575 = vmatprep.mubr.bf16.mxu0 0
      %6576 = vmatmul.mubr.bf16.gmra.mrb[0].mxu0 %v6520
      %v6577 = vpop.f32.mrb[0].mxu0
      %v6578 = vadd.f32 %v6122, %v6577
      %v6579 = vpop.f32.mrb[0].mxu0
      %v6580 = vadd.f32 %v6126, %v6579
      %v6581 = vpop.f32.mrb[0].mxu0
      %v6582 = vadd.f32 %v6122, %v6581
      %v6583 = vpop.f32.mrb[0].mxu0
      %v6584 = vadd.f32 %v6126, %v6583
      %6585 = vmatprep.mubr.bf16.mxu0 0
      %6586 = vmatmul.mubr.bf16.gmra.mrb[0].mxu0 %v6523
      %v6587 = vpop.f32.mrb[0].mxu0
      %v6588 = vadd.f32 %v6122, %v6587
      %v6589 = vpop.f32.mrb[0].mxu0
      %v6590 = vadd.f32 %v6126, %v6589
      %v6591 = vpop.f32.mrb[0].mxu0
      %v6592 = vadd.f32 %v6122, %v6591
      %v6593 = vpop.f32.mrb[0].mxu0
      %v6594 = vadd.f32 %v6126, %v6593
      %6595 = vmatprep.mubr.bf16.mxu0 0
      %6596 = vmatmul.mubr.bf16.gmra.mrb[0].mxu0 %v6526
      %v6597 = vpop.f32.mrb[0].mxu0
      %v6598 = vadd.f32 %v6122, %v6597
      %v6599 = vpop.f32.mrb[0].mxu0
      %v6600 = vadd.f32 %v6126, %v6599
      %v6601 = vpop.f32.mrb[0].mxu0
      %v6602 = vadd.f32 %v6122, %v6601
      %v6603 = vpop.f32.mrb[0].mxu0
      %v6604 = vadd.f32 %v6126, %v6603
      %6605 = vmatprep.mubr.bf16.mxu0 0
      %6606 = vmatmul.mubr.bf16.gmra.mrb[0].mxu0 %v6529
      %v6607 = vpop.f32.mrb[0].mxu0
      %v6608 = vadd.f32 %v6122, %v6607
      %v6609 = vpop.f32.mrb[0].mxu0
      %v6610 = vadd.f32 %v6126, %v6609
      %v6611 = vpop.f32.mrb[0].mxu0
      %v6612 = vadd.f32 %v6122, %v6611
      %v6613 = vpop.f32.mrb[0].mxu0
      %v6614 = vadd.f32 %v6126, %v6613
      %6615 = vmatprep.mubr.bf16.mxu0 0
      %6616 = vmatmul.mubr.bf16.gmra.mrb[0].mxu0 %v6532
      %v6617 = vpop.f32.mrb[0].mxu0
      %v6618 = vadd.f32 %v6122, %v6617
      %v6619 = vpop.f32.mrb[0].mxu0
      %v6620 = vadd.f32 %v6126, %v6619
      %v6621 = vpop.f32.mrb[0].mxu0
      %v6622 = vadd.f32 %v6122, %v6621
      %v6623 = vpop.f32.mrb[0].mxu0
      %v6624 = vadd.f32 %v6126, %v6623
      %6625 = vmatprep.mubr.bf16.mxu0 0
      %6626 = vmatmul.mubr.bf16.gmra.mrb[0].mxu0 %v6535
      %v6627 = vpop.f32.mrb[0].mxu0
      %v6628 = vadd.f32 %v6122, %v6627
      %v6629 = vpop.f32.mrb[0].mxu0
      %v6630 = vadd.f32 %v6126, %v6629
      %v6631 = vpop.f32.mrb[0].mxu0
      %v6632 = vadd.f32 %v6122, %v6631
      %v6633 = vpop.f32.mrb[0].mxu0
      %v6634 = vadd.f32 %v6126, %v6633
      %6635 = vmatprep.mubr.bf16.mxu0 0
      %6636 = vmatmul.mubr.bf16.gmra.mrb[0].mxu0 %v6538
      %v6637 = vpop.f32.mrb[0].mxu0
      %v6638 = vadd.f32 %v6122, %v6637
      %v6639 = vpop.f32.mrb[0].mxu0
      %v6640 = vadd.f32 %v6126, %v6639
      %v6641 = vpop.f32.mrb[0].mxu0
      %v6642 = vadd.f32 %v6122, %v6641
      %v6643 = vpop.f32.mrb[0].mxu0
      %v6644 = vadd.f32 %v6126, %v6643
      %6645 = vmatprep.mubr.bf16.mxu0 0
      %6646 = vmatmul.mubr.bf16.gmra.mrb[0].mxu0 %v6541
      %v6647 = vpop.f32.mrb[0].mxu0
      %v6648 = vadd.f32 %v6122, %v6647
      %v6649 = vpop.f32.mrb[0].mxu0
      %v6650 = vadd.f32 %v6126, %v6649
      %v6651 = vpop.f32.mrb[0].mxu0
      %v6652 = vadd.f32 %v6122, %v6651
      %v6653 = vpop.f32.mrb[0].mxu0
      %v6654 = vadd.f32 %v6126, %v6653
      %6655 = vdwg.mxu0
      %6656 = vmatprep.subr.bf16.mxu0 %v6394
      %6657 = vmatpush1.bf16.msra.mxu0 %v6393
      %6658 = vmatprep.subr.bf16.mxu0 %v6410
      %6659 = vmatpush1.bf16.msra.mxu0 %v6409
      %6660 = vmatprep.subr.bf16.mxu0 %v6426
      %6661 = vmatpush1.bf16.msra.mxu0 %v6425
      %6662 = vmatprep.subr.bf16.mxu0 %v6442
      %6663 = vmatpush1.bf16.msra.mxu0 %v6441
      %6664 = vmatprep.subr.bf16.mxu0 0
      %6665 = vmatpush1.bf16.msra.mxu0 0
      %6666 = vmatprep.subr.bf16.mxu0 0
      %6667 = vmatpush1.bf16.msra.mxu0 0
      %6668 = vmatprep.subr.bf16.mxu0 0
      %6669 = vmatpush1.bf16.msra.mxu0 0
      %6670 = vmatprep.subr.bf16.mxu0 0
      %6671 = vmatpush1.bf16.msra.mxu0 0
      %6672 = vmatprep.subr.bf16.mxu0 0
      %6673 = vmatpush1.bf16.msra.mxu0 0
      %6674 = vmatprep.subr.bf16.mxu0 0
      %6675 = vmatpush1.bf16.msra.mxu0 0
      %6676 = vmatprep.subr.bf16.mxu0 0
      %6677 = vmatpush1.bf16.msra.mxu0 0
      %6678 = vmatprep.subr.bf16.mxu0 0
      %6679 = vmatpush1.bf16.msra.mxu0 0
      %6680 = vmatprep.subr.bf16.mxu0 0
      %6681 = vmatpush1.bf16.msra.mxu0 0
      %6682 = vmatprep.subr.bf16.mxu0 0
      %6683 = vmatpush1.bf16.msra.mxu0 0
      %6684 = vmatprep.subr.bf16.mxu0 0
      %6685 = vmatpush1.bf16.msra.mxu0 0
      %6686 = vmatprep.subr.bf16.mxu0 0
      %6687 = vmatpush1.bf16.msra.mxu0 0
      %6688 = vmatprep.mubr.bf16.mxu0 0
      %6689 = vmatmul.mubr.bf16.gmra.mrb[0].mxu0 %v6520
      %v6690 = vpop.f32.mrb[0].mxu0
      %v6691 = vadd.f32 %v6130, %v6690
      %v6692 = vpop.f32.mrb[0].mxu0
      %v6693 = vadd.f32 %v6134, %v6692
      %v6694 = vpop.f32.mrb[0].mxu0
      %v6695 = vadd.f32 %v6130, %v6694
      %v6696 = vpop.f32.mrb[0].mxu0
      %v6697 = vadd.f32 %v6134, %v6696
      %6698 = vmatprep.mubr.bf16.mxu0 0
      %6699 = vmatmul.mubr.bf16.gmra.mrb[0].mxu0 %v6523
      %v6700 = vpop.f32.mrb[0].mxu0
      %v6701 = vadd.f32 %v6130, %v6700
      %v6702 = vpop.f32.mrb[0].mxu0
      %v6703 = vadd.f32 %v6134, %v6702
      %v6704 = vpop.f32.mrb[0].mxu0
      %v6705 = vadd.f32 %v6130, %v6704
      %v6706 = vpop.f32.mrb[0].mxu0
      %v6707 = vadd.f32 %v6134, %v6706
      %6708 = vmatprep.mubr.bf16.mxu0 0
      %6709 = vmatmul.mubr.bf16.gmra.mrb[0].mxu0 %v6526
      %v6710 = vpop.f32.mrb[0].mxu0
      %v6711 = vadd.f32 %v6130, %v6710
      %v6712 = vpop.f32.mrb[0].mxu0
      %v6713 = vadd.f32 %v6134, %v6712
      %v6714 = vpop.f32.mrb[0].mxu0
      %v6715 = vadd.f32 %v6130, %v6714
      %v6716 = vpop.f32.mrb[0].mxu0
      %v6717 = vadd.f32 %v6134, %v6716
      %6718 = vmatprep.mubr.bf16.mxu0 0
      %6719 = vmatmul.mubr.bf16.gmra.mrb[0].mxu0 %v6529
      %v6720 = vpop.f32.mrb[0].mxu0
      %v6721 = vadd.f32 %v6130, %v6720
      %v6722 = vpop.f32.mrb[0].mxu0
      %v6723 = vadd.f32 %v6134, %v6722
      %v6724 = vpop.f32.mrb[0].mxu0
      %v6725 = vadd.f32 %v6130, %v6724
      %v6726 = vpop.f32.mrb[0].mxu0
      %v6727 = vadd.f32 %v6134, %v6726
      %6728 = vmatprep.mubr.bf16.mxu0 0
      %6729 = vmatmul.mubr.bf16.gmra.mrb[0].mxu0 %v6532
      %v6730 = vpop.f32.mrb[0].mxu0
      %v6731 = vadd.f32 %v6130, %v6730
      %v6732 = vpop.f32.mrb[0].mxu0
      %v6733 = vadd.f32 %v6134, %v6732
      %v6734 = vpop.f32.mrb[0].mxu0
      %v6735 = vadd.f32 %v6130, %v6734
      %v6736 = vpop.f32.mrb[0].mxu0
      %v6737 = vadd.f32 %v6134, %v6736
      %6738 = vmatprep.mubr.bf16.mxu0 0
      %6739 = vmatmul.mubr.bf16.gmra.mrb[0].mxu0 %v6535
      %v6740 = vpop.f32.mrb[0].mxu0
      %v6741 = vadd.f32 %v6130, %v6740
      %v6742 = vpop.f32.mrb[0].mxu0
      %v6743 = vadd.f32 %v6134, %v6742
      %v6744 = vpop.f32.mrb[0].mxu0
      %v6745 = vadd.f32 %v6130, %v6744
      %v6746 = vpop.f32.mrb[0].mxu0
      %v6747 = vadd.f32 %v6134, %v6746
      %6748 = vmatprep.mubr.bf16.mxu0 0
      %6749 = vmatmul.mubr.bf16.gmra.mrb[0].mxu0 %v6538
      %v6750 = vpop.f32.mrb[0].mxu0
      %v6751 = vadd.f32 %v6130, %v6750
      %v6752 = vpop.f32.mrb[0].mxu0
      %v6753 = vadd.f32 %v6134, %v6752
      %v6754 = vpop.f32.mrb[0].mxu0
      %v6755 = vadd.f32 %v6130, %v6754
      %v6756 = vpop.f32.mrb[0].mxu0
      %v6757 = vadd.f32 %v6134, %v6756
      %6758 = vmatprep.mubr.bf16.mxu0 0
      %6759 = vmatmul.mubr.bf16.gmra.mrb[0].mxu0 %v6541
      %v6760 = vpop.f32.mrb[0].mxu0
      %v6761 = vadd.f32 %v6130, %v6760
      %v6762 = vpop.f32.mrb[0].mxu0
      %v6763 = vadd.f32 %v6134, %v6762
      %v6764 = vpop.f32.mrb[0].mxu0
      %v6765 = vadd.f32 %v6130, %v6764
      %v6766 = vpop.f32.mrb[0].mxu0
      %v6767 = vadd.f32 %v6134, %v6766
      %6768 = vdwg.mxu0
      %6769 = vmatprep.subr.bf16.mxu0 %v6396
      %6770 = vmatpush1.bf16.msra.mxu0 %v6395
      %6771 = vmatprep.subr.bf16.mxu0 %v6412
      %6772 = vmatpush1.bf16.msra.mxu0 %v6411
      %6773 = vmatprep.subr.bf16.mxu0 %v6428
      %6774 = vmatpush1.bf16.msra.mxu0 %v6427
      %6775 = vmatprep.subr.bf16.mxu0 %v6444
      %6776 = vmatpush1.bf16.msra.mxu0 %v6443
      %6777 = vmatprep.subr.bf16.mxu0 0
      %6778 = vmatpush1.bf16.msra.mxu0 0
      %6779 = vmatprep.subr.bf16.mxu0 0
      %6780 = vmatpush1.bf16.msra.mxu0 0
      %6781 = vmatprep.subr.bf16.mxu0 0
      %6782 = vmatpush1.bf16.msra.mxu0 0
      %6783 = vmatprep.subr.bf16.mxu0 0
      %6784 = vmatpush1.bf16.msra.mxu0 0
      %6785 = vmatprep.subr.bf16.mxu0 0
      %6786 = vmatpush1.bf16.msra.mxu0 0
      %6787 = vmatprep.subr.bf16.mxu0 0
      %6788 = vmatpush1.bf16.msra.mxu0 0
      %6789 = vmatprep.subr.bf16.mxu0 0
      %6790 = vmatpush1.bf16.msra.mxu0 0
      %6791 = vmatprep.subr.bf16.mxu0 0
      %6792 = vmatpush1.bf16.msra.mxu0 0
      %6793 = vmatprep.subr.bf16.mxu0 0
      %6794 = vmatpush1.bf16.msra.mxu0 0
      %6795 = vmatprep.subr.bf16.mxu0 0
      %6796 = vmatpush1.bf16.msra.mxu0 0
      %6797 = vmatprep.subr.bf16.mxu0 0
      %6798 = vmatpush1.bf16.msra.mxu0 0
      %6799 = vmatprep.subr.bf16.mxu0 0
      %6800 = vmatpush1.bf16.msra.mxu0 0
      %6801 = vmatprep.mubr.bf16.mxu0 0
      %6802 = vmatmul.mubr.bf16.gmra.mrb[0].mxu0 %v6520
      %v6803 = vpop.f32.mrb[0].mxu0
      %v6804 = vadd.f32 %v6138, %v6803
      %v6805 = vpop.f32.mrb[0].mxu0
      %v6806 = vadd.f32 %v6142, %v6805
      %v6807 = vpop.f32.mrb[0].mxu0
      %v6808 = vadd.f32 %v6138, %v6807
      %v6809 = vpop.f32.mrb[0].mxu0
      %v6810 = vadd.f32 %v6142, %v6809
      %6811 = vmatprep.mubr.bf16.mxu0 0
      %6812 = vmatmul.mubr.bf16.gmra.mrb[0].mxu0 %v6523
      %v6813 = vpop.f32.mrb[0].mxu0
      %v6814 = vadd.f32 %v6138, %v6813
      %v6815 = vpop.f32.mrb[0].mxu0
      %v6816 = vadd.f32 %v6142, %v6815
      %v6817 = vpop.f32.mrb[0].mxu0
      %v6818 = vadd.f32 %v6138, %v6817
      %v6819 = vpop.f32.mrb[0].mxu0
      %v6820 = vadd.f32 %v6142, %v6819
      %6821 = vmatprep.mubr.bf16.mxu0 0
      %6822 = vmatmul.mubr.bf16.gmra.mrb[0].mxu0 %v6526
      %v6823 = vpop.f32.mrb[0].mxu0
      %v6824 = vadd.f32 %v6138, %v6823
      %v6825 = vpop.f32.mrb[0].mxu0
      %v6826 = vadd.f32 %v6142, %v6825
      %v6827 = vpop.f32.mrb[0].mxu0
      %v6828 = vadd.f32 %v6138, %v6827
      %v6829 = vpop.f32.mrb[0].mxu0
      %v6830 = vadd.f32 %v6142, %v6829
      %6831 = vmatprep.mubr.bf16.mxu0 0
      %6832 = vmatmul.mubr.bf16.gmra.mrb[0].mxu0 %v6529
      %v6833 = vpop.f32.mrb[0].mxu0
      %v6834 = vadd.f32 %v6138, %v6833
      %v6835 = vpop.f32.mrb[0].mxu0
      %v6836 = vadd.f32 %v6142, %v6835
      %v6837 = vpop.f32.mrb[0].mxu0
      %v6838 = vadd.f32 %v6138, %v6837
      %v6839 = vpop.f32.mrb[0].mxu0
      %v6840 = vadd.f32 %v6142, %v6839
      %6841 = vmatprep.mubr.bf16.mxu0 0
      %6842 = vmatmul.mubr.bf16.gmra.mrb[0].mxu0 %v6532
      %v6843 = vpop.f32.mrb[0].mxu0
      %v6844 = vadd.f32 %v6138, %v6843
      %v6845 = vpop.f32.mrb[0].mxu0
      %v6846 = vadd.f32 %v6142, %v6845
      %v6847 = vpop.f32.mrb[0].mxu0
      %v6848 = vadd.f32 %v6138, %v6847
      %v6849 = vpop.f32.mrb[0].mxu0
      %v6850 = vadd.f32 %v6142, %v6849
      %6851 = vmatprep.mubr.bf16.mxu0 0
      %6852 = vmatmul.mubr.bf16.gmra.mrb[0].mxu0 %v6535
      %v6853 = vpop.f32.mrb[0].mxu0
      %v6854 = vadd.f32 %v6138, %v6853
      %v6855 = vpop.f32.mrb[0].mxu0
      %v6856 = vadd.f32 %v6142, %v6855
      %v6857 = vpop.f32.mrb[0].mxu0
      %v6858 = vadd.f32 %v6138, %v6857
      %v6859 = vpop.f32.mrb[0].mxu0
      %v6860 = vadd.f32 %v6142, %v6859
      %6861 = vmatprep.mubr.bf16.mxu0 0
      %6862 = vmatmul.mubr.bf16.gmra.mrb[0].mxu0 %v6538
      %v6863 = vpop.f32.mrb[0].mxu0
      %v6864 = vadd.f32 %v6138, %v6863
      %v6865 = vpop.f32.mrb[0].mxu0
      %v6866 = vadd.f32 %v6142, %v6865
      %v6867 = vpop.f32.mrb[0].mxu0
      %v6868 = vadd.f32 %v6138, %v6867
      %v6869 = vpop.f32.mrb[0].mxu0
      %v6870 = vadd.f32 %v6142, %v6869
      %6871 = vmatprep.mubr.bf16.mxu0 0
      %6872 = vmatmul.mubr.bf16.gmra.mrb[0].mxu0 %v6541
      %v6873 = vpop.f32.mrb[0].mxu0
      %v6874 = vadd.f32 %v6138, %v6873
      %v6875 = vpop.f32.mrb[0].mxu0
      %v6876 = vadd.f32 %v6142, %v6875
      %v6877 = vpop.f32.mrb[0].mxu0
      %v6878 = vadd.f32 %v6138, %v6877
      %v6879 = vpop.f32.mrb[0].mxu0
      %v6880 = vadd.f32 %v6142, %v6879
      %6881 = vdwg.mxu0
      %6882 = vmatprep.subr.bf16.mxu0 %v6398
      %6883 = vmatpush1.bf16.msra.mxu0 %v6397
      %6884 = vmatprep.subr.bf16.mxu0 %v6414
      %6885 = vmatpush1.bf16.msra.mxu0 %v6413
      %6886 = vmatprep.subr.bf16.mxu0 %v6430
      %6887 = vmatpush1.bf16.msra.mxu0 %v6429
      %6888 = vmatprep.subr.bf16.mxu0 %v6446
      %6889 = vmatpush1.bf16.msra.mxu0 %v6445
      %6890 = vmatprep.subr.bf16.mxu0 0
      %6891 = vmatpush1.bf16.msra.mxu0 0
      %6892 = vmatprep.subr.bf16.mxu0 0
      %6893 = vmatpush1.bf16.msra.mxu0 0
      %6894 = vmatprep.subr.bf16.mxu0 0
      %6895 = vmatpush1.bf16.msra.mxu0 0
      %6896 = vmatprep.subr.bf16.mxu0 0
      %6897 = vmatpush1.bf16.msra.mxu0 0
      %6898 = vmatprep.subr.bf16.mxu0 0
      %6899 = vmatpush1.bf16.msra.mxu0 0
      %6900 = vmatprep.subr.bf16.mxu0 0
      %6901 = vmatpush1.bf16.msra.mxu0 0
      %6902 = vmatprep.subr.bf16.mxu0 0
      %6903 = vmatpush1.bf16.msra.mxu0 0
      %6904 = vmatprep.subr.bf16.mxu0 0
      %6905 = vmatpush1.bf16.msra.mxu0 0
      %6906 = vmatprep.subr.bf16.mxu0 0
      %6907 = vmatpush1.bf16.msra.mxu0 0
      %6908 = vmatprep.subr.bf16.mxu0 0
      %6909 = vmatpush1.bf16.msra.mxu0 0
      %6910 = vmatprep.subr.bf16.mxu0 0
      %6911 = vmatpush1.bf16.msra.mxu0 0
      %6912 = vmatprep.subr.bf16.mxu0 0
      %6913 = vmatpush1.bf16.msra.mxu0 0
      %6914 = vmatprep.mubr.bf16.mxu0 0
      %6915 = vmatmul.mubr.bf16.gmra.mrb[0].mxu0 %v6520
      %v6916 = vpop.f32.mrb[0].mxu0
      %v6917 = vadd.f32 %v6146, %v6916
      %v6918 = vpop.f32.mrb[0].mxu0
      %v6919 = vadd.f32 %v6150, %v6918
      %v6920 = vpop.f32.mrb[0].mxu0
      %v6921 = vadd.f32 %v6146, %v6920
      %v6922 = vpop.f32.mrb[0].mxu0
      %v6923 = vadd.f32 %v6150, %v6922
      %6924 = vmatprep.mubr.bf16.mxu0 0
      %6925 = vmatmul.mubr.bf16.gmra.mrb[0].mxu0 %v6523
      %v6926 = vpop.f32.mrb[0].mxu0
      %v6927 = vadd.f32 %v6146, %v6926
      %v6928 = vpop.f32.mrb[0].mxu0
      %v6929 = vadd.f32 %v6150, %v6928
      %v6930 = vpop.f32.mrb[0].mxu0
      %v6931 = vadd.f32 %v6146, %v6930
      %v6932 = vpop.f32.mrb[0].mxu0
      %v6933 = vadd.f32 %v6150, %v6932
      %6934 = vmatprep.mubr.bf16.mxu0 0
      %6935 = vmatmul.mubr.bf16.gmra.mrb[0].mxu0 %v6526
      %v6936 = vpop.f32.mrb[0].mxu0
      %v6937 = vadd.f32 %v6146, %v6936
      %v6938 = vpop.f32.mrb[0].mxu0
      %v6939 = vadd.f32 %v6150, %v6938
      %v6940 = vpop.f32.mrb[0].mxu0
      %v6941 = vadd.f32 %v6146, %v6940
      %v6942 = vpop.f32.mrb[0].mxu0
      %v6943 = vadd.f32 %v6150, %v6942
      %6944 = vmatprep.mubr.bf16.mxu0 0
      %6945 = vmatmul.mubr.bf16.gmra.mrb[0].mxu0 %v6529
      %v6946 = vpop.f32.mrb[0].mxu0
      %v6947 = vadd.f32 %v6146, %v6946
      %v6948 = vpop.f32.mrb[0].mxu0
      %v6949 = vadd.f32 %v6150, %v6948
      %v6950 = vpop.f32.mrb[0].mxu0
      %v6951 = vadd.f32 %v6146, %v6950
      %v6952 = vpop.f32.mrb[0].mxu0
      %v6953 = vadd.f32 %v6150, %v6952
      %6954 = vmatprep.mubr.bf16.mxu0 0
      %6955 = vmatmul.mubr.bf16.gmra.mrb[0].mxu0 %v6532
      %v6956 = vpop.f32.mrb[0].mxu0
      %v6957 = vadd.f32 %v6146, %v6956
      %v6958 = vpop.f32.mrb[0].mxu0
      %v6959 = vadd.f32 %v6150, %v6958
      %v6960 = vpop.f32.mrb[0].mxu0
      %v6961 = vadd.f32 %v6146, %v6960
      %v6962 = vpop.f32.mrb[0].mxu0
      %v6963 = vadd.f32 %v6150, %v6962
      %6964 = vmatprep.mubr.bf16.mxu0 0
      %6965 = vmatmul.mubr.bf16.gmra.mrb[0].mxu0 %v6535
      %v6966 = vpop.f32.mrb[0].mxu0
      %v6967 = vadd.f32 %v6146, %v6966
      %v6968 = vpop.f32.mrb[0].mxu0
      %v6969 = vadd.f32 %v6150, %v6968
      %v6970 = vpop.f32.mrb[0].mxu0
      %v6971 = vadd.f32 %v6146, %v6970
      %v6972 = vpop.f32.mrb[0].mxu0
      %v6973 = vadd.f32 %v6150, %v6972
      %6974 = vmatprep.mubr.bf16.mxu0 0
      %6975 = vmatmul.mubr.bf16.gmra.mrb[0].mxu0 %v6538
      %v6976 = vpop.f32.mrb[0].mxu0
      %v6977 = vadd.f32 %v6146, %v6976
      %v6978 = vpop.f32.mrb[0].mxu0
      %v6979 = vadd.f32 %v6150, %v6978
      %v6980 = vpop.f32.mrb[0].mxu0
      %v6981 = vadd.f32 %v6146, %v6980
      %v6982 = vpop.f32.mrb[0].mxu0
      %v6983 = vadd.f32 %v6150, %v6982
      %6984 = vmatprep.mubr.bf16.mxu0 0
      %6985 = vmatmul.mubr.bf16.gmra.mrb[0].mxu0 %v6541
      %v6986 = vpop.f32.mrb[0].mxu0
      %v6987 = vadd.f32 %v6146, %v6986
      %v6988 = vpop.f32.mrb[0].mxu0
      %v6989 = vadd.f32 %v6150, %v6988
      %v6990 = vpop.f32.mrb[0].mxu0
      %v6991 = vadd.f32 %v6146, %v6990
      %v6992 = vpop.f32.mrb[0].mxu0
      %v6993 = vadd.f32 %v6150, %v6992
      %6994 = vdwg.mxu0
      %6995 = vmatprep.subr.bf16.mxu0 %v6400
      %6996 = vmatpush1.bf16.msra.mxu0 %v6399
      %6997 = vmatprep.subr.bf16.mxu0 %v6416
      %6998 = vmatpush1.bf16.msra.mxu0 %v6415
      %6999 = vmatprep.subr.bf16.mxu0 %v6432
      %7000 = vmatpush1.bf16.msra.mxu0 %v6431
      %7001 = vmatprep.subr.bf16.mxu0 %v6448
      %7002 = vmatpush1.bf16.msra.mxu0 %v6447
      %7003 = vmatprep.subr.bf16.mxu0 0
      %7004 = vmatpush1.bf16.msra.mxu0 0
      %7005 = vmatprep.subr.bf16.mxu0 0
      %7006 = vmatpush1.bf16.msra.mxu0 0
      %7007 = vmatprep.subr.bf16.mxu0 0
      %7008 = vmatpush1.bf16.msra.mxu0 0
      %7009 = vmatprep.subr.bf16.mxu0 0
      %7010 = vmatpush1.bf16.msra.mxu0 0
      %7011 = vmatprep.subr.bf16.mxu0 0
      %7012 = vmatpush1.bf16.msra.mxu0 0
      %7013 = vmatprep.subr.bf16.mxu0 0
      %7014 = vmatpush1.bf16.msra.mxu0 0
      %7015 = vmatprep.subr.bf16.mxu0 0
      %7016 = vmatpush1.bf16.msra.mxu0 0
      %7017 = vmatprep.subr.bf16.mxu0 0
      %7018 = vmatpush1.bf16.msra.mxu0 0
      %7019 = vmatprep.subr.bf16.mxu0 0
      %7020 = vmatpush1.bf16.msra.mxu0 0
      %7021 = vmatprep.subr.bf16.mxu0 0
      %7022 = vmatpush1.bf16.msra.mxu0 0
      %7023 = vmatprep.subr.bf16.mxu0 0
      %7024 = vmatpush1.bf16.msra.mxu0 0
      %7025 = vmatprep.subr.bf16.mxu0 0
      %7026 = vmatpush1.bf16.msra.mxu0 0
      %7027 = vmatprep.mubr.bf16.mxu0 0
      %7028 = vmatmul.mubr.bf16.gmra.mrb[0].mxu0 %v6520
      %v7029 = vpop.f32.mrb[0].mxu0
      %v7030 = vadd.f32 %v6154, %v7029
      %v7031 = vpop.f32.mrb[0].mxu0
      %v7032 = vadd.f32 %v6158, %v7031
      %v7033 = vpop.f32.mrb[0].mxu0
      %v7034 = vadd.f32 %v6154, %v7033
      %v7035 = vpop.f32.mrb[0].mxu0
      %v7036 = vadd.f32 %v6158, %v7035
      %7037 = vmatprep.mubr.bf16.mxu0 0
      %7038 = vmatmul.mubr.bf16.gmra.mrb[0].mxu0 %v6523
      %v7039 = vpop.f32.mrb[0].mxu0
      %v7040 = vadd.f32 %v6154, %v7039
      %v7041 = vpop.f32.mrb[0].mxu0
      %v7042 = vadd.f32 %v6158, %v7041
      %v7043 = vpop.f32.mrb[0].mxu0
      %v7044 = vadd.f32 %v6154, %v7043
      %v7045 = vpop.f32.mrb[0].mxu0
      %v7046 = vadd.f32 %v6158, %v7045
      %7047 = vmatprep.mubr.bf16.mxu0 0
      %7048 = vmatmul.mubr.bf16.gmra.mrb[0].mxu0 %v6526
      %v7049 = vpop.f32.mrb[0].mxu0
      %v7050 = vadd.f32 %v6154, %v7049
      %v7051 = vpop.f32.mrb[0].mxu0
      %v7052 = vadd.f32 %v6158, %v7051
      %v7053 = vpop.f32.mrb[0].mxu0
      %v7054 = vadd.f32 %v6154, %v7053
      %v7055 = vpop.f32.mrb[0].mxu0
      %v7056 = vadd.f32 %v6158, %v7055
      %7057 = vmatprep.mubr.bf16.mxu0 0
      %7058 = vmatmul.mubr.bf16.gmra.mrb[0].mxu0 %v6529
      %v7059 = vpop.f32.mrb[0].mxu0
      %v7060 = vadd.f32 %v6154, %v7059
      %v7061 = vpop.f32.mrb[0].mxu0
      %v7062 = vadd.f32 %v6158, %v7061
      %v7063 = vpop.f32.mrb[0].mxu0
      %v7064 = vadd.f32 %v6154, %v7063
      %v7065 = vpop.f32.mrb[0].mxu0
      %v7066 = vadd.f32 %v6158, %v7065
      %7067 = vmatprep.mubr.bf16.mxu0 0
      %7068 = vmatmul.mubr.bf16.gmra.mrb[0].mxu0 %v6532
      %v7069 = vpop.f32.mrb[0].mxu0
      %v7070 = vadd.f32 %v6154, %v7069
      %v7071 = vpop.f32.mrb[0].mxu0
      %v7072 = vadd.f32 %v6158, %v7071
      %v7073 = vpop.f32.mrb[0].mxu0
      %v7074 = vadd.f32 %v6154, %v7073
      %v7075 = vpop.f32.mrb[0].mxu0
      %v7076 = vadd.f32 %v6158, %v7075
      %7077 = vmatprep.mubr.bf16.mxu0 0
      %7078 = vmatmul.mubr.bf16.gmra.mrb[0].mxu0 %v6535
      %v7079 = vpop.f32.mrb[0].mxu0
      %v7080 = vadd.f32 %v6154, %v7079
      %v7081 = vpop.f32.mrb[0].mxu0
      %v7082 = vadd.f32 %v6158, %v7081
      %v7083 = vpop.f32.mrb[0].mxu0
      %v7084 = vadd.f32 %v6154, %v7083
      %v7085 = vpop.f32.mrb[0].mxu0
      %v7086 = vadd.f32 %v6158, %v7085
      %7087 = vmatprep.mubr.bf16.mxu0 0
      %7088 = vmatmul.mubr.bf16.gmra.mrb[0].mxu0 %v6538
      %v7089 = vpop.f32.mrb[0].mxu0
      %v7090 = vadd.f32 %v6154, %v7089
      %v7091 = vpop.f32.mrb[0].mxu0
      %v7092 = vadd.f32 %v6158, %v7091
      %v7093 = vpop.f32.mrb[0].mxu0
      %v7094 = vadd.f32 %v6154, %v7093
      %v7095 = vpop.f32.mrb[0].mxu0
      %v7096 = vadd.f32 %v6158, %v7095
      %7097 = vmatprep.mubr.bf16.mxu0 0
      %7098 = vmatmul.mubr.bf16.gmra.mrb[0].mxu0 %v6541
      %v7099 = vpop.f32.mrb[0].mxu0
      %v7100 = vadd.f32 %v6154, %v7099
      %v7101 = vpop.f32.mrb[0].mxu0
      %v7102 = vadd.f32 %v6158, %v7101
      %v7103 = vpop.f32.mrb[0].mxu0
      %v7104 = vadd.f32 %v6154, %v7103
      %v7105 = vpop.f32.mrb[0].mxu0
      %v7106 = vadd.f32 %v6158, %v7105
      %7107 = vdwg.mxu0
      %7108 = vmatprep.subr.bf16.mxu0 %v6402
      %7109 = vmatpush1.bf16.msra.mxu0 %v6401
      %7110 = vmatprep.subr.bf16.mxu0 %v6418
      %7111 = vmatpush1.bf16.msra.mxu0 %v6417
      %7112 = vmatprep.subr.bf16.mxu0 %v6434
      %7113 = vmatpush1.bf16.msra.mxu0 %v6433
      %7114 = vmatprep.subr.bf16.mxu0 %v6450
      %7115 = vmatpush1.bf16.msra.mxu0 %v6449
      %7116 = vmatprep.subr.bf16.mxu0 0
      %7117 = vmatpush1.bf16.msra.mxu0 0
      %7118 = vmatprep.subr.bf16.mxu0 0
      %7119 = vmatpush1.bf16.msra.mxu0 0
      %7120 = vmatprep.subr.bf16.mxu0 0
      %7121 = vmatpush1.bf16.msra.mxu0 0
      %7122 = vmatprep.subr.bf16.mxu0 0
      %7123 = vmatpush1.bf16.msra.mxu0 0
      %7124 = vmatprep.subr.bf16.mxu0 0
      %7125 = vmatpush1.bf16.msra.mxu0 0
      %7126 = vmatprep.subr.bf16.mxu0 0
      %7127 = vmatpush1.bf16.msra.mxu0 0
      %7128 = vmatprep.subr.bf16.mxu0 0
      %7129 = vmatpush1.bf16.msra.mxu0 0
      %7130 = vmatprep.subr.bf16.mxu0 0
      %7131 = vmatpush1.bf16.msra.mxu0 0
      %7132 = vmatprep.subr.bf16.mxu0 0
      %7133 = vmatpush1.bf16.msra.mxu0 0
      %7134 = vmatprep.subr.bf16.mxu0 0
      %7135 = vmatpush1.bf16.msra.mxu0 0
      %7136 = vmatprep.subr.bf16.mxu0 0
      %7137 = vmatpush1.bf16.msra.mxu0 0
      %7138 = vmatprep.subr.bf16.mxu0 0
      %7139 = vmatpush1.bf16.msra.mxu0 0
      %7140 = vmatprep.mubr.bf16.mxu0 0
      %7141 = vmatmul.mubr.bf16.gmra.mrb[0].mxu0 %v6520
      %v7142 = vpop.f32.mrb[0].mxu0
      %v7143 = vadd.f32 %v6162, %v7142
      %v7144 = vpop.f32.mrb[0].mxu0
      %v7145 = vadd.f32 %v6166, %v7144
      %v7146 = vpop.f32.mrb[0].mxu0
      %v7147 = vadd.f32 %v6162, %v7146
      %v7148 = vpop.f32.mrb[0].mxu0
      %v7149 = vadd.f32 %v6166, %v7148
      %7150 = vmatprep.mubr.bf16.mxu0 0
      %7151 = vmatmul.mubr.bf16.gmra.mrb[0].mxu0 %v6523
      %v7152 = vpop.f32.mrb[0].mxu0
      %v7153 = vadd.f32 %v6162, %v7152
      %v7154 = vpop.f32.mrb[0].mxu0
      %v7155 = vadd.f32 %v6166, %v7154
      %v7156 = vpop.f32.mrb[0].mxu0
      %v7157 = vadd.f32 %v6162, %v7156
      %v7158 = vpop.f32.mrb[0].mxu0
      %v7159 = vadd.f32 %v6166, %v7158
      %7160 = vmatprep.mubr.bf16.mxu0 0
      %7161 = vmatmul.mubr.bf16.gmra.mrb[0].mxu0 %v6526
      %v7162 = vpop.f32.mrb[0].mxu0
      %v7163 = vadd.f32 %v6162, %v7162
      %v7164 = vpop.f32.mrb[0].mxu0
      %v7165 = vadd.f32 %v6166, %v7164
      %v7166 = vpop.f32.mrb[0].mxu0
      %v7167 = vadd.f32 %v6162, %v7166
      %v7168 = vpop.f32.mrb[0].mxu0
      %v7169 = vadd.f32 %v6166, %v7168
      %7170 = vmatprep.mubr.bf16.mxu0 0
      %7171 = vmatmul.mubr.bf16.gmra.mrb[0].mxu0 %v6529
      %v7172 = vpop.f32.mrb[0].mxu0
      %v7173 = vadd.f32 %v6162, %v7172
      %v7174 = vpop.f32.mrb[0].mxu0
      %v7175 = vadd.f32 %v6166, %v7174
      %v7176 = vpop.f32.mrb[0].mxu0
      %v7177 = vadd.f32 %v6162, %v7176
      %v7178 = vpop.f32.mrb[0].mxu0
      %v7179 = vadd.f32 %v6166, %v7178
      %7180 = vmatprep.mubr.bf16.mxu0 0
      %7181 = vmatmul.mubr.bf16.gmra.mrb[0].mxu0 %v6532
      %v7182 = vpop.f32.mrb[0].mxu0
      %v7183 = vadd.f32 %v6162, %v7182
      %v7184 = vpop.f32.mrb[0].mxu0
      %v7185 = vadd.f32 %v6166, %v7184
      %v7186 = vpop.f32.mrb[0].mxu0
      %v7187 = vadd.f32 %v6162, %v7186
      %v7188 = vpop.f32.mrb[0].mxu0
      %v7189 = vadd.f32 %v6166, %v7188
      %7190 = vmatprep.mubr.bf16.mxu0 0
      %7191 = vmatmul.mubr.bf16.gmra.mrb[0].mxu0 %v6535
      %v7192 = vpop.f32.mrb[0].mxu0
      %v7193 = vadd.f32 %v6162, %v7192
      %v7194 = vpop.f32.mrb[0].mxu0
      %v7195 = vadd.f32 %v6166, %v7194
      %v7196 = vpop.f32.mrb[0].mxu0
      %v7197 = vadd.f32 %v6162, %v7196
      %v7198 = vpop.f32.mrb[0].mxu0
      %v7199 = vadd.f32 %v6166, %v7198
      %7200 = vmatprep.mubr.bf16.mxu0 0
      %7201 = vmatmul.mubr.bf16.gmra.mrb[0].mxu0 %v6538
      %v7202 = vpop.f32.mrb[0].mxu0
      %v7203 = vadd.f32 %v6162, %v7202
      %v7204 = vpop.f32.mrb[0].mxu0
      %v7205 = vadd.f32 %v6166, %v7204
      %v7206 = vpop.f32.mrb[0].mxu0
      %v7207 = vadd.f32 %v6162, %v7206
      %v7208 = vpop.f32.mrb[0].mxu0
      %v7209 = vadd.f32 %v6166, %v7208
      %7210 = vmatprep.mubr.bf16.mxu0 0
      %7211 = vmatmul.mubr.bf16.gmra.mrb[0].mxu0 %v6541
      %v7212 = vpop.f32.mrb[0].mxu0
      %v7213 = vadd.f32 %v6162, %v7212
      %v7214 = vpop.f32.mrb[0].mxu0
      %v7215 = vadd.f32 %v6166, %v7214
      %v7216 = vpop.f32.mrb[0].mxu0
      %v7217 = vadd.f32 %v6162, %v7216
      %v7218 = vpop.f32.mrb[0].mxu0
      %v7219 = vadd.f32 %v6166, %v7218
      %7220 = vdwg.mxu0
      %7221 = vmatprep.subr.bf16.mxu0 %v6404
      %7222 = vmatpush1.bf16.msra.mxu0 %v6403
      %7223 = vmatprep.subr.bf16.mxu0 %v6420
      %7224 = vmatpush1.bf16.msra.mxu0 %v6419
      %7225 = vmatprep.subr.bf16.mxu0 %v6436
      %7226 = vmatpush1.bf16.msra.mxu0 %v6435
      %7227 = vmatprep.subr.bf16.mxu0 %v6452
      %7228 = vmatpush1.bf16.msra.mxu0 %v6451
      %7229 = vmatprep.subr.bf16.mxu0 0
      %7230 = vmatpush1.bf16.msra.mxu0 0
      %7231 = vmatprep.subr.bf16.mxu0 0
      %7232 = vmatpush1.bf16.msra.mxu0 0
      %7233 = vmatprep.subr.bf16.mxu0 0
      %7234 = vmatpush1.bf16.msra.mxu0 0
      %7235 = vmatprep.subr.bf16.mxu0 0
      %7236 = vmatpush1.bf16.msra.mxu0 0
      %7237 = vmatprep.subr.bf16.mxu0 0
      %7238 = vmatpush1.bf16.msra.mxu0 0
      %7239 = vmatprep.subr.bf16.mxu0 0
      %7240 = vmatpush1.bf16.msra.mxu0 0
      %7241 = vmatprep.subr.bf16.mxu0 0
      %7242 = vmatpush1.bf16.msra.mxu0 0
      %7243 = vmatprep.subr.bf16.mxu0 0
      %7244 = vmatpush1.bf16.msra.mxu0 0
      %7245 = vmatprep.subr.bf16.mxu0 0
      %7246 = vmatpush1.bf16.msra.mxu0 0
      %7247 = vmatprep.subr.bf16.mxu0 0
      %7248 = vmatpush1.bf16.msra.mxu0 0
      %7249 = vmatprep.subr.bf16.mxu0 0
      %7250 = vmatpush1.bf16.msra.mxu0 0
      %7251 = vmatprep.subr.bf16.mxu0 0
      %7252 = vmatpush1.bf16.msra.mxu0 0
      %7253 = vmatprep.mubr.bf16.mxu0 0
      %7254 = vmatmul.mubr.bf16.gmra.mrb[0].mxu0 %v6520
      %v7255 = vpop.f32.mrb[0].mxu0
      %v7256 = vadd.f32 %v6170, %v7255
      %v7257 = vpop.f32.mrb[0].mxu0
      %v7258 = vadd.f32 %v6174, %v7257
      %v7259 = vpop.f32.mrb[0].mxu0
      %v7260 = vadd.f32 %v6170, %v7259
      %v7261 = vpop.f32.mrb[0].mxu0
      %v7262 = vadd.f32 %v6174, %v7261
      %7263 = vmatprep.mubr.bf16.mxu0 0
      %7264 = vmatmul.mubr.bf16.gmra.mrb[0].mxu0 %v6523
      %v7265 = vpop.f32.mrb[0].mxu0
      %v7266 = vadd.f32 %v6170, %v7265
      %v7267 = vpop.f32.mrb[0].mxu0
      %v7268 = vadd.f32 %v6174, %v7267
      %v7269 = vpop.f32.mrb[0].mxu0
      %v7270 = vadd.f32 %v6170, %v7269
      %v7271 = vpop.f32.mrb[0].mxu0
      %v7272 = vadd.f32 %v6174, %v7271
      %7273 = vmatprep.mubr.bf16.mxu0 0
      %7274 = vmatmul.mubr.bf16.gmra.mrb[0].mxu0 %v6526
      %v7275 = vpop.f32.mrb[0].mxu0
      %v7276 = vadd.f32 %v6170, %v7275
      %v7277 = vpop.f32.mrb[0].mxu0
      %v7278 = vadd.f32 %v6174, %v7277
      %v7279 = vpop.f32.mrb[0].mxu0
      %v7280 = vadd.f32 %v6170, %v7279
      %v7281 = vpop.f32.mrb[0].mxu0
      %v7282 = vadd.f32 %v6174, %v7281
      %7283 = vmatprep.mubr.bf16.mxu0 0
      %7284 = vmatmul.mubr.bf16.gmra.mrb[0].mxu0 %v6529
      %v7285 = vpop.f32.mrb[0].mxu0
      %v7286 = vadd.f32 %v6170, %v7285
      %v7287 = vpop.f32.mrb[0].mxu0
      %v7288 = vadd.f32 %v6174, %v7287
      %v7289 = vpop.f32.mrb[0].mxu0
      %v7290 = vadd.f32 %v6170, %v7289
      %v7291 = vpop.f32.mrb[0].mxu0
      %v7292 = vadd.f32 %v6174, %v7291
      %7293 = vmatprep.mubr.bf16.mxu0 0
      %7294 = vmatmul.mubr.bf16.gmra.mrb[0].mxu0 %v6532
      %v7295 = vpop.f32.mrb[0].mxu0
      %v7296 = vadd.f32 %v6170, %v7295
      %v7297 = vpop.f32.mrb[0].mxu0
      %v7298 = vadd.f32 %v6174, %v7297
      %v7299 = vpop.f32.mrb[0].mxu0
      %v7300 = vadd.f32 %v6170, %v7299
      %v7301 = vpop.f32.mrb[0].mxu0
      %v7302 = vadd.f32 %v6174, %v7301
      %7303 = vmatprep.mubr.bf16.mxu0 0
      %7304 = vmatmul.mubr.bf16.gmra.mrb[0].mxu0 %v6535
      %v7305 = vpop.f32.mrb[0].mxu0
      %v7306 = vadd.f32 %v6170, %v7305
      %v7307 = vpop.f32.mrb[0].mxu0
      %v7308 = vadd.f32 %v6174, %v7307
      %v7309 = vpop.f32.mrb[0].mxu0
      %v7310 = vadd.f32 %v6170, %v7309
      %v7311 = vpop.f32.mrb[0].mxu0
      %v7312 = vadd.f32 %v6174, %v7311
      %7313 = vmatprep.mubr.bf16.mxu0 0
      %7314 = vmatmul.mubr.bf16.gmra.mrb[0].mxu0 %v6538
      %v7315 = vpop.f32.mrb[0].mxu0
      %v7316 = vadd.f32 %v6170, %v7315
      %v7317 = vpop.f32.mrb[0].mxu0
      %v7318 = vadd.f32 %v6174, %v7317
      %v7319 = vpop.f32.mrb[0].mxu0
      %v7320 = vadd.f32 %v6170, %v7319
      %v7321 = vpop.f32.mrb[0].mxu0
      %v7322 = vadd.f32 %v6174, %v7321
      %7323 = vmatprep.mubr.bf16.mxu0 0
      %7324 = vmatmul.mubr.bf16.gmra.mrb[0].mxu0 %v6541
      %v7325 = vpop.f32.mrb[0].mxu0
      %v7326 = vadd.f32 %v6170, %v7325
      %v7327 = vpop.f32.mrb[0].mxu0
      %v7328 = vadd.f32 %v6174, %v7327
      %v7329 = vpop.f32.mrb[0].mxu0
      %v7330 = vadd.f32 %v6170, %v7329
      %v7331 = vpop.f32.mrb[0].mxu0
      %v7332 = vadd.f32 %v6174, %v7331
      %7333 = vdwg.mxu0
      %7334 = vmatprep.subr.bf16.mxu0 %v6406
      %7335 = vmatpush1.bf16.msra.mxu0 %v6405
      %7336 = vmatprep.subr.bf16.mxu0 %v6422
      %7337 = vmatpush1.bf16.msra.mxu0 %v6421
      %7338 = vmatprep.subr.bf16.mxu0 %v6438
      %7339 = vmatpush1.bf16.msra.mxu0 %v6437
      %7340 = vmatprep.subr.bf16.mxu0 %v6454
      %7341 = vmatpush1.bf16.msra.mxu0 %v6453
      %7342 = vmatprep.subr.bf16.mxu0 0
      %7343 = vmatpush1.bf16.msra.mxu0 0
      %7344 = vmatprep.subr.bf16.mxu0 0
      %7345 = vmatpush1.bf16.msra.mxu0 0
      %7346 = vmatprep.subr.bf16.mxu0 0
      %7347 = vmatpush1.bf16.msra.mxu0 0
      %7348 = vmatprep.subr.bf16.mxu0 0
      %7349 = vmatpush1.bf16.msra.mxu0 0
      %7350 = vmatprep.subr.bf16.mxu0 0
      %7351 = vmatpush1.bf16.msra.mxu0 0
      %7352 = vmatprep.subr.bf16.mxu0 0
      %7353 = vmatpush1.bf16.msra.mxu0 0
      %7354 = vmatprep.subr.bf16.mxu0 0
      %7355 = vmatpush1.bf16.msra.mxu0 0
      %7356 = vmatprep.subr.bf16.mxu0 0
      %7357 = vmatpush1.bf16.msra.mxu0 0
      %7358 = vmatprep.subr.bf16.mxu0 0
      %7359 = vmatpush1.bf16.msra.mxu0 0
      %7360 = vmatprep.subr.bf16.mxu0 0
      %7361 = vmatpush1.bf16.msra.mxu0 0
      %7362 = vmatprep.subr.bf16.mxu0 0
      %7363 = vmatpush1.bf16.msra.mxu0 0
      %7364 = vmatprep.subr.bf16.mxu0 0
      %7365 = vmatpush1.bf16.msra.mxu0 0
      %7366 = vmatprep.mubr.bf16.mxu0 0
      %7367 = vmatmul.mubr.bf16.gmra.mrb[0].mxu0 %v6520
      %v7368 = vpop.f32.mrb[0].mxu0
      %v7369 = vadd.f32 %v6178, %v7368
      %v7370 = vpop.f32.mrb[0].mxu0
      %v7371 = vadd.f32 %v6182, %v7370
      %v7372 = vpop.f32.mrb[0].mxu0
      %v7373 = vadd.f32 %v6178, %v7372
      %v7374 = vpop.f32.mrb[0].mxu0
      %v7375 = vadd.f32 %v6182, %v7374
      %7376 = vmatprep.mubr.bf16.mxu0 0
      %7377 = vmatmul.mubr.bf16.gmra.mrb[0].mxu0 %v6523
      %v7378 = vpop.f32.mrb[0].mxu0
      %v7379 = vadd.f32 %v6178, %v7378
      %v7380 = vpop.f32.mrb[0].mxu0
      %v7381 = vadd.f32 %v6182, %v7380
      %v7382 = vpop.f32.mrb[0].mxu0
      %v7383 = vadd.f32 %v6178, %v7382
      %v7384 = vpop.f32.mrb[0].mxu0
      %v7385 = vadd.f32 %v6182, %v7384
      %7386 = vmatprep.mubr.bf16.mxu0 0
      %7387 = vmatmul.mubr.bf16.gmra.mrb[0].mxu0 %v6526
      %v7388 = vpop.f32.mrb[0].mxu0
      %v7389 = vadd.f32 %v6178, %v7388
      %v7390 = vpop.f32.mrb[0].mxu0
      %v7391 = vadd.f32 %v6182, %v7390
      %v7392 = vpop.f32.mrb[0].mxu0
      %v7393 = vadd.f32 %v6178, %v7392
      %v7394 = vpop.f32.mrb[0].mxu0
      %v7395 = vadd.f32 %v6182, %v7394
      %7396 = vmatprep.mubr.bf16.mxu0 0
      %7397 = vmatmul.mubr.bf16.gmra.mrb[0].mxu0 %v6529
      %v7398 = vpop.f32.mrb[0].mxu0
      %v7399 = vadd.f32 %v6178, %v7398
      %v7400 = vpop.f32.mrb[0].mxu0
      %v7401 = vadd.f32 %v6182, %v7400
      %v7402 = vpop.f32.mrb[0].mxu0
      %v7403 = vadd.f32 %v6178, %v7402
      %v7404 = vpop.f32.mrb[0].mxu0
      %v7405 = vadd.f32 %v6182, %v7404
      %7406 = vmatprep.mubr.bf16.mxu0 0
      %7407 = vmatmul.mubr.bf16.gmra.mrb[0].mxu0 %v6532
      %v7408 = vpop.f32.mrb[0].mxu0
      %v7409 = vadd.f32 %v6178, %v7408
      %v7410 = vpop.f32.mrb[0].mxu0
      %v7411 = vadd.f32 %v6182, %v7410
      %v7412 = vpop.f32.mrb[0].mxu0
      %v7413 = vadd.f32 %v6178, %v7412
      %v7414 = vpop.f32.mrb[0].mxu0
      %v7415 = vadd.f32 %v6182, %v7414
      %7416 = vmatprep.mubr.bf16.mxu0 0
      %7417 = vmatmul.mubr.bf16.gmra.mrb[0].mxu0 %v6535
      %v7418 = vpop.f32.mrb[0].mxu0
      %v7419 = vadd.f32 %v6178, %v7418
      %v7420 = vpop.f32.mrb[0].mxu0
      %v7421 = vadd.f32 %v6182, %v7420
      %v7422 = vpop.f32.mrb[0].mxu0
      %v7423 = vadd.f32 %v6178, %v7422
      %v7424 = vpop.f32.mrb[0].mxu0
      %v7425 = vadd.f32 %v6182, %v7424
      %7426 = vmatprep.mubr.bf16.mxu0 0
      %7427 = vmatmul.mubr.bf16.gmra.mrb[0].mxu0 %v6538
      %v7428 = vpop.f32.mrb[0].mxu0
      %v7429 = vadd.f32 %v6178, %v7428
      %v7430 = vpop.f32.mrb[0].mxu0
      %v7431 = vadd.f32 %v6182, %v7430
      %v7432 = vpop.f32.mrb[0].mxu0
      %v7433 = vadd.f32 %v6178, %v7432
      %v7434 = vpop.f32.mrb[0].mxu0
      %v7435 = vadd.f32 %v6182, %v7434
      %7436 = vmatprep.mubr.bf16.mxu0 0
      %7437 = vmatmul.mubr.bf16.gmra.mrb[0].mxu0 %v6541
      %v7438 = vpop.f32.mrb[0].mxu0
      %v7439 = vadd.f32 %v6178, %v7438
      %v7440 = vpop.f32.mrb[0].mxu0
      %v7441 = vadd.f32 %v6182, %v7440
      %v7442 = vpop.f32.mrb[0].mxu0
      %v7443 = vadd.f32 %v6178, %v7442
      %v7444 = vpop.f32.mrb[0].mxu0
      %v7445 = vadd.f32 %v6182, %v7444
      %7446 = vdwg.mxu0
      %v7447 = vmax.f32 %v6578, 0.0
      %v7448 = vmax.f32 %v6580, 0.0
      %v7449 = vmax.f32 %v6691, 0.0
      %v7450 = vmax.f32 %v6693, 0.0
      %v7451 = vmax.f32 %v6804, 0.0
      %v7452 = vmax.f32 %v6806, 0.0
      %v7453 = vmax.f32 %v6917, 0.0
      %v7454 = vmax.f32 %v6919, 0.0
      %v7455 = vmax.f32 %v7030, 0.0
      %v7456 = vmax.f32 %v7032, 0.0
      %v7457 = vmax.f32 %v7143, 0.0
      %v7458 = vmax.f32 %v7145, 0.0
      %v7459 = vmax.f32 %v7256, 0.0
      %v7460 = vmax.f32 %v7258, 0.0
      %v7461 = vmax.f32 %v7369, 0.0
      %v7462 = vmax.f32 %v7371, 0.0
      %v7463 = vmax.f32 %v6582, 0.0
      %v7464 = vmax.f32 %v6584, 0.0
      %v7465 = vmax.f32 %v6695, 0.0
      %v7466 = vmax.f32 %v6697, 0.0
      %v7467 = vmax.f32 %v6808, 0.0
      %v7468 = vmax.f32 %v6810, 0.0
      %v7469 = vmax.f32 %v6921, 0.0
      %v7470 = vmax.f32 %v6923, 0.0
      %v7471 = vmax.f32 %v7034, 0.0
      %v7472 = vmax.f32 %v7036, 0.0
      %v7473 = vmax.f32 %v7147, 0.0
      %v7474 = vmax.f32 %v7149, 0.0
      %v7475 = vmax.f32 %v7260, 0.0
      %v7476 = vmax.f32 %v7262, 0.0
      %v7477 = vmax.f32 %v7373, 0.0
      %v7478 = vmax.f32 %v7375, 0.0
      %v7479 = vmax.f32 %v6588, 0.0
      %v7480 = vmax.f32 %v6590, 0.0
      %v7481 = vmax.f32 %v6701, 0.0
      %v7482 = vmax.f32 %v6703, 0.0
      %v7483 = vmax.f32 %v6814, 0.0
      %v7484 = vmax.f32 %v6816, 0.0
      %v7485 = vmax.f32 %v6927, 0.0
      %v7486 = vmax.f32 %v6929, 0.0
      %v7487 = vmax.f32 %v7040, 0.0
      %v7488 = vmax.f32 %v7042, 0.0
      %v7489 = vmax.f32 %v7153, 0.0
      %v7490 = vmax.f32 %v7155, 0.0
      %v7491 = vmax.f32 %v7266, 0.0
      %v7492 = vmax.f32 %v7268, 0.0
      %v7493 = vmax.f32 %v7379, 0.0
      %v7494 = vmax.f32 %v7381, 0.0
      %v7495 = vmax.f32 %v6592, 0.0
      %v7496 = vmax.f32 %v6594, 0.0
      %v7497 = vmax.f32 %v6705, 0.0
      %v7498 = vmax.f32 %v6707, 0.0
      %v7499 = vmax.f32 %v6818, 0.0
      %v7500 = vmax.f32 %v6820, 0.0
      %v7501 = vmax.f32 %v6931, 0.0
      %v7502 = vmax.f32 %v6933, 0.0
      %v7503 = vmax.f32 %v7044, 0.0
      %v7504 = vmax.f32 %v7046, 0.0
      %v7505 = vmax.f32 %v7157, 0.0
      %v7506 = vmax.f32 %v7159, 0.0
      %v7507 = vmax.f32 %v7270, 0.0
      %v7508 = vmax.f32 %v7272, 0.0
      %v7509 = vmax.f32 %v7383, 0.0
      %v7510 = vmax.f32 %v7385, 0.0
      %v7511 = vmax.f32 %v6598, 0.0
      %v7512 = vmax.f32 %v6600, 0.0
      %v7513 = vmax.f32 %v6711, 0.0
      %v7514 = vmax.f32 %v6713, 0.0
      %v7515 = vmax.f32 %v6824, 0.0
      %v7516 = vmax.f32 %v6826, 0.0
      %v7517 = vmax.f32 %v6937, 0.0
      %v7518 = vmax.f32 %v6939, 0.0
      %v7519 = vmax.f32 %v7050, 0.0
      %v7520 = vmax.f32 %v7052, 0.0
      %v7521 = vmax.f32 %v7163, 0.0
      %v7522 = vmax.f32 %v7165, 0.0
      %v7523 = vmax.f32 %v7276, 0.0
      %v7524 = vmax.f32 %v7278, 0.0
      %v7525 = vmax.f32 %v7389, 0.0
      %v7526 = vmax.f32 %v7391, 0.0
      %v7527 = vmax.f32 %v6602, 0.0
      %v7528 = vmax.f32 %v6604, 0.0
      %v7529 = vmax.f32 %v6715, 0.0
      %v7530 = vmax.f32 %v6717, 0.0
      %v7531 = vmax.f32 %v6828, 0.0
      %v7532 = vmax.f32 %v6830, 0.0
      %v7533 = vmax.f32 %v6941, 0.0
      %v7534 = vmax.f32 %v6943, 0.0
      %v7535 = vmax.f32 %v7054, 0.0
      %v7536 = vmax.f32 %v7056, 0.0
      %v7537 = vmax.f32 %v7167, 0.0
      %v7538 = vmax.f32 %v7169, 0.0
      %v7539 = vmax.f32 %v7280, 0.0
      %v7540 = vmax.f32 %v7282, 0.0
      %v7541 = vmax.f32 %v7393, 0.0
      %v7542 = vmax.f32 %v7395, 0.0
      %v7543 = vmax.f32 %v6608, 0.0
      %v7544 = vmax.f32 %v6610, 0.0
      %v7545 = vmax.f32 %v6721, 0.0
      %v7546 = vmax.f32 %v6723, 0.0
      %v7547 = vmax.f32 %v6834, 0.0
      %v7548 = vmax.f32 %v6836, 0.0
      %v7549 = vmax.f32 %v6947, 0.0
      %v7550 = vmax.f32 %v6949, 0.0
      %v7551 = vmax.f32 %v7060, 0.0
      %v7552 = vmax.f32 %v7062, 0.0
      %v7553 = vmax.f32 %v7173, 0.0
      %v7554 = vmax.f32 %v7175, 0.0
      %v7555 = vmax.f32 %v7286, 0.0
      %v7556 = vmax.f32 %v7288, 0.0
      %v7557 = vmax.f32 %v7399, 0.0
      %v7558 = vmax.f32 %v7401, 0.0
      %v7559 = vmax.f32 %v6612, 0.0
      %v7560 = vmax.f32 %v6614, 0.0
      %v7561 = vmax.f32 %v6725, 0.0
      %v7562 = vmax.f32 %v6727, 0.0
      %v7563 = vmax.f32 %v6838, 0.0
      %v7564 = vmax.f32 %v6840, 0.0
      %v7565 = vmax.f32 %v6951, 0.0
      %v7566 = vmax.f32 %v6953, 0.0
      %v7567 = vmax.f32 %v7064, 0.0
      %v7568 = vmax.f32 %v7066, 0.0
      %v7569 = vmax.f32 %v7177, 0.0
      %v7570 = vmax.f32 %v7179, 0.0
      %v7571 = vmax.f32 %v7290, 0.0
      %v7572 = vmax.f32 %v7292, 0.0
      %v7573 = vmax.f32 %v7403, 0.0
      %v7574 = vmax.f32 %v7405, 0.0
      %v7575 = vmax.f32 %v6618, 0.0
      %v7576 = vmax.f32 %v6620, 0.0
      %v7577 = vmax.f32 %v6731, 0.0
      %v7578 = vmax.f32 %v6733, 0.0
      %v7579 = vmax.f32 %v6844, 0.0
      %v7580 = vmax.f32 %v6846, 0.0
      %v7581 = vmax.f32 %v6957, 0.0
      %v7582 = vmax.f32 %v6959, 0.0
      %v7583 = vmax.f32 %v7070, 0.0
      %v7584 = vmax.f32 %v7072, 0.0
      %v7585 = vmax.f32 %v7183, 0.0
      %v7586 = vmax.f32 %v7185, 0.0
      %v7587 = vmax.f32 %v7296, 0.0
      %v7588 = vmax.f32 %v7298, 0.0
      %v7589 = vmax.f32 %v7409, 0.0
      %v7590 = vmax.f32 %v7411, 0.0
      %v7591 = vmax.f32 %v6622, 0.0
      %v7592 = vmax.f32 %v6624, 0.0
      %v7593 = vmax.f32 %v6735, 0.0
      %v7594 = vmax.f32 %v6737, 0.0
      %v7595 = vmax.f32 %v6848, 0.0
      %v7596 = vmax.f32 %v6850, 0.0
      %v7597 = vmax.f32 %v6961, 0.0
      %v7598 = vmax.f32 %v6963, 0.0
      %v7599 = vmax.f32 %v7074, 0.0
      %v7600 = vmax.f32 %v7076, 0.0
      %v7601 = vmax.f32 %v7187, 0.0
      %v7602 = vmax.f32 %v7189, 0.0
      %v7603 = vmax.f32 %v7300, 0.0
      %v7604 = vmax.f32 %v7302, 0.0
      %v7605 = vmax.f32 %v7413, 0.0
      %v7606 = vmax.f32 %v7415, 0.0
      %v7607 = vmax.f32 %v6628, 0.0
      %v7608 = vmax.f32 %v6630, 0.0
      %v7609 = vmax.f32 %v6741, 0.0
      %v7610 = vmax.f32 %v6743, 0.0
      %v7611 = vmax.f32 %v6854, 0.0
      %v7612 = vmax.f32 %v6856, 0.0
      %v7613 = vmax.f32 %v6967, 0.0
      %v7614 = vmax.f32 %v6969, 0.0
      %v7615 = vmax.f32 %v7080, 0.0
      %v7616 = vmax.f32 %v7082, 0.0
      %v7617 = vmax.f32 %v7193, 0.0
      %v7618 = vmax.f32 %v7195, 0.0
      %v7619 = vmax.f32 %v7306, 0.0
      %v7620 = vmax.f32 %v7308, 0.0
      %v7621 = vmax.f32 %v7419, 0.0
      %v7622 = vmax.f32 %v7421, 0.0
      %v7623 = vmax.f32 %v6632, 0.0
      %v7624 = vmax.f32 %v6634, 0.0
      %v7625 = vmax.f32 %v6745, 0.0
      %v7626 = vmax.f32 %v6747, 0.0
      %v7627 = vmax.f32 %v6858, 0.0
      %v7628 = vmax.f32 %v6860, 0.0
      %v7629 = vmax.f32 %v6971, 0.0
      %v7630 = vmax.f32 %v6973, 0.0
      %v7631 = vmax.f32 %v7084, 0.0
      %v7632 = vmax.f32 %v7086, 0.0
      %v7633 = vmax.f32 %v7197, 0.0
      %v7634 = vmax.f32 %v7199, 0.0
      %v7635 = vmax.f32 %v7310, 0.0
      %v7636 = vmax.f32 %v7312, 0.0
      %v7637 = vmax.f32 %v7423, 0.0
      %v7638 = vmax.f32 %v7425, 0.0
      %v7639 = vmax.f32 %v6638, 0.0
      %v7640 = vmax.f32 %v6640, 0.0
      %v7641 = vmax.f32 %v6751, 0.0
      %v7642 = vmax.f32 %v6753, 0.0
      %v7643 = vmax.f32 %v6864, 0.0
      %v7644 = vmax.f32 %v6866, 0.0
      %v7645 = vmax.f32 %v6977, 0.0
      %v7646 = vmax.f32 %v6979, 0.0
      %v7647 = vmax.f32 %v7090, 0.0
      %v7648 = vmax.f32 %v7092, 0.0
      %v7649 = vmax.f32 %v7203, 0.0
      %v7650 = vmax.f32 %v7205, 0.0
      %v7651 = vmax.f32 %v7316, 0.0
      %v7652 = vmax.f32 %v7318, 0.0
      %v7653 = vmax.f32 %v7429, 0.0
      %v7654 = vmax.f32 %v7431, 0.0
      %v7655 = vmax.f32 %v6642, 0.0
      %v7656 = vmax.f32 %v6644, 0.0
      %v7657 = vmax.f32 %v6755, 0.0
      %v7658 = vmax.f32 %v6757, 0.0
      %v7659 = vmax.f32 %v6868, 0.0
      %v7660 = vmax.f32 %v6870, 0.0
      %v7661 = vmax.f32 %v6981, 0.0
      %v7662 = vmax.f32 %v6983, 0.0
      %v7663 = vmax.f32 %v7094, 0.0
      %v7664 = vmax.f32 %v7096, 0.0
      %v7665 = vmax.f32 %v7207, 0.0
      %v7666 = vmax.f32 %v7209, 0.0
      %v7667 = vmax.f32 %v7320, 0.0
      %v7668 = vmax.f32 %v7322, 0.0
      %v7669 = vmax.f32 %v7433, 0.0
      %v7670 = vmax.f32 %v7435, 0.0
      %v7671 = vmax.f32 %v6648, 0.0
      %v7672 = vmax.f32 %v6650, 0.0
      %v7673 = vmax.f32 %v6761, 0.0
      %v7674 = vmax.f32 %v6763, 0.0
      %v7675 = vmax.f32 %v6874, 0.0
      %v7676 = vmax.f32 %v6876, 0.0
      %v7677 = vmax.f32 %v6987, 0.0
      %v7678 = vmax.f32 %v6989, 0.0
      %v7679 = vmax.f32 %v7100, 0.0
      %v7680 = vmax.f32 %v7102, 0.0
      %v7681 = vmax.f32 %v7213, 0.0
      %v7682 = vmax.f32 %v7215, 0.0
      %v7683 = vmax.f32 %v7326, 0.0
      %v7684 = vmax.f32 %v7328, 0.0
      %v7685 = vmax.f32 %v7439, 0.0
      %v7686 = vmax.f32 %v7441, 0.0
      %v7687 = vmax.f32 %v6652, 0.0
      %v7688 = vmax.f32 %v6654, 0.0
      %v7689 = vmax.f32 %v6765, 0.0
      %v7690 = vmax.f32 %v6767, 0.0
      %v7691 = vmax.f32 %v6878, 0.0
      %v7692 = vmax.f32 %v6880, 0.0
      %v7693 = vmax.f32 %v6991, 0.0
      %v7694 = vmax.f32 %v6993, 0.0
      %v7695 = vmax.f32 %v7104, 0.0
      %v7696 = vmax.f32 %v7106, 0.0
      %v7697 = vmax.f32 %v7217, 0.0
      %v7698 = vmax.f32 %v7219, 0.0
      %v7699 = vmax.f32 %v7330, 0.0
      %v7700 = vmax.f32 %v7332, 0.0
      %v7701 = vmax.f32 %v7443, 0.0
      %v7702 = vmax.f32 %v7445, 0.0
      %v7703 = vpack.c.bf16 %v7463, %v7447
      %v7704 = vpack.c.bf16 %v7464, %v7448
      %v7705 = vpack.c.bf16 %v7465, %v7449
      %v7706 = vpack.c.bf16 %v7466, %v7450
      %v7707 = vpack.c.bf16 %v7467, %v7451
      %v7708 = vpack.c.bf16 %v7468, %v7452
      %v7709 = vpack.c.bf16 %v7469, %v7453
      %v7710 = vpack.c.bf16 %v7470, %v7454
      %v7711 = vpack.c.bf16 %v7471, %v7455
      %v7712 = vpack.c.bf16 %v7472, %v7456
      %v7713 = vpack.c.bf16 %v7473, %v7457
      %v7714 = vpack.c.bf16 %v7474, %v7458
      %v7715 = vpack.c.bf16 %v7475, %v7459
      %v7716 = vpack.c.bf16 %v7476, %v7460
      %v7717 = vpack.c.bf16 %v7477, %v7461
      %v7718 = vpack.c.bf16 %v7478, %v7462
      %v7719 = vpack.c.bf16 %v7495, %v7479
      %v7720 = vpack.c.bf16 %v7496, %v7480
      %v7721 = vpack.c.bf16 %v7497, %v7481
      %v7722 = vpack.c.bf16 %v7498, %v7482
      %v7723 = vpack.c.bf16 %v7499, %v7483
      %v7724 = vpack.c.bf16 %v7500, %v7484
      %v7725 = vpack.c.bf16 %v7501, %v7485
      %v7726 = vpack.c.bf16 %v7502, %v7486
      %v7727 = vpack.c.bf16 %v7503, %v7487
      %v7728 = vpack.c.bf16 %v7504, %v7488
      %v7729 = vpack.c.bf16 %v7505, %v7489
      %v7730 = vpack.c.bf16 %v7506, %v7490
      %v7731 = vpack.c.bf16 %v7507, %v7491
      %v7732 = vpack.c.bf16 %v7508, %v7492
      %v7733 = vpack.c.bf16 %v7509, %v7493
      %v7734 = vpack.c.bf16 %v7510, %v7494
      %v7735 = vpack.c.bf16 %v7527, %v7511
      %v7736 = vpack.c.bf16 %v7528, %v7512
      %v7737 = vpack.c.bf16 %v7529, %v7513
      %v7738 = vpack.c.bf16 %v7530, %v7514
      %v7739 = vpack.c.bf16 %v7531, %v7515
      %v7740 = vpack.c.bf16 %v7532, %v7516
      %v7741 = vpack.c.bf16 %v7533, %v7517
      %v7742 = vpack.c.bf16 %v7534, %v7518
      %v7743 = vpack.c.bf16 %v7535, %v7519
      %v7744 = vpack.c.bf16 %v7536, %v7520
      %v7745 = vpack.c.bf16 %v7537, %v7521
      %v7746 = vpack.c.bf16 %v7538, %v7522
      %v7747 = vpack.c.bf16 %v7539, %v7523
      %v7748 = vpack.c.bf16 %v7540, %v7524
      %v7749 = vpack.c.bf16 %v7541, %v7525
      %v7750 = vpack.c.bf16 %v7542, %v7526
      %v7751 = vpack.c.bf16 %v7559, %v7543
      %v7752 = vpack.c.bf16 %v7560, %v7544
      %v7753 = vpack.c.bf16 %v7561, %v7545
      %v7754 = vpack.c.bf16 %v7562, %v7546
      %v7755 = vpack.c.bf16 %v7563, %v7547
      %v7756 = vpack.c.bf16 %v7564, %v7548
      %v7757 = vpack.c.bf16 %v7565, %v7549
      %v7758 = vpack.c.bf16 %v7566, %v7550
      %v7759 = vpack.c.bf16 %v7567, %v7551
      %v7760 = vpack.c.bf16 %v7568, %v7552
      %v7761 = vpack.c.bf16 %v7569, %v7553
      %v7762 = vpack.c.bf16 %v7570, %v7554
      %v7763 = vpack.c.bf16 %v7571, %v7555
      %v7764 = vpack.c.bf16 %v7572, %v7556
      %v7765 = vpack.c.bf16 %v7573, %v7557
      %v7766 = vpack.c.bf16 %v7574, %v7558
      %v7767 = vpack.c.bf16 %v7591, %v7575
      %v7768 = vpack.c.bf16 %v7592, %v7576
      %v7769 = vpack.c.bf16 %v7593, %v7577
      %v7770 = vpack.c.bf16 %v7594, %v7578
      %v7771 = vpack.c.bf16 %v7595, %v7579
      %v7772 = vpack.c.bf16 %v7596, %v7580
      %v7773 = vpack.c.bf16 %v7597, %v7581
      %v7774 = vpack.c.bf16 %v7598, %v7582
      %v7775 = vpack.c.bf16 %v7599, %v7583
      %v7776 = vpack.c.bf16 %v7600, %v7584
      %v7777 = vpack.c.bf16 %v7601, %v7585
      %v7778 = vpack.c.bf16 %v7602, %v7586
      %v7779 = vpack.c.bf16 %v7603, %v7587
      %v7780 = vpack.c.bf16 %v7604, %v7588
      %v7781 = vpack.c.bf16 %v7605, %v7589
      %v7782 = vpack.c.bf16 %v7606, %v7590
      %v7783 = vpack.c.bf16 %v7623, %v7607
      %v7784 = vpack.c.bf16 %v7624, %v7608
      %v7785 = vpack.c.bf16 %v7625, %v7609
      %v7786 = vpack.c.bf16 %v7626, %v7610
      %v7787 = vpack.c.bf16 %v7627, %v7611
      %v7788 = vpack.c.bf16 %v7628, %v7612
      %v7789 = vpack.c.bf16 %v7629, %v7613
      %v7790 = vpack.c.bf16 %v7630, %v7614
      %v7791 = vpack.c.bf16 %v7631, %v7615
      %v7792 = vpack.c.bf16 %v7632, %v7616
      %v7793 = vpack.c.bf16 %v7633, %v7617
      %v7794 = vpack.c.bf16 %v7634, %v7618
      %v7795 = vpack.c.bf16 %v7635, %v7619
      %v7796 = vpack.c.bf16 %v7636, %v7620
      %v7797 = vpack.c.bf16 %v7637, %v7621
      %v7798 = vpack.c.bf16 %v7638, %v7622
      %v7799 = vpack.c.bf16 %v7655, %v7639
      %v7800 = vpack.c.bf16 %v7656, %v7640
      %v7801 = vpack.c.bf16 %v7657, %v7641
      %v7802 = vpack.c.bf16 %v7658, %v7642
      %v7803 = vpack.c.bf16 %v7659, %v7643
      %v7804 = vpack.c.bf16 %v7660, %v7644
      %v7805 = vpack.c.bf16 %v7661, %v7645
      %v7806 = vpack.c.bf16 %v7662, %v7646
      %v7807 = vpack.c.bf16 %v7663, %v7647
      %v7808 = vpack.c.bf16 %v7664, %v7648
      %v7809 = vpack.c.bf16 %v7665, %v7649
      %v7810 = vpack.c.bf16 %v7666, %v7650
      %v7811 = vpack.c.bf16 %v7667, %v7651
      %v7812 = vpack.c.bf16 %v7668, %v7652
      %v7813 = vpack.c.bf16 %v7669, %v7653
      %v7814 = vpack.c.bf16 %v7670, %v7654
      %v7815 = vpack.c.bf16 %v7687, %v7671
      %v7816 = vpack.c.bf16 %v7688, %v7672
      %v7817 = vpack.c.bf16 %v7689, %v7673
      %v7818 = vpack.c.bf16 %v7690, %v7674
      %v7819 = vpack.c.bf16 %v7691, %v7675
      %v7820 = vpack.c.bf16 %v7692, %v7676
      %v7821 = vpack.c.bf16 %v7693, %v7677
      %v7822 = vpack.c.bf16 %v7694, %v7678
      %v7823 = vpack.c.bf16 %v7695, %v7679
      %v7824 = vpack.c.bf16 %v7696, %v7680
      %v7825 = vpack.c.bf16 %v7697, %v7681
      %v7826 = vpack.c.bf16 %v7698, %v7682
      %v7827 = vpack.c.bf16 %v7699, %v7683
      %v7828 = vpack.c.bf16 %v7700, %v7684
      %v7829 = vpack.c.bf16 %v7701, %v7685
      %v7830 = vpack.c.bf16 %v7702, %v7686
      %v7832 = vlaneseq
      %v7833 = vshrl.u32 %v7832, 7
      %v7834 = vsub.s32 0, %v7833
      %v7835 = vrot.slane %v1179, %v7834
      %v8093 = vunpack.c.l.b16 %v922
      %v8094 = vunpack.c.l.b16 %v923
      %v8095 = vunpack.c.l.b16 %v924
      %v8096 = vunpack.c.l.b16 %v925
      %v8097 = vunpack.c.l.b16 %v926
      %v8098 = vunpack.c.l.b16 %v927
      %v8099 = vunpack.c.l.b16 %v928
      %v8100 = vunpack.c.l.b16 %v929
      %v8101 = vunpack.c.l.b16 %v930
      %v8102 = vunpack.c.l.b16 %v931
      %v8103 = vunpack.c.l.b16 %v932
      %v8104 = vunpack.c.l.b16 %v933
      %v8105 = vunpack.c.l.b16 %v934
      %v8106 = vunpack.c.l.b16 %v935
      %v8107 = vunpack.c.l.b16 %v936
      %v8108 = vunpack.c.l.b16 %v937
      %v8109 = vunpack.c.l.b16 %v938
      %v8110 = vunpack.c.l.b16 %v939
      %v8111 = vunpack.c.l.b16 %v940
      %v8112 = vunpack.c.l.b16 %v941
      %v8113 = vunpack.c.l.b16 %v942
      %v8114 = vunpack.c.l.b16 %v943
      %v8115 = vunpack.c.l.b16 %v944
      %v8116 = vunpack.c.l.b16 %v945
      %v8117 = vunpack.c.l.b16 %v946
      %v8118 = vunpack.c.l.b16 %v947
      %v8119 = vunpack.c.l.b16 %v948
      %v8120 = vunpack.c.l.b16 %v949
      %v8121 = vunpack.c.l.b16 %v950
      %v8122 = vunpack.c.l.b16 %v951
      %v8123 = vunpack.c.l.b16 %v952
      %v8124 = vunpack.c.l.b16 %v953
      %v8125 = vunpack.c.l.b16 %v954
      %v8126 = vunpack.c.l.b16 %v955
      %v8127 = vunpack.c.l.b16 %v956
      %v8128 = vunpack.c.l.b16 %v957
      %v8129 = vunpack.c.l.b16 %v958
      %v8130 = vunpack.c.l.b16 %v959
      %v8131 = vunpack.c.l.b16 %v960
      %v8132 = vunpack.c.l.b16 %v961
      %v8133 = vunpack.c.l.b16 %v962
      %v8134 = vunpack.c.l.b16 %v963
      %v8135 = vunpack.c.l.b16 %v964
      %v8136 = vunpack.c.l.b16 %v965
      %v8137 = vunpack.c.l.b16 %v966
      %v8138 = vunpack.c.l.b16 %v967
      %v8139 = vunpack.c.l.b16 %v968
      %v8140 = vunpack.c.l.b16 %v969
      %v8141 = vunpack.c.l.b16 %v970
      %v8142 = vunpack.c.l.b16 %v971
      %v8143 = vunpack.c.l.b16 %v972
      %v8144 = vunpack.c.l.b16 %v973
      %v8145 = vunpack.c.l.b16 %v974
      %v8146 = vunpack.c.l.b16 %v975
      %v8147 = vunpack.c.l.b16 %v976
      %v8148 = vunpack.c.l.b16 %v977
      %v8149 = vunpack.c.l.b16 %v978
      %v8150 = vunpack.c.l.b16 %v979
      %v8151 = vunpack.c.l.b16 %v980
      %v8152 = vunpack.c.l.b16 %v981
      %v8153 = vunpack.c.l.b16 %v982
      %v8154 = vunpack.c.l.b16 %v983
      %v8155 = vunpack.c.l.b16 %v984
      %v8156 = vunpack.c.l.b16 %v985
      %v8157 = vunpack.c.l.b16 %v986
      %v8158 = vunpack.c.l.b16 %v987
      %v8159 = vunpack.c.l.b16 %v988
      %v8160 = vunpack.c.l.b16 %v989
      %v8161 = vunpack.c.l.b16 %v990
      %v8162 = vunpack.c.l.b16 %v991
      %v8163 = vunpack.c.l.b16 %v992
      %v8164 = vunpack.c.l.b16 %v993
      %v8165 = vunpack.c.l.b16 %v994
      %v8166 = vunpack.c.l.b16 %v995
      %v8167 = vunpack.c.l.b16 %v996
      %v8168 = vunpack.c.l.b16 %v997
      %v8169 = vunpack.c.l.b16 %v998
      %v8170 = vunpack.c.l.b16 %v999
      %v8171 = vunpack.c.l.b16 %v1000
      %v8172 = vunpack.c.l.b16 %v1001
      %v8173 = vunpack.c.l.b16 %v1002
      %v8174 = vunpack.c.l.b16 %v1003
      %v8175 = vunpack.c.l.b16 %v1004
      %v8176 = vunpack.c.l.b16 %v1005
      %v8177 = vunpack.c.l.b16 %v1006
      %v8178 = vunpack.c.l.b16 %v1007
      %v8179 = vunpack.c.l.b16 %v1008
      %v8180 = vunpack.c.l.b16 %v1009
      %v8181 = vunpack.c.l.b16 %v1010
      %v8182 = vunpack.c.l.b16 %v1011
      %v8183 = vunpack.c.l.b16 %v1012
      %v8184 = vunpack.c.l.b16 %v1013
      %v8185 = vunpack.c.l.b16 %v1014
      %v8186 = vunpack.c.l.b16 %v1015
      %v8187 = vunpack.c.l.b16 %v1016
      %v8188 = vunpack.c.l.b16 %v1017
      %v8189 = vunpack.c.l.b16 %v1018
      %v8190 = vunpack.c.l.b16 %v1019
      %v8191 = vunpack.c.l.b16 %v1020
      %v8192 = vunpack.c.l.b16 %v1021
      %v8193 = vunpack.c.l.b16 %v1022
      %v8194 = vunpack.c.l.b16 %v1023
      %v8195 = vunpack.c.l.b16 %v1024
      %v8196 = vunpack.c.l.b16 %v1025
      %v8197 = vunpack.c.l.b16 %v1026
      %v8198 = vunpack.c.l.b16 %v1027
      %v8199 = vunpack.c.l.b16 %v1028
      %v8200 = vunpack.c.l.b16 %v1029
      %v8201 = vunpack.c.l.b16 %v1030
      %v8202 = vunpack.c.l.b16 %v1031
      %v8203 = vunpack.c.l.b16 %v1032
      %v8204 = vunpack.c.l.b16 %v1033
      %v8205 = vunpack.c.l.b16 %v1034
      %v8206 = vunpack.c.l.b16 %v1035
      %v8207 = vunpack.c.l.b16 %v1036
      %v8208 = vunpack.c.l.b16 %v1037
      %v8209 = vunpack.c.l.b16 %v1038
      %v8210 = vunpack.c.l.b16 %v1039
      %v8211 = vunpack.c.l.b16 %v1040
      %v8212 = vunpack.c.l.b16 %v1041
      %v8213 = vunpack.c.l.b16 %v1042
      %v8214 = vunpack.c.l.b16 %v1043
      %v8215 = vunpack.c.l.b16 %v1044
      %v8216 = vunpack.c.l.b16 %v1045
      %v8217 = vunpack.c.l.b16 %v1046
      %v8218 = vunpack.c.l.b16 %v1047
      %v8219 = vunpack.c.l.b16 %v1048
      %v8220 = vunpack.c.l.b16 %v1049
      %v8221 = vunpack.c.l.b16 %v1050
      %v8222 = vunpack.c.l.b16 %v1051
      %v8223 = vunpack.c.l.b16 %v1052
      %v8224 = vunpack.c.l.b16 %v1053
      %v8225 = vunpack.c.l.b16 %v1054
      %v8226 = vunpack.c.l.b16 %v1055
      %v8227 = vunpack.c.l.b16 %v1056
      %v8228 = vunpack.c.l.b16 %v1057
      %v8229 = vunpack.c.l.b16 %v1058
      %v8230 = vunpack.c.l.b16 %v1059
      %v8231 = vunpack.c.l.b16 %v1060
      %v8232 = vunpack.c.l.b16 %v1061
      %v8233 = vunpack.c.l.b16 %v1062
      %v8234 = vunpack.c.l.b16 %v1063
      %v8235 = vunpack.c.l.b16 %v1064
      %v8236 = vunpack.c.l.b16 %v1065
      %v8237 = vunpack.c.l.b16 %v1066
      %v8238 = vunpack.c.l.b16 %v1067
      %v8239 = vunpack.c.l.b16 %v1068
      %v8240 = vunpack.c.l.b16 %v1069
      %v8241 = vunpack.c.l.b16 %v1070
      %v8242 = vunpack.c.l.b16 %v1071
      %v8243 = vunpack.c.l.b16 %v1072
      %v8244 = vunpack.c.l.b16 %v1073
      %v8245 = vunpack.c.l.b16 %v1074
      %v8246 = vunpack.c.l.b16 %v1075
      %v8247 = vunpack.c.l.b16 %v1076
      %v8248 = vunpack.c.l.b16 %v1077
      %v8249 = vunpack.c.l.b16 %v1078
      %v8250 = vunpack.c.l.b16 %v1079
      %v8251 = vunpack.c.l.b16 %v1080
      %v8252 = vunpack.c.l.b16 %v1081
      %v8253 = vunpack.c.l.b16 %v1082
      %v8254 = vunpack.c.l.b16 %v1083
      %v8255 = vunpack.c.l.b16 %v1084
      %v8256 = vunpack.c.l.b16 %v1085
      %v8257 = vunpack.c.l.b16 %v1086
      %v8258 = vunpack.c.l.b16 %v1087
      %v8259 = vunpack.c.l.b16 %v1088
      %v8260 = vunpack.c.l.b16 %v1089
      %v8261 = vunpack.c.l.b16 %v1090
      %v8262 = vunpack.c.l.b16 %v1091
      %v8263 = vunpack.c.l.b16 %v1092
      %v8264 = vunpack.c.l.b16 %v1093
      %v8265 = vunpack.c.l.b16 %v1094
      %v8266 = vunpack.c.l.b16 %v1095
      %v8267 = vunpack.c.l.b16 %v1096
      %v8268 = vunpack.c.l.b16 %v1097
      %v8269 = vunpack.c.l.b16 %v1098
      %v8270 = vunpack.c.l.b16 %v1099
      %v8271 = vunpack.c.l.b16 %v1100
      %v8272 = vunpack.c.l.b16 %v1101
      %v8273 = vunpack.c.l.b16 %v1102
      %v8274 = vunpack.c.l.b16 %v1103
      %v8275 = vunpack.c.l.b16 %v1104
      %v8276 = vunpack.c.l.b16 %v1105
      %v8277 = vunpack.c.l.b16 %v1106
      %v8278 = vunpack.c.l.b16 %v1107
      %v8279 = vunpack.c.l.b16 %v1108
      %v8280 = vunpack.c.l.b16 %v1109
      %v8281 = vunpack.c.l.b16 %v1110
      %v8282 = vunpack.c.l.b16 %v1111
      %v8283 = vunpack.c.l.b16 %v1112
      %v8284 = vunpack.c.l.b16 %v1113
      %v8285 = vunpack.c.l.b16 %v1114
      %v8286 = vunpack.c.l.b16 %v1115
      %v8287 = vunpack.c.l.b16 %v1116
      %v8288 = vunpack.c.l.b16 %v1117
      %v8289 = vunpack.c.l.b16 %v1118
      %v8290 = vunpack.c.l.b16 %v1119
      %v8291 = vunpack.c.l.b16 %v1120
      %v8292 = vunpack.c.l.b16 %v1121
      %v8293 = vunpack.c.l.b16 %v1122
      %v8294 = vunpack.c.l.b16 %v1123
      %v8295 = vunpack.c.l.b16 %v1124
      %v8296 = vunpack.c.l.b16 %v1125
      %v8297 = vunpack.c.l.b16 %v1126
      %v8298 = vunpack.c.l.b16 %v1127
      %v8299 = vunpack.c.l.b16 %v1128
      %v8300 = vunpack.c.l.b16 %v1129
      %v8301 = vunpack.c.l.b16 %v1130
      %v8302 = vunpack.c.l.b16 %v1131
      %v8303 = vunpack.c.l.b16 %v1132
      %v8304 = vunpack.c.l.b16 %v1133
      %v8305 = vunpack.c.l.b16 %v1134
      %v8306 = vunpack.c.l.b16 %v1135
      %v8307 = vunpack.c.l.b16 %v1136
      %v8308 = vunpack.c.l.b16 %v1137
      %v8309 = vunpack.c.l.b16 %v1138
      %v8310 = vunpack.c.l.b16 %v1139
      %v8311 = vunpack.c.l.b16 %v1140
      %v8312 = vunpack.c.l.b16 %v1141
      %v8313 = vunpack.c.l.b16 %v1142
      %v8314 = vunpack.c.l.b16 %v1143
      %v8315 = vunpack.c.l.b16 %v1144
      %v8316 = vunpack.c.l.b16 %v1145
      %v8317 = vunpack.c.l.b16 %v1146
      %v8318 = vunpack.c.l.b16 %v1147
      %v8319 = vunpack.c.l.b16 %v1148
      %v8320 = vunpack.c.l.b16 %v1149
      %v8321 = vunpack.c.l.b16 %v1150
      %v8322 = vunpack.c.l.b16 %v1151
      %v8323 = vunpack.c.l.b16 %v1152
      %v8324 = vunpack.c.l.b16 %v1153
      %v8325 = vunpack.c.l.b16 %v1154
      %v8326 = vunpack.c.l.b16 %v1155
      %v8327 = vunpack.c.l.b16 %v1156
      %v8328 = vunpack.c.l.b16 %v1157
      %v8329 = vunpack.c.l.b16 %v1158
      %v8330 = vunpack.c.l.b16 %v1159
      %v8331 = vunpack.c.l.b16 %v1160
      %v8332 = vunpack.c.l.b16 %v1161
      %v8333 = vunpack.c.l.b16 %v1162
      %v8334 = vunpack.c.l.b16 %v1163
      %v8335 = vunpack.c.l.b16 %v1164
      %v8336 = vunpack.c.l.b16 %v1165
      %v8337 = vunpack.c.l.b16 %v1166
      %v8338 = vunpack.c.l.b16 %v1167
      %v8339 = vunpack.c.l.b16 %v1168
      %v8340 = vunpack.c.l.b16 %v1169
      %v8341 = vunpack.c.l.b16 %v1170
      %v8342 = vunpack.c.l.b16 %v1171
      %v8343 = vunpack.c.l.b16 %v1172
      %v8344 = vunpack.c.l.b16 %v1173
      %v8345 = vunpack.c.l.b16 %v1174
      %v8346 = vunpack.c.l.b16 %v1175
      %v8347 = vunpack.c.l.b16 %v1176
      %v8348 = vunpack.c.l.b16 %v1177
      %v8349 = vpack.c.b16 %v8094, %v8093
      %v8350 = vpack.c.b16 %v8096, %v8095
      %v8351 = vpack.c.b16 %v8098, %v8097
      %v8352 = vpack.c.b16 %v8100, %v8099
      %v8353 = vpack.c.b16 %v8102, %v8101
      %v8354 = vpack.c.b16 %v8104, %v8103
      %v8355 = vpack.c.b16 %v8106, %v8105
      %v8356 = vpack.c.b16 %v8108, %v8107
      %v8357 = vpack.c.b16 %v8110, %v8109
      %v8358 = vpack.c.b16 %v8112, %v8111
      %v8359 = vpack.c.b16 %v8114, %v8113
      %v8360 = vpack.c.b16 %v8116, %v8115
      %v8361 = vpack.c.b16 %v8118, %v8117
      %v8362 = vpack.c.b16 %v8120, %v8119
      %v8363 = vpack.c.b16 %v8122, %v8121
      %v8364 = vpack.c.b16 %v8124, %v8123
      %v8365 = vpack.c.b16 %v8126, %v8125
      %v8366 = vpack.c.b16 %v8128, %v8127
      %v8367 = vpack.c.b16 %v8130, %v8129
      %v8368 = vpack.c.b16 %v8132, %v8131
      %v8369 = vpack.c.b16 %v8134, %v8133
      %v8370 = vpack.c.b16 %v8136, %v8135
      %v8371 = vpack.c.b16 %v8138, %v8137
      %v8372 = vpack.c.b16 %v8140, %v8139
      %v8373 = vpack.c.b16 %v8142, %v8141
      %v8374 = vpack.c.b16 %v8144, %v8143
      %v8375 = vpack.c.b16 %v8146, %v8145
      %v8376 = vpack.c.b16 %v8148, %v8147
      %v8377 = vpack.c.b16 %v8150, %v8149
      %v8378 = vpack.c.b16 %v8152, %v8151
      %v8379 = vpack.c.b16 %v8154, %v8153
      %v8380 = vpack.c.b16 %v8156, %v8155
      %v8381 = vpack.c.b16 %v8158, %v8157
      %v8382 = vpack.c.b16 %v8160, %v8159
      %v8383 = vpack.c.b16 %v8162, %v8161
      %v8384 = vpack.c.b16 %v8164, %v8163
      %v8385 = vpack.c.b16 %v8166, %v8165
      %v8386 = vpack.c.b16 %v8168, %v8167
      %v8387 = vpack.c.b16 %v8170, %v8169
      %v8388 = vpack.c.b16 %v8172, %v8171
      %v8389 = vpack.c.b16 %v8174, %v8173
      %v8390 = vpack.c.b16 %v8176, %v8175
      %v8391 = vpack.c.b16 %v8178, %v8177
      %v8392 = vpack.c.b16 %v8180, %v8179
      %v8393 = vpack.c.b16 %v8182, %v8181
      %v8394 = vpack.c.b16 %v8184, %v8183
      %v8395 = vpack.c.b16 %v8186, %v8185
      %v8396 = vpack.c.b16 %v8188, %v8187
      %v8397 = vpack.c.b16 %v8190, %v8189
      %v8398 = vpack.c.b16 %v8192, %v8191
      %v8399 = vpack.c.b16 %v8194, %v8193
      %v8400 = vpack.c.b16 %v8196, %v8195
      %v8401 = vpack.c.b16 %v8198, %v8197
      %v8402 = vpack.c.b16 %v8200, %v8199
      %v8403 = vpack.c.b16 %v8202, %v8201
      %v8404 = vpack.c.b16 %v8204, %v8203
      %v8405 = vpack.c.b16 %v8206, %v8205
      %v8406 = vpack.c.b16 %v8208, %v8207
      %v8407 = vpack.c.b16 %v8210, %v8209
      %v8408 = vpack.c.b16 %v8212, %v8211
      %v8409 = vpack.c.b16 %v8214, %v8213
      %v8410 = vpack.c.b16 %v8216, %v8215
      %v8411 = vpack.c.b16 %v8218, %v8217
      %v8412 = vpack.c.b16 %v8220, %v8219
      %v8413 = vpack.c.b16 %v8222, %v8221
      %v8414 = vpack.c.b16 %v8224, %v8223
      %v8415 = vpack.c.b16 %v8226, %v8225
      %v8416 = vpack.c.b16 %v8228, %v8227
      %v8417 = vpack.c.b16 %v8230, %v8229
      %v8418 = vpack.c.b16 %v8232, %v8231
      %v8419 = vpack.c.b16 %v8234, %v8233
      %v8420 = vpack.c.b16 %v8236, %v8235
      %v8421 = vpack.c.b16 %v8238, %v8237
      %v8422 = vpack.c.b16 %v8240, %v8239
      %v8423 = vpack.c.b16 %v8242, %v8241
      %v8424 = vpack.c.b16 %v8244, %v8243
      %v8425 = vpack.c.b16 %v8246, %v8245
      %v8426 = vpack.c.b16 %v8248, %v8247
      %v8427 = vpack.c.b16 %v8250, %v8249
      %v8428 = vpack.c.b16 %v8252, %v8251
      %v8429 = vpack.c.b16 %v8254, %v8253
      %v8430 = vpack.c.b16 %v8256, %v8255
      %v8431 = vpack.c.b16 %v8258, %v8257
      %v8432 = vpack.c.b16 %v8260, %v8259
      %v8433 = vpack.c.b16 %v8262, %v8261
      %v8434 = vpack.c.b16 %v8264, %v8263
      %v8435 = vpack.c.b16 %v8266, %v8265
      %v8436 = vpack.c.b16 %v8268, %v8267
      %v8437 = vpack.c.b16 %v8270, %v8269
      %v8438 = vpack.c.b16 %v8272, %v8271
      %v8439 = vpack.c.b16 %v8274, %v8273
      %v8440 = vpack.c.b16 %v8276, %v8275
      %v8441 = vpack.c.b16 %v8278, %v8277
      %v8442 = vpack.c.b16 %v8280, %v8279
      %v8443 = vpack.c.b16 %v8282, %v8281
      %v8444 = vpack.c.b16 %v8284, %v8283
      %v8445 = vpack.c.b16 %v8286, %v8285
      %v8446 = vpack.c.b16 %v8288, %v8287
      %v8447 = vpack.c.b16 %v8290, %v8289
      %v8448 = vpack.c.b16 %v8292, %v8291
      %v8449 = vpack.c.b16 %v8294, %v8293
      %v8450 = vpack.c.b16 %v8296, %v8295
      %v8451 = vpack.c.b16 %v8298, %v8297
      %v8452 = vpack.c.b16 %v8300, %v8299
      %v8453 = vpack.c.b16 %v8302, %v8301
      %v8454 = vpack.c.b16 %v8304, %v8303
      %v8455 = vpack.c.b16 %v8306, %v8305
      %v8456 = vpack.c.b16 %v8308, %v8307
      %v8457 = vpack.c.b16 %v8310, %v8309
      %v8458 = vpack.c.b16 %v8312, %v8311
      %v8459 = vpack.c.b16 %v8314, %v8313
      %v8460 = vpack.c.b16 %v8316, %v8315
      %v8461 = vpack.c.b16 %v8318, %v8317
      %v8462 = vpack.c.b16 %v8320, %v8319
      %v8463 = vpack.c.b16 %v8322, %v8321
      %v8464 = vpack.c.b16 %v8324, %v8323
      %v8465 = vpack.c.b16 %v8326, %v8325
      %v8466 = vpack.c.b16 %v8328, %v8327
      %v8467 = vpack.c.b16 %v8330, %v8329
      %v8468 = vpack.c.b16 %v8332, %v8331
      %v8469 = vpack.c.b16 %v8334, %v8333
      %v8470 = vpack.c.b16 %v8336, %v8335
      %v8471 = vpack.c.b16 %v8338, %v8337
      %v8472 = vpack.c.b16 %v8340, %v8339
      %v8473 = vpack.c.b16 %v8342, %v8341
      %v8474 = vpack.c.b16 %v8344, %v8343
      %v8475 = vpack.c.b16 %v8346, %v8345
      %v8476 = vpack.c.b16 %v8348, %v8347
      %8605 = vmatprep.subr.bf16.mxu0 0
      %8606 = vmatpush1.bf16.msra.mxu0 %v8349
      %8607 = vmatprep.subr.bf16.mxu0 0
      %8608 = vmatpush1.bf16.msra.mxu0 %v8350
      %8609 = vmatprep.subr.bf16.mxu0 0
      %8610 = vmatpush1.bf16.msra.mxu0 %v8351
      %8611 = vmatprep.subr.bf16.mxu0 0
      %8612 = vmatpush1.bf16.msra.mxu0 %v8352
      %8613 = vmatprep.subr.bf16.mxu0 0
      %8614 = vmatpush1.bf16.msra.mxu0 %v8353
      %8615 = vmatprep.subr.bf16.mxu0 0
      %8616 = vmatpush1.bf16.msra.mxu0 %v8354
      %8617 = vmatprep.subr.bf16.mxu0 0
      %8618 = vmatpush1.bf16.msra.mxu0 %v8355
      %8619 = vmatprep.subr.bf16.mxu0 0
      %8620 = vmatpush1.bf16.msra.mxu0 %v8356
      %8621 = vmatprep.subr.bf16.mxu0 0
      %8622 = vmatpush1.bf16.msra.mxu0 %v8357
      %8623 = vmatprep.subr.bf16.mxu0 0
      %8624 = vmatpush1.bf16.msra.mxu0 %v8358
      %8625 = vmatprep.subr.bf16.mxu0 0
      %8626 = vmatpush1.bf16.msra.mxu0 %v8359
      %8627 = vmatprep.subr.bf16.mxu0 0
      %8628 = vmatpush1.bf16.msra.mxu0 %v8360
      %8629 = vmatprep.subr.bf16.mxu0 0
      %8630 = vmatpush1.bf16.msra.mxu0 %v8361
      %8631 = vmatprep.subr.bf16.mxu0 0
      %8632 = vmatpush1.bf16.msra.mxu0 %v8362
      %8633 = vmatprep.subr.bf16.mxu0 0
      %8634 = vmatpush1.bf16.msra.mxu0 %v8363
      %8635 = vmatprep.subr.bf16.mxu0 0
      %8636 = vmatpush1.bf16.msra.mxu0 %v8364
      %8637 = vmatprep.mubr.bf16.mxu0 %v7704
      %8638 = vmatmul.mubr.bf16.gmra.mrb[0].mxu0 %v7703
      %v8639 = vpop.f32.mrb[0].mxu0
      %v8640 = vadd.f32 %v7835, %v8639
      %v8641 = vpop.f32.mrb[0].mxu0
      %v8642 = vpop.f32.mrb[0].mxu0
      %v8643 = vadd.f32 %v7835, %v8642
      %v8644 = vpop.f32.mrb[0].mxu0
      %8645 = vmatprep.mubr.bf16.mxu0 %v7720
      %8646 = vmatmul.mubr.bf16.gmra.mrb[0].mxu0 %v7719
      %v8647 = vpop.f32.mrb[0].mxu0
      %v8648 = vadd.f32 %v7835, %v8647
      %v8649 = vpop.f32.mrb[0].mxu0
      %v8650 = vpop.f32.mrb[0].mxu0
      %v8651 = vadd.f32 %v7835, %v8650
      %v8652 = vpop.f32.mrb[0].mxu0
      %8653 = vmatprep.mubr.bf16.mxu0 %v7736
      %8654 = vmatmul.mubr.bf16.gmra.mrb[0].mxu0 %v7735
      %v8655 = vpop.f32.mrb[0].mxu0
      %v8656 = vadd.f32 %v7835, %v8655
      %v8657 = vpop.f32.mrb[0].mxu0
      %v8658 = vpop.f32.mrb[0].mxu0
      %v8659 = vadd.f32 %v7835, %v8658
      %v8660 = vpop.f32.mrb[0].mxu0
      %8661 = vmatprep.mubr.bf16.mxu0 %v7752
      %8662 = vmatmul.mubr.bf16.gmra.mrb[0].mxu0 %v7751
      %v8663 = vpop.f32.mrb[0].mxu0
      %v8664 = vadd.f32 %v7835, %v8663
      %v8665 = vpop.f32.mrb[0].mxu0
      %v8666 = vpop.f32.mrb[0].mxu0
      %v8667 = vadd.f32 %v7835, %v8666
      %v8668 = vpop.f32.mrb[0].mxu0
      %8669 = vmatprep.mubr.bf16.mxu0 %v7768
      %8670 = vmatmul.mubr.bf16.gmra.mrb[0].mxu0 %v7767
      %v8671 = vpop.f32.mrb[0].mxu0
      %v8672 = vadd.f32 %v7835, %v8671
      %v8673 = vpop.f32.mrb[0].mxu0
      %v8674 = vpop.f32.mrb[0].mxu0
      %v8675 = vadd.f32 %v7835, %v8674
      %v8676 = vpop.f32.mrb[0].mxu0
      %8677 = vmatprep.mubr.bf16.mxu0 %v7784
      %8678 = vmatmul.mubr.bf16.gmra.mrb[0].mxu0 %v7783
      %v8679 = vpop.f32.mrb[0].mxu0
      %v8680 = vadd.f32 %v7835, %v8679
      %v8681 = vpop.f32.mrb[0].mxu0
      %v8682 = vpop.f32.mrb[0].mxu0
      %v8683 = vadd.f32 %v7835, %v8682
      %v8684 = vpop.f32.mrb[0].mxu0
      %8685 = vmatprep.mubr.bf16.mxu0 %v7800
      %8686 = vmatmul.mubr.bf16.gmra.mrb[0].mxu0 %v7799
      %v8687 = vpop.f32.mrb[0].mxu0
      %v8688 = vadd.f32 %v7835, %v8687
      %v8689 = vpop.f32.mrb[0].mxu0
      %v8690 = vpop.f32.mrb[0].mxu0
      %v8691 = vadd.f32 %v7835, %v8690
      %v8692 = vpop.f32.mrb[0].mxu0
      %8693 = vmatprep.mubr.bf16.mxu0 %v7816
      %8694 = vmatmul.mubr.bf16.gmra.mrb[0].mxu0 %v7815
      %v8695 = vpop.f32.mrb[0].mxu0
      %v8696 = vadd.f32 %v7835, %v8695
      %v8697 = vpop.f32.mrb[0].mxu0
      %v8698 = vpop.f32.mrb[0].mxu0
      %v8699 = vadd.f32 %v7835, %v8698
      %v8700 = vpop.f32.mrb[0].mxu0
      %8701 = vdwg.mxu0
      %8702 = vmatprep.subr.bf16.mxu0 0
      %8703 = vmatpush1.bf16.msra.mxu0 %v8365
      %8704 = vmatprep.subr.bf16.mxu0 0
      %8705 = vmatpush1.bf16.msra.mxu0 %v8366
      %8706 = vmatprep.subr.bf16.mxu0 0
      %8707 = vmatpush1.bf16.msra.mxu0 %v8367
      %8708 = vmatprep.subr.bf16.mxu0 0
      %8709 = vmatpush1.bf16.msra.mxu0 %v8368
      %8710 = vmatprep.subr.bf16.mxu0 0
      %8711 = vmatpush1.bf16.msra.mxu0 %v8369
      %8712 = vmatprep.subr.bf16.mxu0 0
      %8713 = vmatpush1.bf16.msra.mxu0 %v8370
      %8714 = vmatprep.subr.bf16.mxu0 0
      %8715 = vmatpush1.bf16.msra.mxu0 %v8371
      %8716 = vmatprep.subr.bf16.mxu0 0
      %8717 = vmatpush1.bf16.msra.mxu0 %v8372
      %8718 = vmatprep.subr.bf16.mxu0 0
      %8719 = vmatpush1.bf16.msra.mxu0 %v8373
      %8720 = vmatprep.subr.bf16.mxu0 0
      %8721 = vmatpush1.bf16.msra.mxu0 %v8374
      %8722 = vmatprep.subr.bf16.mxu0 0
      %8723 = vmatpush1.bf16.msra.mxu0 %v8375
      %8724 = vmatprep.subr.bf16.mxu0 0
      %8725 = vmatpush1.bf16.msra.mxu0 %v8376
      %8726 = vmatprep.subr.bf16.mxu0 0
      %8727 = vmatpush1.bf16.msra.mxu0 %v8377
      %8728 = vmatprep.subr.bf16.mxu0 0
      %8729 = vmatpush1.bf16.msra.mxu0 %v8378
      %8730 = vmatprep.subr.bf16.mxu0 0
      %8731 = vmatpush1.bf16.msra.mxu0 %v8379
      %8732 = vmatprep.subr.bf16.mxu0 0
      %8733 = vmatpush1.bf16.msra.mxu0 %v8380
      %8734 = vmatprep.mubr.bf16.mxu0 %v7706
      %8735 = vmatmul.mubr.bf16.gmra.mrb[0].mxu0 %v7705
      %v8736 = vpop.f32.mrb[0].mxu0
      %v8737 = vadd.f32 %v8640, %v8736
      %v8738 = vpop.f32.mrb[0].mxu0
      %v8739 = vpop.f32.mrb[0].mxu0
      %v8740 = vadd.f32 %v8643, %v8739
      %v8741 = vpop.f32.mrb[0].mxu0
      %8742 = vmatprep.mubr.bf16.mxu0 %v7722
      %8743 = vmatmul.mubr.bf16.gmra.mrb[0].mxu0 %v7721
      %v8744 = vpop.f32.mrb[0].mxu0
      %v8745 = vadd.f32 %v8648, %v8744
      %v8746 = vpop.f32.mrb[0].mxu0
      %v8747 = vpop.f32.mrb[0].mxu0
      %v8748 = vadd.f32 %v8651, %v8747
      %v8749 = vpop.f32.mrb[0].mxu0
      %8750 = vmatprep.mubr.bf16.mxu0 %v7738
      %8751 = vmatmul.mubr.bf16.gmra.mrb[0].mxu0 %v7737
      %v8752 = vpop.f32.mrb[0].mxu0
      %v8753 = vadd.f32 %v8656, %v8752
      %v8754 = vpop.f32.mrb[0].mxu0
      %v8755 = vpop.f32.mrb[0].mxu0
      %v8756 = vadd.f32 %v8659, %v8755
      %v8757 = vpop.f32.mrb[0].mxu0
      %8758 = vmatprep.mubr.bf16.mxu0 %v7754
      %8759 = vmatmul.mubr.bf16.gmra.mrb[0].mxu0 %v7753
      %v8760 = vpop.f32.mrb[0].mxu0
      %v8761 = vadd.f32 %v8664, %v8760
      %v8762 = vpop.f32.mrb[0].mxu0
      %v8763 = vpop.f32.mrb[0].mxu0
      %v8764 = vadd.f32 %v8667, %v8763
      %v8765 = vpop.f32.mrb[0].mxu0
      %8766 = vmatprep.mubr.bf16.mxu0 %v7770
      %8767 = vmatmul.mubr.bf16.gmra.mrb[0].mxu0 %v7769
      %v8768 = vpop.f32.mrb[0].mxu0
      %v8769 = vadd.f32 %v8672, %v8768
      %v8770 = vpop.f32.mrb[0].mxu0
      %v8771 = vpop.f32.mrb[0].mxu0
      %v8772 = vadd.f32 %v8675, %v8771
      %v8773 = vpop.f32.mrb[0].mxu0
      %8774 = vmatprep.mubr.bf16.mxu0 %v7786
      %8775 = vmatmul.mubr.bf16.gmra.mrb[0].mxu0 %v7785
      %v8776 = vpop.f32.mrb[0].mxu0
      %v8777 = vadd.f32 %v8680, %v8776
      %v8778 = vpop.f32.mrb[0].mxu0
      %v8779 = vpop.f32.mrb[0].mxu0
      %v8780 = vadd.f32 %v8683, %v8779
      %v8781 = vpop.f32.mrb[0].mxu0
      %8782 = vmatprep.mubr.bf16.mxu0 %v7802
      %8783 = vmatmul.mubr.bf16.gmra.mrb[0].mxu0 %v7801
      %v8784 = vpop.f32.mrb[0].mxu0
      %v8785 = vadd.f32 %v8688, %v8784
      %v8786 = vpop.f32.mrb[0].mxu0
      %v8787 = vpop.f32.mrb[0].mxu0
      %v8788 = vadd.f32 %v8691, %v8787
      %v8789 = vpop.f32.mrb[0].mxu0
      %8790 = vmatprep.mubr.bf16.mxu0 %v7818
      %8791 = vmatmul.mubr.bf16.gmra.mrb[0].mxu0 %v7817
      %v8792 = vpop.f32.mrb[0].mxu0
      %v8793 = vadd.f32 %v8696, %v8792
      %v8794 = vpop.f32.mrb[0].mxu0
      %v8795 = vpop.f32.mrb[0].mxu0
      %v8796 = vadd.f32 %v8699, %v8795
      %v8797 = vpop.f32.mrb[0].mxu0
      %8798 = vdwg.mxu0
      %8799 = vmatprep.subr.bf16.mxu0 0
      %8800 = vmatpush1.bf16.msra.mxu0 %v8381
      %8801 = vmatprep.subr.bf16.mxu0 0
      %8802 = vmatpush1.bf16.msra.mxu0 %v8382
      %8803 = vmatprep.subr.bf16.mxu0 0
      %8804 = vmatpush1.bf16.msra.mxu0 %v8383
      %8805 = vmatprep.subr.bf16.mxu0 0
      %8806 = vmatpush1.bf16.msra.mxu0 %v8384
      %8807 = vmatprep.subr.bf16.mxu0 0
      %8808 = vmatpush1.bf16.msra.mxu0 %v8385
      %8809 = vmatprep.subr.bf16.mxu0 0
      %8810 = vmatpush1.bf16.msra.mxu0 %v8386
      %8811 = vmatprep.subr.bf16.mxu0 0
      %8812 = vmatpush1.bf16.msra.mxu0 %v8387
      %8813 = vmatprep.subr.bf16.mxu0 0
      %8814 = vmatpush1.bf16.msra.mxu0 %v8388
      %8815 = vmatprep.subr.bf16.mxu0 0
      %8816 = vmatpush1.bf16.msra.mxu0 %v8389
      %8817 = vmatprep.subr.bf16.mxu0 0
      %8818 = vmatpush1.bf16.msra.mxu0 %v8390
      %8819 = vmatprep.subr.bf16.mxu0 0
      %8820 = vmatpush1.bf16.msra.mxu0 %v8391
      %8821 = vmatprep.subr.bf16.mxu0 0
      %8822 = vmatpush1.bf16.msra.mxu0 %v8392
      %8823 = vmatprep.subr.bf16.mxu0 0
      %8824 = vmatpush1.bf16.msra.mxu0 %v8393
      %8825 = vmatprep.subr.bf16.mxu0 0
      %8826 = vmatpush1.bf16.msra.mxu0 %v8394
      %8827 = vmatprep.subr.bf16.mxu0 0
      %8828 = vmatpush1.bf16.msra.mxu0 %v8395
      %8829 = vmatprep.subr.bf16.mxu0 0
      %8830 = vmatpush1.bf16.msra.mxu0 %v8396
      %8831 = vmatprep.mubr.bf16.mxu0 %v7708
      %8832 = vmatmul.mubr.bf16.gmra.mrb[0].mxu0 %v7707
      %v8833 = vpop.f32.mrb[0].mxu0
      %v8834 = vadd.f32 %v8737, %v8833
      %v8835 = vpop.f32.mrb[0].mxu0
      %v8836 = vpop.f32.mrb[0].mxu0
      %v8837 = vadd.f32 %v8740, %v8836
      %v8838 = vpop.f32.mrb[0].mxu0
      %8839 = vmatprep.mubr.bf16.mxu0 %v7724
      %8840 = vmatmul.mubr.bf16.gmra.mrb[0].mxu0 %v7723
      %v8841 = vpop.f32.mrb[0].mxu0
      %v8842 = vadd.f32 %v8745, %v8841
      %v8843 = vpop.f32.mrb[0].mxu0
      %v8844 = vpop.f32.mrb[0].mxu0
      %v8845 = vadd.f32 %v8748, %v8844
      %v8846 = vpop.f32.mrb[0].mxu0
      %8847 = vmatprep.mubr.bf16.mxu0 %v7740
      %8848 = vmatmul.mubr.bf16.gmra.mrb[0].mxu0 %v7739
      %v8849 = vpop.f32.mrb[0].mxu0
      %v8850 = vadd.f32 %v8753, %v8849
      %v8851 = vpop.f32.mrb[0].mxu0
      %v8852 = vpop.f32.mrb[0].mxu0
      %v8853 = vadd.f32 %v8756, %v8852
      %v8854 = vpop.f32.mrb[0].mxu0
      %8855 = vmatprep.mubr.bf16.mxu0 %v7756
      %8856 = vmatmul.mubr.bf16.gmra.mrb[0].mxu0 %v7755
      %v8857 = vpop.f32.mrb[0].mxu0
      %v8858 = vadd.f32 %v8761, %v8857
      %v8859 = vpop.f32.mrb[0].mxu0
      %v8860 = vpop.f32.mrb[0].mxu0
      %v8861 = vadd.f32 %v8764, %v8860
      %v8862 = vpop.f32.mrb[0].mxu0
      %8863 = vmatprep.mubr.bf16.mxu0 %v7772
      %8864 = vmatmul.mubr.bf16.gmra.mrb[0].mxu0 %v7771
      %v8865 = vpop.f32.mrb[0].mxu0
      %v8866 = vadd.f32 %v8769, %v8865
      %v8867 = vpop.f32.mrb[0].mxu0
      %v8868 = vpop.f32.mrb[0].mxu0
      %v8869 = vadd.f32 %v8772, %v8868
      %v8870 = vpop.f32.mrb[0].mxu0
      %8871 = vmatprep.mubr.bf16.mxu0 %v7788
      %8872 = vmatmul.mubr.bf16.gmra.mrb[0].mxu0 %v7787
      %v8873 = vpop.f32.mrb[0].mxu0
      %v8874 = vadd.f32 %v8777, %v8873
      %v8875 = vpop.f32.mrb[0].mxu0
      %v8876 = vpop.f32.mrb[0].mxu0
      %v8877 = vadd.f32 %v8780, %v8876
      %v8878 = vpop.f32.mrb[0].mxu0
      %8879 = vmatprep.mubr.bf16.mxu0 %v7804
      %8880 = vmatmul.mubr.bf16.gmra.mrb[0].mxu0 %v7803
      %v8881 = vpop.f32.mrb[0].mxu0
      %v8882 = vadd.f32 %v8785, %v8881
      %v8883 = vpop.f32.mrb[0].mxu0
      %v8884 = vpop.f32.mrb[0].mxu0
      %v8885 = vadd.f32 %v8788, %v8884
      %v8886 = vpop.f32.mrb[0].mxu0
      %8887 = vmatprep.mubr.bf16.mxu0 %v7820
      %8888 = vmatmul.mubr.bf16.gmra.mrb[0].mxu0 %v7819
      %v8889 = vpop.f32.mrb[0].mxu0
      %v8890 = vadd.f32 %v8793, %v8889
      %v8891 = vpop.f32.mrb[0].mxu0
      %v8892 = vpop.f32.mrb[0].mxu0
      %v8893 = vadd.f32 %v8796, %v8892
      %v8894 = vpop.f32.mrb[0].mxu0
      %8895 = vdwg.mxu0
      %8896 = vmatprep.subr.bf16.mxu0 0
      %8897 = vmatpush1.bf16.msra.mxu0 %v8397
      %8898 = vmatprep.subr.bf16.mxu0 0
      %8899 = vmatpush1.bf16.msra.mxu0 %v8398
      %8900 = vmatprep.subr.bf16.mxu0 0
      %8901 = vmatpush1.bf16.msra.mxu0 %v8399
      %8902 = vmatprep.subr.bf16.mxu0 0
      %8903 = vmatpush1.bf16.msra.mxu0 %v8400
      %8904 = vmatprep.subr.bf16.mxu0 0
      %8905 = vmatpush1.bf16.msra.mxu0 %v8401
      %8906 = vmatprep.subr.bf16.mxu0 0
      %8907 = vmatpush1.bf16.msra.mxu0 %v8402
      %8908 = vmatprep.subr.bf16.mxu0 0
      %8909 = vmatpush1.bf16.msra.mxu0 %v8403
      %8910 = vmatprep.subr.bf16.mxu0 0
      %8911 = vmatpush1.bf16.msra.mxu0 %v8404
      %8912 = vmatprep.subr.bf16.mxu0 0
      %8913 = vmatpush1.bf16.msra.mxu0 %v8405
      %8914 = vmatprep.subr.bf16.mxu0 0
      %8915 = vmatpush1.bf16.msra.mxu0 %v8406
      %8916 = vmatprep.subr.bf16.mxu0 0
      %8917 = vmatpush1.bf16.msra.mxu0 %v8407
      %8918 = vmatprep.subr.bf16.mxu0 0
      %8919 = vmatpush1.bf16.msra.mxu0 %v8408
      %8920 = vmatprep.subr.bf16.mxu0 0
      %8921 = vmatpush1.bf16.msra.mxu0 %v8409
      %8922 = vmatprep.subr.bf16.mxu0 0
      %8923 = vmatpush1.bf16.msra.mxu0 %v8410
      %8924 = vmatprep.subr.bf16.mxu0 0
      %8925 = vmatpush1.bf16.msra.mxu0 %v8411
      %8926 = vmatprep.subr.bf16.mxu0 0
      %8927 = vmatpush1.bf16.msra.mxu0 %v8412
      %8928 = vmatprep.mubr.bf16.mxu0 %v7710
      %8929 = vmatmul.mubr.bf16.gmra.mrb[0].mxu0 %v7709
      %v8930 = vpop.f32.mrb[0].mxu0
      %v8931 = vadd.f32 %v8834, %v8930
      %v8932 = vpop.f32.mrb[0].mxu0
      %v8933 = vpop.f32.mrb[0].mxu0
      %v8934 = vadd.f32 %v8837, %v8933
      %v8935 = vpop.f32.mrb[0].mxu0
      %8936 = vmatprep.mubr.bf16.mxu0 %v7726
      %8937 = vmatmul.mubr.bf16.gmra.mrb[0].mxu0 %v7725
      %v8938 = vpop.f32.mrb[0].mxu0
      %v8939 = vadd.f32 %v8842, %v8938
      %v8940 = vpop.f32.mrb[0].mxu0
      %v8941 = vpop.f32.mrb[0].mxu0
      %v8942 = vadd.f32 %v8845, %v8941
      %v8943 = vpop.f32.mrb[0].mxu0
      %8944 = vmatprep.mubr.bf16.mxu0 %v7742
      %8945 = vmatmul.mubr.bf16.gmra.mrb[0].mxu0 %v7741
      %v8946 = vpop.f32.mrb[0].mxu0
      %v8947 = vadd.f32 %v8850, %v8946
      %v8948 = vpop.f32.mrb[0].mxu0
      %v8949 = vpop.f32.mrb[0].mxu0
      %v8950 = vadd.f32 %v8853, %v8949
      %v8951 = vpop.f32.mrb[0].mxu0
      %8952 = vmatprep.mubr.bf16.mxu0 %v7758
      %8953 = vmatmul.mubr.bf16.gmra.mrb[0].mxu0 %v7757
      %v8954 = vpop.f32.mrb[0].mxu0
      %v8955 = vadd.f32 %v8858, %v8954
      %v8956 = vpop.f32.mrb[0].mxu0
      %v8957 = vpop.f32.mrb[0].mxu0
      %v8958 = vadd.f32 %v8861, %v8957
      %v8959 = vpop.f32.mrb[0].mxu0
      %8960 = vmatprep.mubr.bf16.mxu0 %v7774
      %8961 = vmatmul.mubr.bf16.gmra.mrb[0].mxu0 %v7773
      %v8962 = vpop.f32.mrb[0].mxu0
      %v8963 = vadd.f32 %v8866, %v8962
      %v8964 = vpop.f32.mrb[0].mxu0
      %v8965 = vpop.f32.mrb[0].mxu0
      %v8966 = vadd.f32 %v8869, %v8965
      %v8967 = vpop.f32.mrb[0].mxu0
      %8968 = vmatprep.mubr.bf16.mxu0 %v7790
      %8969 = vmatmul.mubr.bf16.gmra.mrb[0].mxu0 %v7789
      %v8970 = vpop.f32.mrb[0].mxu0
      %v8971 = vadd.f32 %v8874, %v8970
      %v8972 = vpop.f32.mrb[0].mxu0
      %v8973 = vpop.f32.mrb[0].mxu0
      %v8974 = vadd.f32 %v8877, %v8973
      %v8975 = vpop.f32.mrb[0].mxu0
      %8976 = vmatprep.mubr.bf16.mxu0 %v7806
      %8977 = vmatmul.mubr.bf16.gmra.mrb[0].mxu0 %v7805
      %v8978 = vpop.f32.mrb[0].mxu0
      %v8979 = vadd.f32 %v8882, %v8978
      %v8980 = vpop.f32.mrb[0].mxu0
      %v8981 = vpop.f32.mrb[0].mxu0
      %v8982 = vadd.f32 %v8885, %v8981
      %v8983 = vpop.f32.mrb[0].mxu0
      %8984 = vmatprep.mubr.bf16.mxu0 %v7822
      %8985 = vmatmul.mubr.bf16.gmra.mrb[0].mxu0 %v7821
      %v8986 = vpop.f32.mrb[0].mxu0
      %v8987 = vadd.f32 %v8890, %v8986
      %v8988 = vpop.f32.mrb[0].mxu0
      %v8989 = vpop.f32.mrb[0].mxu0
      %v8990 = vadd.f32 %v8893, %v8989
      %v8991 = vpop.f32.mrb[0].mxu0
      %8992 = vdwg.mxu0
      %8993 = vmatprep.subr.bf16.mxu0 0
      %8994 = vmatpush1.bf16.msra.mxu0 %v8413
      %8995 = vmatprep.subr.bf16.mxu0 0
      %8996 = vmatpush1.bf16.msra.mxu0 %v8414
      %8997 = vmatprep.subr.bf16.mxu0 0
      %8998 = vmatpush1.bf16.msra.mxu0 %v8415
      %8999 = vmatprep.subr.bf16.mxu0 0
      %9000 = vmatpush1.bf16.msra.mxu0 %v8416
      %9001 = vmatprep.subr.bf16.mxu0 0
      %9002 = vmatpush1.bf16.msra.mxu0 %v8417
      %9003 = vmatprep.subr.bf16.mxu0 0
      %9004 = vmatpush1.bf16.msra.mxu0 %v8418
      %9005 = vmatprep.subr.bf16.mxu0 0
      %9006 = vmatpush1.bf16.msra.mxu0 %v8419
      %9007 = vmatprep.subr.bf16.mxu0 0
      %9008 = vmatpush1.bf16.msra.mxu0 %v8420
      %9009 = vmatprep.subr.bf16.mxu0 0
      %9010 = vmatpush1.bf16.msra.mxu0 %v8421
      %9011 = vmatprep.subr.bf16.mxu0 0
      %9012 = vmatpush1.bf16.msra.mxu0 %v8422
      %9013 = vmatprep.subr.bf16.mxu0 0
      %9014 = vmatpush1.bf16.msra.mxu0 %v8423
      %9015 = vmatprep.subr.bf16.mxu0 0
      %9016 = vmatpush1.bf16.msra.mxu0 %v8424
      %9017 = vmatprep.subr.bf16.mxu0 0
      %9018 = vmatpush1.bf16.msra.mxu0 %v8425
      %9019 = vmatprep.subr.bf16.mxu0 0
      %9020 = vmatpush1.bf16.msra.mxu0 %v8426
      %9021 = vmatprep.subr.bf16.mxu0 0
      %9022 = vmatpush1.bf16.msra.mxu0 %v8427
      %9023 = vmatprep.subr.bf16.mxu0 0
      %9024 = vmatpush1.bf16.msra.mxu0 %v8428
      %9025 = vmatprep.mubr.bf16.mxu0 %v7712
      %9026 = vmatmul.mubr.bf16.gmra.mrb[0].mxu0 %v7711
      %v9027 = vpop.f32.mrb[0].mxu0
      %v9028 = vadd.f32 %v8931, %v9027
      %v9029 = vpop.f32.mrb[0].mxu0
      %v9030 = vpop.f32.mrb[0].mxu0
      %v9031 = vadd.f32 %v8934, %v9030
      %v9032 = vpop.f32.mrb[0].mxu0
      %9033 = vmatprep.mubr.bf16.mxu0 %v7728
      %9034 = vmatmul.mubr.bf16.gmra.mrb[0].mxu0 %v7727
      %v9035 = vpop.f32.mrb[0].mxu0
      %v9036 = vadd.f32 %v8939, %v9035
      %v9037 = vpop.f32.mrb[0].mxu0
      %v9038 = vpop.f32.mrb[0].mxu0
      %v9039 = vadd.f32 %v8942, %v9038
      %v9040 = vpop.f32.mrb[0].mxu0
      %9041 = vmatprep.mubr.bf16.mxu0 %v7744
      %9042 = vmatmul.mubr.bf16.gmra.mrb[0].mxu0 %v7743
      %v9043 = vpop.f32.mrb[0].mxu0
      %v9044 = vadd.f32 %v8947, %v9043
      %v9045 = vpop.f32.mrb[0].mxu0
      %v9046 = vpop.f32.mrb[0].mxu0
      %v9047 = vadd.f32 %v8950, %v9046
      %v9048 = vpop.f32.mrb[0].mxu0
      %9049 = vmatprep.mubr.bf16.mxu0 %v7760
      %9050 = vmatmul.mubr.bf16.gmra.mrb[0].mxu0 %v7759
      %v9051 = vpop.f32.mrb[0].mxu0
      %v9052 = vadd.f32 %v8955, %v9051
      %v9053 = vpop.f32.mrb[0].mxu0
      %v9054 = vpop.f32.mrb[0].mxu0
      %v9055 = vadd.f32 %v8958, %v9054
      %v9056 = vpop.f32.mrb[0].mxu0
      %9057 = vmatprep.mubr.bf16.mxu0 %v7776
      %9058 = vmatmul.mubr.bf16.gmra.mrb[0].mxu0 %v7775
      %v9059 = vpop.f32.mrb[0].mxu0
      %v9060 = vadd.f32 %v8963, %v9059
      %v9061 = vpop.f32.mrb[0].mxu0
      %v9062 = vpop.f32.mrb[0].mxu0
      %v9063 = vadd.f32 %v8966, %v9062
      %v9064 = vpop.f32.mrb[0].mxu0
      %9065 = vmatprep.mubr.bf16.mxu0 %v7792
      %9066 = vmatmul.mubr.bf16.gmra.mrb[0].mxu0 %v7791
      %v9067 = vpop.f32.mrb[0].mxu0
      %v9068 = vadd.f32 %v8971, %v9067
      %v9069 = vpop.f32.mrb[0].mxu0
      %v9070 = vpop.f32.mrb[0].mxu0
      %v9071 = vadd.f32 %v8974, %v9070
      %v9072 = vpop.f32.mrb[0].mxu0
      %9073 = vmatprep.mubr.bf16.mxu0 %v7808
      %9074 = vmatmul.mubr.bf16.gmra.mrb[0].mxu0 %v7807
      %v9075 = vpop.f32.mrb[0].mxu0
      %v9076 = vadd.f32 %v8979, %v9075
      %v9077 = vpop.f32.mrb[0].mxu0
      %v9078 = vpop.f32.mrb[0].mxu0
      %v9079 = vadd.f32 %v8982, %v9078
      %v9080 = vpop.f32.mrb[0].mxu0
      %9081 = vmatprep.mubr.bf16.mxu0 %v7824
      %9082 = vmatmul.mubr.bf16.gmra.mrb[0].mxu0 %v7823
      %v9083 = vpop.f32.mrb[0].mxu0
      %v9084 = vadd.f32 %v8987, %v9083
      %v9085 = vpop.f32.mrb[0].mxu0
      %v9086 = vpop.f32.mrb[0].mxu0
      %v9087 = vadd.f32 %v8990, %v9086
      %v9088 = vpop.f32.mrb[0].mxu0
      %9089 = vdwg.mxu0
      %9090 = vmatprep.subr.bf16.mxu0 0
      %9091 = vmatpush1.bf16.msra.mxu0 %v8429
      %9092 = vmatprep.subr.bf16.mxu0 0
      %9093 = vmatpush1.bf16.msra.mxu0 %v8430
      %9094 = vmatprep.subr.bf16.mxu0 0
      %9095 = vmatpush1.bf16.msra.mxu0 %v8431
      %9096 = vmatprep.subr.bf16.mxu0 0
      %9097 = vmatpush1.bf16.msra.mxu0 %v8432
      %9098 = vmatprep.subr.bf16.mxu0 0
      %9099 = vmatpush1.bf16.msra.mxu0 %v8433
      %9100 = vmatprep.subr.bf16.mxu0 0
      %9101 = vmatpush1.bf16.msra.mxu0 %v8434
      %9102 = vmatprep.subr.bf16.mxu0 0
      %9103 = vmatpush1.bf16.msra.mxu0 %v8435
      %9104 = vmatprep.subr.bf16.mxu0 0
      %9105 = vmatpush1.bf16.msra.mxu0 %v8436
      %9106 = vmatprep.subr.bf16.mxu0 0
      %9107 = vmatpush1.bf16.msra.mxu0 %v8437
      %9108 = vmatprep.subr.bf16.mxu0 0
      %9109 = vmatpush1.bf16.msra.mxu0 %v8438
      %9110 = vmatprep.subr.bf16.mxu0 0
      %9111 = vmatpush1.bf16.msra.mxu0 %v8439
      %9112 = vmatprep.subr.bf16.mxu0 0
      %9113 = vmatpush1.bf16.msra.mxu0 %v8440
      %9114 = vmatprep.subr.bf16.mxu0 0
      %9115 = vmatpush1.bf16.msra.mxu0 %v8441
      %9116 = vmatprep.subr.bf16.mxu0 0
      %9117 = vmatpush1.bf16.msra.mxu0 %v8442
      %9118 = vmatprep.subr.bf16.mxu0 0
      %9119 = vmatpush1.bf16.msra.mxu0 %v8443
      %9120 = vmatprep.subr.bf16.mxu0 0
      %9121 = vmatpush1.bf16.msra.mxu0 %v8444
      %9122 = vmatprep.mubr.bf16.mxu0 %v7714
      %9123 = vmatmul.mubr.bf16.gmra.mrb[0].mxu0 %v7713
      %v9124 = vpop.f32.mrb[0].mxu0
      %v9125 = vadd.f32 %v9028, %v9124
      %v9126 = vpop.f32.mrb[0].mxu0
      %v9127 = vpop.f32.mrb[0].mxu0
      %v9128 = vadd.f32 %v9031, %v9127
      %v9129 = vpop.f32.mrb[0].mxu0
      %9130 = vmatprep.mubr.bf16.mxu0 %v7730
      %9131 = vmatmul.mubr.bf16.gmra.mrb[0].mxu0 %v7729
      %v9132 = vpop.f32.mrb[0].mxu0
      %v9133 = vadd.f32 %v9036, %v9132
      %v9134 = vpop.f32.mrb[0].mxu0
      %v9135 = vpop.f32.mrb[0].mxu0
      %v9136 = vadd.f32 %v9039, %v9135
      %v9137 = vpop.f32.mrb[0].mxu0
      %9138 = vmatprep.mubr.bf16.mxu0 %v7746
      %9139 = vmatmul.mubr.bf16.gmra.mrb[0].mxu0 %v7745
      %v9140 = vpop.f32.mrb[0].mxu0
      %v9141 = vadd.f32 %v9044, %v9140
      %v9142 = vpop.f32.mrb[0].mxu0
      %v9143 = vpop.f32.mrb[0].mxu0
      %v9144 = vadd.f32 %v9047, %v9143
      %v9145 = vpop.f32.mrb[0].mxu0
      %9146 = vmatprep.mubr.bf16.mxu0 %v7762
      %9147 = vmatmul.mubr.bf16.gmra.mrb[0].mxu0 %v7761
      %v9148 = vpop.f32.mrb[0].mxu0
      %v9149 = vadd.f32 %v9052, %v9148
      %v9150 = vpop.f32.mrb[0].mxu0
      %v9151 = vpop.f32.mrb[0].mxu0
      %v9152 = vadd.f32 %v9055, %v9151
      %v9153 = vpop.f32.mrb[0].mxu0
      %9154 = vmatprep.mubr.bf16.mxu0 %v7778
      %9155 = vmatmul.mubr.bf16.gmra.mrb[0].mxu0 %v7777
      %v9156 = vpop.f32.mrb[0].mxu0
      %v9157 = vadd.f32 %v9060, %v9156
      %v9158 = vpop.f32.mrb[0].mxu0
      %v9159 = vpop.f32.mrb[0].mxu0
      %v9160 = vadd.f32 %v9063, %v9159
      %v9161 = vpop.f32.mrb[0].mxu0
      %9162 = vmatprep.mubr.bf16.mxu0 %v7794
      %9163 = vmatmul.mubr.bf16.gmra.mrb[0].mxu0 %v7793
      %v9164 = vpop.f32.mrb[0].mxu0
      %v9165 = vadd.f32 %v9068, %v9164
      %v9166 = vpop.f32.mrb[0].mxu0
      %v9167 = vpop.f32.mrb[0].mxu0
      %v9168 = vadd.f32 %v9071, %v9167
      %v9169 = vpop.f32.mrb[0].mxu0
      %9170 = vmatprep.mubr.bf16.mxu0 %v7810
      %9171 = vmatmul.mubr.bf16.gmra.mrb[0].mxu0 %v7809
      %v9172 = vpop.f32.mrb[0].mxu0
      %v9173 = vadd.f32 %v9076, %v9172
      %v9174 = vpop.f32.mrb[0].mxu0
      %v9175 = vpop.f32.mrb[0].mxu0
      %v9176 = vadd.f32 %v9079, %v9175
      %v9177 = vpop.f32.mrb[0].mxu0
      %9178 = vmatprep.mubr.bf16.mxu0 %v7826
      %9179 = vmatmul.mubr.bf16.gmra.mrb[0].mxu0 %v7825
      %v9180 = vpop.f32.mrb[0].mxu0
      %v9181 = vadd.f32 %v9084, %v9180
      %v9182 = vpop.f32.mrb[0].mxu0
      %v9183 = vpop.f32.mrb[0].mxu0
      %v9184 = vadd.f32 %v9087, %v9183
      %v9185 = vpop.f32.mrb[0].mxu0
      %9186 = vdwg.mxu0
      %9187 = vmatprep.subr.bf16.mxu0 0
      %9188 = vmatpush1.bf16.msra.mxu0 %v8445
      %9189 = vmatprep.subr.bf16.mxu0 0
      %9190 = vmatpush1.bf16.msra.mxu0 %v8446
      %9191 = vmatprep.subr.bf16.mxu0 0
      %9192 = vmatpush1.bf16.msra.mxu0 %v8447
      %9193 = vmatprep.subr.bf16.mxu0 0
      %9194 = vmatpush1.bf16.msra.mxu0 %v8448
      %9195 = vmatprep.subr.bf16.mxu0 0
      %9196 = vmatpush1.bf16.msra.mxu0 %v8449
      %9197 = vmatprep.subr.bf16.mxu0 0
      %9198 = vmatpush1.bf16.msra.mxu0 %v8450
      %9199 = vmatprep.subr.bf16.mxu0 0
      %9200 = vmatpush1.bf16.msra.mxu0 %v8451
      %9201 = vmatprep.subr.bf16.mxu0 0
      %9202 = vmatpush1.bf16.msra.mxu0 %v8452
      %9203 = vmatprep.subr.bf16.mxu0 0
      %9204 = vmatpush1.bf16.msra.mxu0 %v8453
      %9205 = vmatprep.subr.bf16.mxu0 0
      %9206 = vmatpush1.bf16.msra.mxu0 %v8454
      %9207 = vmatprep.subr.bf16.mxu0 0
      %9208 = vmatpush1.bf16.msra.mxu0 %v8455
      %9209 = vmatprep.subr.bf16.mxu0 0
      %9210 = vmatpush1.bf16.msra.mxu0 %v8456
      %9211 = vmatprep.subr.bf16.mxu0 0
      %9212 = vmatpush1.bf16.msra.mxu0 %v8457
      %9213 = vmatprep.subr.bf16.mxu0 0
      %9214 = vmatpush1.bf16.msra.mxu0 %v8458
      %9215 = vmatprep.subr.bf16.mxu0 0
      %9216 = vmatpush1.bf16.msra.mxu0 %v8459
      %9217 = vmatprep.subr.bf16.mxu0 0
      %9218 = vmatpush1.bf16.msra.mxu0 %v8460
      %9219 = vmatprep.mubr.bf16.mxu0 %v7716
      %9220 = vmatmul.mubr.bf16.gmra.mrb[0].mxu0 %v7715
      %v9221 = vpop.f32.mrb[0].mxu0
      %v9222 = vadd.f32 %v9125, %v9221
      %v9223 = vpop.f32.mrb[0].mxu0
      %v9224 = vpop.f32.mrb[0].mxu0
      %v9225 = vadd.f32 %v9128, %v9224
      %v9226 = vpop.f32.mrb[0].mxu0
      %9227 = vmatprep.mubr.bf16.mxu0 %v7732
      %9228 = vmatmul.mubr.bf16.gmra.mrb[0].mxu0 %v7731
      %v9229 = vpop.f32.mrb[0].mxu0
      %v9230 = vadd.f32 %v9133, %v9229
      %v9231 = vpop.f32.mrb[0].mxu0
      %v9232 = vpop.f32.mrb[0].mxu0
      %v9233 = vadd.f32 %v9136, %v9232
      %v9234 = vpop.f32.mrb[0].mxu0
      %9235 = vmatprep.mubr.bf16.mxu0 %v7748
      %9236 = vmatmul.mubr.bf16.gmra.mrb[0].mxu0 %v7747
      %v9237 = vpop.f32.mrb[0].mxu0
      %v9238 = vadd.f32 %v9141, %v9237
      %v9239 = vpop.f32.mrb[0].mxu0
      %v9240 = vpop.f32.mrb[0].mxu0
      %v9241 = vadd.f32 %v9144, %v9240
      %v9242 = vpop.f32.mrb[0].mxu0
      %9243 = vmatprep.mubr.bf16.mxu0 %v7764
      %9244 = vmatmul.mubr.bf16.gmra.mrb[0].mxu0 %v7763
      %v9245 = vpop.f32.mrb[0].mxu0
      %v9246 = vadd.f32 %v9149, %v9245
      %v9247 = vpop.f32.mrb[0].mxu0
      %v9248 = vpop.f32.mrb[0].mxu0
      %v9249 = vadd.f32 %v9152, %v9248
      %v9250 = vpop.f32.mrb[0].mxu0
      %9251 = vmatprep.mubr.bf16.mxu0 %v7780
      %9252 = vmatmul.mubr.bf16.gmra.mrb[0].mxu0 %v7779
      %v9253 = vpop.f32.mrb[0].mxu0
      %v9254 = vadd.f32 %v9157, %v9253
      %v9255 = vpop.f32.mrb[0].mxu0
      %v9256 = vpop.f32.mrb[0].mxu0
      %v9257 = vadd.f32 %v9160, %v9256
      %v9258 = vpop.f32.mrb[0].mxu0
      %9259 = vmatprep.mubr.bf16.mxu0 %v7796
      %9260 = vmatmul.mubr.bf16.gmra.mrb[0].mxu0 %v7795
      %v9261 = vpop.f32.mrb[0].mxu0
      %v9262 = vadd.f32 %v9165, %v9261
      %v9263 = vpop.f32.mrb[0].mxu0
      %v9264 = vpop.f32.mrb[0].mxu0
      %v9265 = vadd.f32 %v9168, %v9264
      %v9266 = vpop.f32.mrb[0].mxu0
      %9267 = vmatprep.mubr.bf16.mxu0 %v7812
      %9268 = vmatmul.mubr.bf16.gmra.mrb[0].mxu0 %v7811
      %v9269 = vpop.f32.mrb[0].mxu0
      %v9270 = vadd.f32 %v9173, %v9269
      %v9271 = vpop.f32.mrb[0].mxu0
      %v9272 = vpop.f32.mrb[0].mxu0
      %v9273 = vadd.f32 %v9176, %v9272
      %v9274 = vpop.f32.mrb[0].mxu0
      %9275 = vmatprep.mubr.bf16.mxu0 %v7828
      %9276 = vmatmul.mubr.bf16.gmra.mrb[0].mxu0 %v7827
      %v9277 = vpop.f32.mrb[0].mxu0
      %v9278 = vadd.f32 %v9181, %v9277
      %v9279 = vpop.f32.mrb[0].mxu0
      %v9280 = vpop.f32.mrb[0].mxu0
      %v9281 = vadd.f32 %v9184, %v9280
      %v9282 = vpop.f32.mrb[0].mxu0
      %9283 = vdwg.mxu0
      %9284 = vmatprep.subr.bf16.mxu0 0
      %9285 = vmatpush1.bf16.msra.mxu0 %v8461
      %9286 = vmatprep.subr.bf16.mxu0 0
      %9287 = vmatpush1.bf16.msra.mxu0 %v8462
      %9288 = vmatprep.subr.bf16.mxu0 0
      %9289 = vmatpush1.bf16.msra.mxu0 %v8463
      %9290 = vmatprep.subr.bf16.mxu0 0
      %9291 = vmatpush1.bf16.msra.mxu0 %v8464
      %9292 = vmatprep.subr.bf16.mxu0 0
      %9293 = vmatpush1.bf16.msra.mxu0 %v8465
      %9294 = vmatprep.subr.bf16.mxu0 0
      %9295 = vmatpush1.bf16.msra.mxu0 %v8466
      %9296 = vmatprep.subr.bf16.mxu0 0
      %9297 = vmatpush1.bf16.msra.mxu0 %v8467
      %9298 = vmatprep.subr.bf16.mxu0 0
      %9299 = vmatpush1.bf16.msra.mxu0 %v8468
      %9300 = vmatprep.subr.bf16.mxu0 0
      %9301 = vmatpush1.bf16.msra.mxu0 %v8469
      %9302 = vmatprep.subr.bf16.mxu0 0
      %9303 = vmatpush1.bf16.msra.mxu0 %v8470
      %9304 = vmatprep.subr.bf16.mxu0 0
      %9305 = vmatpush1.bf16.msra.mxu0 %v8471
      %9306 = vmatprep.subr.bf16.mxu0 0
      %9307 = vmatpush1.bf16.msra.mxu0 %v8472
      %9308 = vmatprep.subr.bf16.mxu0 0
      %9309 = vmatpush1.bf16.msra.mxu0 %v8473
      %9310 = vmatprep.subr.bf16.mxu0 0
      %9311 = vmatpush1.bf16.msra.mxu0 %v8474
      %9312 = vmatprep.subr.bf16.mxu0 0
      %9313 = vmatpush1.bf16.msra.mxu0 %v8475
      %9314 = vmatprep.subr.bf16.mxu0 0
      %9315 = vmatpush1.bf16.msra.mxu0 %v8476
      %9316 = vmatprep.mubr.bf16.mxu0 %v7718
      %9317 = vmatmul.mubr.bf16.gmra.mrb[0].mxu0 %v7717
      %v9318 = vpop.f32.mrb[0].mxu0
      %v9319 = vadd.f32 %v9222, %v9318
      %v9320 = vpop.f32.mrb[0].mxu0
      %v9321 = vpop.f32.mrb[0].mxu0
      %v9322 = vadd.f32 %v9225, %v9321
      %v9323 = vpop.f32.mrb[0].mxu0
      %9324 = vmatprep.mubr.bf16.mxu0 %v7734
      %9325 = vmatmul.mubr.bf16.gmra.mrb[0].mxu0 %v7733
      %v9326 = vpop.f32.mrb[0].mxu0
      %v9327 = vadd.f32 %v9230, %v9326
      %v9328 = vpop.f32.mrb[0].mxu0
      %v9329 = vpop.f32.mrb[0].mxu0
      %v9330 = vadd.f32 %v9233, %v9329
      %v9331 = vpop.f32.mrb[0].mxu0
      %9332 = vmatprep.mubr.bf16.mxu0 %v7750
      %9333 = vmatmul.mubr.bf16.gmra.mrb[0].mxu0 %v7749
      %v9334 = vpop.f32.mrb[0].mxu0
      %v9335 = vadd.f32 %v9238, %v9334
      %v9336 = vpop.f32.mrb[0].mxu0
      %v9337 = vpop.f32.mrb[0].mxu0
      %v9338 = vadd.f32 %v9241, %v9337
      %v9339 = vpop.f32.mrb[0].mxu0
      %9340 = vmatprep.mubr.bf16.mxu0 %v7766
      %9341 = vmatmul.mubr.bf16.gmra.mrb[0].mxu0 %v7765
      %v9342 = vpop.f32.mrb[0].mxu0
      %v9343 = vadd.f32 %v9246, %v9342
      %v9344 = vpop.f32.mrb[0].mxu0
      %v9345 = vpop.f32.mrb[0].mxu0
      %v9346 = vadd.f32 %v9249, %v9345
      %v9347 = vpop.f32.mrb[0].mxu0
      %9348 = vmatprep.mubr.bf16.mxu0 %v7782
      %9349 = vmatmul.mubr.bf16.gmra.mrb[0].mxu0 %v7781
      %v9350 = vpop.f32.mrb[0].mxu0
      %v9351 = vadd.f32 %v9254, %v9350
      %v9352 = vpop.f32.mrb[0].mxu0
      %v9353 = vpop.f32.mrb[0].mxu0
      %v9354 = vadd.f32 %v9257, %v9353
      %v9355 = vpop.f32.mrb[0].mxu0
      %9356 = vmatprep.mubr.bf16.mxu0 %v7798
      %9357 = vmatmul.mubr.bf16.gmra.mrb[0].mxu0 %v7797
      %v9358 = vpop.f32.mrb[0].mxu0
      %v9359 = vadd.f32 %v9262, %v9358
      %v9360 = vpop.f32.mrb[0].mxu0
      %v9361 = vpop.f32.mrb[0].mxu0
      %v9362 = vadd.f32 %v9265, %v9361
      %v9363 = vpop.f32.mrb[0].mxu0
      %9364 = vmatprep.mubr.bf16.mxu0 %v7814
      %9365 = vmatmul.mubr.bf16.gmra.mrb[0].mxu0 %v7813
      %v9366 = vpop.f32.mrb[0].mxu0
      %v9367 = vadd.f32 %v9270, %v9366
      %v9368 = vpop.f32.mrb[0].mxu0
      %v9369 = vpop.f32.mrb[0].mxu0
      %v9370 = vadd.f32 %v9273, %v9369
      %v9371 = vpop.f32.mrb[0].mxu0
      %9372 = vmatprep.mubr.bf16.mxu0 %v7830
      %9373 = vmatmul.mubr.bf16.gmra.mrb[0].mxu0 %v7829
      %v9374 = vpop.f32.mrb[0].mxu0
      %v9375 = vadd.f32 %v9278, %v9374
      %v9376 = vpop.f32.mrb[0].mxu0
      %v9377 = vpop.f32.mrb[0].mxu0
      %v9378 = vadd.f32 %v9281, %v9377
      %v9379 = vpop.f32.mrb[0].mxu0
      %9380 = vdwg.mxu0
      %v9381 = vadd.f32 %v6093, %v9319
      %v9382 = vadd.f32 %v6094, %v9322
      %v9383 = vadd.f32 %v6095, %v9327
      %v9384 = vadd.f32 %v6096, %v9330
      %v9385 = vadd.f32 %v6097, %v9335
      %v9386 = vadd.f32 %v6098, %v9338
      %v9387 = vadd.f32 %v6099, %v9343
      %v9388 = vadd.f32 %v6100, %v9346
      %v9389 = vadd.f32 %v6101, %v9351
      %v9390 = vadd.f32 %v6102, %v9354
      %v9391 = vadd.f32 %v6103, %v9359
      %v9392 = vadd.f32 %v6104, %v9362
      %v9393 = vadd.f32 %v6105, %v9367
      %v9394 = vadd.f32 %v6106, %v9370
      %v9395 = vadd.f32 %v6107, %v9375
      %v9396 = vadd.f32 %v6108, %v9378
      %v9397 = vsel %vm1243, %v9381, 0.0
      %9398 = vadd.xlane.f32.xlu0 %v9397
      %v9399 = vpop.xlane.xlu0 %9398
      %v9400 = vsel %vm1243, %v9382, 0.0
      %9401 = vadd.xlane.f32.xlu0 %v9400
      %v9402 = vpop.xlane.xlu0 %9401
      %v9403 = vsel %vm1243, %v9383, 0.0
      %9404 = vadd.xlane.f32.xlu0 %v9403
      %v9405 = vpop.xlane.xlu0 %9404
      %v9406 = vsel %vm1243, %v9384, 0.0
      %9407 = vadd.xlane.f32.xlu0 %v9406
      %v9408 = vpop.xlane.xlu0 %9407
      %v9409 = vsel %vm1243, %v9385, 0.0
      %9410 = vadd.xlane.f32.xlu0 %v9409
      %v9411 = vpop.xlane.xlu0 %9410
      %v9412 = vsel %vm1243, %v9386, 0.0
      %9413 = vadd.xlane.f32.xlu0 %v9412
      %v9414 = vpop.xlane.xlu0 %9413
      %v9415 = vsel %vm1243, %v9387, 0.0
      %9416 = vadd.xlane.f32.xlu0 %v9415
      %v9417 = vpop.xlane.xlu0 %9416
      %v9418 = vsel %vm1243, %v9388, 0.0
      %9419 = vadd.xlane.f32.xlu0 %v9418
      %v9420 = vpop.xlane.xlu0 %9419
      %v9421 = vsel %vm1243, %v9389, 0.0
      %9422 = vadd.xlane.f32.xlu0 %v9421
      %v9423 = vpop.xlane.xlu0 %9422
      %v9424 = vsel %vm1243, %v9390, 0.0
      %9425 = vadd.xlane.f32.xlu0 %v9424
      %v9426 = vpop.xlane.xlu0 %9425
      %v9427 = vsel %vm1243, %v9391, 0.0
      %9428 = vadd.xlane.f32.xlu0 %v9427
      %v9429 = vpop.xlane.xlu0 %9428
      %v9430 = vsel %vm1243, %v9392, 0.0
      %9431 = vadd.xlane.f32.xlu0 %v9430
      %v9432 = vpop.xlane.xlu0 %9431
      %v9433 = vsel %vm1243, %v9393, 0.0
      %9434 = vadd.xlane.f32.xlu0 %v9433
      %v9435 = vpop.xlane.xlu0 %9434
      %v9436 = vsel %vm1243, %v9394, 0.0
      %9437 = vadd.xlane.f32.xlu0 %v9436
      %v9438 = vpop.xlane.xlu0 %9437
      %v9439 = vsel %vm1243, %v9395, 0.0
      %9440 = vadd.xlane.f32.xlu0 %v9439
      %v9441 = vpop.xlane.xlu0 %9440
      %v9442 = vsel %vm1243, %v9396, 0.0
      %9443 = vadd.xlane.f32.xlu0 %v9442
      %v9444 = vpop.xlane.xlu0 %9443
      %v9445 = vmul.f32 %v9399, %v5904
      %v9446 = vmul.f32 %v9402, %v5904
      %v9447 = vmul.f32 %v9405, %v5904
      %v9448 = vmul.f32 %v9408, %v5904
      %v9449 = vmul.f32 %v9411, %v5904
      %v9450 = vmul.f32 %v9414, %v5904
      %v9451 = vmul.f32 %v9417, %v5904
      %v9452 = vmul.f32 %v9420, %v5904
      %v9453 = vmul.f32 %v9423, %v5904
      %v9454 = vmul.f32 %v9426, %v5904
      %v9455 = vmul.f32 %v9429, %v5904
      %v9456 = vmul.f32 %v9432, %v5904
      %v9457 = vmul.f32 %v9435, %v5904
      %v9458 = vmul.f32 %v9438, %v5904
      %v9459 = vmul.f32 %v9441, %v5904
      %v9460 = vmul.f32 %v9444, %v5904
      %v9461 = vsub.f32 %v9381, %v9445
      %v9462 = vsub.f32 %v9382, %v9446
      %v9463 = vsub.f32 %v9383, %v9447
      %v9464 = vsub.f32 %v9384, %v9448
      %v9465 = vsub.f32 %v9385, %v9449
      %v9466 = vsub.f32 %v9386, %v9450
      %v9467 = vsub.f32 %v9387, %v9451
      %v9468 = vsub.f32 %v9388, %v9452
      %v9469 = vsub.f32 %v9389, %v9453
      %v9470 = vsub.f32 %v9390, %v9454
      %v9471 = vsub.f32 %v9391, %v9455
      %v9472 = vsub.f32 %v9392, %v9456
      %v9473 = vsub.f32 %v9393, %v9457
      %v9474 = vsub.f32 %v9394, %v9458
      %v9475 = vsub.f32 %v9395, %v9459
      %v9476 = vsub.f32 %v9396, %v9460
      %v9477 = vmul.f32 %v9461, %v9461
      %v9478 = vmul.f32 %v9462, %v9462
      %v9479 = vmul.f32 %v9463, %v9463
      %v9480 = vmul.f32 %v9464, %v9464
      %v9481 = vmul.f32 %v9465, %v9465
      %v9482 = vmul.f32 %v9466, %v9466
      %v9483 = vmul.f32 %v9467, %v9467
      %v9484 = vmul.f32 %v9468, %v9468
      %v9485 = vmul.f32 %v9469, %v9469
      %v9486 = vmul.f32 %v9470, %v9470
      %v9487 = vmul.f32 %v9471, %v9471
      %v9488 = vmul.f32 %v9472, %v9472
      %v9489 = vmul.f32 %v9473, %v9473
      %v9490 = vmul.f32 %v9474, %v9474
      %v9491 = vmul.f32 %v9475, %v9475
      %v9492 = vmul.f32 %v9476, %v9476
      %v9493 = vsel %vm1243, %v9477, 0.0
      %9494 = vadd.xlane.f32.xlu0 %v9493
      %v9495 = vpop.xlane.xlu0 %9494
      %v9496 = vsel %vm1243, %v9478, 0.0
      %9497 = vadd.xlane.f32.xlu0 %v9496
      %v9498 = vpop.xlane.xlu0 %9497
      %v9499 = vsel %vm1243, %v9479, 0.0
      %9500 = vadd.xlane.f32.xlu0 %v9499
      %v9501 = vpop.xlane.xlu0 %9500
      %v9502 = vsel %vm1243, %v9480, 0.0
      %9503 = vadd.xlane.f32.xlu0 %v9502
      %v9504 = vpop.xlane.xlu0 %9503
      %v9505 = vsel %vm1243, %v9481, 0.0
      %9506 = vadd.xlane.f32.xlu0 %v9505
      %v9507 = vpop.xlane.xlu0 %9506
      %v9508 = vsel %vm1243, %v9482, 0.0
      %9509 = vadd.xlane.f32.xlu0 %v9508
      %v9510 = vpop.xlane.xlu0 %9509
      %v9511 = vsel %vm1243, %v9483, 0.0
      %9512 = vadd.xlane.f32.xlu0 %v9511
      %v9513 = vpop.xlane.xlu0 %9512
      %v9514 = vsel %vm1243, %v9484, 0.0
      %9515 = vadd.xlane.f32.xlu0 %v9514
      %v9516 = vpop.xlane.xlu0 %9515
      %v9517 = vsel %vm1243, %v9485, 0.0
      %9518 = vadd.xlane.f32.xlu0 %v9517
      %v9519 = vpop.xlane.xlu0 %9518
      %v9520 = vsel %vm1243, %v9486, 0.0
      %9521 = vadd.xlane.f32.xlu0 %v9520
      %v9522 = vpop.xlane.xlu0 %9521
      %v9523 = vsel %vm1243, %v9487, 0.0
      %9524 = vadd.xlane.f32.xlu0 %v9523
      %v9525 = vpop.xlane.xlu0 %9524
      %v9526 = vsel %vm1243, %v9488, 0.0
      %9527 = vadd.xlane.f32.xlu0 %v9526
      %v9528 = vpop.xlane.xlu0 %9527
      %v9529 = vsel %vm1243, %v9489, 0.0
      %9530 = vadd.xlane.f32.xlu0 %v9529
      %v9531 = vpop.xlane.xlu0 %9530
      %v9532 = vsel %vm1243, %v9490, 0.0
      %9533 = vadd.xlane.f32.xlu0 %v9532
      %v9534 = vpop.xlane.xlu0 %9533
      %v9535 = vsel %vm1243, %v9491, 0.0
      %9536 = vadd.xlane.f32.xlu0 %v9535
      %v9537 = vpop.xlane.xlu0 %9536
      %v9538 = vsel %vm1243, %v9492, 0.0
      %9539 = vadd.xlane.f32.xlu0 %v9538
      %v9540 = vpop.xlane.xlu0 %9539
      %v9541 = vmul.f32 %v9495, %v5904
      %v9542 = vmul.f32 %v9498, %v5904
      %v9543 = vmul.f32 %v9501, %v5904
      %v9544 = vmul.f32 %v9504, %v5904
      %v9545 = vmul.f32 %v9507, %v5904
      %v9546 = vmul.f32 %v9510, %v5904
      %v9547 = vmul.f32 %v9513, %v5904
      %v9548 = vmul.f32 %v9516, %v5904
      %v9549 = vmul.f32 %v9519, %v5904
      %v9550 = vmul.f32 %v9522, %v5904
      %v9551 = vmul.f32 %v9525, %v5904
      %v9552 = vmul.f32 %v9528, %v5904
      %v9553 = vmul.f32 %v9531, %v5904
      %v9554 = vmul.f32 %v9534, %v5904
      %v9555 = vmul.f32 %v9537, %v5904
      %v9556 = vmul.f32 %v9540, %v5904
      %v9557 = vadd.f32 %v9541, 1e-05
      %v9558 = vadd.f32 %v9542, 1e-05
      %v9559 = vadd.f32 %v9543, 1e-05
      %v9560 = vadd.f32 %v9544, 1e-05
      %v9561 = vadd.f32 %v9545, 1e-05
      %v9562 = vadd.f32 %v9546, 1e-05
      %v9563 = vadd.f32 %v9547, 1e-05
      %v9564 = vadd.f32 %v9548, 1e-05
      %v9565 = vadd.f32 %v9549, 1e-05
      %v9566 = vadd.f32 %v9550, 1e-05
      %v9567 = vadd.f32 %v9551, 1e-05
      %v9568 = vadd.f32 %v9552, 1e-05
      %v9569 = vadd.f32 %v9553, 1e-05
      %v9570 = vadd.f32 %v9554, 1e-05
      %v9571 = vadd.f32 %v9555, 1e-05
      %v9572 = vadd.f32 %v9556, 1e-05
      %v9573 = vrsqrt.pop %v9557
      %v9574 = vrsqrt.pop %v9558
      %v9575 = vrsqrt.pop %v9559
      %v9576 = vrsqrt.pop %v9560
      %v9577 = vrsqrt.pop %v9561
      %v9578 = vrsqrt.pop %v9562
      %v9579 = vrsqrt.pop %v9563
      %v9580 = vrsqrt.pop %v9564
      %v9581 = vrsqrt.pop %v9565
      %v9582 = vrsqrt.pop %v9566
      %v9583 = vrsqrt.pop %v9567
      %v9584 = vrsqrt.pop %v9568
      %v9585 = vrsqrt.pop %v9569
      %v9586 = vrsqrt.pop %v9570
      %v9587 = vrsqrt.pop %v9571
      %v9588 = vrsqrt.pop %v9572
      %v9589 = vmul.f32 %v9461, %v9573
      %v9590 = vmul.f32 %v9462, %v9574
      %v9591 = vmul.f32 %v9463, %v9575
      %v9592 = vmul.f32 %v9464, %v9576
      %v9593 = vmul.f32 %v9465, %v9577
      %v9594 = vmul.f32 %v9466, %v9578
      %v9595 = vmul.f32 %v9467, %v9579
      %v9596 = vmul.f32 %v9468, %v9580
      %v9597 = vmul.f32 %v9469, %v9581
      %v9598 = vmul.f32 %v9470, %v9582
      %v9599 = vmul.f32 %v9471, %v9583
      %v9600 = vmul.f32 %v9472, %v9584
      %v9601 = vmul.f32 %v9473, %v9585
      %v9602 = vmul.f32 %v9474, %v9586
      %v9603 = vmul.f32 %v9475, %v9587
      %v9604 = vmul.f32 %v9476, %v9588
      %v9606 = vlaneseq
      %v9607 = vshrl.u32 %v9606, 7
      %v9608 = vsub.s32 0, %v9607
      %v9609 = vrot.slane %v1181, %v9608
      %v9611 = vmul.f32 %v9589, %v9609
      %v9612 = vmul.f32 %v9590, %v9609
      %v9613 = vmul.f32 %v9591, %v9609
      %v9614 = vmul.f32 %v9592, %v9609
      %v9615 = vmul.f32 %v9593, %v9609
      %v9616 = vmul.f32 %v9594, %v9609
      %v9617 = vmul.f32 %v9595, %v9609
      %v9618 = vmul.f32 %v9596, %v9609
      %v9619 = vmul.f32 %v9597, %v9609
      %v9620 = vmul.f32 %v9598, %v9609
      %v9621 = vmul.f32 %v9599, %v9609
      %v9622 = vmul.f32 %v9600, %v9609
      %v9623 = vmul.f32 %v9601, %v9609
      %v9624 = vmul.f32 %v9602, %v9609
      %v9625 = vmul.f32 %v9603, %v9609
      %v9626 = vmul.f32 %v9604, %v9609
      %v9628 = vlaneseq
      %v9629 = vshrl.u32 %v9628, 7
      %v9630 = vsub.s32 0, %v9629
      %v9631 = vrot.slane %v1183, %v9630
      %v9633 = vadd.f32 %v9611, %v9631
      %v9634 = vadd.f32 %v9612, %v9631
      %v9635 = vadd.f32 %v9613, %v9631
      %v9636 = vadd.f32 %v9614, %v9631
      %v9637 = vadd.f32 %v9615, %v9631
      %v9638 = vadd.f32 %v9616, %v9631
      %v9639 = vadd.f32 %v9617, %v9631
      %v9640 = vadd.f32 %v9618, %v9631
      %v9641 = vadd.f32 %v9619, %v9631
      %v9642 = vadd.f32 %v9620, %v9631
      %v9643 = vadd.f32 %v9621, %v9631
      %v9644 = vadd.f32 %v9622, %v9631
      %v9645 = vadd.f32 %v9623, %v9631
      %v9646 = vadd.f32 %v9624, %v9631
      %v9647 = vadd.f32 %v9625, %v9631
      %v9648 = vadd.f32 %v9626, %v9631
      %9649 = vst.msk [vmem:[#allocation2] sm:$0xff] %vm1243, %v9633
      %9650 = vst.msk [vmem:[#allocation2 + $0x8] sm:$0xff] %vm1243, %v9634
      %9651 = vst.msk [vmem:[#allocation2 + $0x10] sm:$0xff] %vm1243, %v9635
      %9652 = vst.msk [vmem:[#allocation2 + $0x18] sm:$0xff] %vm1243, %v9636
      %9653 = vst.msk [vmem:[#allocation2 + $0x20] sm:$0xff] %vm1243, %v9637
      %9654 = vst.msk [vmem:[#allocation2 + $0x28] sm:$0xff] %vm1243, %v9638
      %9655 = vst.msk [vmem:[#allocation2 + $0x30] sm:$0xff] %vm1243, %v9639
      %9656 = vst.msk [vmem:[#allocation2 + $0x38] sm:$0xff] %vm1243, %v9640
      %9657 = vst.msk [vmem:[#allocation2 + $0x40] sm:$0xff] %vm1243, %v9641
      %9658 = vst.msk [vmem:[#allocation2 + $0x48] sm:$0xff] %vm1243, %v9642
      %9659 = vst.msk [vmem:[#allocation2 + $0x50] sm:$0xff] %vm1243, %v9643
      %9660 = vst.msk [vmem:[#allocation2 + $0x58] sm:$0xff] %vm1243, %v9644
      %9661 = vst.msk [vmem:[#allocation2 + $0x60] sm:$0xff] %vm1243, %v9645
      %9662 = vst.msk [vmem:[#allocation2 + $0x68] sm:$0xff] %vm1243, %v9646
      %9663 = vst.msk [vmem:[#allocation2 + $0x70] sm:$0xff] %vm1243, %v9647
      %9664 = vst.msk [vmem:[#allocation2 + $0x78] sm:$0xff] %vm1243, %v9648
      %p9665 = scmp.eq.s32.totalorder %s33, 3
      // Predicated region
      $region93: #{vit_forward.1} parent=87 // pred_check
        %p9666 = pneg %p9665
      $region94: #{vit_forward.1} parent=87 // pred_check_branch
        %9668 = sbr.rel (%p9666) target = $region96
      $region95: #{vit_forward.1} parent=87 // pred_region
        %v9669 = vsel %vm1243, %v9633, 0.0
        %v9670 = vsel %vm1243, %v9634, 0.0
        %v9671 = vadd.f32 %v9669, %v9670
        %v9672 = vrot.slane %v9671, 4
        %v9673 = vadd.f32 %v9671, %v9672
        %v9674 = vrot.slane %v9673, 2
        %v9675 = vadd.f32 %v9673, %v9674
        %v9676 = vrot.slane %v9675, 1
        %v9677 = vadd.f32 %v9675, %v9676
        %v9678 = vsel %vm1243, %v9635, 0.0
        %v9679 = vsel %vm1243, %v9636, 0.0
        %v9680 = vadd.f32 %v9678, %v9679
        %v9681 = vrot.slane %v9680, 4
        %v9682 = vadd.f32 %v9680, %v9681
        %v9683 = vrot.slane %v9682, 2
        %v9684 = vadd.f32 %v9682, %v9683
        %v9685 = vrot.slane %v9684, 1
        %v9686 = vadd.f32 %v9684, %v9685
        %v9687 = vsel %vm1243, %v9637, 0.0
        %v9688 = vsel %vm1243, %v9638, 0.0
        %v9689 = vadd.f32 %v9687, %v9688
        %v9690 = vrot.slane %v9689, 4
        %v9691 = vadd.f32 %v9689, %v9690
        %v9692 = vrot.slane %v9691, 2
        %v9693 = vadd.f32 %v9691, %v9692
        %v9694 = vrot.slane %v9693, 1
        %v9695 = vadd.f32 %v9693, %v9694
        %v9696 = vsel %vm1243, %v9639, 0.0
        %v9697 = vsel %vm1243, %v9640, 0.0
        %v9698 = vadd.f32 %v9696, %v9697
        %v9699 = vrot.slane %v9698, 4
        %v9700 = vadd.f32 %v9698, %v9699
        %v9701 = vrot.slane %v9700, 2
        %v9702 = vadd.f32 %v9700, %v9701
        %v9703 = vrot.slane %v9702, 1
        %v9704 = vadd.f32 %v9702, %v9703
        %v9705 = vsel %vm1243, %v9641, 0.0
        %v9706 = vsel %vm1243, %v9642, 0.0
        %v9707 = vadd.f32 %v9705, %v9706
        %v9708 = vrot.slane %v9707, 4
        %v9709 = vadd.f32 %v9707, %v9708
        %v9710 = vrot.slane %v9709, 2
        %v9711 = vadd.f32 %v9709, %v9710
        %v9712 = vrot.slane %v9711, 1
        %v9713 = vadd.f32 %v9711, %v9712
        %v9714 = vsel %vm1243, %v9643, 0.0
        %v9715 = vsel %vm1243, %v9644, 0.0
        %v9716 = vadd.f32 %v9714, %v9715
        %v9717 = vrot.slane %v9716, 4
        %v9718 = vadd.f32 %v9716, %v9717
        %v9719 = vrot.slane %v9718, 2
        %v9720 = vadd.f32 %v9718, %v9719
        %v9721 = vrot.slane %v9720, 1
        %v9722 = vadd.f32 %v9720, %v9721
        %v9723 = vsel %vm1243, %v9645, 0.0
        %v9724 = vsel %vm1243, %v9646, 0.0
        %v9725 = vadd.f32 %v9723, %v9724
        %v9726 = vrot.slane %v9725, 4
        %v9727 = vadd.f32 %v9725, %v9726
        %v9728 = vrot.slane %v9727, 2
        %v9729 = vadd.f32 %v9727, %v9728
        %v9730 = vrot.slane %v9729, 1
        %v9731 = vadd.f32 %v9729, %v9730
        %v9732 = vsel %vm1243, %v9647, 0.0
        %v9733 = vsel %vm1243, %v9648, 0.0
        %v9734 = vadd.f32 %v9732, %v9733
        %v9735 = vrot.slane %v9734, 4
        %v9736 = vadd.f32 %v9734, %v9735
        %v9737 = vrot.slane %v9736, 2
        %v9738 = vadd.f32 %v9736, %v9737
        %v9739 = vrot.slane %v9738, 1
        %v9740 = vadd.f32 %v9738, %v9739
        %v9741 = vrcp.pop 16.0
        %v9742 = vmul.f32 %v9677, %v9741
        %v9743 = vmul.f32 %v9686, %v9741
        %v9744 = vmul.f32 %v9695, %v9741
        %v9745 = vmul.f32 %v9704, %v9741
        %v9746 = vmul.f32 %v9713, %v9741
        %v9747 = vmul.f32 %v9722, %v9741
        %v9748 = vmul.f32 %v9731, %v9741
        %v9749 = vmul.f32 %v9740, %v9741
        %v9750 = vpack.c.bf16 %v9742, %v9742
        %v9751 = vpack.c.bf16 %v9743, %v9743
        %v9752 = vpack.c.bf16 %v9744, %v9744
        %v9753 = vpack.c.bf16 %v9745, %v9745
        %v9754 = vpack.c.bf16 %v9746, %v9746
        %v9755 = vpack.c.bf16 %v9747, %v9747
        %v9756 = vpack.c.bf16 %v9748, %v9748
        %v9757 = vpack.c.bf16 %v9749, %v9749
        %v9758 = vld [vmem:[%s15] sm:$0xf]
        %v9759 = vld [vmem:[%s15 + $0x4] sm:$0xf]
        %v9760 = vld [vmem:[%s15 + $0x8] sm:$0xf]
        %v9761 = vld [vmem:[%s15 + $0xc] sm:$0xf]
        %v9762 = vld [vmem:[%s15 + $0x10] sm:$0xf]
        %v9763 = vld [vmem:[%s15 + $0x14] sm:$0xf]
        %v9764 = vld [vmem:[%s15 + $0x18] sm:$0xf]
        %v9765 = vld [vmem:[%s15 + $0x1c] sm:$0xf]
        %v9766 = vld [vmem:[%s16] sm:$0x1]
        %v9768 = vlaneseq
        %v9769 = vshrl.u32 %v9768, 7
        %v9770 = vsub.s32 0, %v9769
        %v9771 = vrot.slane %v9766, %v9770
        %v9781 = vunpack.c.l.b16 %v9750
        %v9782 = vunpack.c.l.b16 %v9751
        %v9783 = vunpack.c.l.b16 %v9752
        %v9784 = vunpack.c.l.b16 %v9753
        %v9785 = vunpack.c.l.b16 %v9754
        %v9786 = vunpack.c.l.b16 %v9755
        %v9787 = vunpack.c.l.b16 %v9756
        %v9788 = vunpack.c.l.b16 %v9757
        %vm9789 = vcmask 1041409
        %v9790 = vsel %vm9789, %v9782, %v9781
        %vm9791 = vcmask 1042434
        %v9792 = vsel %vm9791, %v9783, %v9790
        %vm9793 = vcmask 1043459
        %v9794 = vsel %vm9793, %v9784, %v9792
        %vm9795 = vcmask 1044484
        %v9796 = vsel %vm9795, %v9785, %v9794
        %vm9797 = vcmask 1045509
        %v9798 = vsel %vm9797, %v9786, %v9796
        %vm9799 = vcmask 1046534
        %v9800 = vsel %vm9799, %v9787, %v9798
        %vm9801 = vcmask 1047559
        %v9802 = vsel %vm9801, %v9788, %v9800
        %v9803 = vpack.c.b16 %v9802, %v9802
        %v9812 = vunpack.c.l.b16 %v9758
        %v9813 = vunpack.c.l.b16 %v9759
        %v9814 = vunpack.c.l.b16 %v9760
        %v9815 = vunpack.c.l.b16 %v9761
        %v9816 = vunpack.c.l.b16 %v9762
        %v9817 = vunpack.c.l.b16 %v9763
        %v9818 = vunpack.c.l.b16 %v9764
        %v9819 = vunpack.c.l.b16 %v9765
        %v9820 = vpack.c.b16 %v9813, %v9812
        %v9821 = vpack.c.b16 %v9815, %v9814
        %v9822 = vpack.c.b16 %v9817, %v9816
        %v9823 = vpack.c.b16 %v9819, %v9818
        %v9829 = vsel %vm1243, %v9803, 0
        %9831 = vmatprep.subr.bf16.mxu0 0
        %9832 = vmatpush1.bf16.msra.mxu0 %v9820
        %9833 = vmatprep.subr.bf16.mxu0 0
        %9834 = vmatpush1.bf16.msra.mxu0 %v9821
        %9835 = vmatprep.subr.bf16.mxu0 0
        %9836 = vmatpush1.bf16.msra.mxu0 %v9822
        %9837 = vmatprep.subr.bf16.mxu0 0
        %9838 = vmatpush1.bf16.msra.mxu0 %v9823
        %9839 = vmatprep.subr.bf16.mxu0 0
        %9840 = vmatpush1.bf16.msra.mxu0 0
        %9841 = vmatprep.subr.bf16.mxu0 0
        %9842 = vmatpush1.bf16.msra.mxu0 0
        %9843 = vmatprep.subr.bf16.mxu0 0
        %9844 = vmatpush1.bf16.msra.mxu0 0
        %9845 = vmatprep.subr.bf16.mxu0 0
        %9846 = vmatpush1.bf16.msra.mxu0 0
        %9847 = vmatprep.subr.bf16.mxu0 0
        %9848 = vmatpush1.bf16.msra.mxu0 0
        %9849 = vmatprep.subr.bf16.mxu0 0
        %9850 = vmatpush1.bf16.msra.mxu0 0
        %9851 = vmatprep.subr.bf16.mxu0 0
        %9852 = vmatpush1.bf16.msra.mxu0 0
        %9853 = vmatprep.subr.bf16.mxu0 0
        %9854 = vmatpush1.bf16.msra.mxu0 0
        %9855 = vmatprep.subr.bf16.mxu0 0
        %9856 = vmatpush1.bf16.msra.mxu0 0
        %9857 = vmatprep.subr.bf16.mxu0 0
        %9858 = vmatpush1.bf16.msra.mxu0 0
        %9859 = vmatprep.subr.bf16.mxu0 0
        %9860 = vmatpush1.bf16.msra.mxu0 0
        %9861 = vmatprep.subr.bf16.mxu0 0
        %9862 = vmatpush1.bf16.msra.mxu0 0
        %9863 = vmatprep.mubr.bf16.mxu0 0
        %9864 = vmatmul.mubr.bf16.gmra.mrb[0].mxu0 %v9829
        %v9865 = vpop.f32.mrb[0].mxu0
        %v9866 = vadd.f32 %v9771, %v9865
        %v9867 = vpop.f32.mrb[0].mxu0
        %v9868 = vpop.f32.mrb[0].mxu0
        %v9869 = vpop.f32.mrb[0].mxu0
        %9870 = vdwg.mxu0
        %9871 = vst [vmem:[%s563] sm:$0xff] %v9866
      $region96: #{vit_forward.1} parent=87 // pred_fallthru
        _
      %p9872 = scmp.lt.s32.totalorder %s32, 0
      %s9873 = scalar_select %p9872, %s32, 0
      %s9874 = smul.addr %s9873, 8
      %s9875 = scalar_lea.vmem %s17, %s9874
      // Predicated region
      $region97: #{vit_forward.1} parent=87 // pred_check
        %p9876 = pneg %p420
      $region98: #{vit_forward.1} parent=87 // pred_check_branch
        %9878 = sbr.rel (%p9876) target = $region100
      $region99: #{vit_forward.1} parent=87 // pred_region
        _
      $region100: #{vit_forward.1} parent=87 // pred_fallthru
        _
      // Predicated region
      $region101: #{vit_forward.1} parent=87 // pred_check
        %p9879 = pneg %p420
      $region102: #{vit_forward.1} parent=87 // pred_check_branch
        %9881 = sbr.rel (%p9879) target = $region104
      $region103: #{vit_forward.1} parent=87 // pred_region
        %p9882 = scmp.lt.s32.totalorder %s32, 0
        %s9883 = scalar_select %p9882, %s32, 0
        %s9884 = smul.addr %s9883, 8
        %s9885 = scalar_lea.vmem %s17, %s9884
      $region104: #{vit_forward.1} parent=87 // pred_fallthru
        _
    $region88: #{vit_forward.1} parent=5 // pred_fallthru
      _
    %p9886 = scmp.le.s32.totalorder 2, %s23
    // Predicated region
    $region105: #{vit_forward.1} parent=5 // pred_check
      %p9887 = pneg %p9886
    $region106: #{vit_forward.1} parent=5 // pred_check_branch
      %9889 = sbr.rel (%p9887) target = $region108
    $region107: #{vit_forward.1} parent=5 // pred_region
      %s9890 = ssub.s32 %s23, 2
    $region108: #{vit_forward.1} parent=5 // pred_fallthru
      _
  $region6: #{vit_forward.1} parent=0 // loop_footer
    %s27 = sadd.s32 1, %s23
  $region7: #{vit_forward.1} parent=0 // loop_footer_branch
    %22 = sbr.rel target = $region3
  $region8: #{vit_forward.1} parent=0 // loop_exit
    _

</llo_original>
